<compile_context>
chip_gen: v7x
topology: tpu7x:2x2x1
jax: 0.10.0
libtpu: 0.0.40
codegen_flags: <defaults>
</compile_context>

<pallas_src>
import functools

import jax
import jax.numpy as jnp
from jax.experimental import pallas as pl
from jax.experimental.pallas import tpu as pltpu


K_IN = 28 * 28        # 784
K_PAD = 896           # 7 * 128 (lane-aligned feature dim)


def _discriminator_kernel(
    x_ref,            # (bt, 896)   bf16, zero-padded features
    w1_ref, b1_ref,   # (896, 1024) bf16, (1, 1024) f32
    w2_ref, b2_ref,   # (1024, 512) bf16, (1, 512)  f32
    w3_ref, b3_ref,   # (512, 256)  bf16, (1, 256)  f32
    w4_ref, b4_ref,   # (1, 256)    f32,  (1, 1)    f32
    o_ref,            # (bt, 128)   bf16 — lane-dense output block
):
    slope = jnp.float32(0.2)

    # fc1 + LeakyReLU(0.2)   (bf16 x bf16 -> f32 accumulate on the MXU)
    h = jnp.dot(x_ref[...], w1_ref[...],
                preferred_element_type=jnp.float32) + b1_ref[...]
    h = jnp.where(h > 0, h, slope * h)

    # fc2 + LeakyReLU(0.2)
    h = jnp.dot(h.astype(jnp.bfloat16), w2_ref[...],
                preferred_element_type=jnp.float32) + b2_ref[...]
    h = jnp.where(h > 0, h, slope * h)

    # fc3 + LeakyReLU(0.2)
    h = jnp.dot(h.astype(jnp.bfloat16), w3_ref[...],
                preferred_element_type=jnp.float32) + b3_ref[...]
    h = jnp.where(h > 0, h, slope * h)

    # fc4 (256 -> 1) as a VPU multiply + lane reduction (no degenerate N=1 MXU op)
    logits = jnp.sum(h * w4_ref[...], axis=-1, keepdims=True) + b4_ref[...]  # (bt, 1)

    # Sigmoid: exp on the EUP, divide via approx reciprocal (also EUP slot).
    prob = pl.reciprocal(1.0 + jnp.exp(-logits), approx=True)               # (bt, 1) f32

    # Lane-dense, unmasked bf16 store; wrapper slices column 0.
    o_ref[...] = jnp.broadcast_to(prob.astype(o_ref.dtype), o_ref.shape)


def _max_tile_for_device():
    """512 rows/tile on v6e/v7x; keep 256 on v5e (128-wide MXU saturates early)."""
    try:
        kind = jax.devices()[0].device_kind.lower()
    except Exception:
        return 512
    if "v5 lite" in kind or "v5e" in kind or "v5lite" in kind:
        return 256
    return 512


def _auto_batch_tile(batch, max_tile):
    """Biggest MXU-friendly tile that still leaves >=2 grid steps (v7x 2 TCs)."""
    half = -(-batch // 2)                   # ceil(B / 2)
    bt = min(max_tile, max(128, half))
    return ((bt + 7) // 8) * 8              # sublane (8) multiple


@functools.partial(jax.jit, static_argnames=("batch_tile",))
def discriminator_forward(x, params, batch_tile=None):
    """x: (B, 1, 28, 28) f32, or pre-flattened (B, 784) / (B, 896).  -> (B, 1) f32."""
    w1, b1, w2, b2, w3, b3, w4, b4 = params

    if x.ndim > 2:                          # x.view(B, -1)
        x = x.reshape(x.shape[0], -1)
    B, F = x.shape

    bt = batch_tile if batch_tile is not None else _auto_batch_tile(B, _max_tile_for_device())
    assert bt % 8 == 0, "batch_tile must be a multiple of 8"
    B_pad = pl.cdiv(B, bt) * bt
    grid = (B_pad // bt,)

    # Pad only what is missing (skips the batch pad when B % bt == 0, and the
    # whole pad/cast when the producer already supplies (B, 896) bf16).
    if F == K_IN:
        x = jnp.pad(x, ((0, B_pad - B), (0, K_PAD - K_IN)))
    elif F == K_PAD:
        if B_pad != B:
            x = jnp.pad(x, ((0, B_pad - B), (0, 0)))
    else:
        raise ValueError(f"expected {K_IN} or {K_PAD} features, got {F}")
    if x.dtype != jnp.bfloat16:
        x = x.astype(jnp.bfloat16)

    # Weights: bf16 for the MXU layers; w1's K dim padded to match x.
    w1p = jnp.pad(w1, ((0, K_PAD - K_IN), (0, 0))).astype(jnp.bfloat16)
    w2b = w2.astype(jnp.bfloat16)
    w3b = w3.astype(jnp.bfloat16)
    w4r = w4.reshape(1, -1).astype(jnp.float32)        # (1, 256) row for the VPU reduce

    const = lambda i: (0, 0)   # weights/biases: same block every step -> VMEM-resident
    resident = lambda a: pl.BlockSpec(a.shape, const, pipeline_mode=pl.Buffered(1))

    out = pl.pallas_call(
        _discriminator_kernel,
        out_shape=jax.ShapeDtypeStruct((B_pad, 128), jnp.bfloat16),
        grid_spec=pltpu.PrefetchScalarGridSpec(
            num_scalar_prefetch=0,
            grid=grid,
            in_specs=[
                pl.BlockSpec((bt, K_PAD), lambda i: (i, 0)),
                resident(w1p), resident(b1),
                resident(w2b), resident(b2),
                resident(w3b), resident(b3),
                resident(w4r), resident(b4),
            ],
            out_specs=pl.BlockSpec((bt, 128), lambda i: (i, 0)),
        ),
        compiler_params=pltpu.CompilerParams(
            dimension_semantics=("parallel",),   # shards grid steps across v7x's 2 TCs
            vmem_limit_bytes=48 << 20,           # safe on v7x's 64 MiB physical VMEM
        ),
    )(x, w1p, b1, w2b, b2, w3b, b3, w4r, b4)

    # Drop the lane broadcast and any batch padding; return f32 probabilities.
    return out[:B, :1].astype(jnp.float32)


def init_params(key):
    """PyTorch nn.Linear init: U(-1/sqrt(fan_in), 1/sqrt(fan_in)).

    Weights stored (in_features, out_features) so the kernel computes
    y = x @ W + b  (== x @ W_pt.T + b).  Biases are (1, out)."""
    dims = [(K_IN, 1024), (1024, 512), (512, 256), (256, 1)]
    params = []
    for (fan_in, fan_out) in dims:
        key, kw, kb = jax.random.split(key, 3)
        bound = 1.0 / jnp.sqrt(jnp.float32(fan_in))
        w = jax.random.uniform(kw, (fan_in, fan_out), jnp.float32, -bound, bound)
        b = jax.random.uniform(kb, (1, fan_out), jnp.float32, -bound, bound)
        params += [w, b]
    return tuple(params)


def _reference_forward(x_nchw, params):
    """Pure-JAX f32 reference for the correctness check."""
    w1, b1, w2, b2, w3, b3, w4, b4 = params
    x = x_nchw.reshape(x_nchw.shape[0], -1)
    lrelu = lambda h: jnp.where(h > 0, h, 0.2 * h)
    h = lrelu(x @ w1 + b1)
    h = lrelu(h @ w2 + b2)
    h = lrelu(h @ w3 + b3)
    return jax.nn.sigmoid(h @ w4 + b4)


if __name__ == "__main__":
    key = jax.random.PRNGKey(0)
    kx, kp, kx2 = jax.random.split(key, 3)

    params = init_params(kp)

    # Small demo batch (padded up to one 128-row tile).
    x = jax.random.normal(kx, (4, 1, 28, 28), jnp.float32)   # NCHW, MNIST-like
    out = jax.block_until_ready(discriminator_forward(x, params))
    ref = _reference_forward(x, params)
    assert out.shape == (4, 1)
    # bf16 weights/activations + bf16 output store vs f32 reference -> loose tol.
    assert jnp.allclose(out, ref, atol=2e-2, rtol=0.0), (out, ref)

    # Non-divisible batch: exercises batch padding + a 2-step "parallel" grid
    # (both v7x TensorCores active).
    x2 = jax.random.normal(kx2, (200, 1, 28, 28), jnp.float32)
    out2 = jax.block_until_ready(discriminator_forward(x2, params))
    ref2 = _reference_forward(x2, params)
    assert out2.shape == (200, 1)
    assert jnp.allclose(out2, ref2, atol=2e-2, rtol=0.0)

    print("KERNEL_OK")
</pallas_src>

<mosaic_0001>
module attributes {stable_mosaic.version = 11 : i64} {
  func.func @_discriminator_kernel(%arg0: i32, %arg1: memref<128x896xbf16, #tpu.memory_space<vmem>>, %arg2: memref<896x1024xbf16, #tpu.memory_space<vmem>>, %arg3: memref<1x1024xf32, #tpu.memory_space<vmem>>, %arg4: memref<1024x512xbf16, #tpu.memory_space<vmem>>, %arg5: memref<1x512xf32, #tpu.memory_space<vmem>>, %arg6: memref<512x256xbf16, #tpu.memory_space<vmem>>, %arg7: memref<1x256xf32, #tpu.memory_space<vmem>>, %arg8: memref<1x256xf32, #tpu.memory_space<vmem>>, %arg9: memref<1x1xf32, #tpu.memory_space<vmem>>, %arg10: memref<128x128xbf16, #tpu.memory_space<vmem>>) attributes {dimension_semantics = [#tpu.dimension_semantics<parallel>], iteration_bounds = array<i64: 1>, scalar_prefetch = 0 : i64, scratch_operands = 0 : i64, tpu.core_type = #tpu.core_type<tc>, window_params = [{transform_indices = @transform_0, window_bounds = array<i64: 128, 896>}, {pipeline_mode = #tpu.pipeline_mode<synchronous>, transform_indices = @transform_1, window_bounds = array<i64: 896, 1024>}, {pipeline_mode = #tpu.pipeline_mode<synchronous>, transform_indices = @transform_2, window_bounds = array<i64: 1, 1024>}, {pipeline_mode = #tpu.pipeline_mode<synchronous>, transform_indices = @transform_3, window_bounds = array<i64: 1024, 512>}, {pipeline_mode = #tpu.pipeline_mode<synchronous>, transform_indices = @transform_4, window_bounds = array<i64: 1, 512>}, {pipeline_mode = #tpu.pipeline_mode<synchronous>, transform_indices = @transform_5, window_bounds = array<i64: 512, 256>}, {pipeline_mode = #tpu.pipeline_mode<synchronous>, transform_indices = @transform_6, window_bounds = array<i64: 1, 256>}, {pipeline_mode = #tpu.pipeline_mode<synchronous>, transform_indices = @transform_7, window_bounds = array<i64: 1, 256>}, {pipeline_mode = #tpu.pipeline_mode<synchronous>, transform_indices = @transform_8, window_bounds = array<i64: 1, 1>}, {transform_indices = @transform_9, window_bounds = array<i64: 128, 128>}]} {
    %c0 = arith.constant 0 : index
    %c0_0 = arith.constant 0 : index
    %0 = vector.load %arg1[%c0, %c0_0] : memref<128x896xbf16, #tpu.memory_space<vmem>>, vector<128x896xbf16>
    %c0_1 = arith.constant 0 : index
    %c0_2 = arith.constant 0 : index
    %1 = vector.load %arg2[%c0_1, %c0_2] : memref<896x1024xbf16, #tpu.memory_space<vmem>>, vector<896x1024xbf16>
    %cst = arith.constant dense<0.000000e+00> : vector<128x1024xf32>
    %2 = tpu.matmul %0, %1, %cst {dimension_numbers = #tpu.dot_dimension_numbers<[1], [0], [0], [1], [0, 0, 1, 1], [], []>} : vector<128x896xbf16>, vector<896x1024xbf16>, vector<128x1024xf32> -> vector<128x1024xf32>
    %c0_3 = arith.constant 0 : index
    %c0_4 = arith.constant 0 : index
    %3 = vector.load %arg3[%c0_3, %c0_4] : memref<1x1024xf32, #tpu.memory_space<vmem>>, vector<1x1024xf32>
    %4 = vector.broadcast %3 : vector<1x1024xf32> to vector<128x1024xf32>
    %5 = arith.addf %2, %4 : vector<128x1024xf32>
    %cst_5 = arith.constant 0.000000e+00 : f32
    %6 = vector.broadcast %cst_5 : f32 to vector<128x1024xf32>
    %7 = arith.cmpf ogt, %5, %6 : vector<128x1024xf32>
    %cst_6 = arith.constant 2.000000e-01 : f32
    %8 = vector.broadcast %cst_6 : f32 to vector<128x1024xf32>
    %9 = arith.mulf %8, %5 : vector<128x1024xf32>
    %10 = arith.select %7, %5, %9 : vector<128x1024xi1>, vector<128x1024xf32>
    %11 = arith.truncf %10 : vector<128x1024xf32> to vector<128x1024xbf16>
    %c0_7 = arith.constant 0 : index
    %c0_8 = arith.constant 0 : index
    %12 = vector.load %arg4[%c0_7, %c0_8] : memref<1024x512xbf16, #tpu.memory_space<vmem>>, vector<1024x512xbf16>
    %cst_9 = arith.constant dense<0.000000e+00> : vector<128x512xf32>
    %13 = tpu.matmul %11, %12, %cst_9 {dimension_numbers = #tpu.dot_dimension_numbers<[1], [0], [0], [1], [0, 0, 1, 1], [], []>} : vector<128x1024xbf16>, vector<1024x512xbf16>, vector<128x512xf32> -> vector<128x512xf32>
    %c0_10 = arith.constant 0 : index
    %c0_11 = arith.constant 0 : index
    %14 = vector.load %arg5[%c0_10, %c0_11] : memref<1x512xf32, #tpu.memory_space<vmem>>, vector<1x512xf32>
    %15 = vector.broadcast %14 : vector<1x512xf32> to vector<128x512xf32>
    %16 = arith.addf %13, %15 : vector<128x512xf32>
    %cst_12 = arith.constant 0.000000e+00 : f32
    %17 = vector.broadcast %cst_12 : f32 to vector<128x512xf32>
    %18 = arith.cmpf ogt, %16, %17 : vector<128x512xf32>
    %cst_13 = arith.constant 2.000000e-01 : f32
    %19 = vector.broadcast %cst_13 : f32 to vector<128x512xf32>
    %20 = arith.mulf %19, %16 : vector<128x512xf32>
    %21 = arith.select %18, %16, %20 : vector<128x512xi1>, vector<128x512xf32>
    %22 = arith.truncf %21 : vector<128x512xf32> to vector<128x512xbf16>
    %c0_14 = arith.constant 0 : index
    %c0_15 = arith.constant 0 : index
    %23 = vector.load %arg6[%c0_14, %c0_15] : memref<512x256xbf16, #tpu.memory_space<vmem>>, vector<512x256xbf16>
    %cst_16 = arith.constant dense<0.000000e+00> : vector<128x256xf32>
    %24 = tpu.matmul %22, %23, %cst_16 {dimension_numbers = #tpu.dot_dimension_numbers<[1], [0], [0], [1], [0, 0, 1, 1], [], []>} : vector<128x512xbf16>, vector<512x256xbf16>, vector<128x256xf32> -> vector<128x256xf32>
    %c0_17 = arith.constant 0 : index
    %c0_18 = arith.constant 0 : index
    %25 = vector.load %arg7[%c0_17, %c0_18] : memref<1x256xf32, #tpu.memory_space<vmem>>, vector<1x256xf32>
    %26 = vector.broadcast %25 : vector<1x256xf32> to vector<128x256xf32>
    %27 = arith.addf %24, %26 : vector<128x256xf32>
    %cst_19 = arith.constant 0.000000e+00 : f32
    %28 = vector.broadcast %cst_19 : f32 to vector<128x256xf32>
    %29 = arith.cmpf ogt, %27, %28 : vector<128x256xf32>
    %cst_20 = arith.constant 2.000000e-01 : f32
    %30 = vector.broadcast %cst_20 : f32 to vector<128x256xf32>
    %31 = arith.mulf %30, %27 : vector<128x256xf32>
    %32 = arith.select %29, %27, %31 : vector<128x256xi1>, vector<128x256xf32>
    %c0_21 = arith.constant 0 : index
    %c0_22 = arith.constant 0 : index
    %33 = vector.load %arg8[%c0_21, %c0_22] : memref<1x256xf32, #tpu.memory_space<vmem>>, vector<1x256xf32>
    %34 = vector.broadcast %33 : vector<1x256xf32> to vector<128x256xf32>
    %35 = arith.mulf %32, %34 : vector<128x256xf32>
    %cst_23 = arith.constant dense<0.000000e+00> : vector<128xf32>
    %36 = vector.multi_reduction <add>, %35, %cst_23 [1] : vector<128x256xf32> to vector<128xf32>
    %37 = vector.shape_cast %36 : vector<128xf32> to vector<128x1xf32>
    %c0_24 = arith.constant 0 : index
    %c0_25 = arith.constant 0 : index
    %38 = vector.load %arg9[%c0_24, %c0_25] : memref<1x1xf32, #tpu.memory_space<vmem>>, vector<1x1xf32>
    %39 = vector.broadcast %38 : vector<1x1xf32> to vector<128x1xf32>
    %40 = arith.addf %37, %39 : vector<128x1xf32>
    %cst_26 = arith.constant 0.000000e+00 : f32
    %41 = vector.broadcast %cst_26 : f32 to vector<128x1xf32>
    %42 = arith.subf %41, %40 : vector<128x1xf32>
    %43 = math.exp %42 : vector<128x1xf32>
    %cst_27 = arith.constant 1.000000e+00 : f32
    %44 = vector.broadcast %cst_27 : f32 to vector<128x1xf32>
    %45 = arith.addf %44, %43 : vector<128x1xf32>
    %46 = tpu.reciprocal %45 {approx = true} : vector<128x1xf32> -> vector<128x1xf32>
    %47 = arith.truncf %46 : vector<128x1xf32> to vector<128x1xbf16>
    %48 = vector.shape_cast %47 : vector<128x1xbf16> to vector<128x1xbf16>
    %49 = vector.broadcast %48 : vector<128x1xbf16> to vector<128x128xbf16>
    %c0_28 = arith.constant 0 : index
    %c0_29 = arith.constant 0 : index
    %50 = vector.load %arg10[%c0_28, %c0_29] : memref<128x128xbf16, #tpu.memory_space<vmem>>, vector<128x128xbf16>
    tpu.vector_store %arg10[%c0_28, %c0_29], %49 {strides = array<i32>} : memref<128x128xbf16, #tpu.memory_space<vmem>>, vector<128x128xbf16>,
    return
  }
  func.func @transform_0(%arg0: i32) -> (i32, i32) {
    %c0_i32 = arith.constant 0 : i32
    %c0_i32_0 = arith.constant 0 : i32
    return %arg0, %c0_i32 : i32, i32
  }
  func.func @transform_1(%arg0: i32) -> (i32, i32) {
    %c0_i32 = arith.constant 0 : i32
    %c0_i32_0 = arith.constant 0 : i32
    %c0_i32_1 = arith.constant 0 : i32
    return %c0_i32, %c0_i32_0 : i32, i32
  }
  func.func @transform_2(%arg0: i32) -> (i32, i32) {
    %c0_i32 = arith.constant 0 : i32
    %c0_i32_0 = arith.constant 0 : i32
    %c0_i32_1 = arith.constant 0 : i32
    return %c0_i32, %c0_i32_0 : i32, i32
  }
  func.func @transform_3(%arg0: i32) -> (i32, i32) {
    %c0_i32 = arith.constant 0 : i32
    %c0_i32_0 = arith.constant 0 : i32
    %c0_i32_1 = arith.constant 0 : i32
    return %c0_i32, %c0_i32_0 : i32, i32
  }
  func.func @transform_4(%arg0: i32) -> (i32, i32) {
    %c0_i32 = arith.constant 0 : i32
    %c0_i32_0 = arith.constant 0 : i32
    %c0_i32_1 = arith.constant 0 : i32
    return %c0_i32, %c0_i32_0 : i32, i32
  }
  func.func @transform_5(%arg0: i32) -> (i32, i32) {
    %c0_i32 = arith.constant 0 : i32
    %c0_i32_0 = arith.constant 0 : i32
    %c0_i32_1 = arith.constant 0 : i32
    return %c0_i32, %c0_i32_0 : i32, i32
  }
  func.func @transform_6(%arg0: i32) -> (i32, i32) {
    %c0_i32 = arith.constant 0 : i32
    %c0_i32_0 = arith.constant 0 : i32
    %c0_i32_1 = arith.constant 0 : i32
    return %c0_i32, %c0_i32_0 : i32, i32
  }
  func.func @transform_7(%arg0: i32) -> (i32, i32) {
    %c0_i32 = arith.constant 0 : i32
    %c0_i32_0 = arith.constant 0 : i32
    %c0_i32_1 = arith.constant 0 : i32
    return %c0_i32, %c0_i32_0 : i32, i32
  }
  func.func @transform_8(%arg0: i32) -> (i32, i32) {
    %c0_i32 = arith.constant 0 : i32
    %c0_i32_0 = arith.constant 0 : i32
    %c0_i32_1 = arith.constant 0 : i32
    return %c0_i32, %c0_i32_0 : i32, i32
  }
  func.func @transform_9(%arg0: i32) -> (i32, i32) {
    %c0_i32 = arith.constant 0 : i32
    %c0_i32_0 = arith.constant 0 : i32
    return %arg0, %c0_i32 : i32, i32
  }
}

</mosaic_0001>

<llo_original>
// kernel: discriminator_forward.1
$region0: #{discriminator_forward.1}
  #allocation0 [shape = 'u32[]', space=smem, size = 0x4, offset = 0x4, fixed_abs, tag = 'smem constant byte address 0x4 - core index']
  #allocation1 [shape = 'u32[144,128]{1,0:T(1,128)}', space=vmem, size = 0x12000, scoped, tag = 'internal scratch']
  #allocation2 [shape = 'f32[1,1]{1,0:T(1,128)S(1)}', space=vmem, size = 0x200, scoped, tag = 'scoped memory for discriminator_forward.1']
  %s0 = inlined_call_operand.vmem [shape: bf16[128,896], index: 0, kind: input, shape index: {}]
  %s1 = inlined_call_operand.vmem [shape: bf16[896,1024], index: 1, kind: input, shape index: {}]
  %s2 = inlined_call_operand.vmem [shape: f32[1,1024], index: 2, kind: input, shape index: {}]
  %s3 = inlined_call_operand.vmem [shape: bf16[1024,512], index: 3, kind: input, shape index: {}]
  %s4 = inlined_call_operand.vmem [shape: f32[1,512], index: 4, kind: input, shape index: {}]
  %s5 = inlined_call_operand.vmem [shape: bf16[512,256], index: 5, kind: input, shape index: {}]
  %s6 = inlined_call_operand.vmem [shape: f32[1,256], index: 6, kind: input, shape index: {}]
  %s7 = inlined_call_operand.vmem [shape: f32[1,256], index: 7, kind: input, shape index: {}]
  %s8 = inlined_call_operand.<no memory space> [shape: f32[1,1], index: 8, kind: input, shape index: {}]
  %s9 = inlined_call_operand.vmem [shape: bf16[128,128], index: 9, kind: output, shape index: {}]
  %s10 = sld [smem:[#allocation0]]
  $region46: #{discriminator_forward.1} parent=0
    _
  %s12 = ssub.s32 1, %s10
  %s13 = scalar_select 0, %s12, %s10
  %v14 = vstv %s8
  %15 = vst [vmem:[#allocation2] sm:$0x1] %v14
  // Predicated region
  $region2: #{discriminator_forward.1} parent=0 // pred_check
    _
  $region3: #{discriminator_forward.1} parent=0 // pred_check_branch
    %17 = sbr.rel (0) target = $region5
  $region4: #{discriminator_forward.1} parent=0 // pred_region
    _
  $region5: #{discriminator_forward.1} parent=0 // pred_fallthru
    _
  // Predicated region
  $region6: #{discriminator_forward.1} parent=0 // pred_check
    _
  $region7: #{discriminator_forward.1} parent=0 // pred_check_branch
    %19 = sbr.rel (0) target = $region9
  $region8: #{discriminator_forward.1} parent=0 // pred_region
    _
  $region9: #{discriminator_forward.1} parent=0 // pred_fallthru
    _
  // Predicated region
  $region10: #{discriminator_forward.1} parent=0 // pred_check
    _
  $region11: #{discriminator_forward.1} parent=0 // pred_check_branch
    %21 = sbr.rel (0) target = $region13
  $region12: #{discriminator_forward.1} parent=0 // pred_region
    _
  $region13: #{discriminator_forward.1} parent=0 // pred_fallthru
    _
  // Predicated region
  $region14: #{discriminator_forward.1} parent=0 // pred_check
    _
  $region15: #{discriminator_forward.1} parent=0 // pred_check_branch
    %23 = sbr.rel (0) target = $region17
  $region16: #{discriminator_forward.1} parent=0 // pred_region
    _
  $region17: #{discriminator_forward.1} parent=0 // pred_fallthru
    _
  // Predicated region
  $region18: #{discriminator_forward.1} parent=0 // pred_check
    _
  $region19: #{discriminator_forward.1} parent=0 // pred_check_branch
    %25 = sbr.rel (0) target = $region21
  $region20: #{discriminator_forward.1} parent=0 // pred_region
    _
  $region21: #{discriminator_forward.1} parent=0 // pred_fallthru
    _
  // Predicated region
  $region22: #{discriminator_forward.1} parent=0 // pred_check
    _
  $region23: #{discriminator_forward.1} parent=0 // pred_check_branch
    %27 = sbr.rel (0) target = $region25
  $region24: #{discriminator_forward.1} parent=0 // pred_region
    _
  $region25: #{discriminator_forward.1} parent=0 // pred_fallthru
    _
  // Predicated region
  $region26: #{discriminator_forward.1} parent=0 // pred_check
    _
  $region27: #{discriminator_forward.1} parent=0 // pred_check_branch
    %29 = sbr.rel (0) target = $region29
  $region28: #{discriminator_forward.1} parent=0 // pred_region
    _
  $region29: #{discriminator_forward.1} parent=0 // pred_fallthru
    _
  // Predicated region
  $region30: #{discriminator_forward.1} parent=0 // pred_check
    _
  $region31: #{discriminator_forward.1} parent=0 // pred_check_branch
    %31 = sbr.rel (0) target = $region33
  $region32: #{discriminator_forward.1} parent=0 // pred_region
    _
  $region33: #{discriminator_forward.1} parent=0 // pred_fallthru
    _
  // Predicated region
  $region34: #{discriminator_forward.1} parent=0 // pred_check
    _
  $region35: #{discriminator_forward.1} parent=0 // pred_check_branch
    %33 = sbr.rel (0) target = $region37
  $region36: #{discriminator_forward.1} parent=0 // pred_region
    _
  $region37: #{discriminator_forward.1} parent=0 // pred_fallthru
    _
  %v35 = vld [vmem:[%s0] sm:$0xff]
  %v36 = vld [vmem:[%s0 + $0x8] sm:$0xff]
  %v37 = vld [vmem:[%s0 + $0x10] sm:$0xff]
  %v38 = vld [vmem:[%s0 + $0x18] sm:$0xf]
  %v39 = vld [vmem:[%s0 + $0x1c] sm:$0xff]
  %v40 = vld [vmem:[%s0 + $0x24] sm:$0xff]
  %v41 = vld [vmem:[%s0 + $0x2c] sm:$0xff]
  %v42 = vld [vmem:[%s0 + $0x34] sm:$0xf]
  %v43 = vld [vmem:[%s0 + $0x38] sm:$0xff]
  %v44 = vld [vmem:[%s0 + $0x40] sm:$0xff]
  %v45 = vld [vmem:[%s0 + $0x48] sm:$0xff]
  %v46 = vld [vmem:[%s0 + $0x50] sm:$0xf]
  %v47 = vld [vmem:[%s0 + $0x54] sm:$0xff]
  %v48 = vld [vmem:[%s0 + $0x5c] sm:$0xff]
  %v49 = vld [vmem:[%s0 + $0x64] sm:$0xff]
  %v50 = vld [vmem:[%s0 + $0x6c] sm:$0xf]
  %v51 = vld [vmem:[%s0 + $0x70] sm:$0xff]
  %v52 = vld [vmem:[%s0 + $0x78] sm:$0xff]
  %v53 = vld [vmem:[%s0 + $0x80] sm:$0xff]
  %v54 = vld [vmem:[%s0 + $0x88] sm:$0xf]
  %v55 = vld [vmem:[%s0 + $0x8c] sm:$0xff]
  %v56 = vld [vmem:[%s0 + $0x94] sm:$0xff]
  %v57 = vld [vmem:[%s0 + $0x9c] sm:$0xff]
  %v58 = vld [vmem:[%s0 + $0xa4] sm:$0xf]
  %v59 = vld [vmem:[%s0 + $0xa8] sm:$0xff]
  %v60 = vld [vmem:[%s0 + $0xb0] sm:$0xff]
  %v61 = vld [vmem:[%s0 + $0xb8] sm:$0xff]
  %v62 = vld [vmem:[%s0 + $0xc0] sm:$0xf]
  %v63 = vld [vmem:[%s0 + $0xc4] sm:$0xff]
  %v64 = vld [vmem:[%s0 + $0xcc] sm:$0xff]
  %v65 = vld [vmem:[%s0 + $0xd4] sm:$0xff]
  %v66 = vld [vmem:[%s0 + $0xdc] sm:$0xf]
  %v67 = vld [vmem:[%s0 + $0xe0] sm:$0xff]
  %v68 = vld [vmem:[%s0 + $0xe8] sm:$0xff]
  %v69 = vld [vmem:[%s0 + $0xf0] sm:$0xff]
  %v70 = vld [vmem:[%s0 + $0xf8] sm:$0xf]
  %v71 = vld [vmem:[%s0 + $0xfc] sm:$0xff]
  %v72 = vld [vmem:[%s0 + $0x104] sm:$0xff]
  %v73 = vld [vmem:[%s0 + $0x10c] sm:$0xff]
  %v74 = vld [vmem:[%s0 + $0x114] sm:$0xf]
  %v75 = vld [vmem:[%s0 + $0x118] sm:$0xff]
  %v76 = vld [vmem:[%s0 + $0x120] sm:$0xff]
  %v77 = vld [vmem:[%s0 + $0x128] sm:$0xff]
  %v78 = vld [vmem:[%s0 + $0x130] sm:$0xf]
  %v79 = vld [vmem:[%s0 + $0x134] sm:$0xff]
  %v80 = vld [vmem:[%s0 + $0x13c] sm:$0xff]
  %v81 = vld [vmem:[%s0 + $0x144] sm:$0xff]
  %v82 = vld [vmem:[%s0 + $0x14c] sm:$0xf]
  %v83 = vld [vmem:[%s0 + $0x150] sm:$0xff]
  %v84 = vld [vmem:[%s0 + $0x158] sm:$0xff]
  %v85 = vld [vmem:[%s0 + $0x160] sm:$0xff]
  %v86 = vld [vmem:[%s0 + $0x168] sm:$0xf]
  %v87 = vld [vmem:[%s0 + $0x16c] sm:$0xff]
  %v88 = vld [vmem:[%s0 + $0x174] sm:$0xff]
  %v89 = vld [vmem:[%s0 + $0x17c] sm:$0xff]
  %v90 = vld [vmem:[%s0 + $0x184] sm:$0xf]
  %v91 = vld [vmem:[%s0 + $0x188] sm:$0xff]
  %v92 = vld [vmem:[%s0 + $0x190] sm:$0xff]
  %v93 = vld [vmem:[%s0 + $0x198] sm:$0xff]
  %v94 = vld [vmem:[%s0 + $0x1a0] sm:$0xf]
  %v95 = vld [vmem:[%s0 + $0x1a4] sm:$0xff]
  %v96 = vld [vmem:[%s0 + $0x1ac] sm:$0xff]
  %v97 = vld [vmem:[%s0 + $0x1b4] sm:$0xff]
  %v98 = vld [vmem:[%s0 + $0x1bc] sm:$0xf]
  %v99 = vld [vmem:[%s1] sm:$0xff]
  %v100 = vld [vmem:[%s1 + $0x8] sm:$0xff]
  %v101 = vld [vmem:[%s1 + $0x10] sm:$0xff]
  %v102 = vld [vmem:[%s1 + $0x18] sm:$0xff]
  %v103 = vld [vmem:[%s1 + $0x20] sm:$0xff]
  %v104 = vld [vmem:[%s1 + $0x28] sm:$0xff]
  %v105 = vld [vmem:[%s1 + $0x30] sm:$0xff]
  %v106 = vld [vmem:[%s1 + $0x38] sm:$0xff]
  %v107 = vld [vmem:[%s1 + $0x40] sm:$0xff]
  %v108 = vld [vmem:[%s1 + $0x48] sm:$0xff]
  %v109 = vld [vmem:[%s1 + $0x50] sm:$0xff]
  %v110 = vld [vmem:[%s1 + $0x58] sm:$0xff]
  %v111 = vld [vmem:[%s1 + $0x60] sm:$0xff]
  %v112 = vld [vmem:[%s1 + $0x68] sm:$0xff]
  %v113 = vld [vmem:[%s1 + $0x70] sm:$0xff]
  %v114 = vld [vmem:[%s1 + $0x78] sm:$0xff]
  %v115 = vld [vmem:[%s1 + $0x80] sm:$0xff]
  %v116 = vld [vmem:[%s1 + $0x88] sm:$0xff]
  %v117 = vld [vmem:[%s1 + $0x90] sm:$0xff]
  %v118 = vld [vmem:[%s1 + $0x98] sm:$0xff]
  %v119 = vld [vmem:[%s1 + $0xa0] sm:$0xff]
  %v120 = vld [vmem:[%s1 + $0xa8] sm:$0xff]
  %v121 = vld [vmem:[%s1 + $0xb0] sm:$0xff]
  %v122 = vld [vmem:[%s1 + $0xb8] sm:$0xff]
  %v123 = vld [vmem:[%s1 + $0xc0] sm:$0xff]
  %v124 = vld [vmem:[%s1 + $0xc8] sm:$0xff]
  %v125 = vld [vmem:[%s1 + $0xd0] sm:$0xff]
  %v126 = vld [vmem:[%s1 + $0xd8] sm:$0xff]
  %v127 = vld [vmem:[%s1 + $0xe0] sm:$0xff]
  %v128 = vld [vmem:[%s1 + $0xe8] sm:$0xff]
  %v129 = vld [vmem:[%s1 + $0xf0] sm:$0xff]
  %v130 = vld [vmem:[%s1 + $0xf8] sm:$0xff]
  %v131 = vld [vmem:[%s1 + $0x100] sm:$0xff]
  %v132 = vld [vmem:[%s1 + $0x108] sm:$0xff]
  %v133 = vld [vmem:[%s1 + $0x110] sm:$0xff]
  %v134 = vld [vmem:[%s1 + $0x118] sm:$0xff]
  %v135 = vld [vmem:[%s1 + $0x120] sm:$0xff]
  %v136 = vld [vmem:[%s1 + $0x128] sm:$0xff]
  %v137 = vld [vmem:[%s1 + $0x130] sm:$0xff]
  %v138 = vld [vmem:[%s1 + $0x138] sm:$0xff]
  %v139 = vld [vmem:[%s1 + $0x140] sm:$0xff]
  %v140 = vld [vmem:[%s1 + $0x148] sm:$0xff]
  %v141 = vld [vmem:[%s1 + $0x150] sm:$0xff]
  %v142 = vld [vmem:[%s1 + $0x158] sm:$0xff]
  %v143 = vld [vmem:[%s1 + $0x160] sm:$0xff]
  %v144 = vld [vmem:[%s1 + $0x168] sm:$0xff]
  %v145 = vld [vmem:[%s1 + $0x170] sm:$0xff]
  %v146 = vld [vmem:[%s1 + $0x178] sm:$0xff]
  %v147 = vld [vmem:[%s1 + $0x180] sm:$0xff]
  %v148 = vld [vmem:[%s1 + $0x188] sm:$0xff]
  %v149 = vld [vmem:[%s1 + $0x190] sm:$0xff]
  %v150 = vld [vmem:[%s1 + $0x198] sm:$0xff]
  %v151 = vld [vmem:[%s1 + $0x1a0] sm:$0xff]
  %v152 = vld [vmem:[%s1 + $0x1a8] sm:$0xff]
  %v153 = vld [vmem:[%s1 + $0x1b0] sm:$0xff]
  %v154 = vld [vmem:[%s1 + $0x1b8] sm:$0xff]
  %v155 = vld [vmem:[%s1 + $0x1c0] sm:$0xff]
  %v156 = vld [vmem:[%s1 + $0x1c8] sm:$0xff]
  %v157 = vld [vmem:[%s1 + $0x1d0] sm:$0xff]
  %v158 = vld [vmem:[%s1 + $0x1d8] sm:$0xff]
  %v159 = vld [vmem:[%s1 + $0x1e0] sm:$0xff]
  %v160 = vld [vmem:[%s1 + $0x1e8] sm:$0xff]
  %v161 = vld [vmem:[%s1 + $0x1f0] sm:$0xff]
  %v162 = vld [vmem:[%s1 + $0x1f8] sm:$0xff]
  %v163 = vld [vmem:[%s1 + $0x200] sm:$0xff]
  %v164 = vld [vmem:[%s1 + $0x208] sm:$0xff]
  %v165 = vld [vmem:[%s1 + $0x210] sm:$0xff]
  %v166 = vld [vmem:[%s1 + $0x218] sm:$0xff]
  %v167 = vld [vmem:[%s1 + $0x220] sm:$0xff]
  %v168 = vld [vmem:[%s1 + $0x228] sm:$0xff]
  %v169 = vld [vmem:[%s1 + $0x230] sm:$0xff]
  %v170 = vld [vmem:[%s1 + $0x238] sm:$0xff]
  %v171 = vld [vmem:[%s1 + $0x240] sm:$0xff]
  %v172 = vld [vmem:[%s1 + $0x248] sm:$0xff]
  %v173 = vld [vmem:[%s1 + $0x250] sm:$0xff]
  %v174 = vld [vmem:[%s1 + $0x258] sm:$0xff]
  %v175 = vld [vmem:[%s1 + $0x260] sm:$0xff]
  %v176 = vld [vmem:[%s1 + $0x268] sm:$0xff]
  %v177 = vld [vmem:[%s1 + $0x270] sm:$0xff]
  %v178 = vld [vmem:[%s1 + $0x278] sm:$0xff]
  %v179 = vld [vmem:[%s1 + $0x280] sm:$0xff]
  %v180 = vld [vmem:[%s1 + $0x288] sm:$0xff]
  %v181 = vld [vmem:[%s1 + $0x290] sm:$0xff]
  %v182 = vld [vmem:[%s1 + $0x298] sm:$0xff]
  %v183 = vld [vmem:[%s1 + $0x2a0] sm:$0xff]
  %v184 = vld [vmem:[%s1 + $0x2a8] sm:$0xff]
  %v185 = vld [vmem:[%s1 + $0x2b0] sm:$0xff]
  %v186 = vld [vmem:[%s1 + $0x2b8] sm:$0xff]
  %v187 = vld [vmem:[%s1 + $0x2c0] sm:$0xff]
  %v188 = vld [vmem:[%s1 + $0x2c8] sm:$0xff]
  %v189 = vld [vmem:[%s1 + $0x2d0] sm:$0xff]
  %v190 = vld [vmem:[%s1 + $0x2d8] sm:$0xff]
  %v191 = vld [vmem:[%s1 + $0x2e0] sm:$0xff]
  %v192 = vld [vmem:[%s1 + $0x2e8] sm:$0xff]
  %v193 = vld [vmem:[%s1 + $0x2f0] sm:$0xff]
  %v194 = vld [vmem:[%s1 + $0x2f8] sm:$0xff]
  %v195 = vld [vmem:[%s1 + $0x300] sm:$0xff]
  %v196 = vld [vmem:[%s1 + $0x308] sm:$0xff]
  %v197 = vld [vmem:[%s1 + $0x310] sm:$0xff]
  %v198 = vld [vmem:[%s1 + $0x318] sm:$0xff]
  %v199 = vld [vmem:[%s1 + $0x320] sm:$0xff]
  %v200 = vld [vmem:[%s1 + $0x328] sm:$0xff]
  %v201 = vld [vmem:[%s1 + $0x330] sm:$0xff]
  %v202 = vld [vmem:[%s1 + $0x338] sm:$0xff]
  %v203 = vld [vmem:[%s1 + $0x340] sm:$0xff]
  %v204 = vld [vmem:[%s1 + $0x348] sm:$0xff]
  %v205 = vld [vmem:[%s1 + $0x350] sm:$0xff]
  %v206 = vld [vmem:[%s1 + $0x358] sm:$0xff]
  %v207 = vld [vmem:[%s1 + $0x360] sm:$0xff]
  %v208 = vld [vmem:[%s1 + $0x368] sm:$0xff]
  %v209 = vld [vmem:[%s1 + $0x370] sm:$0xff]
  %v210 = vld [vmem:[%s1 + $0x378] sm:$0xff]
  %v211 = vld [vmem:[%s1 + $0x380] sm:$0xff]
  %v212 = vld [vmem:[%s1 + $0x388] sm:$0xff]
  %v213 = vld [vmem:[%s1 + $0x390] sm:$0xff]
  %v214 = vld [vmem:[%s1 + $0x398] sm:$0xff]
  %v215 = vld [vmem:[%s1 + $0x3a0] sm:$0xff]
  %v216 = vld [vmem:[%s1 + $0x3a8] sm:$0xff]
  %v217 = vld [vmem:[%s1 + $0x3b0] sm:$0xff]
  %v218 = vld [vmem:[%s1 + $0x3b8] sm:$0xff]
  %v219 = vld [vmem:[%s1 + $0x3c0] sm:$0xff]
  %v220 = vld [vmem:[%s1 + $0x3c8] sm:$0xff]
  %v221 = vld [vmem:[%s1 + $0x3d0] sm:$0xff]
  %v222 = vld [vmem:[%s1 + $0x3d8] sm:$0xff]
  %v223 = vld [vmem:[%s1 + $0x3e0] sm:$0xff]
  %v224 = vld [vmem:[%s1 + $0x3e8] sm:$0xff]
  %v225 = vld [vmem:[%s1 + $0x3f0] sm:$0xff]
  %v226 = vld [vmem:[%s1 + $0x3f8] sm:$0xff]
  %v227 = vld [vmem:[%s1 + $0x400] sm:$0xff]
  %v228 = vld [vmem:[%s1 + $0x408] sm:$0xff]
  %v229 = vld [vmem:[%s1 + $0x410] sm:$0xff]
  %v230 = vld [vmem:[%s1 + $0x418] sm:$0xff]
  %v231 = vld [vmem:[%s1 + $0x420] sm:$0xff]
  %v232 = vld [vmem:[%s1 + $0x428] sm:$0xff]
  %v233 = vld [vmem:[%s1 + $0x430] sm:$0xff]
  %v234 = vld [vmem:[%s1 + $0x438] sm:$0xff]
  %v235 = vld [vmem:[%s1 + $0x440] sm:$0xff]
  %v236 = vld [vmem:[%s1 + $0x448] sm:$0xff]
  %v237 = vld [vmem:[%s1 + $0x450] sm:$0xff]
  %v238 = vld [vmem:[%s1 + $0x458] sm:$0xff]
  %v239 = vld [vmem:[%s1 + $0x460] sm:$0xff]
  %v240 = vld [vmem:[%s1 + $0x468] sm:$0xff]
  %v241 = vld [vmem:[%s1 + $0x470] sm:$0xff]
  %v242 = vld [vmem:[%s1 + $0x478] sm:$0xff]
  %v243 = vld [vmem:[%s1 + $0x480] sm:$0xff]
  %v244 = vld [vmem:[%s1 + $0x488] sm:$0xff]
  %v245 = vld [vmem:[%s1 + $0x490] sm:$0xff]
  %v246 = vld [vmem:[%s1 + $0x498] sm:$0xff]
  %v247 = vld [vmem:[%s1 + $0x4a0] sm:$0xff]
  %v248 = vld [vmem:[%s1 + $0x4a8] sm:$0xff]
  %v249 = vld [vmem:[%s1 + $0x4b0] sm:$0xff]
  %v250 = vld [vmem:[%s1 + $0x4b8] sm:$0xff]
  %v251 = vld [vmem:[%s1 + $0x4c0] sm:$0xff]
  %v252 = vld [vmem:[%s1 + $0x4c8] sm:$0xff]
  %v253 = vld [vmem:[%s1 + $0x4d0] sm:$0xff]
  %v254 = vld [vmem:[%s1 + $0x4d8] sm:$0xff]
  %v255 = vld [vmem:[%s1 + $0x4e0] sm:$0xff]
  %v256 = vld [vmem:[%s1 + $0x4e8] sm:$0xff]
  %v257 = vld [vmem:[%s1 + $0x4f0] sm:$0xff]
  %v258 = vld [vmem:[%s1 + $0x4f8] sm:$0xff]
  %v259 = vld [vmem:[%s1 + $0x500] sm:$0xff]
  %v260 = vld [vmem:[%s1 + $0x508] sm:$0xff]
  %v261 = vld [vmem:[%s1 + $0x510] sm:$0xff]
  %v262 = vld [vmem:[%s1 + $0x518] sm:$0xff]
  %v263 = vld [vmem:[%s1 + $0x520] sm:$0xff]
  %v264 = vld [vmem:[%s1 + $0x528] sm:$0xff]
  %v265 = vld [vmem:[%s1 + $0x530] sm:$0xff]
  %v266 = vld [vmem:[%s1 + $0x538] sm:$0xff]
  %v267 = vld [vmem:[%s1 + $0x540] sm:$0xff]
  %v268 = vld [vmem:[%s1 + $0x548] sm:$0xff]
  %v269 = vld [vmem:[%s1 + $0x550] sm:$0xff]
  %v270 = vld [vmem:[%s1 + $0x558] sm:$0xff]
  %v271 = vld [vmem:[%s1 + $0x560] sm:$0xff]
  %v272 = vld [vmem:[%s1 + $0x568] sm:$0xff]
  %v273 = vld [vmem:[%s1 + $0x570] sm:$0xff]
  %v274 = vld [vmem:[%s1 + $0x578] sm:$0xff]
  %v275 = vld [vmem:[%s1 + $0x580] sm:$0xff]
  %v276 = vld [vmem:[%s1 + $0x588] sm:$0xff]
  %v277 = vld [vmem:[%s1 + $0x590] sm:$0xff]
  %v278 = vld [vmem:[%s1 + $0x598] sm:$0xff]
  %v279 = vld [vmem:[%s1 + $0x5a0] sm:$0xff]
  %v280 = vld [vmem:[%s1 + $0x5a8] sm:$0xff]
  %v281 = vld [vmem:[%s1 + $0x5b0] sm:$0xff]
  %v282 = vld [vmem:[%s1 + $0x5b8] sm:$0xff]
  %v283 = vld [vmem:[%s1 + $0x5c0] sm:$0xff]
  %v284 = vld [vmem:[%s1 + $0x5c8] sm:$0xff]
  %v285 = vld [vmem:[%s1 + $0x5d0] sm:$0xff]
  %v286 = vld [vmem:[%s1 + $0x5d8] sm:$0xff]
  %v287 = vld [vmem:[%s1 + $0x5e0] sm:$0xff]
  %v288 = vld [vmem:[%s1 + $0x5e8] sm:$0xff]
  %v289 = vld [vmem:[%s1 + $0x5f0] sm:$0xff]
  %v290 = vld [vmem:[%s1 + $0x5f8] sm:$0xff]
  %v291 = vld [vmem:[%s1 + $0x600] sm:$0xff]
  %v292 = vld [vmem:[%s1 + $0x608] sm:$0xff]
  %v293 = vld [vmem:[%s1 + $0x610] sm:$0xff]
  %v294 = vld [vmem:[%s1 + $0x618] sm:$0xff]
  %v295 = vld [vmem:[%s1 + $0x620] sm:$0xff]
  %v296 = vld [vmem:[%s1 + $0x628] sm:$0xff]
  %v297 = vld [vmem:[%s1 + $0x630] sm:$0xff]
  %v298 = vld [vmem:[%s1 + $0x638] sm:$0xff]
  %v299 = vld [vmem:[%s1 + $0x640] sm:$0xff]
  %v300 = vld [vmem:[%s1 + $0x648] sm:$0xff]
  %v301 = vld [vmem:[%s1 + $0x650] sm:$0xff]
  %v302 = vld [vmem:[%s1 + $0x658] sm:$0xff]
  %v303 = vld [vmem:[%s1 + $0x660] sm:$0xff]
  %v304 = vld [vmem:[%s1 + $0x668] sm:$0xff]
  %v305 = vld [vmem:[%s1 + $0x670] sm:$0xff]
  %v306 = vld [vmem:[%s1 + $0x678] sm:$0xff]
  %v307 = vld [vmem:[%s1 + $0x680] sm:$0xff]
  %v308 = vld [vmem:[%s1 + $0x688] sm:$0xff]
  %v309 = vld [vmem:[%s1 + $0x690] sm:$0xff]
  %v310 = vld [vmem:[%s1 + $0x698] sm:$0xff]
  %v311 = vld [vmem:[%s1 + $0x6a0] sm:$0xff]
  %v312 = vld [vmem:[%s1 + $0x6a8] sm:$0xff]
  %v313 = vld [vmem:[%s1 + $0x6b0] sm:$0xff]
  %v314 = vld [vmem:[%s1 + $0x6b8] sm:$0xff]
  %v315 = vld [vmem:[%s1 + $0x6c0] sm:$0xff]
  %v316 = vld [vmem:[%s1 + $0x6c8] sm:$0xff]
  %v317 = vld [vmem:[%s1 + $0x6d0] sm:$0xff]
  %v318 = vld [vmem:[%s1 + $0x6d8] sm:$0xff]
  %v319 = vld [vmem:[%s1 + $0x6e0] sm:$0xff]
  %v320 = vld [vmem:[%s1 + $0x6e8] sm:$0xff]
  %v321 = vld [vmem:[%s1 + $0x6f0] sm:$0xff]
  %v322 = vld [vmem:[%s1 + $0x6f8] sm:$0xff]
  %v323 = vld [vmem:[%s1 + $0x700] sm:$0xff]
  %v324 = vld [vmem:[%s1 + $0x708] sm:$0xff]
  %v325 = vld [vmem:[%s1 + $0x710] sm:$0xff]
  %v326 = vld [vmem:[%s1 + $0x718] sm:$0xff]
  %v327 = vld [vmem:[%s1 + $0x720] sm:$0xff]
  %v328 = vld [vmem:[%s1 + $0x728] sm:$0xff]
  %v329 = vld [vmem:[%s1 + $0x730] sm:$0xff]
  %v330 = vld [vmem:[%s1 + $0x738] sm:$0xff]
  %v331 = vld [vmem:[%s1 + $0x740] sm:$0xff]
  %v332 = vld [vmem:[%s1 + $0x748] sm:$0xff]
  %v333 = vld [vmem:[%s1 + $0x750] sm:$0xff]
  %v334 = vld [vmem:[%s1 + $0x758] sm:$0xff]
  %v335 = vld [vmem:[%s1 + $0x760] sm:$0xff]
  %v336 = vld [vmem:[%s1 + $0x768] sm:$0xff]
  %v337 = vld [vmem:[%s1 + $0x770] sm:$0xff]
  %v338 = vld [vmem:[%s1 + $0x778] sm:$0xff]
  %v339 = vld [vmem:[%s1 + $0x780] sm:$0xff]
  %v340 = vld [vmem:[%s1 + $0x788] sm:$0xff]
  %v341 = vld [vmem:[%s1 + $0x790] sm:$0xff]
  %v342 = vld [vmem:[%s1 + $0x798] sm:$0xff]
  %v343 = vld [vmem:[%s1 + $0x7a0] sm:$0xff]
  %v344 = vld [vmem:[%s1 + $0x7a8] sm:$0xff]
  %v345 = vld [vmem:[%s1 + $0x7b0] sm:$0xff]
  %v346 = vld [vmem:[%s1 + $0x7b8] sm:$0xff]
  %v347 = vld [vmem:[%s1 + $0x7c0] sm:$0xff]
  %v348 = vld [vmem:[%s1 + $0x7c8] sm:$0xff]
  %v349 = vld [vmem:[%s1 + $0x7d0] sm:$0xff]
  %v350 = vld [vmem:[%s1 + $0x7d8] sm:$0xff]
  %v351 = vld [vmem:[%s1 + $0x7e0] sm:$0xff]
  %v352 = vld [vmem:[%s1 + $0x7e8] sm:$0xff]
  %v353 = vld [vmem:[%s1 + $0x7f0] sm:$0xff]
  %v354 = vld [vmem:[%s1 + $0x7f8] sm:$0xff]
  %v355 = vld [vmem:[%s1 + $0x800] sm:$0xff]
  %v356 = vld [vmem:[%s1 + $0x808] sm:$0xff]
  %v357 = vld [vmem:[%s1 + $0x810] sm:$0xff]
  %v358 = vld [vmem:[%s1 + $0x818] sm:$0xff]
  %v359 = vld [vmem:[%s1 + $0x820] sm:$0xff]
  %v360 = vld [vmem:[%s1 + $0x828] sm:$0xff]
  %v361 = vld [vmem:[%s1 + $0x830] sm:$0xff]
  %v362 = vld [vmem:[%s1 + $0x838] sm:$0xff]
  %v363 = vld [vmem:[%s1 + $0x840] sm:$0xff]
  %v364 = vld [vmem:[%s1 + $0x848] sm:$0xff]
  %v365 = vld [vmem:[%s1 + $0x850] sm:$0xff]
  %v366 = vld [vmem:[%s1 + $0x858] sm:$0xff]
  %v367 = vld [vmem:[%s1 + $0x860] sm:$0xff]
  %v368 = vld [vmem:[%s1 + $0x868] sm:$0xff]
  %v369 = vld [vmem:[%s1 + $0x870] sm:$0xff]
  %v370 = vld [vmem:[%s1 + $0x878] sm:$0xff]
  %v371 = vld [vmem:[%s1 + $0x880] sm:$0xff]
  %v372 = vld [vmem:[%s1 + $0x888] sm:$0xff]
  %v373 = vld [vmem:[%s1 + $0x890] sm:$0xff]
  %v374 = vld [vmem:[%s1 + $0x898] sm:$0xff]
  %v375 = vld [vmem:[%s1 + $0x8a0] sm:$0xff]
  %v376 = vld [vmem:[%s1 + $0x8a8] sm:$0xff]
  %v377 = vld [vmem:[%s1 + $0x8b0] sm:$0xff]
  %v378 = vld [vmem:[%s1 + $0x8b8] sm:$0xff]
  %v379 = vld [vmem:[%s1 + $0x8c0] sm:$0xff]
  %v380 = vld [vmem:[%s1 + $0x8c8] sm:$0xff]
  %v381 = vld [vmem:[%s1 + $0x8d0] sm:$0xff]
  %v382 = vld [vmem:[%s1 + $0x8d8] sm:$0xff]
  %v383 = vld [vmem:[%s1 + $0x8e0] sm:$0xff]
  %v384 = vld [vmem:[%s1 + $0x8e8] sm:$0xff]
  %v385 = vld [vmem:[%s1 + $0x8f0] sm:$0xff]
  %v386 = vld [vmem:[%s1 + $0x8f8] sm:$0xff]
  %v387 = vld [vmem:[%s1 + $0x900] sm:$0xff]
  %v388 = vld [vmem:[%s1 + $0x908] sm:$0xff]
  %v389 = vld [vmem:[%s1 + $0x910] sm:$0xff]
  %v390 = vld [vmem:[%s1 + $0x918] sm:$0xff]
  %v391 = vld [vmem:[%s1 + $0x920] sm:$0xff]
  %v392 = vld [vmem:[%s1 + $0x928] sm:$0xff]
  %v393 = vld [vmem:[%s1 + $0x930] sm:$0xff]
  %v394 = vld [vmem:[%s1 + $0x938] sm:$0xff]
  %v395 = vld [vmem:[%s1 + $0x940] sm:$0xff]
  %v396 = vld [vmem:[%s1 + $0x948] sm:$0xff]
  %v397 = vld [vmem:[%s1 + $0x950] sm:$0xff]
  %v398 = vld [vmem:[%s1 + $0x958] sm:$0xff]
  %v399 = vld [vmem:[%s1 + $0x960] sm:$0xff]
  %v400 = vld [vmem:[%s1 + $0x968] sm:$0xff]
  %v401 = vld [vmem:[%s1 + $0x970] sm:$0xff]
  %v402 = vld [vmem:[%s1 + $0x978] sm:$0xff]
  %v403 = vld [vmem:[%s1 + $0x980] sm:$0xff]
  %v404 = vld [vmem:[%s1 + $0x988] sm:$0xff]
  %v405 = vld [vmem:[%s1 + $0x990] sm:$0xff]
  %v406 = vld [vmem:[%s1 + $0x998] sm:$0xff]
  %v407 = vld [vmem:[%s1 + $0x9a0] sm:$0xff]
  %v408 = vld [vmem:[%s1 + $0x9a8] sm:$0xff]
  %v409 = vld [vmem:[%s1 + $0x9b0] sm:$0xff]
  %v410 = vld [vmem:[%s1 + $0x9b8] sm:$0xff]
  %v411 = vld [vmem:[%s1 + $0x9c0] sm:$0xff]
  %v412 = vld [vmem:[%s1 + $0x9c8] sm:$0xff]
  %v413 = vld [vmem:[%s1 + $0x9d0] sm:$0xff]
  %v414 = vld [vmem:[%s1 + $0x9d8] sm:$0xff]
  %v415 = vld [vmem:[%s1 + $0x9e0] sm:$0xff]
  %v416 = vld [vmem:[%s1 + $0x9e8] sm:$0xff]
  %v417 = vld [vmem:[%s1 + $0x9f0] sm:$0xff]
  %v418 = vld [vmem:[%s1 + $0x9f8] sm:$0xff]
  %v419 = vld [vmem:[%s1 + $0xa00] sm:$0xff]
  %v420 = vld [vmem:[%s1 + $0xa08] sm:$0xff]
  %v421 = vld [vmem:[%s1 + $0xa10] sm:$0xff]
  %v422 = vld [vmem:[%s1 + $0xa18] sm:$0xff]
  %v423 = vld [vmem:[%s1 + $0xa20] sm:$0xff]
  %v424 = vld [vmem:[%s1 + $0xa28] sm:$0xff]
  %v425 = vld [vmem:[%s1 + $0xa30] sm:$0xff]
  %v426 = vld [vmem:[%s1 + $0xa38] sm:$0xff]
  %v427 = vld [vmem:[%s1 + $0xa40] sm:$0xff]
  %v428 = vld [vmem:[%s1 + $0xa48] sm:$0xff]
  %v429 = vld [vmem:[%s1 + $0xa50] sm:$0xff]
  %v430 = vld [vmem:[%s1 + $0xa58] sm:$0xff]
  %v431 = vld [vmem:[%s1 + $0xa60] sm:$0xff]
  %v432 = vld [vmem:[%s1 + $0xa68] sm:$0xff]
  %v433 = vld [vmem:[%s1 + $0xa70] sm:$0xff]
  %v434 = vld [vmem:[%s1 + $0xa78] sm:$0xff]
  %v435 = vld [vmem:[%s1 + $0xa80] sm:$0xff]
  %v436 = vld [vmem:[%s1 + $0xa88] sm:$0xff]
  %v437 = vld [vmem:[%s1 + $0xa90] sm:$0xff]
  %v438 = vld [vmem:[%s1 + $0xa98] sm:$0xff]
  %v439 = vld [vmem:[%s1 + $0xaa0] sm:$0xff]
  %v440 = vld [vmem:[%s1 + $0xaa8] sm:$0xff]
  %v441 = vld [vmem:[%s1 + $0xab0] sm:$0xff]
  %v442 = vld [vmem:[%s1 + $0xab8] sm:$0xff]
  %v443 = vld [vmem:[%s1 + $0xac0] sm:$0xff]
  %v444 = vld [vmem:[%s1 + $0xac8] sm:$0xff]
  %v445 = vld [vmem:[%s1 + $0xad0] sm:$0xff]
  %v446 = vld [vmem:[%s1 + $0xad8] sm:$0xff]
  %v447 = vld [vmem:[%s1 + $0xae0] sm:$0xff]
  %v448 = vld [vmem:[%s1 + $0xae8] sm:$0xff]
  %v449 = vld [vmem:[%s1 + $0xaf0] sm:$0xff]
  %v450 = vld [vmem:[%s1 + $0xaf8] sm:$0xff]
  %v451 = vld [vmem:[%s1 + $0xb00] sm:$0xff]
  %v452 = vld [vmem:[%s1 + $0xb08] sm:$0xff]
  %v453 = vld [vmem:[%s1 + $0xb10] sm:$0xff]
  %v454 = vld [vmem:[%s1 + $0xb18] sm:$0xff]
  %v455 = vld [vmem:[%s1 + $0xb20] sm:$0xff]
  %v456 = vld [vmem:[%s1 + $0xb28] sm:$0xff]
  %v457 = vld [vmem:[%s1 + $0xb30] sm:$0xff]
  %v458 = vld [vmem:[%s1 + $0xb38] sm:$0xff]
  %v459 = vld [vmem:[%s1 + $0xb40] sm:$0xff]
  %v460 = vld [vmem:[%s1 + $0xb48] sm:$0xff]
  %v461 = vld [vmem:[%s1 + $0xb50] sm:$0xff]
  %v462 = vld [vmem:[%s1 + $0xb58] sm:$0xff]
  %v463 = vld [vmem:[%s1 + $0xb60] sm:$0xff]
  %v464 = vld [vmem:[%s1 + $0xb68] sm:$0xff]
  %v465 = vld [vmem:[%s1 + $0xb70] sm:$0xff]
  %v466 = vld [vmem:[%s1 + $0xb78] sm:$0xff]
  %v467 = vld [vmem:[%s1 + $0xb80] sm:$0xff]
  %v468 = vld [vmem:[%s1 + $0xb88] sm:$0xff]
  %v469 = vld [vmem:[%s1 + $0xb90] sm:$0xff]
  %v470 = vld [vmem:[%s1 + $0xb98] sm:$0xff]
  %v471 = vld [vmem:[%s1 + $0xba0] sm:$0xff]
  %v472 = vld [vmem:[%s1 + $0xba8] sm:$0xff]
  %v473 = vld [vmem:[%s1 + $0xbb0] sm:$0xff]
  %v474 = vld [vmem:[%s1 + $0xbb8] sm:$0xff]
  %v475 = vld [vmem:[%s1 + $0xbc0] sm:$0xff]
  %v476 = vld [vmem:[%s1 + $0xbc8] sm:$0xff]
  %v477 = vld [vmem:[%s1 + $0xbd0] sm:$0xff]
  %v478 = vld [vmem:[%s1 + $0xbd8] sm:$0xff]
  %v479 = vld [vmem:[%s1 + $0xbe0] sm:$0xff]
  %v480 = vld [vmem:[%s1 + $0xbe8] sm:$0xff]
  %v481 = vld [vmem:[%s1 + $0xbf0] sm:$0xff]
  %v482 = vld [vmem:[%s1 + $0xbf8] sm:$0xff]
  %v483 = vld [vmem:[%s1 + $0xc00] sm:$0xff]
  %v484 = vld [vmem:[%s1 + $0xc08] sm:$0xff]
  %v485 = vld [vmem:[%s1 + $0xc10] sm:$0xff]
  %v486 = vld [vmem:[%s1 + $0xc18] sm:$0xff]
  %v487 = vld [vmem:[%s1 + $0xc20] sm:$0xff]
  %v488 = vld [vmem:[%s1 + $0xc28] sm:$0xff]
  %v489 = vld [vmem:[%s1 + $0xc30] sm:$0xff]
  %v490 = vld [vmem:[%s1 + $0xc38] sm:$0xff]
  %v491 = vld [vmem:[%s1 + $0xc40] sm:$0xff]
  %v492 = vld [vmem:[%s1 + $0xc48] sm:$0xff]
  %v493 = vld [vmem:[%s1 + $0xc50] sm:$0xff]
  %v494 = vld [vmem:[%s1 + $0xc58] sm:$0xff]
  %v495 = vld [vmem:[%s1 + $0xc60] sm:$0xff]
  %v496 = vld [vmem:[%s1 + $0xc68] sm:$0xff]
  %v497 = vld [vmem:[%s1 + $0xc70] sm:$0xff]
  %v498 = vld [vmem:[%s1 + $0xc78] sm:$0xff]
  %v499 = vld [vmem:[%s1 + $0xc80] sm:$0xff]
  %v500 = vld [vmem:[%s1 + $0xc88] sm:$0xff]
  %v501 = vld [vmem:[%s1 + $0xc90] sm:$0xff]
  %v502 = vld [vmem:[%s1 + $0xc98] sm:$0xff]
  %v503 = vld [vmem:[%s1 + $0xca0] sm:$0xff]
  %v504 = vld [vmem:[%s1 + $0xca8] sm:$0xff]
  %v505 = vld [vmem:[%s1 + $0xcb0] sm:$0xff]
  %v506 = vld [vmem:[%s1 + $0xcb8] sm:$0xff]
  %v507 = vld [vmem:[%s1 + $0xcc0] sm:$0xff]
  %v508 = vld [vmem:[%s1 + $0xcc8] sm:$0xff]
  %v509 = vld [vmem:[%s1 + $0xcd0] sm:$0xff]
  %v510 = vld [vmem:[%s1 + $0xcd8] sm:$0xff]
  %v511 = vld [vmem:[%s1 + $0xce0] sm:$0xff]
  %v512 = vld [vmem:[%s1 + $0xce8] sm:$0xff]
  %v513 = vld [vmem:[%s1 + $0xcf0] sm:$0xff]
  %v514 = vld [vmem:[%s1 + $0xcf8] sm:$0xff]
  %v515 = vld [vmem:[%s1 + $0xd00] sm:$0xff]
  %v516 = vld [vmem:[%s1 + $0xd08] sm:$0xff]
  %v517 = vld [vmem:[%s1 + $0xd10] sm:$0xff]
  %v518 = vld [vmem:[%s1 + $0xd18] sm:$0xff]
  %v519 = vld [vmem:[%s1 + $0xd20] sm:$0xff]
  %v520 = vld [vmem:[%s1 + $0xd28] sm:$0xff]
  %v521 = vld [vmem:[%s1 + $0xd30] sm:$0xff]
  %v522 = vld [vmem:[%s1 + $0xd38] sm:$0xff]
  %v523 = vld [vmem:[%s1 + $0xd40] sm:$0xff]
  %v524 = vld [vmem:[%s1 + $0xd48] sm:$0xff]
  %v525 = vld [vmem:[%s1 + $0xd50] sm:$0xff]
  %v526 = vld [vmem:[%s1 + $0xd58] sm:$0xff]
  %v527 = vld [vmem:[%s1 + $0xd60] sm:$0xff]
  %v528 = vld [vmem:[%s1 + $0xd68] sm:$0xff]
  %v529 = vld [vmem:[%s1 + $0xd70] sm:$0xff]
  %v530 = vld [vmem:[%s1 + $0xd78] sm:$0xff]
  %v531 = vld [vmem:[%s1 + $0xd80] sm:$0xff]
  %v532 = vld [vmem:[%s1 + $0xd88] sm:$0xff]
  %v533 = vld [vmem:[%s1 + $0xd90] sm:$0xff]
  %v534 = vld [vmem:[%s1 + $0xd98] sm:$0xff]
  %v535 = vld [vmem:[%s1 + $0xda0] sm:$0xff]
  %v536 = vld [vmem:[%s1 + $0xda8] sm:$0xff]
  %v537 = vld [vmem:[%s1 + $0xdb0] sm:$0xff]
  %v538 = vld [vmem:[%s1 + $0xdb8] sm:$0xff]
  %v539 = vld [vmem:[%s1 + $0xdc0] sm:$0xff]
  %v540 = vld [vmem:[%s1 + $0xdc8] sm:$0xff]
  %v541 = vld [vmem:[%s1 + $0xdd0] sm:$0xff]
  %v542 = vld [vmem:[%s1 + $0xdd8] sm:$0xff]
  %v543 = vld [vmem:[%s1 + $0xde0] sm:$0xff]
  %v544 = vld [vmem:[%s1 + $0xde8] sm:$0xff]
  %v545 = vld [vmem:[%s1 + $0xdf0] sm:$0xff]
  %v546 = vld [vmem:[%s1 + $0xdf8] sm:$0xff]
  %v547 = vld [vmem:[%s2] sm:$0xff]
  %v549 = vlaneseq
  %v550 = vshrl.u32 %v549, 7
  %v551 = vsub.s32 0, %v550
  %v552 = vrot.slane %v547, %v551
  %v553 = vlaneseq
  %v554 = vshrl.u32 %v553, 7
  %v555 = vsub.s32 1, %v554
  %v556 = vrot.slane %v547, %v555
  %v557 = vlaneseq
  %v558 = vshrl.u32 %v557, 7
  %v559 = vsub.s32 2, %v558
  %v560 = vrot.slane %v547, %v559
  %v561 = vlaneseq
  %v562 = vshrl.u32 %v561, 7
  %v563 = vsub.s32 3, %v562
  %v564 = vrot.slane %v547, %v563
  %v565 = vlaneseq
  %v566 = vshrl.u32 %v565, 7
  %v567 = vsub.s32 4, %v566
  %v568 = vrot.slane %v547, %v567
  %v569 = vlaneseq
  %v570 = vshrl.u32 %v569, 7
  %v571 = vsub.s32 5, %v570
  %v572 = vrot.slane %v547, %v571
  %v573 = vlaneseq
  %v574 = vshrl.u32 %v573, 7
  %v575 = vsub.s32 6, %v574
  %v576 = vrot.slane %v547, %v575
  %v577 = vlaneseq
  %v578 = vshrl.u32 %v577, 7
  %v579 = vsub.s32 7, %v578
  %v580 = vrot.slane %v547, %v579
  %v653 = vunpack.c.l.b16 %v35
  %v654 = vunpack.c.h.b16 %v35
  %v655 = vunpack.c.l.b16 %v36
  %v656 = vunpack.c.h.b16 %v36
  %v657 = vunpack.c.l.b16 %v37
  %v658 = vunpack.c.h.b16 %v37
  %v659 = vunpack.c.l.b16 %v38
  %v660 = vunpack.c.l.b16 %v39
  %v661 = vunpack.c.h.b16 %v39
  %v662 = vunpack.c.l.b16 %v40
  %v663 = vunpack.c.h.b16 %v40
  %v664 = vunpack.c.l.b16 %v41
  %v665 = vunpack.c.h.b16 %v41
  %v666 = vunpack.c.l.b16 %v42
  %v667 = vunpack.c.l.b16 %v43
  %v668 = vunpack.c.h.b16 %v43
  %v669 = vunpack.c.l.b16 %v44
  %v670 = vunpack.c.h.b16 %v44
  %v671 = vunpack.c.l.b16 %v45
  %v672 = vunpack.c.h.b16 %v45
  %v673 = vunpack.c.l.b16 %v46
  %v674 = vunpack.c.l.b16 %v47
  %v675 = vunpack.c.h.b16 %v47
  %v676 = vunpack.c.l.b16 %v48
  %v677 = vunpack.c.h.b16 %v48
  %v678 = vunpack.c.l.b16 %v49
  %v679 = vunpack.c.h.b16 %v49
  %v680 = vunpack.c.l.b16 %v50
  %v681 = vunpack.c.l.b16 %v51
  %v682 = vunpack.c.h.b16 %v51
  %v683 = vunpack.c.l.b16 %v52
  %v684 = vunpack.c.h.b16 %v52
  %v685 = vunpack.c.l.b16 %v53
  %v686 = vunpack.c.h.b16 %v53
  %v687 = vunpack.c.l.b16 %v54
  %v688 = vunpack.c.l.b16 %v55
  %v689 = vunpack.c.h.b16 %v55
  %v690 = vunpack.c.l.b16 %v56
  %v691 = vunpack.c.h.b16 %v56
  %v692 = vunpack.c.l.b16 %v57
  %v693 = vunpack.c.h.b16 %v57
  %v694 = vunpack.c.l.b16 %v58
  %v695 = vunpack.c.l.b16 %v59
  %v696 = vunpack.c.h.b16 %v59
  %v697 = vunpack.c.l.b16 %v60
  %v698 = vunpack.c.h.b16 %v60
  %v699 = vunpack.c.l.b16 %v61
  %v700 = vunpack.c.h.b16 %v61
  %v701 = vunpack.c.l.b16 %v62
  %v702 = vunpack.c.l.b16 %v63
  %v703 = vunpack.c.h.b16 %v63
  %v704 = vunpack.c.l.b16 %v64
  %v705 = vunpack.c.h.b16 %v64
  %v706 = vunpack.c.l.b16 %v65
  %v707 = vunpack.c.h.b16 %v65
  %v708 = vunpack.c.l.b16 %v66
  %v709 = vunpack.c.l.b16 %v67
  %v710 = vunpack.c.h.b16 %v67
  %v711 = vunpack.c.l.b16 %v68
  %v712 = vunpack.c.h.b16 %v68
  %v713 = vunpack.c.l.b16 %v69
  %v714 = vunpack.c.h.b16 %v69
  %v715 = vunpack.c.l.b16 %v70
  %v716 = vunpack.c.l.b16 %v71
  %v717 = vunpack.c.h.b16 %v71
  %v718 = vunpack.c.l.b16 %v72
  %v719 = vunpack.c.h.b16 %v72
  %v720 = vunpack.c.l.b16 %v73
  %v721 = vunpack.c.h.b16 %v73
  %v722 = vunpack.c.l.b16 %v74
  %v723 = vunpack.c.l.b16 %v75
  %v724 = vunpack.c.h.b16 %v75
  %v725 = vunpack.c.l.b16 %v76
  %v726 = vunpack.c.h.b16 %v76
  %v727 = vunpack.c.l.b16 %v77
  %v728 = vunpack.c.h.b16 %v77
  %v729 = vunpack.c.l.b16 %v78
  %v730 = vunpack.c.l.b16 %v79
  %v731 = vunpack.c.h.b16 %v79
  %v732 = vunpack.c.l.b16 %v80
  %v733 = vunpack.c.h.b16 %v80
  %v734 = vunpack.c.l.b16 %v81
  %v735 = vunpack.c.h.b16 %v81
  %v736 = vunpack.c.l.b16 %v82
  %v737 = vunpack.c.l.b16 %v83
  %v738 = vunpack.c.h.b16 %v83
  %v739 = vunpack.c.l.b16 %v84
  %v740 = vunpack.c.h.b16 %v84
  %v741 = vunpack.c.l.b16 %v85
  %v742 = vunpack.c.h.b16 %v85
  %v743 = vunpack.c.l.b16 %v86
  %v744 = vunpack.c.l.b16 %v87
  %v745 = vunpack.c.h.b16 %v87
  %v746 = vunpack.c.l.b16 %v88
  %v747 = vunpack.c.h.b16 %v88
  %v748 = vunpack.c.l.b16 %v89
  %v749 = vunpack.c.h.b16 %v89
  %v750 = vunpack.c.l.b16 %v90
  %v751 = vunpack.c.l.b16 %v91
  %v752 = vunpack.c.h.b16 %v91
  %v753 = vunpack.c.l.b16 %v92
  %v754 = vunpack.c.h.b16 %v92
  %v755 = vunpack.c.l.b16 %v93
  %v756 = vunpack.c.h.b16 %v93
  %v757 = vunpack.c.l.b16 %v94
  %v758 = vunpack.c.l.b16 %v95
  %v759 = vunpack.c.h.b16 %v95
  %v760 = vunpack.c.l.b16 %v96
  %v761 = vunpack.c.h.b16 %v96
  %v762 = vunpack.c.l.b16 %v97
  %v763 = vunpack.c.h.b16 %v97
  %v764 = vunpack.c.l.b16 %v98
  %v765 = vpack.c.b16 %v660, %v653
  %v766 = vpack.c.b16 %v661, %v654
  %v767 = vpack.c.b16 %v662, %v655
  %v768 = vpack.c.b16 %v663, %v656
  %v769 = vpack.c.b16 %v664, %v657
  %v770 = vpack.c.b16 %v665, %v658
  %v771 = vpack.c.b16 %v666, %v659
  %v772 = vpack.c.b16 %v674, %v667
  %v773 = vpack.c.b16 %v675, %v668
  %v774 = vpack.c.b16 %v676, %v669
  %v775 = vpack.c.b16 %v677, %v670
  %v776 = vpack.c.b16 %v678, %v671
  %v777 = vpack.c.b16 %v679, %v672
  %v778 = vpack.c.b16 %v680, %v673
  %v779 = vpack.c.b16 %v688, %v681
  %v780 = vpack.c.b16 %v689, %v682
  %v781 = vpack.c.b16 %v690, %v683
  %v782 = vpack.c.b16 %v691, %v684
  %v783 = vpack.c.b16 %v692, %v685
  %v784 = vpack.c.b16 %v693, %v686
  %v785 = vpack.c.b16 %v694, %v687
  %v786 = vpack.c.b16 %v702, %v695
  %v787 = vpack.c.b16 %v703, %v696
  %v788 = vpack.c.b16 %v704, %v697
  %v789 = vpack.c.b16 %v705, %v698
  %v790 = vpack.c.b16 %v706, %v699
  %v791 = vpack.c.b16 %v707, %v700
  %v792 = vpack.c.b16 %v708, %v701
  %v793 = vpack.c.b16 %v716, %v709
  %v794 = vpack.c.b16 %v717, %v710
  %v795 = vpack.c.b16 %v718, %v711
  %v796 = vpack.c.b16 %v719, %v712
  %v797 = vpack.c.b16 %v720, %v713
  %v798 = vpack.c.b16 %v721, %v714
  %v799 = vpack.c.b16 %v722, %v715
  %v800 = vpack.c.b16 %v730, %v723
  %v801 = vpack.c.b16 %v731, %v724
  %v802 = vpack.c.b16 %v732, %v725
  %v803 = vpack.c.b16 %v733, %v726
  %v804 = vpack.c.b16 %v734, %v727
  %v805 = vpack.c.b16 %v735, %v728
  %v806 = vpack.c.b16 %v736, %v729
  %v807 = vpack.c.b16 %v744, %v737
  %v808 = vpack.c.b16 %v745, %v738
  %v809 = vpack.c.b16 %v746, %v739
  %v810 = vpack.c.b16 %v747, %v740
  %v811 = vpack.c.b16 %v748, %v741
  %v812 = vpack.c.b16 %v749, %v742
  %v813 = vpack.c.b16 %v750, %v743
  %v814 = vpack.c.b16 %v758, %v751
  %v815 = vpack.c.b16 %v759, %v752
  %v816 = vpack.c.b16 %v760, %v753
  %v817 = vpack.c.b16 %v761, %v754
  %v818 = vpack.c.b16 %v762, %v755
  %v819 = vpack.c.b16 %v763, %v756
  %v820 = vpack.c.b16 %v764, %v757
  %v1325 = vunpack.c.l.b16 %v99
  %v1326 = vunpack.c.h.b16 %v99
  %v1327 = vunpack.c.l.b16 %v100
  %v1328 = vunpack.c.h.b16 %v100
  %v1329 = vunpack.c.l.b16 %v101
  %v1330 = vunpack.c.h.b16 %v101
  %v1331 = vunpack.c.l.b16 %v102
  %v1332 = vunpack.c.h.b16 %v102
  %v1333 = vunpack.c.l.b16 %v103
  %v1334 = vunpack.c.h.b16 %v103
  %v1335 = vunpack.c.l.b16 %v104
  %v1336 = vunpack.c.h.b16 %v104
  %v1337 = vunpack.c.l.b16 %v105
  %v1338 = vunpack.c.h.b16 %v105
  %v1339 = vunpack.c.l.b16 %v106
  %v1340 = vunpack.c.h.b16 %v106
  %v1341 = vunpack.c.l.b16 %v107
  %v1342 = vunpack.c.h.b16 %v107
  %v1343 = vunpack.c.l.b16 %v108
  %v1344 = vunpack.c.h.b16 %v108
  %v1345 = vunpack.c.l.b16 %v109
  %v1346 = vunpack.c.h.b16 %v109
  %v1347 = vunpack.c.l.b16 %v110
  %v1348 = vunpack.c.h.b16 %v110
  %v1349 = vunpack.c.l.b16 %v111
  %v1350 = vunpack.c.h.b16 %v111
  %v1351 = vunpack.c.l.b16 %v112
  %v1352 = vunpack.c.h.b16 %v112
  %v1353 = vunpack.c.l.b16 %v113
  %v1354 = vunpack.c.h.b16 %v113
  %v1355 = vunpack.c.l.b16 %v114
  %v1356 = vunpack.c.h.b16 %v114
  %v1357 = vunpack.c.l.b16 %v115
  %v1358 = vunpack.c.h.b16 %v115
  %v1359 = vunpack.c.l.b16 %v116
  %v1360 = vunpack.c.h.b16 %v116
  %v1361 = vunpack.c.l.b16 %v117
  %v1362 = vunpack.c.h.b16 %v117
  %v1363 = vunpack.c.l.b16 %v118
  %v1364 = vunpack.c.h.b16 %v118
  %v1365 = vunpack.c.l.b16 %v119
  %v1366 = vunpack.c.h.b16 %v119
  %v1367 = vunpack.c.l.b16 %v120
  %v1368 = vunpack.c.h.b16 %v120
  %v1369 = vunpack.c.l.b16 %v121
  %v1370 = vunpack.c.h.b16 %v121
  %v1371 = vunpack.c.l.b16 %v122
  %v1372 = vunpack.c.h.b16 %v122
  %v1373 = vunpack.c.l.b16 %v123
  %v1374 = vunpack.c.h.b16 %v123
  %v1375 = vunpack.c.l.b16 %v124
  %v1376 = vunpack.c.h.b16 %v124
  %v1377 = vunpack.c.l.b16 %v125
  %v1378 = vunpack.c.h.b16 %v125
  %v1379 = vunpack.c.l.b16 %v126
  %v1380 = vunpack.c.h.b16 %v126
  %v1381 = vunpack.c.l.b16 %v127
  %v1382 = vunpack.c.h.b16 %v127
  %v1383 = vunpack.c.l.b16 %v128
  %v1384 = vunpack.c.h.b16 %v128
  %v1385 = vunpack.c.l.b16 %v129
  %v1386 = vunpack.c.h.b16 %v129
  %v1387 = vunpack.c.l.b16 %v130
  %v1388 = vunpack.c.h.b16 %v130
  %v1389 = vunpack.c.l.b16 %v131
  %v1390 = vunpack.c.h.b16 %v131
  %v1391 = vunpack.c.l.b16 %v132
  %v1392 = vunpack.c.h.b16 %v132
  %v1393 = vunpack.c.l.b16 %v133
  %v1394 = vunpack.c.h.b16 %v133
  %v1395 = vunpack.c.l.b16 %v134
  %v1396 = vunpack.c.h.b16 %v134
  %v1397 = vunpack.c.l.b16 %v135
  %v1398 = vunpack.c.h.b16 %v135
  %v1399 = vunpack.c.l.b16 %v136
  %v1400 = vunpack.c.h.b16 %v136
  %v1401 = vunpack.c.l.b16 %v137
  %v1402 = vunpack.c.h.b16 %v137
  %v1403 = vunpack.c.l.b16 %v138
  %v1404 = vunpack.c.h.b16 %v138
  %v1405 = vunpack.c.l.b16 %v139
  %v1406 = vunpack.c.h.b16 %v139
  %v1407 = vunpack.c.l.b16 %v140
  %v1408 = vunpack.c.h.b16 %v140
  %v1409 = vunpack.c.l.b16 %v141
  %v1410 = vunpack.c.h.b16 %v141
  %v1411 = vunpack.c.l.b16 %v142
  %v1412 = vunpack.c.h.b16 %v142
  %v1413 = vunpack.c.l.b16 %v143
  %v1414 = vunpack.c.h.b16 %v143
  %v1415 = vunpack.c.l.b16 %v144
  %v1416 = vunpack.c.h.b16 %v144
  %v1417 = vunpack.c.l.b16 %v145
  %v1418 = vunpack.c.h.b16 %v145
  %v1419 = vunpack.c.l.b16 %v146
  %v1420 = vunpack.c.h.b16 %v146
  %v1421 = vunpack.c.l.b16 %v147
  %v1422 = vunpack.c.h.b16 %v147
  %v1423 = vunpack.c.l.b16 %v148
  %v1424 = vunpack.c.h.b16 %v148
  %v1425 = vunpack.c.l.b16 %v149
  %v1426 = vunpack.c.h.b16 %v149
  %v1427 = vunpack.c.l.b16 %v150
  %v1428 = vunpack.c.h.b16 %v150
  %v1429 = vunpack.c.l.b16 %v151
  %v1430 = vunpack.c.h.b16 %v151
  %v1431 = vunpack.c.l.b16 %v152
  %v1432 = vunpack.c.h.b16 %v152
  %v1433 = vunpack.c.l.b16 %v153
  %v1434 = vunpack.c.h.b16 %v153
  %v1435 = vunpack.c.l.b16 %v154
  %v1436 = vunpack.c.h.b16 %v154
  %v1437 = vunpack.c.l.b16 %v155
  %v1438 = vunpack.c.h.b16 %v155
  %v1439 = vunpack.c.l.b16 %v156
  %v1440 = vunpack.c.h.b16 %v156
  %v1441 = vunpack.c.l.b16 %v157
  %v1442 = vunpack.c.h.b16 %v157
  %v1443 = vunpack.c.l.b16 %v158
  %v1444 = vunpack.c.h.b16 %v158
  %v1445 = vunpack.c.l.b16 %v159
  %v1446 = vunpack.c.h.b16 %v159
  %v1447 = vunpack.c.l.b16 %v160
  %v1448 = vunpack.c.h.b16 %v160
  %v1449 = vunpack.c.l.b16 %v161
  %v1450 = vunpack.c.h.b16 %v161
  %v1451 = vunpack.c.l.b16 %v162
  %v1452 = vunpack.c.h.b16 %v162
  %v1453 = vunpack.c.l.b16 %v163
  %v1454 = vunpack.c.h.b16 %v163
  %v1455 = vunpack.c.l.b16 %v164
  %v1456 = vunpack.c.h.b16 %v164
  %v1457 = vunpack.c.l.b16 %v165
  %v1458 = vunpack.c.h.b16 %v165
  %v1459 = vunpack.c.l.b16 %v166
  %v1460 = vunpack.c.h.b16 %v166
  %v1461 = vunpack.c.l.b16 %v167
  %v1462 = vunpack.c.h.b16 %v167
  %v1463 = vunpack.c.l.b16 %v168
  %v1464 = vunpack.c.h.b16 %v168
  %v1465 = vunpack.c.l.b16 %v169
  %v1466 = vunpack.c.h.b16 %v169
  %v1467 = vunpack.c.l.b16 %v170
  %v1468 = vunpack.c.h.b16 %v170
  %v1469 = vunpack.c.l.b16 %v171
  %v1470 = vunpack.c.h.b16 %v171
  %v1471 = vunpack.c.l.b16 %v172
  %v1472 = vunpack.c.h.b16 %v172
  %v1473 = vunpack.c.l.b16 %v173
  %v1474 = vunpack.c.h.b16 %v173
  %v1475 = vunpack.c.l.b16 %v174
  %v1476 = vunpack.c.h.b16 %v174
  %v1477 = vunpack.c.l.b16 %v175
  %v1478 = vunpack.c.h.b16 %v175
  %v1479 = vunpack.c.l.b16 %v176
  %v1480 = vunpack.c.h.b16 %v176
  %v1481 = vunpack.c.l.b16 %v177
  %v1482 = vunpack.c.h.b16 %v177
  %v1483 = vunpack.c.l.b16 %v178
  %v1484 = vunpack.c.h.b16 %v178
  %v1485 = vunpack.c.l.b16 %v179
  %v1486 = vunpack.c.h.b16 %v179
  %v1487 = vunpack.c.l.b16 %v180
  %v1488 = vunpack.c.h.b16 %v180
  %v1489 = vunpack.c.l.b16 %v181
  %v1490 = vunpack.c.h.b16 %v181
  %v1491 = vunpack.c.l.b16 %v182
  %v1492 = vunpack.c.h.b16 %v182
  %v1493 = vunpack.c.l.b16 %v183
  %v1494 = vunpack.c.h.b16 %v183
  %v1495 = vunpack.c.l.b16 %v184
  %v1496 = vunpack.c.h.b16 %v184
  %v1497 = vunpack.c.l.b16 %v185
  %v1498 = vunpack.c.h.b16 %v185
  %v1499 = vunpack.c.l.b16 %v186
  %v1500 = vunpack.c.h.b16 %v186
  %v1501 = vunpack.c.l.b16 %v187
  %v1502 = vunpack.c.h.b16 %v187
  %v1503 = vunpack.c.l.b16 %v188
  %v1504 = vunpack.c.h.b16 %v188
  %v1505 = vunpack.c.l.b16 %v189
  %v1506 = vunpack.c.h.b16 %v189
  %v1507 = vunpack.c.l.b16 %v190
  %v1508 = vunpack.c.h.b16 %v190
  %v1509 = vunpack.c.l.b16 %v191
  %v1510 = vunpack.c.h.b16 %v191
  %v1511 = vunpack.c.l.b16 %v192
  %v1512 = vunpack.c.h.b16 %v192
  %v1513 = vunpack.c.l.b16 %v193
  %v1514 = vunpack.c.h.b16 %v193
  %v1515 = vunpack.c.l.b16 %v194
  %v1516 = vunpack.c.h.b16 %v194
  %v1517 = vunpack.c.l.b16 %v195
  %v1518 = vunpack.c.h.b16 %v195
  %v1519 = vunpack.c.l.b16 %v196
  %v1520 = vunpack.c.h.b16 %v196
  %v1521 = vunpack.c.l.b16 %v197
  %v1522 = vunpack.c.h.b16 %v197
  %v1523 = vunpack.c.l.b16 %v198
  %v1524 = vunpack.c.h.b16 %v198
  %v1525 = vunpack.c.l.b16 %v199
  %v1526 = vunpack.c.h.b16 %v199
  %v1527 = vunpack.c.l.b16 %v200
  %v1528 = vunpack.c.h.b16 %v200
  %v1529 = vunpack.c.l.b16 %v201
  %v1530 = vunpack.c.h.b16 %v201
  %v1531 = vunpack.c.l.b16 %v202
  %v1532 = vunpack.c.h.b16 %v202
  %v1533 = vunpack.c.l.b16 %v203
  %v1534 = vunpack.c.h.b16 %v203
  %v1535 = vunpack.c.l.b16 %v204
  %v1536 = vunpack.c.h.b16 %v204
  %v1537 = vunpack.c.l.b16 %v205
  %v1538 = vunpack.c.h.b16 %v205
  %v1539 = vunpack.c.l.b16 %v206
  %v1540 = vunpack.c.h.b16 %v206
  %v1541 = vunpack.c.l.b16 %v207
  %v1542 = vunpack.c.h.b16 %v207
  %v1543 = vunpack.c.l.b16 %v208
  %v1544 = vunpack.c.h.b16 %v208
  %v1545 = vunpack.c.l.b16 %v209
  %v1546 = vunpack.c.h.b16 %v209
  %v1547 = vunpack.c.l.b16 %v210
  %v1548 = vunpack.c.h.b16 %v210
  %v1549 = vunpack.c.l.b16 %v211
  %v1550 = vunpack.c.h.b16 %v211
  %v1551 = vunpack.c.l.b16 %v212
  %v1552 = vunpack.c.h.b16 %v212
  %v1553 = vunpack.c.l.b16 %v213
  %v1554 = vunpack.c.h.b16 %v213
  %v1555 = vunpack.c.l.b16 %v214
  %v1556 = vunpack.c.h.b16 %v214
  %v1557 = vunpack.c.l.b16 %v215
  %v1558 = vunpack.c.h.b16 %v215
  %v1559 = vunpack.c.l.b16 %v216
  %v1560 = vunpack.c.h.b16 %v216
  %v1561 = vunpack.c.l.b16 %v217
  %v1562 = vunpack.c.h.b16 %v217
  %v1563 = vunpack.c.l.b16 %v218
  %v1564 = vunpack.c.h.b16 %v218
  %v1565 = vunpack.c.l.b16 %v219
  %v1566 = vunpack.c.h.b16 %v219
  %v1567 = vunpack.c.l.b16 %v220
  %v1568 = vunpack.c.h.b16 %v220
  %v1569 = vunpack.c.l.b16 %v221
  %v1570 = vunpack.c.h.b16 %v221
  %v1571 = vunpack.c.l.b16 %v222
  %v1572 = vunpack.c.h.b16 %v222
  %v1573 = vunpack.c.l.b16 %v223
  %v1574 = vunpack.c.h.b16 %v223
  %v1575 = vunpack.c.l.b16 %v224
  %v1576 = vunpack.c.h.b16 %v224
  %v1577 = vunpack.c.l.b16 %v225
  %v1578 = vunpack.c.h.b16 %v225
  %v1579 = vunpack.c.l.b16 %v226
  %v1580 = vunpack.c.h.b16 %v226
  %v1581 = vunpack.c.l.b16 %v227
  %v1582 = vunpack.c.h.b16 %v227
  %v1583 = vunpack.c.l.b16 %v228
  %v1584 = vunpack.c.h.b16 %v228
  %v1585 = vunpack.c.l.b16 %v229
  %v1586 = vunpack.c.h.b16 %v229
  %v1587 = vunpack.c.l.b16 %v230
  %v1588 = vunpack.c.h.b16 %v230
  %v1589 = vunpack.c.l.b16 %v231
  %v1590 = vunpack.c.h.b16 %v231
  %v1591 = vunpack.c.l.b16 %v232
  %v1592 = vunpack.c.h.b16 %v232
  %v1593 = vunpack.c.l.b16 %v233
  %v1594 = vunpack.c.h.b16 %v233
  %v1595 = vunpack.c.l.b16 %v234
  %v1596 = vunpack.c.h.b16 %v234
  %v1597 = vunpack.c.l.b16 %v235
  %v1598 = vunpack.c.h.b16 %v235
  %v1599 = vunpack.c.l.b16 %v236
  %v1600 = vunpack.c.h.b16 %v236
  %v1601 = vunpack.c.l.b16 %v237
  %v1602 = vunpack.c.h.b16 %v237
  %v1603 = vunpack.c.l.b16 %v238
  %v1604 = vunpack.c.h.b16 %v238
  %v1605 = vunpack.c.l.b16 %v239
  %v1606 = vunpack.c.h.b16 %v239
  %v1607 = vunpack.c.l.b16 %v240
  %v1608 = vunpack.c.h.b16 %v240
  %v1609 = vunpack.c.l.b16 %v241
  %v1610 = vunpack.c.h.b16 %v241
  %v1611 = vunpack.c.l.b16 %v242
  %v1612 = vunpack.c.h.b16 %v242
  %v1613 = vunpack.c.l.b16 %v243
  %v1614 = vunpack.c.h.b16 %v243
  %v1615 = vunpack.c.l.b16 %v244
  %v1616 = vunpack.c.h.b16 %v244
  %v1617 = vunpack.c.l.b16 %v245
  %v1618 = vunpack.c.h.b16 %v245
  %v1619 = vunpack.c.l.b16 %v246
  %v1620 = vunpack.c.h.b16 %v246
  %v1621 = vunpack.c.l.b16 %v247
  %v1622 = vunpack.c.h.b16 %v247
  %v1623 = vunpack.c.l.b16 %v248
  %v1624 = vunpack.c.h.b16 %v248
  %v1625 = vunpack.c.l.b16 %v249
  %v1626 = vunpack.c.h.b16 %v249
  %v1627 = vunpack.c.l.b16 %v250
  %v1628 = vunpack.c.h.b16 %v250
  %v1629 = vunpack.c.l.b16 %v251
  %v1630 = vunpack.c.h.b16 %v251
  %v1631 = vunpack.c.l.b16 %v252
  %v1632 = vunpack.c.h.b16 %v252
  %v1633 = vunpack.c.l.b16 %v253
  %v1634 = vunpack.c.h.b16 %v253
  %v1635 = vunpack.c.l.b16 %v254
  %v1636 = vunpack.c.h.b16 %v254
  %v1637 = vunpack.c.l.b16 %v255
  %v1638 = vunpack.c.h.b16 %v255
  %v1639 = vunpack.c.l.b16 %v256
  %v1640 = vunpack.c.h.b16 %v256
  %v1641 = vunpack.c.l.b16 %v257
  %v1642 = vunpack.c.h.b16 %v257
  %v1643 = vunpack.c.l.b16 %v258
  %v1644 = vunpack.c.h.b16 %v258
  %v1645 = vunpack.c.l.b16 %v259
  %v1646 = vunpack.c.h.b16 %v259
  %v1647 = vunpack.c.l.b16 %v260
  %v1648 = vunpack.c.h.b16 %v260
  %v1649 = vunpack.c.l.b16 %v261
  %v1650 = vunpack.c.h.b16 %v261
  %v1651 = vunpack.c.l.b16 %v262
  %v1652 = vunpack.c.h.b16 %v262
  %v1653 = vunpack.c.l.b16 %v263
  %v1654 = vunpack.c.h.b16 %v263
  %v1655 = vunpack.c.l.b16 %v264
  %v1656 = vunpack.c.h.b16 %v264
  %v1657 = vunpack.c.l.b16 %v265
  %v1658 = vunpack.c.h.b16 %v265
  %v1659 = vunpack.c.l.b16 %v266
  %v1660 = vunpack.c.h.b16 %v266
  %v1661 = vunpack.c.l.b16 %v267
  %v1662 = vunpack.c.h.b16 %v267
  %v1663 = vunpack.c.l.b16 %v268
  %v1664 = vunpack.c.h.b16 %v268
  %v1665 = vunpack.c.l.b16 %v269
  %v1666 = vunpack.c.h.b16 %v269
  %v1667 = vunpack.c.l.b16 %v270
  %v1668 = vunpack.c.h.b16 %v270
  %v1669 = vunpack.c.l.b16 %v271
  %v1670 = vunpack.c.h.b16 %v271
  %v1671 = vunpack.c.l.b16 %v272
  %v1672 = vunpack.c.h.b16 %v272
  %v1673 = vunpack.c.l.b16 %v273
  %v1674 = vunpack.c.h.b16 %v273
  %v1675 = vunpack.c.l.b16 %v274
  %v1676 = vunpack.c.h.b16 %v274
  %v1677 = vunpack.c.l.b16 %v275
  %v1678 = vunpack.c.h.b16 %v275
  %v1679 = vunpack.c.l.b16 %v276
  %v1680 = vunpack.c.h.b16 %v276
  %v1681 = vunpack.c.l.b16 %v277
  %v1682 = vunpack.c.h.b16 %v277
  %v1683 = vunpack.c.l.b16 %v278
  %v1684 = vunpack.c.h.b16 %v278
  %v1685 = vunpack.c.l.b16 %v279
  %v1686 = vunpack.c.h.b16 %v279
  %v1687 = vunpack.c.l.b16 %v280
  %v1688 = vunpack.c.h.b16 %v280
  %v1689 = vunpack.c.l.b16 %v281
  %v1690 = vunpack.c.h.b16 %v281
  %v1691 = vunpack.c.l.b16 %v282
  %v1692 = vunpack.c.h.b16 %v282
  %v1693 = vunpack.c.l.b16 %v283
  %v1694 = vunpack.c.h.b16 %v283
  %v1695 = vunpack.c.l.b16 %v284
  %v1696 = vunpack.c.h.b16 %v284
  %v1697 = vunpack.c.l.b16 %v285
  %v1698 = vunpack.c.h.b16 %v285
  %v1699 = vunpack.c.l.b16 %v286
  %v1700 = vunpack.c.h.b16 %v286
  %v1701 = vunpack.c.l.b16 %v287
  %v1702 = vunpack.c.h.b16 %v287
  %v1703 = vunpack.c.l.b16 %v288
  %v1704 = vunpack.c.h.b16 %v288
  %v1705 = vunpack.c.l.b16 %v289
  %v1706 = vunpack.c.h.b16 %v289
  %v1707 = vunpack.c.l.b16 %v290
  %v1708 = vunpack.c.h.b16 %v290
  %v1709 = vunpack.c.l.b16 %v291
  %v1710 = vunpack.c.h.b16 %v291
  %v1711 = vunpack.c.l.b16 %v292
  %v1712 = vunpack.c.h.b16 %v292
  %v1713 = vunpack.c.l.b16 %v293
  %v1714 = vunpack.c.h.b16 %v293
  %v1715 = vunpack.c.l.b16 %v294
  %v1716 = vunpack.c.h.b16 %v294
  %v1717 = vunpack.c.l.b16 %v295
  %v1718 = vunpack.c.h.b16 %v295
  %v1719 = vunpack.c.l.b16 %v296
  %v1720 = vunpack.c.h.b16 %v296
  %v1721 = vunpack.c.l.b16 %v297
  %v1722 = vunpack.c.h.b16 %v297
  %v1723 = vunpack.c.l.b16 %v298
  %v1724 = vunpack.c.h.b16 %v298
  %v1725 = vunpack.c.l.b16 %v299
  %v1726 = vunpack.c.h.b16 %v299
  %v1727 = vunpack.c.l.b16 %v300
  %v1728 = vunpack.c.h.b16 %v300
  %v1729 = vunpack.c.l.b16 %v301
  %v1730 = vunpack.c.h.b16 %v301
  %v1731 = vunpack.c.l.b16 %v302
  %v1732 = vunpack.c.h.b16 %v302
  %v1733 = vunpack.c.l.b16 %v303
  %v1734 = vunpack.c.h.b16 %v303
  %v1735 = vunpack.c.l.b16 %v304
  %v1736 = vunpack.c.h.b16 %v304
  %v1737 = vunpack.c.l.b16 %v305
  %v1738 = vunpack.c.h.b16 %v305
  %v1739 = vunpack.c.l.b16 %v306
  %v1740 = vunpack.c.h.b16 %v306
  %v1741 = vunpack.c.l.b16 %v307
  %v1742 = vunpack.c.h.b16 %v307
  %v1743 = vunpack.c.l.b16 %v308
  %v1744 = vunpack.c.h.b16 %v308
  %v1745 = vunpack.c.l.b16 %v309
  %v1746 = vunpack.c.h.b16 %v309
  %v1747 = vunpack.c.l.b16 %v310
  %v1748 = vunpack.c.h.b16 %v310
  %v1749 = vunpack.c.l.b16 %v311
  %v1750 = vunpack.c.h.b16 %v311
  %v1751 = vunpack.c.l.b16 %v312
  %v1752 = vunpack.c.h.b16 %v312
  %v1753 = vunpack.c.l.b16 %v313
  %v1754 = vunpack.c.h.b16 %v313
  %v1755 = vunpack.c.l.b16 %v314
  %v1756 = vunpack.c.h.b16 %v314
  %v1757 = vunpack.c.l.b16 %v315
  %v1758 = vunpack.c.h.b16 %v315
  %v1759 = vunpack.c.l.b16 %v316
  %v1760 = vunpack.c.h.b16 %v316
  %v1761 = vunpack.c.l.b16 %v317
  %v1762 = vunpack.c.h.b16 %v317
  %v1763 = vunpack.c.l.b16 %v318
  %v1764 = vunpack.c.h.b16 %v318
  %v1765 = vunpack.c.l.b16 %v319
  %v1766 = vunpack.c.h.b16 %v319
  %v1767 = vunpack.c.l.b16 %v320
  %v1768 = vunpack.c.h.b16 %v320
  %v1769 = vunpack.c.l.b16 %v321
  %v1770 = vunpack.c.h.b16 %v321
  %v1771 = vunpack.c.l.b16 %v322
  %v1772 = vunpack.c.h.b16 %v322
  %v1773 = vunpack.c.l.b16 %v323
  %v1774 = vunpack.c.h.b16 %v323
  %v1775 = vunpack.c.l.b16 %v324
  %v1776 = vunpack.c.h.b16 %v324
  %v1777 = vunpack.c.l.b16 %v325
  %v1778 = vunpack.c.h.b16 %v325
  %v1779 = vunpack.c.l.b16 %v326
  %v1780 = vunpack.c.h.b16 %v326
  %v1781 = vunpack.c.l.b16 %v327
  %v1782 = vunpack.c.h.b16 %v327
  %v1783 = vunpack.c.l.b16 %v328
  %v1784 = vunpack.c.h.b16 %v328
  %v1785 = vunpack.c.l.b16 %v329
  %v1786 = vunpack.c.h.b16 %v329
  %v1787 = vunpack.c.l.b16 %v330
  %v1788 = vunpack.c.h.b16 %v330
  %v1789 = vunpack.c.l.b16 %v331
  %v1790 = vunpack.c.h.b16 %v331
  %v1791 = vunpack.c.l.b16 %v332
  %v1792 = vunpack.c.h.b16 %v332
  %v1793 = vunpack.c.l.b16 %v333
  %v1794 = vunpack.c.h.b16 %v333
  %v1795 = vunpack.c.l.b16 %v334
  %v1796 = vunpack.c.h.b16 %v334
  %v1797 = vunpack.c.l.b16 %v335
  %v1798 = vunpack.c.h.b16 %v335
  %v1799 = vunpack.c.l.b16 %v336
  %v1800 = vunpack.c.h.b16 %v336
  %v1801 = vunpack.c.l.b16 %v337
  %v1802 = vunpack.c.h.b16 %v337
  %v1803 = vunpack.c.l.b16 %v338
  %v1804 = vunpack.c.h.b16 %v338
  %v1805 = vunpack.c.l.b16 %v339
  %v1806 = vunpack.c.h.b16 %v339
  %v1807 = vunpack.c.l.b16 %v340
  %v1808 = vunpack.c.h.b16 %v340
  %v1809 = vunpack.c.l.b16 %v341
  %v1810 = vunpack.c.h.b16 %v341
  %v1811 = vunpack.c.l.b16 %v342
  %v1812 = vunpack.c.h.b16 %v342
  %v1813 = vunpack.c.l.b16 %v343
  %v1814 = vunpack.c.h.b16 %v343
  %v1815 = vunpack.c.l.b16 %v344
  %v1816 = vunpack.c.h.b16 %v344
  %v1817 = vunpack.c.l.b16 %v345
  %v1818 = vunpack.c.h.b16 %v345
  %v1819 = vunpack.c.l.b16 %v346
  %v1820 = vunpack.c.h.b16 %v346
  %v1821 = vunpack.c.l.b16 %v347
  %v1822 = vunpack.c.h.b16 %v347
  %v1823 = vunpack.c.l.b16 %v348
  %v1824 = vunpack.c.h.b16 %v348
  %v1825 = vunpack.c.l.b16 %v349
  %v1826 = vunpack.c.h.b16 %v349
  %v1827 = vunpack.c.l.b16 %v350
  %v1828 = vunpack.c.h.b16 %v350
  %v1829 = vunpack.c.l.b16 %v351
  %v1830 = vunpack.c.h.b16 %v351
  %v1831 = vunpack.c.l.b16 %v352
  %v1832 = vunpack.c.h.b16 %v352
  %v1833 = vunpack.c.l.b16 %v353
  %v1834 = vunpack.c.h.b16 %v353
  %v1835 = vunpack.c.l.b16 %v354
  %v1836 = vunpack.c.h.b16 %v354
  %v1837 = vunpack.c.l.b16 %v355
  %v1838 = vunpack.c.h.b16 %v355
  %v1839 = vunpack.c.l.b16 %v356
  %v1840 = vunpack.c.h.b16 %v356
  %v1841 = vunpack.c.l.b16 %v357
  %v1842 = vunpack.c.h.b16 %v357
  %v1843 = vunpack.c.l.b16 %v358
  %v1844 = vunpack.c.h.b16 %v358
  %v1845 = vunpack.c.l.b16 %v359
  %v1846 = vunpack.c.h.b16 %v359
  %v1847 = vunpack.c.l.b16 %v360
  %v1848 = vunpack.c.h.b16 %v360
  %v1849 = vunpack.c.l.b16 %v361
  %v1850 = vunpack.c.h.b16 %v361
  %v1851 = vunpack.c.l.b16 %v362
  %v1852 = vunpack.c.h.b16 %v362
  %v1853 = vunpack.c.l.b16 %v363
  %v1854 = vunpack.c.h.b16 %v363
  %v1855 = vunpack.c.l.b16 %v364
  %v1856 = vunpack.c.h.b16 %v364
  %v1857 = vunpack.c.l.b16 %v365
  %v1858 = vunpack.c.h.b16 %v365
  %v1859 = vunpack.c.l.b16 %v366
  %v1860 = vunpack.c.h.b16 %v366
  %v1861 = vunpack.c.l.b16 %v367
  %v1862 = vunpack.c.h.b16 %v367
  %v1863 = vunpack.c.l.b16 %v368
  %v1864 = vunpack.c.h.b16 %v368
  %v1865 = vunpack.c.l.b16 %v369
  %v1866 = vunpack.c.h.b16 %v369
  %v1867 = vunpack.c.l.b16 %v370
  %v1868 = vunpack.c.h.b16 %v370
  %v1869 = vunpack.c.l.b16 %v371
  %v1870 = vunpack.c.h.b16 %v371
  %v1871 = vunpack.c.l.b16 %v372
  %v1872 = vunpack.c.h.b16 %v372
  %v1873 = vunpack.c.l.b16 %v373
  %v1874 = vunpack.c.h.b16 %v373
  %v1875 = vunpack.c.l.b16 %v374
  %v1876 = vunpack.c.h.b16 %v374
  %v1877 = vunpack.c.l.b16 %v375
  %v1878 = vunpack.c.h.b16 %v375
  %v1879 = vunpack.c.l.b16 %v376
  %v1880 = vunpack.c.h.b16 %v376
  %v1881 = vunpack.c.l.b16 %v377
  %v1882 = vunpack.c.h.b16 %v377
  %v1883 = vunpack.c.l.b16 %v378
  %v1884 = vunpack.c.h.b16 %v378
  %v1885 = vunpack.c.l.b16 %v379
  %v1886 = vunpack.c.h.b16 %v379
  %v1887 = vunpack.c.l.b16 %v380
  %v1888 = vunpack.c.h.b16 %v380
  %v1889 = vunpack.c.l.b16 %v381
  %v1890 = vunpack.c.h.b16 %v381
  %v1891 = vunpack.c.l.b16 %v382
  %v1892 = vunpack.c.h.b16 %v382
  %v1893 = vunpack.c.l.b16 %v383
  %v1894 = vunpack.c.h.b16 %v383
  %v1895 = vunpack.c.l.b16 %v384
  %v1896 = vunpack.c.h.b16 %v384
  %v1897 = vunpack.c.l.b16 %v385
  %v1898 = vunpack.c.h.b16 %v385
  %v1899 = vunpack.c.l.b16 %v386
  %v1900 = vunpack.c.h.b16 %v386
  %v1901 = vunpack.c.l.b16 %v387
  %v1902 = vunpack.c.h.b16 %v387
  %v1903 = vunpack.c.l.b16 %v388
  %v1904 = vunpack.c.h.b16 %v388
  %v1905 = vunpack.c.l.b16 %v389
  %v1906 = vunpack.c.h.b16 %v389
  %v1907 = vunpack.c.l.b16 %v390
  %v1908 = vunpack.c.h.b16 %v390
  %v1909 = vunpack.c.l.b16 %v391
  %v1910 = vunpack.c.h.b16 %v391
  %v1911 = vunpack.c.l.b16 %v392
  %v1912 = vunpack.c.h.b16 %v392
  %v1913 = vunpack.c.l.b16 %v393
  %v1914 = vunpack.c.h.b16 %v393
  %v1915 = vunpack.c.l.b16 %v394
  %v1916 = vunpack.c.h.b16 %v394
  %v1917 = vunpack.c.l.b16 %v395
  %v1918 = vunpack.c.h.b16 %v395
  %v1919 = vunpack.c.l.b16 %v396
  %v1920 = vunpack.c.h.b16 %v396
  %v1921 = vunpack.c.l.b16 %v397
  %v1922 = vunpack.c.h.b16 %v397
  %v1923 = vunpack.c.l.b16 %v398
  %v1924 = vunpack.c.h.b16 %v398
  %v1925 = vunpack.c.l.b16 %v399
  %v1926 = vunpack.c.h.b16 %v399
  %v1927 = vunpack.c.l.b16 %v400
  %v1928 = vunpack.c.h.b16 %v400
  %v1929 = vunpack.c.l.b16 %v401
  %v1930 = vunpack.c.h.b16 %v401
  %v1931 = vunpack.c.l.b16 %v402
  %v1932 = vunpack.c.h.b16 %v402
  %v1933 = vunpack.c.l.b16 %v403
  %v1934 = vunpack.c.h.b16 %v403
  %v1935 = vunpack.c.l.b16 %v404
  %v1936 = vunpack.c.h.b16 %v404
  %v1937 = vunpack.c.l.b16 %v405
  %v1938 = vunpack.c.h.b16 %v405
  %v1939 = vunpack.c.l.b16 %v406
  %v1940 = vunpack.c.h.b16 %v406
  %v1941 = vunpack.c.l.b16 %v407
  %v1942 = vunpack.c.h.b16 %v407
  %v1943 = vunpack.c.l.b16 %v408
  %v1944 = vunpack.c.h.b16 %v408
  %v1945 = vunpack.c.l.b16 %v409
  %v1946 = vunpack.c.h.b16 %v409
  %v1947 = vunpack.c.l.b16 %v410
  %v1948 = vunpack.c.h.b16 %v410
  %v1949 = vunpack.c.l.b16 %v411
  %v1950 = vunpack.c.h.b16 %v411
  %v1951 = vunpack.c.l.b16 %v412
  %v1952 = vunpack.c.h.b16 %v412
  %v1953 = vunpack.c.l.b16 %v413
  %v1954 = vunpack.c.h.b16 %v413
  %v1955 = vunpack.c.l.b16 %v414
  %v1956 = vunpack.c.h.b16 %v414
  %v1957 = vunpack.c.l.b16 %v415
  %v1958 = vunpack.c.h.b16 %v415
  %v1959 = vunpack.c.l.b16 %v416
  %v1960 = vunpack.c.h.b16 %v416
  %v1961 = vunpack.c.l.b16 %v417
  %v1962 = vunpack.c.h.b16 %v417
  %v1963 = vunpack.c.l.b16 %v418
  %v1964 = vunpack.c.h.b16 %v418
  %v1965 = vunpack.c.l.b16 %v419
  %v1966 = vunpack.c.h.b16 %v419
  %v1967 = vunpack.c.l.b16 %v420
  %v1968 = vunpack.c.h.b16 %v420
  %v1969 = vunpack.c.l.b16 %v421
  %v1970 = vunpack.c.h.b16 %v421
  %v1971 = vunpack.c.l.b16 %v422
  %v1972 = vunpack.c.h.b16 %v422
  %v1973 = vunpack.c.l.b16 %v423
  %v1974 = vunpack.c.h.b16 %v423
  %v1975 = vunpack.c.l.b16 %v424
  %v1976 = vunpack.c.h.b16 %v424
  %v1977 = vunpack.c.l.b16 %v425
  %v1978 = vunpack.c.h.b16 %v425
  %v1979 = vunpack.c.l.b16 %v426
  %v1980 = vunpack.c.h.b16 %v426
  %v1981 = vunpack.c.l.b16 %v427
  %v1982 = vunpack.c.h.b16 %v427
  %v1983 = vunpack.c.l.b16 %v428
  %v1984 = vunpack.c.h.b16 %v428
  %v1985 = vunpack.c.l.b16 %v429
  %v1986 = vunpack.c.h.b16 %v429
  %v1987 = vunpack.c.l.b16 %v430
  %v1988 = vunpack.c.h.b16 %v430
  %v1989 = vunpack.c.l.b16 %v431
  %v1990 = vunpack.c.h.b16 %v431
  %v1991 = vunpack.c.l.b16 %v432
  %v1992 = vunpack.c.h.b16 %v432
  %v1993 = vunpack.c.l.b16 %v433
  %v1994 = vunpack.c.h.b16 %v433
  %v1995 = vunpack.c.l.b16 %v434
  %v1996 = vunpack.c.h.b16 %v434
  %v1997 = vunpack.c.l.b16 %v435
  %v1998 = vunpack.c.h.b16 %v435
  %v1999 = vunpack.c.l.b16 %v436
  %v2000 = vunpack.c.h.b16 %v436
  %v2001 = vunpack.c.l.b16 %v437
  %v2002 = vunpack.c.h.b16 %v437
  %v2003 = vunpack.c.l.b16 %v438
  %v2004 = vunpack.c.h.b16 %v438
  %v2005 = vunpack.c.l.b16 %v439
  %v2006 = vunpack.c.h.b16 %v439
  %v2007 = vunpack.c.l.b16 %v440
  %v2008 = vunpack.c.h.b16 %v440
  %v2009 = vunpack.c.l.b16 %v441
  %v2010 = vunpack.c.h.b16 %v441
  %v2011 = vunpack.c.l.b16 %v442
  %v2012 = vunpack.c.h.b16 %v442
  %v2013 = vunpack.c.l.b16 %v443
  %v2014 = vunpack.c.h.b16 %v443
  %v2015 = vunpack.c.l.b16 %v444
  %v2016 = vunpack.c.h.b16 %v444
  %v2017 = vunpack.c.l.b16 %v445
  %v2018 = vunpack.c.h.b16 %v445
  %v2019 = vunpack.c.l.b16 %v446
  %v2020 = vunpack.c.h.b16 %v446
  %v2021 = vunpack.c.l.b16 %v447
  %v2022 = vunpack.c.h.b16 %v447
  %v2023 = vunpack.c.l.b16 %v448
  %v2024 = vunpack.c.h.b16 %v448
  %v2025 = vunpack.c.l.b16 %v449
  %v2026 = vunpack.c.h.b16 %v449
  %v2027 = vunpack.c.l.b16 %v450
  %v2028 = vunpack.c.h.b16 %v450
  %v2029 = vunpack.c.l.b16 %v451
  %v2030 = vunpack.c.h.b16 %v451
  %v2031 = vunpack.c.l.b16 %v452
  %v2032 = vunpack.c.h.b16 %v452
  %v2033 = vunpack.c.l.b16 %v453
  %v2034 = vunpack.c.h.b16 %v453
  %v2035 = vunpack.c.l.b16 %v454
  %v2036 = vunpack.c.h.b16 %v454
  %v2037 = vunpack.c.l.b16 %v455
  %v2038 = vunpack.c.h.b16 %v455
  %v2039 = vunpack.c.l.b16 %v456
  %v2040 = vunpack.c.h.b16 %v456
  %v2041 = vunpack.c.l.b16 %v457
  %v2042 = vunpack.c.h.b16 %v457
  %v2043 = vunpack.c.l.b16 %v458
  %v2044 = vunpack.c.h.b16 %v458
  %v2045 = vunpack.c.l.b16 %v459
  %v2046 = vunpack.c.h.b16 %v459
  %v2047 = vunpack.c.l.b16 %v460
  %v2048 = vunpack.c.h.b16 %v460
  %v2049 = vunpack.c.l.b16 %v461
  %v2050 = vunpack.c.h.b16 %v461
  %v2051 = vunpack.c.l.b16 %v462
  %v2052 = vunpack.c.h.b16 %v462
  %v2053 = vunpack.c.l.b16 %v463
  %v2054 = vunpack.c.h.b16 %v463
  %v2055 = vunpack.c.l.b16 %v464
  %v2056 = vunpack.c.h.b16 %v464
  %v2057 = vunpack.c.l.b16 %v465
  %v2058 = vunpack.c.h.b16 %v465
  %v2059 = vunpack.c.l.b16 %v466
  %v2060 = vunpack.c.h.b16 %v466
  %v2061 = vunpack.c.l.b16 %v467
  %v2062 = vunpack.c.h.b16 %v467
  %v2063 = vunpack.c.l.b16 %v468
  %v2064 = vunpack.c.h.b16 %v468
  %v2065 = vunpack.c.l.b16 %v469
  %v2066 = vunpack.c.h.b16 %v469
  %v2067 = vunpack.c.l.b16 %v470
  %v2068 = vunpack.c.h.b16 %v470
  %v2069 = vunpack.c.l.b16 %v471
  %v2070 = vunpack.c.h.b16 %v471
  %v2071 = vunpack.c.l.b16 %v472
  %v2072 = vunpack.c.h.b16 %v472
  %v2073 = vunpack.c.l.b16 %v473
  %v2074 = vunpack.c.h.b16 %v473
  %v2075 = vunpack.c.l.b16 %v474
  %v2076 = vunpack.c.h.b16 %v474
  %v2077 = vunpack.c.l.b16 %v475
  %v2078 = vunpack.c.h.b16 %v475
  %v2079 = vunpack.c.l.b16 %v476
  %v2080 = vunpack.c.h.b16 %v476
  %v2081 = vunpack.c.l.b16 %v477
  %v2082 = vunpack.c.h.b16 %v477
  %v2083 = vunpack.c.l.b16 %v478
  %v2084 = vunpack.c.h.b16 %v478
  %v2085 = vunpack.c.l.b16 %v479
  %v2086 = vunpack.c.h.b16 %v479
  %v2087 = vunpack.c.l.b16 %v480
  %v2088 = vunpack.c.h.b16 %v480
  %v2089 = vunpack.c.l.b16 %v481
  %v2090 = vunpack.c.h.b16 %v481
  %v2091 = vunpack.c.l.b16 %v482
  %v2092 = vunpack.c.h.b16 %v482
  %v2093 = vunpack.c.l.b16 %v483
  %v2094 = vunpack.c.h.b16 %v483
  %v2095 = vunpack.c.l.b16 %v484
  %v2096 = vunpack.c.h.b16 %v484
  %v2097 = vunpack.c.l.b16 %v485
  %v2098 = vunpack.c.h.b16 %v485
  %v2099 = vunpack.c.l.b16 %v486
  %v2100 = vunpack.c.h.b16 %v486
  %v2101 = vunpack.c.l.b16 %v487
  %v2102 = vunpack.c.h.b16 %v487
  %v2103 = vunpack.c.l.b16 %v488
  %v2104 = vunpack.c.h.b16 %v488
  %v2105 = vunpack.c.l.b16 %v489
  %v2106 = vunpack.c.h.b16 %v489
  %v2107 = vunpack.c.l.b16 %v490
  %v2108 = vunpack.c.h.b16 %v490
  %v2109 = vunpack.c.l.b16 %v491
  %v2110 = vunpack.c.h.b16 %v491
  %v2111 = vunpack.c.l.b16 %v492
  %v2112 = vunpack.c.h.b16 %v492
  %v2113 = vunpack.c.l.b16 %v493
  %v2114 = vunpack.c.h.b16 %v493
  %v2115 = vunpack.c.l.b16 %v494
  %v2116 = vunpack.c.h.b16 %v494
  %v2117 = vunpack.c.l.b16 %v495
  %v2118 = vunpack.c.h.b16 %v495
  %v2119 = vunpack.c.l.b16 %v496
  %v2120 = vunpack.c.h.b16 %v496
  %v2121 = vunpack.c.l.b16 %v497
  %v2122 = vunpack.c.h.b16 %v497
  %v2123 = vunpack.c.l.b16 %v498
  %v2124 = vunpack.c.h.b16 %v498
  %v2125 = vunpack.c.l.b16 %v499
  %v2126 = vunpack.c.h.b16 %v499
  %v2127 = vunpack.c.l.b16 %v500
  %v2128 = vunpack.c.h.b16 %v500
  %v2129 = vunpack.c.l.b16 %v501
  %v2130 = vunpack.c.h.b16 %v501
  %v2131 = vunpack.c.l.b16 %v502
  %v2132 = vunpack.c.h.b16 %v502
  %v2133 = vunpack.c.l.b16 %v503
  %v2134 = vunpack.c.h.b16 %v503
  %v2135 = vunpack.c.l.b16 %v504
  %v2136 = vunpack.c.h.b16 %v504
  %v2137 = vunpack.c.l.b16 %v505
  %v2138 = vunpack.c.h.b16 %v505
  %v2139 = vunpack.c.l.b16 %v506
  %v2140 = vunpack.c.h.b16 %v506
  %v2141 = vunpack.c.l.b16 %v507
  %v2142 = vunpack.c.h.b16 %v507
  %v2143 = vunpack.c.l.b16 %v508
  %v2144 = vunpack.c.h.b16 %v508
  %v2145 = vunpack.c.l.b16 %v509
  %v2146 = vunpack.c.h.b16 %v509
  %v2147 = vunpack.c.l.b16 %v510
  %v2148 = vunpack.c.h.b16 %v510
  %v2149 = vunpack.c.l.b16 %v511
  %v2150 = vunpack.c.h.b16 %v511
  %v2151 = vunpack.c.l.b16 %v512
  %v2152 = vunpack.c.h.b16 %v512
  %v2153 = vunpack.c.l.b16 %v513
  %v2154 = vunpack.c.h.b16 %v513
  %v2155 = vunpack.c.l.b16 %v514
  %v2156 = vunpack.c.h.b16 %v514
  %v2157 = vunpack.c.l.b16 %v515
  %v2158 = vunpack.c.h.b16 %v515
  %v2159 = vunpack.c.l.b16 %v516
  %v2160 = vunpack.c.h.b16 %v516
  %v2161 = vunpack.c.l.b16 %v517
  %v2162 = vunpack.c.h.b16 %v517
  %v2163 = vunpack.c.l.b16 %v518
  %v2164 = vunpack.c.h.b16 %v518
  %v2165 = vunpack.c.l.b16 %v519
  %v2166 = vunpack.c.h.b16 %v519
  %v2167 = vunpack.c.l.b16 %v520
  %v2168 = vunpack.c.h.b16 %v520
  %v2169 = vunpack.c.l.b16 %v521
  %v2170 = vunpack.c.h.b16 %v521
  %v2171 = vunpack.c.l.b16 %v522
  %v2172 = vunpack.c.h.b16 %v522
  %v2173 = vunpack.c.l.b16 %v523
  %v2174 = vunpack.c.h.b16 %v523
  %v2175 = vunpack.c.l.b16 %v524
  %v2176 = vunpack.c.h.b16 %v524
  %v2177 = vunpack.c.l.b16 %v525
  %v2178 = vunpack.c.h.b16 %v525
  %v2179 = vunpack.c.l.b16 %v526
  %v2180 = vunpack.c.h.b16 %v526
  %v2181 = vunpack.c.l.b16 %v527
  %v2182 = vunpack.c.h.b16 %v527
  %v2183 = vunpack.c.l.b16 %v528
  %v2184 = vunpack.c.h.b16 %v528
  %v2185 = vunpack.c.l.b16 %v529
  %v2186 = vunpack.c.h.b16 %v529
  %v2187 = vunpack.c.l.b16 %v530
  %v2188 = vunpack.c.h.b16 %v530
  %v2189 = vunpack.c.l.b16 %v531
  %v2190 = vunpack.c.h.b16 %v531
  %v2191 = vunpack.c.l.b16 %v532
  %v2192 = vunpack.c.h.b16 %v532
  %v2193 = vunpack.c.l.b16 %v533
  %v2194 = vunpack.c.h.b16 %v533
  %v2195 = vunpack.c.l.b16 %v534
  %v2196 = vunpack.c.h.b16 %v534
  %v2197 = vunpack.c.l.b16 %v535
  %v2198 = vunpack.c.h.b16 %v535
  %v2199 = vunpack.c.l.b16 %v536
  %v2200 = vunpack.c.h.b16 %v536
  %v2201 = vunpack.c.l.b16 %v537
  %v2202 = vunpack.c.h.b16 %v537
  %v2203 = vunpack.c.l.b16 %v538
  %v2204 = vunpack.c.h.b16 %v538
  %v2205 = vunpack.c.l.b16 %v539
  %v2206 = vunpack.c.h.b16 %v539
  %v2207 = vunpack.c.l.b16 %v540
  %v2208 = vunpack.c.h.b16 %v540
  %v2209 = vunpack.c.l.b16 %v541
  %v2210 = vunpack.c.h.b16 %v541
  %v2211 = vunpack.c.l.b16 %v542
  %v2212 = vunpack.c.h.b16 %v542
  %v2213 = vunpack.c.l.b16 %v543
  %v2214 = vunpack.c.h.b16 %v543
  %v2215 = vunpack.c.l.b16 %v544
  %v2216 = vunpack.c.h.b16 %v544
  %v2217 = vunpack.c.l.b16 %v545
  %v2218 = vunpack.c.h.b16 %v545
  %v2219 = vunpack.c.l.b16 %v546
  %v2220 = vunpack.c.h.b16 %v546
  %v2221 = vpack.c.b16 %v1333, %v1325
  %v2222 = vpack.c.b16 %v1334, %v1326
  %v2223 = vpack.c.b16 %v1335, %v1327
  %v2224 = vpack.c.b16 %v1336, %v1328
  %v2225 = vpack.c.b16 %v1337, %v1329
  %v2226 = vpack.c.b16 %v1338, %v1330
  %v2227 = vpack.c.b16 %v1339, %v1331
  %v2228 = vpack.c.b16 %v1340, %v1332
  %v2229 = vpack.c.b16 %v1349, %v1341
  %v2230 = vpack.c.b16 %v1350, %v1342
  %v2231 = vpack.c.b16 %v1351, %v1343
  %v2232 = vpack.c.b16 %v1352, %v1344
  %v2233 = vpack.c.b16 %v1353, %v1345
  %v2234 = vpack.c.b16 %v1354, %v1346
  %v2235 = vpack.c.b16 %v1355, %v1347
  %v2236 = vpack.c.b16 %v1356, %v1348
  %v2237 = vpack.c.b16 %v1365, %v1357
  %v2238 = vpack.c.b16 %v1366, %v1358
  %v2239 = vpack.c.b16 %v1367, %v1359
  %v2240 = vpack.c.b16 %v1368, %v1360
  %v2241 = vpack.c.b16 %v1369, %v1361
  %v2242 = vpack.c.b16 %v1370, %v1362
  %v2243 = vpack.c.b16 %v1371, %v1363
  %v2244 = vpack.c.b16 %v1372, %v1364
  %v2245 = vpack.c.b16 %v1381, %v1373
  %v2246 = vpack.c.b16 %v1382, %v1374
  %v2247 = vpack.c.b16 %v1383, %v1375
  %v2248 = vpack.c.b16 %v1384, %v1376
  %v2249 = vpack.c.b16 %v1385, %v1377
  %v2250 = vpack.c.b16 %v1386, %v1378
  %v2251 = vpack.c.b16 %v1387, %v1379
  %v2252 = vpack.c.b16 %v1388, %v1380
  %v2253 = vpack.c.b16 %v1397, %v1389
  %v2254 = vpack.c.b16 %v1398, %v1390
  %v2255 = vpack.c.b16 %v1399, %v1391
  %v2256 = vpack.c.b16 %v1400, %v1392
  %v2257 = vpack.c.b16 %v1401, %v1393
  %v2258 = vpack.c.b16 %v1402, %v1394
  %v2259 = vpack.c.b16 %v1403, %v1395
  %v2260 = vpack.c.b16 %v1404, %v1396
  %v2261 = vpack.c.b16 %v1413, %v1405
  %v2262 = vpack.c.b16 %v1414, %v1406
  %v2263 = vpack.c.b16 %v1415, %v1407
  %v2264 = vpack.c.b16 %v1416, %v1408
  %v2265 = vpack.c.b16 %v1417, %v1409
  %v2266 = vpack.c.b16 %v1418, %v1410
  %v2267 = vpack.c.b16 %v1419, %v1411
  %v2268 = vpack.c.b16 %v1420, %v1412
  %v2269 = vpack.c.b16 %v1429, %v1421
  %v2270 = vpack.c.b16 %v1430, %v1422
  %v2271 = vpack.c.b16 %v1431, %v1423
  %v2272 = vpack.c.b16 %v1432, %v1424
  %v2273 = vpack.c.b16 %v1433, %v1425
  %v2274 = vpack.c.b16 %v1434, %v1426
  %v2275 = vpack.c.b16 %v1435, %v1427
  %v2276 = vpack.c.b16 %v1436, %v1428
  %v2277 = vpack.c.b16 %v1445, %v1437
  %v2278 = vpack.c.b16 %v1446, %v1438
  %v2279 = vpack.c.b16 %v1447, %v1439
  %v2280 = vpack.c.b16 %v1448, %v1440
  %v2281 = vpack.c.b16 %v1449, %v1441
  %v2282 = vpack.c.b16 %v1450, %v1442
  %v2283 = vpack.c.b16 %v1451, %v1443
  %v2284 = vpack.c.b16 %v1452, %v1444
  %v2285 = vpack.c.b16 %v1461, %v1453
  %v2286 = vpack.c.b16 %v1462, %v1454
  %v2287 = vpack.c.b16 %v1463, %v1455
  %v2288 = vpack.c.b16 %v1464, %v1456
  %v2289 = vpack.c.b16 %v1465, %v1457
  %v2290 = vpack.c.b16 %v1466, %v1458
  %v2291 = vpack.c.b16 %v1467, %v1459
  %v2292 = vpack.c.b16 %v1468, %v1460
  %v2293 = vpack.c.b16 %v1477, %v1469
  %v2294 = vpack.c.b16 %v1478, %v1470
  %v2295 = vpack.c.b16 %v1479, %v1471
  %v2296 = vpack.c.b16 %v1480, %v1472
  %v2297 = vpack.c.b16 %v1481, %v1473
  %v2298 = vpack.c.b16 %v1482, %v1474
  %v2299 = vpack.c.b16 %v1483, %v1475
  %v2300 = vpack.c.b16 %v1484, %v1476
  %v2301 = vpack.c.b16 %v1493, %v1485
  %v2302 = vpack.c.b16 %v1494, %v1486
  %v2303 = vpack.c.b16 %v1495, %v1487
  %v2304 = vpack.c.b16 %v1496, %v1488
  %v2305 = vpack.c.b16 %v1497, %v1489
  %v2306 = vpack.c.b16 %v1498, %v1490
  %v2307 = vpack.c.b16 %v1499, %v1491
  %v2308 = vpack.c.b16 %v1500, %v1492
  %v2309 = vpack.c.b16 %v1509, %v1501
  %v2310 = vpack.c.b16 %v1510, %v1502
  %v2311 = vpack.c.b16 %v1511, %v1503
  %v2312 = vpack.c.b16 %v1512, %v1504
  %v2313 = vpack.c.b16 %v1513, %v1505
  %v2314 = vpack.c.b16 %v1514, %v1506
  %v2315 = vpack.c.b16 %v1515, %v1507
  %v2316 = vpack.c.b16 %v1516, %v1508
  %v2317 = vpack.c.b16 %v1525, %v1517
  %v2318 = vpack.c.b16 %v1526, %v1518
  %v2319 = vpack.c.b16 %v1527, %v1519
  %v2320 = vpack.c.b16 %v1528, %v1520
  %v2321 = vpack.c.b16 %v1529, %v1521
  %v2322 = vpack.c.b16 %v1530, %v1522
  %v2323 = vpack.c.b16 %v1531, %v1523
  %v2324 = vpack.c.b16 %v1532, %v1524
  %v2325 = vpack.c.b16 %v1541, %v1533
  %v2326 = vpack.c.b16 %v1542, %v1534
  %v2327 = vpack.c.b16 %v1543, %v1535
  %v2328 = vpack.c.b16 %v1544, %v1536
  %v2329 = vpack.c.b16 %v1545, %v1537
  %v2330 = vpack.c.b16 %v1546, %v1538
  %v2331 = vpack.c.b16 %v1547, %v1539
  %v2332 = vpack.c.b16 %v1548, %v1540
  %v2333 = vpack.c.b16 %v1557, %v1549
  %v2334 = vpack.c.b16 %v1558, %v1550
  %v2335 = vpack.c.b16 %v1559, %v1551
  %v2336 = vpack.c.b16 %v1560, %v1552
  %v2337 = vpack.c.b16 %v1561, %v1553
  %v2338 = vpack.c.b16 %v1562, %v1554
  %v2339 = vpack.c.b16 %v1563, %v1555
  %v2340 = vpack.c.b16 %v1564, %v1556
  %v2341 = vpack.c.b16 %v1573, %v1565
  %v2342 = vpack.c.b16 %v1574, %v1566
  %v2343 = vpack.c.b16 %v1575, %v1567
  %v2344 = vpack.c.b16 %v1576, %v1568
  %v2345 = vpack.c.b16 %v1577, %v1569
  %v2346 = vpack.c.b16 %v1578, %v1570
  %v2347 = vpack.c.b16 %v1579, %v1571
  %v2348 = vpack.c.b16 %v1580, %v1572
  %v2349 = vpack.c.b16 %v1589, %v1581
  %v2350 = vpack.c.b16 %v1590, %v1582
  %v2351 = vpack.c.b16 %v1591, %v1583
  %v2352 = vpack.c.b16 %v1592, %v1584
  %v2353 = vpack.c.b16 %v1593, %v1585
  %v2354 = vpack.c.b16 %v1594, %v1586
  %v2355 = vpack.c.b16 %v1595, %v1587
  %v2356 = vpack.c.b16 %v1596, %v1588
  %v2357 = vpack.c.b16 %v1605, %v1597
  %v2358 = vpack.c.b16 %v1606, %v1598
  %v2359 = vpack.c.b16 %v1607, %v1599
  %v2360 = vpack.c.b16 %v1608, %v1600
  %v2361 = vpack.c.b16 %v1609, %v1601
  %v2362 = vpack.c.b16 %v1610, %v1602
  %v2363 = vpack.c.b16 %v1611, %v1603
  %v2364 = vpack.c.b16 %v1612, %v1604
  %v2365 = vpack.c.b16 %v1621, %v1613
  %v2366 = vpack.c.b16 %v1622, %v1614
  %v2367 = vpack.c.b16 %v1623, %v1615
  %v2368 = vpack.c.b16 %v1624, %v1616
  %v2369 = vpack.c.b16 %v1625, %v1617
  %v2370 = vpack.c.b16 %v1626, %v1618
  %v2371 = vpack.c.b16 %v1627, %v1619
  %v2372 = vpack.c.b16 %v1628, %v1620
  %v2373 = vpack.c.b16 %v1637, %v1629
  %v2374 = vpack.c.b16 %v1638, %v1630
  %v2375 = vpack.c.b16 %v1639, %v1631
  %v2376 = vpack.c.b16 %v1640, %v1632
  %v2377 = vpack.c.b16 %v1641, %v1633
  %v2378 = vpack.c.b16 %v1642, %v1634
  %v2379 = vpack.c.b16 %v1643, %v1635
  %v2380 = vpack.c.b16 %v1644, %v1636
  %v2381 = vpack.c.b16 %v1653, %v1645
  %v2382 = vpack.c.b16 %v1654, %v1646
  %v2383 = vpack.c.b16 %v1655, %v1647
  %v2384 = vpack.c.b16 %v1656, %v1648
  %v2385 = vpack.c.b16 %v1657, %v1649
  %v2386 = vpack.c.b16 %v1658, %v1650
  %v2387 = vpack.c.b16 %v1659, %v1651
  %v2388 = vpack.c.b16 %v1660, %v1652
  %v2389 = vpack.c.b16 %v1669, %v1661
  %v2390 = vpack.c.b16 %v1670, %v1662
  %v2391 = vpack.c.b16 %v1671, %v1663
  %v2392 = vpack.c.b16 %v1672, %v1664
  %v2393 = vpack.c.b16 %v1673, %v1665
  %v2394 = vpack.c.b16 %v1674, %v1666
  %v2395 = vpack.c.b16 %v1675, %v1667
  %v2396 = vpack.c.b16 %v1676, %v1668
  %v2397 = vpack.c.b16 %v1685, %v1677
  %v2398 = vpack.c.b16 %v1686, %v1678
  %v2399 = vpack.c.b16 %v1687, %v1679
  %v2400 = vpack.c.b16 %v1688, %v1680
  %v2401 = vpack.c.b16 %v1689, %v1681
  %v2402 = vpack.c.b16 %v1690, %v1682
  %v2403 = vpack.c.b16 %v1691, %v1683
  %v2404 = vpack.c.b16 %v1692, %v1684
  %v2405 = vpack.c.b16 %v1701, %v1693
  %v2406 = vpack.c.b16 %v1702, %v1694
  %v2407 = vpack.c.b16 %v1703, %v1695
  %v2408 = vpack.c.b16 %v1704, %v1696
  %v2409 = vpack.c.b16 %v1705, %v1697
  %v2410 = vpack.c.b16 %v1706, %v1698
  %v2411 = vpack.c.b16 %v1707, %v1699
  %v2412 = vpack.c.b16 %v1708, %v1700
  %v2413 = vpack.c.b16 %v1717, %v1709
  %v2414 = vpack.c.b16 %v1718, %v1710
  %v2415 = vpack.c.b16 %v1719, %v1711
  %v2416 = vpack.c.b16 %v1720, %v1712
  %v2417 = vpack.c.b16 %v1721, %v1713
  %v2418 = vpack.c.b16 %v1722, %v1714
  %v2419 = vpack.c.b16 %v1723, %v1715
  %v2420 = vpack.c.b16 %v1724, %v1716
  %v2421 = vpack.c.b16 %v1733, %v1725
  %v2422 = vpack.c.b16 %v1734, %v1726
  %v2423 = vpack.c.b16 %v1735, %v1727
  %v2424 = vpack.c.b16 %v1736, %v1728
  %v2425 = vpack.c.b16 %v1737, %v1729
  %v2426 = vpack.c.b16 %v1738, %v1730
  %v2427 = vpack.c.b16 %v1739, %v1731
  %v2428 = vpack.c.b16 %v1740, %v1732
  %v2429 = vpack.c.b16 %v1749, %v1741
  %v2430 = vpack.c.b16 %v1750, %v1742
  %v2431 = vpack.c.b16 %v1751, %v1743
  %v2432 = vpack.c.b16 %v1752, %v1744
  %v2433 = vpack.c.b16 %v1753, %v1745
  %v2434 = vpack.c.b16 %v1754, %v1746
  %v2435 = vpack.c.b16 %v1755, %v1747
  %v2436 = vpack.c.b16 %v1756, %v1748
  %v2437 = vpack.c.b16 %v1765, %v1757
  %v2438 = vpack.c.b16 %v1766, %v1758
  %v2439 = vpack.c.b16 %v1767, %v1759
  %v2440 = vpack.c.b16 %v1768, %v1760
  %v2441 = vpack.c.b16 %v1769, %v1761
  %v2442 = vpack.c.b16 %v1770, %v1762
  %v2443 = vpack.c.b16 %v1771, %v1763
  %v2444 = vpack.c.b16 %v1772, %v1764
  %v2445 = vpack.c.b16 %v1781, %v1773
  %v2446 = vpack.c.b16 %v1782, %v1774
  %v2447 = vpack.c.b16 %v1783, %v1775
  %v2448 = vpack.c.b16 %v1784, %v1776
  %v2449 = vpack.c.b16 %v1785, %v1777
  %v2450 = vpack.c.b16 %v1786, %v1778
  %v2451 = vpack.c.b16 %v1787, %v1779
  %v2452 = vpack.c.b16 %v1788, %v1780
  %v2453 = vpack.c.b16 %v1797, %v1789
  %v2454 = vpack.c.b16 %v1798, %v1790
  %v2455 = vpack.c.b16 %v1799, %v1791
  %v2456 = vpack.c.b16 %v1800, %v1792
  %v2457 = vpack.c.b16 %v1801, %v1793
  %v2458 = vpack.c.b16 %v1802, %v1794
  %v2459 = vpack.c.b16 %v1803, %v1795
  %v2460 = vpack.c.b16 %v1804, %v1796
  %v2461 = vpack.c.b16 %v1813, %v1805
  %v2462 = vpack.c.b16 %v1814, %v1806
  %v2463 = vpack.c.b16 %v1815, %v1807
  %v2464 = vpack.c.b16 %v1816, %v1808
  %v2465 = vpack.c.b16 %v1817, %v1809
  %v2466 = vpack.c.b16 %v1818, %v1810
  %v2467 = vpack.c.b16 %v1819, %v1811
  %v2468 = vpack.c.b16 %v1820, %v1812
  %v2469 = vpack.c.b16 %v1829, %v1821
  %v2470 = vpack.c.b16 %v1830, %v1822
  %v2471 = vpack.c.b16 %v1831, %v1823
  %v2472 = vpack.c.b16 %v1832, %v1824
  %v2473 = vpack.c.b16 %v1833, %v1825
  %v2474 = vpack.c.b16 %v1834, %v1826
  %v2475 = vpack.c.b16 %v1835, %v1827
  %v2476 = vpack.c.b16 %v1836, %v1828
  %v2477 = vpack.c.b16 %v1845, %v1837
  %v2478 = vpack.c.b16 %v1846, %v1838
  %v2479 = vpack.c.b16 %v1847, %v1839
  %v2480 = vpack.c.b16 %v1848, %v1840
  %v2481 = vpack.c.b16 %v1849, %v1841
  %v2482 = vpack.c.b16 %v1850, %v1842
  %v2483 = vpack.c.b16 %v1851, %v1843
  %v2484 = vpack.c.b16 %v1852, %v1844
  %v2485 = vpack.c.b16 %v1861, %v1853
  %v2486 = vpack.c.b16 %v1862, %v1854
  %v2487 = vpack.c.b16 %v1863, %v1855
  %v2488 = vpack.c.b16 %v1864, %v1856
  %v2489 = vpack.c.b16 %v1865, %v1857
  %v2490 = vpack.c.b16 %v1866, %v1858
  %v2491 = vpack.c.b16 %v1867, %v1859
  %v2492 = vpack.c.b16 %v1868, %v1860
  %v2493 = vpack.c.b16 %v1877, %v1869
  %v2494 = vpack.c.b16 %v1878, %v1870
  %v2495 = vpack.c.b16 %v1879, %v1871
  %v2496 = vpack.c.b16 %v1880, %v1872
  %v2497 = vpack.c.b16 %v1881, %v1873
  %v2498 = vpack.c.b16 %v1882, %v1874
  %v2499 = vpack.c.b16 %v1883, %v1875
  %v2500 = vpack.c.b16 %v1884, %v1876
  %v2501 = vpack.c.b16 %v1893, %v1885
  %v2502 = vpack.c.b16 %v1894, %v1886
  %v2503 = vpack.c.b16 %v1895, %v1887
  %v2504 = vpack.c.b16 %v1896, %v1888
  %v2505 = vpack.c.b16 %v1897, %v1889
  %v2506 = vpack.c.b16 %v1898, %v1890
  %v2507 = vpack.c.b16 %v1899, %v1891
  %v2508 = vpack.c.b16 %v1900, %v1892
  %v2509 = vpack.c.b16 %v1909, %v1901
  %v2510 = vpack.c.b16 %v1910, %v1902
  %v2511 = vpack.c.b16 %v1911, %v1903
  %v2512 = vpack.c.b16 %v1912, %v1904
  %v2513 = vpack.c.b16 %v1913, %v1905
  %v2514 = vpack.c.b16 %v1914, %v1906
  %v2515 = vpack.c.b16 %v1915, %v1907
  %v2516 = vpack.c.b16 %v1916, %v1908
  %v2517 = vpack.c.b16 %v1925, %v1917
  %v2518 = vpack.c.b16 %v1926, %v1918
  %v2519 = vpack.c.b16 %v1927, %v1919
  %v2520 = vpack.c.b16 %v1928, %v1920
  %v2521 = vpack.c.b16 %v1929, %v1921
  %v2522 = vpack.c.b16 %v1930, %v1922
  %v2523 = vpack.c.b16 %v1931, %v1923
  %v2524 = vpack.c.b16 %v1932, %v1924
  %v2525 = vpack.c.b16 %v1941, %v1933
  %v2526 = vpack.c.b16 %v1942, %v1934
  %v2527 = vpack.c.b16 %v1943, %v1935
  %v2528 = vpack.c.b16 %v1944, %v1936
  %v2529 = vpack.c.b16 %v1945, %v1937
  %v2530 = vpack.c.b16 %v1946, %v1938
  %v2531 = vpack.c.b16 %v1947, %v1939
  %v2532 = vpack.c.b16 %v1948, %v1940
  %v2533 = vpack.c.b16 %v1957, %v1949
  %v2534 = vpack.c.b16 %v1958, %v1950
  %v2535 = vpack.c.b16 %v1959, %v1951
  %v2536 = vpack.c.b16 %v1960, %v1952
  %v2537 = vpack.c.b16 %v1961, %v1953
  %v2538 = vpack.c.b16 %v1962, %v1954
  %v2539 = vpack.c.b16 %v1963, %v1955
  %v2540 = vpack.c.b16 %v1964, %v1956
  %v2541 = vpack.c.b16 %v1973, %v1965
  %v2542 = vpack.c.b16 %v1974, %v1966
  %v2543 = vpack.c.b16 %v1975, %v1967
  %v2544 = vpack.c.b16 %v1976, %v1968
  %v2545 = vpack.c.b16 %v1977, %v1969
  %v2546 = vpack.c.b16 %v1978, %v1970
  %v2547 = vpack.c.b16 %v1979, %v1971
  %v2548 = vpack.c.b16 %v1980, %v1972
  %v2549 = vpack.c.b16 %v1989, %v1981
  %v2550 = vpack.c.b16 %v1990, %v1982
  %v2551 = vpack.c.b16 %v1991, %v1983
  %v2552 = vpack.c.b16 %v1992, %v1984
  %v2553 = vpack.c.b16 %v1993, %v1985
  %v2554 = vpack.c.b16 %v1994, %v1986
  %v2555 = vpack.c.b16 %v1995, %v1987
  %v2556 = vpack.c.b16 %v1996, %v1988
  %v2557 = vpack.c.b16 %v2005, %v1997
  %v2558 = vpack.c.b16 %v2006, %v1998
  %v2559 = vpack.c.b16 %v2007, %v1999
  %v2560 = vpack.c.b16 %v2008, %v2000
  %v2561 = vpack.c.b16 %v2009, %v2001
  %v2562 = vpack.c.b16 %v2010, %v2002
  %v2563 = vpack.c.b16 %v2011, %v2003
  %v2564 = vpack.c.b16 %v2012, %v2004
  %v2565 = vpack.c.b16 %v2021, %v2013
  %v2566 = vpack.c.b16 %v2022, %v2014
  %v2567 = vpack.c.b16 %v2023, %v2015
  %v2568 = vpack.c.b16 %v2024, %v2016
  %v2569 = vpack.c.b16 %v2025, %v2017
  %v2570 = vpack.c.b16 %v2026, %v2018
  %v2571 = vpack.c.b16 %v2027, %v2019
  %v2572 = vpack.c.b16 %v2028, %v2020
  %v2573 = vpack.c.b16 %v2037, %v2029
  %v2574 = vpack.c.b16 %v2038, %v2030
  %v2575 = vpack.c.b16 %v2039, %v2031
  %v2576 = vpack.c.b16 %v2040, %v2032
  %v2577 = vpack.c.b16 %v2041, %v2033
  %v2578 = vpack.c.b16 %v2042, %v2034
  %v2579 = vpack.c.b16 %v2043, %v2035
  %v2580 = vpack.c.b16 %v2044, %v2036
  %v2581 = vpack.c.b16 %v2053, %v2045
  %v2582 = vpack.c.b16 %v2054, %v2046
  %v2583 = vpack.c.b16 %v2055, %v2047
  %v2584 = vpack.c.b16 %v2056, %v2048
  %v2585 = vpack.c.b16 %v2057, %v2049
  %v2586 = vpack.c.b16 %v2058, %v2050
  %v2587 = vpack.c.b16 %v2059, %v2051
  %v2588 = vpack.c.b16 %v2060, %v2052
  %v2589 = vpack.c.b16 %v2069, %v2061
  %v2590 = vpack.c.b16 %v2070, %v2062
  %v2591 = vpack.c.b16 %v2071, %v2063
  %v2592 = vpack.c.b16 %v2072, %v2064
  %v2593 = vpack.c.b16 %v2073, %v2065
  %v2594 = vpack.c.b16 %v2074, %v2066
  %v2595 = vpack.c.b16 %v2075, %v2067
  %v2596 = vpack.c.b16 %v2076, %v2068
  %v2597 = vpack.c.b16 %v2085, %v2077
  %v2598 = vpack.c.b16 %v2086, %v2078
  %v2599 = vpack.c.b16 %v2087, %v2079
  %v2600 = vpack.c.b16 %v2088, %v2080
  %v2601 = vpack.c.b16 %v2089, %v2081
  %v2602 = vpack.c.b16 %v2090, %v2082
  %v2603 = vpack.c.b16 %v2091, %v2083
  %v2604 = vpack.c.b16 %v2092, %v2084
  %v2605 = vpack.c.b16 %v2101, %v2093
  %v2606 = vpack.c.b16 %v2102, %v2094
  %v2607 = vpack.c.b16 %v2103, %v2095
  %v2608 = vpack.c.b16 %v2104, %v2096
  %v2609 = vpack.c.b16 %v2105, %v2097
  %v2610 = vpack.c.b16 %v2106, %v2098
  %v2611 = vpack.c.b16 %v2107, %v2099
  %v2612 = vpack.c.b16 %v2108, %v2100
  %v2613 = vpack.c.b16 %v2117, %v2109
  %v2614 = vpack.c.b16 %v2118, %v2110
  %v2615 = vpack.c.b16 %v2119, %v2111
  %v2616 = vpack.c.b16 %v2120, %v2112
  %v2617 = vpack.c.b16 %v2121, %v2113
  %v2618 = vpack.c.b16 %v2122, %v2114
  %v2619 = vpack.c.b16 %v2123, %v2115
  %v2620 = vpack.c.b16 %v2124, %v2116
  %v2621 = vpack.c.b16 %v2133, %v2125
  %v2622 = vpack.c.b16 %v2134, %v2126
  %v2623 = vpack.c.b16 %v2135, %v2127
  %v2624 = vpack.c.b16 %v2136, %v2128
  %v2625 = vpack.c.b16 %v2137, %v2129
  %v2626 = vpack.c.b16 %v2138, %v2130
  %v2627 = vpack.c.b16 %v2139, %v2131
  %v2628 = vpack.c.b16 %v2140, %v2132
  %v2629 = vpack.c.b16 %v2149, %v2141
  %v2630 = vpack.c.b16 %v2150, %v2142
  %v2631 = vpack.c.b16 %v2151, %v2143
  %v2632 = vpack.c.b16 %v2152, %v2144
  %v2633 = vpack.c.b16 %v2153, %v2145
  %v2634 = vpack.c.b16 %v2154, %v2146
  %v2635 = vpack.c.b16 %v2155, %v2147
  %v2636 = vpack.c.b16 %v2156, %v2148
  %v2637 = vpack.c.b16 %v2165, %v2157
  %v2638 = vpack.c.b16 %v2166, %v2158
  %v2639 = vpack.c.b16 %v2167, %v2159
  %v2640 = vpack.c.b16 %v2168, %v2160
  %v2641 = vpack.c.b16 %v2169, %v2161
  %v2642 = vpack.c.b16 %v2170, %v2162
  %v2643 = vpack.c.b16 %v2171, %v2163
  %v2644 = vpack.c.b16 %v2172, %v2164
  %v2645 = vpack.c.b16 %v2181, %v2173
  %v2646 = vpack.c.b16 %v2182, %v2174
  %v2647 = vpack.c.b16 %v2183, %v2175
  %v2648 = vpack.c.b16 %v2184, %v2176
  %v2649 = vpack.c.b16 %v2185, %v2177
  %v2650 = vpack.c.b16 %v2186, %v2178
  %v2651 = vpack.c.b16 %v2187, %v2179
  %v2652 = vpack.c.b16 %v2188, %v2180
  %v2653 = vpack.c.b16 %v2197, %v2189
  %v2654 = vpack.c.b16 %v2198, %v2190
  %v2655 = vpack.c.b16 %v2199, %v2191
  %v2656 = vpack.c.b16 %v2200, %v2192
  %v2657 = vpack.c.b16 %v2201, %v2193
  %v2658 = vpack.c.b16 %v2202, %v2194
  %v2659 = vpack.c.b16 %v2203, %v2195
  %v2660 = vpack.c.b16 %v2204, %v2196
  %v2661 = vpack.c.b16 %v2213, %v2205
  %v2662 = vpack.c.b16 %v2214, %v2206
  %v2663 = vpack.c.b16 %v2215, %v2207
  %v2664 = vpack.c.b16 %v2216, %v2208
  %v2665 = vpack.c.b16 %v2217, %v2209
  %v2666 = vpack.c.b16 %v2218, %v2210
  %v2667 = vpack.c.b16 %v2219, %v2211
  %v2668 = vpack.c.b16 %v2220, %v2212
  %3117 = vmatprep.subr.bf16.mxu0 %v2222
  %3118 = vmatpush1.bf16.msra.mxu0 %v2221
  %3119 = vmatprep.subr.bf16.mxu0 %v2230
  %3120 = vmatpush1.bf16.msra.mxu0 %v2229
  %3121 = vmatprep.subr.bf16.mxu0 %v2238
  %3122 = vmatpush1.bf16.msra.mxu0 %v2237
  %3123 = vmatprep.subr.bf16.mxu0 %v2246
  %3124 = vmatpush1.bf16.msra.mxu0 %v2245
  %3125 = vmatprep.subr.bf16.mxu0 %v2254
  %3126 = vmatpush1.bf16.msra.mxu0 %v2253
  %3127 = vmatprep.subr.bf16.mxu0 %v2262
  %3128 = vmatpush1.bf16.msra.mxu0 %v2261
  %3129 = vmatprep.subr.bf16.mxu0 %v2270
  %3130 = vmatpush1.bf16.msra.mxu0 %v2269
  %3131 = vmatprep.subr.bf16.mxu0 %v2278
  %3132 = vmatpush1.bf16.msra.mxu0 %v2277
  %3133 = vmatprep.subr.bf16.mxu0 %v2286
  %3134 = vmatpush1.bf16.msra.mxu0 %v2285
  %3135 = vmatprep.subr.bf16.mxu0 %v2294
  %3136 = vmatpush1.bf16.msra.mxu0 %v2293
  %3137 = vmatprep.subr.bf16.mxu0 %v2302
  %3138 = vmatpush1.bf16.msra.mxu0 %v2301
  %3139 = vmatprep.subr.bf16.mxu0 %v2310
  %3140 = vmatpush1.bf16.msra.mxu0 %v2309
  %3141 = vmatprep.subr.bf16.mxu0 %v2318
  %3142 = vmatpush1.bf16.msra.mxu0 %v2317
  %3143 = vmatprep.subr.bf16.mxu0 %v2326
  %3144 = vmatpush1.bf16.msra.mxu0 %v2325
  %3145 = vmatprep.subr.bf16.mxu0 %v2334
  %3146 = vmatpush1.bf16.msra.mxu0 %v2333
  %3147 = vmatprep.subr.bf16.mxu0 %v2342
  %3148 = vmatpush1.bf16.msra.mxu0 %v2341
  %3149 = vmatprep.mubr.bf16.mxu0 %v766
  %3150 = vmatmul.mubr.bf16.gmra.mrb[0].mxu0 %v765
  %v3151 = vpop.f32.mrb[0].mxu0
  %v3152 = vadd.f32 %v552, %v3151
  %v3153 = vpop.f32.mrb[0].mxu0
  %v3154 = vadd.f32 %v556, %v3153
  %v3155 = vpop.f32.mrb[0].mxu0
  %v3156 = vadd.f32 %v552, %v3155
  %v3157 = vpop.f32.mrb[0].mxu0
  %v3158 = vadd.f32 %v556, %v3157
  %3159 = vmatprep.mubr.bf16.mxu0 %v773
  %3160 = vmatmul.mubr.bf16.gmra.mrb[0].mxu0 %v772
  %v3161 = vpop.f32.mrb[0].mxu0
  %v3162 = vadd.f32 %v552, %v3161
  %v3163 = vpop.f32.mrb[0].mxu0
  %v3164 = vadd.f32 %v556, %v3163
  %v3165 = vpop.f32.mrb[0].mxu0
  %v3166 = vadd.f32 %v552, %v3165
  %v3167 = vpop.f32.mrb[0].mxu0
  %v3168 = vadd.f32 %v556, %v3167
  %3169 = vmatprep.mubr.bf16.mxu0 %v780
  %3170 = vmatmul.mubr.bf16.gmra.mrb[0].mxu0 %v779
  %v3171 = vpop.f32.mrb[0].mxu0
  %v3172 = vadd.f32 %v552, %v3171
  %v3173 = vpop.f32.mrb[0].mxu0
  %v3174 = vadd.f32 %v556, %v3173
  %v3175 = vpop.f32.mrb[0].mxu0
  %v3176 = vadd.f32 %v552, %v3175
  %v3177 = vpop.f32.mrb[0].mxu0
  %v3178 = vadd.f32 %v556, %v3177
  %3179 = vmatprep.mubr.bf16.mxu0 %v787
  %3180 = vmatmul.mubr.bf16.gmra.mrb[0].mxu0 %v786
  %v3181 = vpop.f32.mrb[0].mxu0
  %v3182 = vadd.f32 %v552, %v3181
  %v3183 = vpop.f32.mrb[0].mxu0
  %v3184 = vadd.f32 %v556, %v3183
  %v3185 = vpop.f32.mrb[0].mxu0
  %v3186 = vadd.f32 %v552, %v3185
  %v3187 = vpop.f32.mrb[0].mxu0
  %v3188 = vadd.f32 %v556, %v3187
  %3189 = vmatprep.mubr.bf16.mxu0 %v794
  %3190 = vmatmul.mubr.bf16.gmra.mrb[0].mxu0 %v793
  %v3191 = vpop.f32.mrb[0].mxu0
  %v3192 = vadd.f32 %v552, %v3191
  %v3193 = vpop.f32.mrb[0].mxu0
  %v3194 = vadd.f32 %v556, %v3193
  %v3195 = vpop.f32.mrb[0].mxu0
  %v3196 = vadd.f32 %v552, %v3195
  %v3197 = vpop.f32.mrb[0].mxu0
  %v3198 = vadd.f32 %v556, %v3197
  %3199 = vmatprep.mubr.bf16.mxu0 %v801
  %3200 = vmatmul.mubr.bf16.gmra.mrb[0].mxu0 %v800
  %v3201 = vpop.f32.mrb[0].mxu0
  %v3202 = vadd.f32 %v552, %v3201
  %v3203 = vpop.f32.mrb[0].mxu0
  %v3204 = vadd.f32 %v556, %v3203
  %v3205 = vpop.f32.mrb[0].mxu0
  %v3206 = vadd.f32 %v552, %v3205
  %v3207 = vpop.f32.mrb[0].mxu0
  %v3208 = vadd.f32 %v556, %v3207
  %3209 = vmatprep.mubr.bf16.mxu0 %v808
  %3210 = vmatmul.mubr.bf16.gmra.mrb[0].mxu0 %v807
  %v3211 = vpop.f32.mrb[0].mxu0
  %v3212 = vadd.f32 %v552, %v3211
  %v3213 = vpop.f32.mrb[0].mxu0
  %v3214 = vadd.f32 %v556, %v3213
  %v3215 = vpop.f32.mrb[0].mxu0
  %v3216 = vadd.f32 %v552, %v3215
  %v3217 = vpop.f32.mrb[0].mxu0
  %v3218 = vadd.f32 %v556, %v3217
  %3219 = vmatprep.mubr.bf16.mxu0 %v815
  %3220 = vmatmul.mubr.bf16.gmra.mrb[0].mxu0 %v814
  %v3221 = vpop.f32.mrb[0].mxu0
  %v3222 = vadd.f32 %v552, %v3221
  %v3223 = vpop.f32.mrb[0].mxu0
  %v3224 = vadd.f32 %v556, %v3223
  %v3225 = vpop.f32.mrb[0].mxu0
  %v3226 = vadd.f32 %v552, %v3225
  %v3227 = vpop.f32.mrb[0].mxu0
  %v3228 = vadd.f32 %v556, %v3227
  %3229 = vdwg.mxu0
  %3230 = vmatprep.subr.bf16.mxu0 %v2350
  %3231 = vmatpush1.bf16.msra.mxu0 %v2349
  %3232 = vmatprep.subr.bf16.mxu0 %v2358
  %3233 = vmatpush1.bf16.msra.mxu0 %v2357
  %3234 = vmatprep.subr.bf16.mxu0 %v2366
  %3235 = vmatpush1.bf16.msra.mxu0 %v2365
  %3236 = vmatprep.subr.bf16.mxu0 %v2374
  %3237 = vmatpush1.bf16.msra.mxu0 %v2373
  %3238 = vmatprep.subr.bf16.mxu0 %v2382
  %3239 = vmatpush1.bf16.msra.mxu0 %v2381
  %3240 = vmatprep.subr.bf16.mxu0 %v2390
  %3241 = vmatpush1.bf16.msra.mxu0 %v2389
  %3242 = vmatprep.subr.bf16.mxu0 %v2398
  %3243 = vmatpush1.bf16.msra.mxu0 %v2397
  %3244 = vmatprep.subr.bf16.mxu0 %v2406
  %3245 = vmatpush1.bf16.msra.mxu0 %v2405
  %3246 = vmatprep.subr.bf16.mxu0 %v2414
  %3247 = vmatpush1.bf16.msra.mxu0 %v2413
  %3248 = vmatprep.subr.bf16.mxu0 %v2422
  %3249 = vmatpush1.bf16.msra.mxu0 %v2421
  %3250 = vmatprep.subr.bf16.mxu0 %v2430
  %3251 = vmatpush1.bf16.msra.mxu0 %v2429
  %3252 = vmatprep.subr.bf16.mxu0 %v2438
  %3253 = vmatpush1.bf16.msra.mxu0 %v2437
  %3254 = vmatprep.subr.bf16.mxu0 %v2446
  %3255 = vmatpush1.bf16.msra.mxu0 %v2445
  %3256 = vmatprep.subr.bf16.mxu0 %v2454
  %3257 = vmatpush1.bf16.msra.mxu0 %v2453
  %3258 = vmatprep.subr.bf16.mxu0 %v2462
  %3259 = vmatpush1.bf16.msra.mxu0 %v2461
  %3260 = vmatprep.subr.bf16.mxu0 %v2470
  %3261 = vmatpush1.bf16.msra.mxu0 %v2469
  %3262 = vmatprep.mubr.bf16.mxu0 %v768
  %3263 = vmatmul.mubr.bf16.gmra.mrb[0].mxu0 %v767
  %v3264 = vpop.f32.mrb[0].mxu0
  %v3265 = vadd.f32 %v3152, %v3264
  %v3266 = vpop.f32.mrb[0].mxu0
  %v3267 = vadd.f32 %v3154, %v3266
  %v3268 = vpop.f32.mrb[0].mxu0
  %v3269 = vadd.f32 %v3156, %v3268
  %v3270 = vpop.f32.mrb[0].mxu0
  %v3271 = vadd.f32 %v3158, %v3270
  %3272 = vmatprep.mubr.bf16.mxu0 %v775
  %3273 = vmatmul.mubr.bf16.gmra.mrb[0].mxu0 %v774
  %v3274 = vpop.f32.mrb[0].mxu0
  %v3275 = vadd.f32 %v3162, %v3274
  %v3276 = vpop.f32.mrb[0].mxu0
  %v3277 = vadd.f32 %v3164, %v3276
  %v3278 = vpop.f32.mrb[0].mxu0
  %v3279 = vadd.f32 %v3166, %v3278
  %v3280 = vpop.f32.mrb[0].mxu0
  %v3281 = vadd.f32 %v3168, %v3280
  %3282 = vmatprep.mubr.bf16.mxu0 %v782
  %3283 = vmatmul.mubr.bf16.gmra.mrb[0].mxu0 %v781
  %v3284 = vpop.f32.mrb[0].mxu0
  %v3285 = vadd.f32 %v3172, %v3284
  %v3286 = vpop.f32.mrb[0].mxu0
  %v3287 = vadd.f32 %v3174, %v3286
  %v3288 = vpop.f32.mrb[0].mxu0
  %v3289 = vadd.f32 %v3176, %v3288
  %v3290 = vpop.f32.mrb[0].mxu0
  %v3291 = vadd.f32 %v3178, %v3290
  %3292 = vmatprep.mubr.bf16.mxu0 %v789
  %3293 = vmatmul.mubr.bf16.gmra.mrb[0].mxu0 %v788
  %v3294 = vpop.f32.mrb[0].mxu0
  %v3295 = vadd.f32 %v3182, %v3294
  %v3296 = vpop.f32.mrb[0].mxu0
  %v3297 = vadd.f32 %v3184, %v3296
  %v3298 = vpop.f32.mrb[0].mxu0
  %v3299 = vadd.f32 %v3186, %v3298
  %v3300 = vpop.f32.mrb[0].mxu0
  %v3301 = vadd.f32 %v3188, %v3300
  %3302 = vmatprep.mubr.bf16.mxu0 %v796
  %3303 = vmatmul.mubr.bf16.gmra.mrb[0].mxu0 %v795
  %v3304 = vpop.f32.mrb[0].mxu0
  %v3305 = vadd.f32 %v3192, %v3304
  %v3306 = vpop.f32.mrb[0].mxu0
  %v3307 = vadd.f32 %v3194, %v3306
  %v3308 = vpop.f32.mrb[0].mxu0
  %v3309 = vadd.f32 %v3196, %v3308
  %v3310 = vpop.f32.mrb[0].mxu0
  %v3311 = vadd.f32 %v3198, %v3310
  %3312 = vmatprep.mubr.bf16.mxu0 %v803
  %3313 = vmatmul.mubr.bf16.gmra.mrb[0].mxu0 %v802
  %v3314 = vpop.f32.mrb[0].mxu0
  %v3315 = vadd.f32 %v3202, %v3314
  %v3316 = vpop.f32.mrb[0].mxu0
  %v3317 = vadd.f32 %v3204, %v3316
  %v3318 = vpop.f32.mrb[0].mxu0
  %v3319 = vadd.f32 %v3206, %v3318
  %v3320 = vpop.f32.mrb[0].mxu0
  %v3321 = vadd.f32 %v3208, %v3320
  %3322 = vmatprep.mubr.bf16.mxu0 %v810
  %3323 = vmatmul.mubr.bf16.gmra.mrb[0].mxu0 %v809
  %v3324 = vpop.f32.mrb[0].mxu0
  %v3325 = vadd.f32 %v3212, %v3324
  %v3326 = vpop.f32.mrb[0].mxu0
  %v3327 = vadd.f32 %v3214, %v3326
  %v3328 = vpop.f32.mrb[0].mxu0
  %v3329 = vadd.f32 %v3216, %v3328
  %v3330 = vpop.f32.mrb[0].mxu0
  %v3331 = vadd.f32 %v3218, %v3330
  %3332 = vmatprep.mubr.bf16.mxu0 %v817
  %3333 = vmatmul.mubr.bf16.gmra.mrb[0].mxu0 %v816
  %v3334 = vpop.f32.mrb[0].mxu0
  %v3335 = vadd.f32 %v3222, %v3334
  %v3336 = vpop.f32.mrb[0].mxu0
  %v3337 = vadd.f32 %v3224, %v3336
  %v3338 = vpop.f32.mrb[0].mxu0
  %v3339 = vadd.f32 %v3226, %v3338
  %v3340 = vpop.f32.mrb[0].mxu0
  %v3341 = vadd.f32 %v3228, %v3340
  %3342 = vdwg.mxu0
  %3343 = vmatprep.subr.bf16.mxu0 %v2478
  %3344 = vmatpush1.bf16.msra.mxu0 %v2477
  %3345 = vmatprep.subr.bf16.mxu0 %v2486
  %3346 = vmatpush1.bf16.msra.mxu0 %v2485
  %3347 = vmatprep.subr.bf16.mxu0 %v2494
  %3348 = vmatpush1.bf16.msra.mxu0 %v2493
  %3349 = vmatprep.subr.bf16.mxu0 %v2502
  %3350 = vmatpush1.bf16.msra.mxu0 %v2501
  %3351 = vmatprep.subr.bf16.mxu0 %v2510
  %3352 = vmatpush1.bf16.msra.mxu0 %v2509
  %3353 = vmatprep.subr.bf16.mxu0 %v2518
  %3354 = vmatpush1.bf16.msra.mxu0 %v2517
  %3355 = vmatprep.subr.bf16.mxu0 %v2526
  %3356 = vmatpush1.bf16.msra.mxu0 %v2525
  %3357 = vmatprep.subr.bf16.mxu0 %v2534
  %3358 = vmatpush1.bf16.msra.mxu0 %v2533
  %3359 = vmatprep.subr.bf16.mxu0 %v2542
  %3360 = vmatpush1.bf16.msra.mxu0 %v2541
  %3361 = vmatprep.subr.bf16.mxu0 %v2550
  %3362 = vmatpush1.bf16.msra.mxu0 %v2549
  %3363 = vmatprep.subr.bf16.mxu0 %v2558
  %3364 = vmatpush1.bf16.msra.mxu0 %v2557
  %3365 = vmatprep.subr.bf16.mxu0 %v2566
  %3366 = vmatpush1.bf16.msra.mxu0 %v2565
  %3367 = vmatprep.subr.bf16.mxu0 %v2574
  %3368 = vmatpush1.bf16.msra.mxu0 %v2573
  %3369 = vmatprep.subr.bf16.mxu0 %v2582
  %3370 = vmatpush1.bf16.msra.mxu0 %v2581
  %3371 = vmatprep.subr.bf16.mxu0 %v2590
  %3372 = vmatpush1.bf16.msra.mxu0 %v2589
  %3373 = vmatprep.subr.bf16.mxu0 %v2598
  %3374 = vmatpush1.bf16.msra.mxu0 %v2597
  %3375 = vmatprep.mubr.bf16.mxu0 %v770
  %3376 = vmatmul.mubr.bf16.gmra.mrb[0].mxu0 %v769
  %v3377 = vpop.f32.mrb[0].mxu0
  %v3378 = vadd.f32 %v3265, %v3377
  %v3379 = vpop.f32.mrb[0].mxu0
  %v3380 = vadd.f32 %v3267, %v3379
  %v3381 = vpop.f32.mrb[0].mxu0
  %v3382 = vadd.f32 %v3269, %v3381
  %v3383 = vpop.f32.mrb[0].mxu0
  %v3384 = vadd.f32 %v3271, %v3383
  %3385 = vmatprep.mubr.bf16.mxu0 %v777
  %3386 = vmatmul.mubr.bf16.gmra.mrb[0].mxu0 %v776
  %v3387 = vpop.f32.mrb[0].mxu0
  %v3388 = vadd.f32 %v3275, %v3387
  %v3389 = vpop.f32.mrb[0].mxu0
  %v3390 = vadd.f32 %v3277, %v3389
  %v3391 = vpop.f32.mrb[0].mxu0
  %v3392 = vadd.f32 %v3279, %v3391
  %v3393 = vpop.f32.mrb[0].mxu0
  %v3394 = vadd.f32 %v3281, %v3393
  %3395 = vmatprep.mubr.bf16.mxu0 %v784
  %3396 = vmatmul.mubr.bf16.gmra.mrb[0].mxu0 %v783
  %v3397 = vpop.f32.mrb[0].mxu0
  %v3398 = vadd.f32 %v3285, %v3397
  %v3399 = vpop.f32.mrb[0].mxu0
  %v3400 = vadd.f32 %v3287, %v3399
  %v3401 = vpop.f32.mrb[0].mxu0
  %v3402 = vadd.f32 %v3289, %v3401
  %v3403 = vpop.f32.mrb[0].mxu0
  %v3404 = vadd.f32 %v3291, %v3403
  %3405 = vmatprep.mubr.bf16.mxu0 %v791
  %3406 = vmatmul.mubr.bf16.gmra.mrb[0].mxu0 %v790
  %v3407 = vpop.f32.mrb[0].mxu0
  %v3408 = vadd.f32 %v3295, %v3407
  %v3409 = vpop.f32.mrb[0].mxu0
  %v3410 = vadd.f32 %v3297, %v3409
  %v3411 = vpop.f32.mrb[0].mxu0
  %v3412 = vadd.f32 %v3299, %v3411
  %v3413 = vpop.f32.mrb[0].mxu0
  %v3414 = vadd.f32 %v3301, %v3413
  %3415 = vmatprep.mubr.bf16.mxu0 %v798
  %3416 = vmatmul.mubr.bf16.gmra.mrb[0].mxu0 %v797
  %v3417 = vpop.f32.mrb[0].mxu0
  %v3418 = vadd.f32 %v3305, %v3417
  %v3419 = vpop.f32.mrb[0].mxu0
  %v3420 = vadd.f32 %v3307, %v3419
  %v3421 = vpop.f32.mrb[0].mxu0
  %v3422 = vadd.f32 %v3309, %v3421
  %v3423 = vpop.f32.mrb[0].mxu0
  %v3424 = vadd.f32 %v3311, %v3423
  %3425 = vmatprep.mubr.bf16.mxu0 %v805
  %3426 = vmatmul.mubr.bf16.gmra.mrb[0].mxu0 %v804
  %v3427 = vpop.f32.mrb[0].mxu0
  %v3428 = vadd.f32 %v3315, %v3427
  %v3429 = vpop.f32.mrb[0].mxu0
  %v3430 = vadd.f32 %v3317, %v3429
  %v3431 = vpop.f32.mrb[0].mxu0
  %v3432 = vadd.f32 %v3319, %v3431
  %v3433 = vpop.f32.mrb[0].mxu0
  %v3434 = vadd.f32 %v3321, %v3433
  %3435 = vmatprep.mubr.bf16.mxu0 %v812
  %3436 = vmatmul.mubr.bf16.gmra.mrb[0].mxu0 %v811
  %v3437 = vpop.f32.mrb[0].mxu0
  %v3438 = vadd.f32 %v3325, %v3437
  %v3439 = vpop.f32.mrb[0].mxu0
  %v3440 = vadd.f32 %v3327, %v3439
  %v3441 = vpop.f32.mrb[0].mxu0
  %v3442 = vadd.f32 %v3329, %v3441
  %v3443 = vpop.f32.mrb[0].mxu0
  %v3444 = vadd.f32 %v3331, %v3443
  %3445 = vmatprep.mubr.bf16.mxu0 %v819
  %3446 = vmatmul.mubr.bf16.gmra.mrb[0].mxu0 %v818
  %v3447 = vpop.f32.mrb[0].mxu0
  %v3448 = vadd.f32 %v3335, %v3447
  %v3449 = vpop.f32.mrb[0].mxu0
  %v3450 = vadd.f32 %v3337, %v3449
  %v3451 = vpop.f32.mrb[0].mxu0
  %v3452 = vadd.f32 %v3339, %v3451
  %v3453 = vpop.f32.mrb[0].mxu0
  %v3454 = vadd.f32 %v3341, %v3453
  %3455 = vdwg.mxu0
  %3456 = vmatprep.subr.bf16.mxu0 %v2606
  %3457 = vmatpush1.bf16.msra.mxu0 %v2605
  %3458 = vmatprep.subr.bf16.mxu0 %v2614
  %3459 = vmatpush1.bf16.msra.mxu0 %v2613
  %3460 = vmatprep.subr.bf16.mxu0 %v2622
  %3461 = vmatpush1.bf16.msra.mxu0 %v2621
  %3462 = vmatprep.subr.bf16.mxu0 %v2630
  %3463 = vmatpush1.bf16.msra.mxu0 %v2629
  %3464 = vmatprep.subr.bf16.mxu0 %v2638
  %3465 = vmatpush1.bf16.msra.mxu0 %v2637
  %3466 = vmatprep.subr.bf16.mxu0 %v2646
  %3467 = vmatpush1.bf16.msra.mxu0 %v2645
  %3468 = vmatprep.subr.bf16.mxu0 %v2654
  %3469 = vmatpush1.bf16.msra.mxu0 %v2653
  %3470 = vmatprep.subr.bf16.mxu0 %v2662
  %3471 = vmatpush1.bf16.msra.mxu0 %v2661
  %3472 = vmatprep.subr.bf16.mxu0 0
  %3473 = vmatpush1.bf16.msra.mxu0 0
  %3474 = vmatprep.subr.bf16.mxu0 0
  %3475 = vmatpush1.bf16.msra.mxu0 0
  %3476 = vmatprep.subr.bf16.mxu0 0
  %3477 = vmatpush1.bf16.msra.mxu0 0
  %3478 = vmatprep.subr.bf16.mxu0 0
  %3479 = vmatpush1.bf16.msra.mxu0 0
  %3480 = vmatprep.subr.bf16.mxu0 0
  %3481 = vmatpush1.bf16.msra.mxu0 0
  %3482 = vmatprep.subr.bf16.mxu0 0
  %3483 = vmatpush1.bf16.msra.mxu0 0
  %3484 = vmatprep.subr.bf16.mxu0 0
  %3485 = vmatpush1.bf16.msra.mxu0 0
  %3486 = vmatprep.subr.bf16.mxu0 0
  %3487 = vmatpush1.bf16.msra.mxu0 0
  %3488 = vmatprep.mubr.bf16.mxu0 0
  %3489 = vmatmul.mubr.bf16.gmra.mrb[0].mxu0 %v771
  %v3490 = vpop.f32.mrb[0].mxu0
  %v3491 = vadd.f32 %v3378, %v3490
  %v3492 = vpop.f32.mrb[0].mxu0
  %v3493 = vadd.f32 %v3380, %v3492
  %v3494 = vpop.f32.mrb[0].mxu0
  %v3495 = vadd.f32 %v3382, %v3494
  %v3496 = vpop.f32.mrb[0].mxu0
  %v3497 = vadd.f32 %v3384, %v3496
  %3498 = vmatprep.mubr.bf16.mxu0 0
  %3499 = vmatmul.mubr.bf16.gmra.mrb[0].mxu0 %v778
  %v3500 = vpop.f32.mrb[0].mxu0
  %v3501 = vadd.f32 %v3388, %v3500
  %v3502 = vpop.f32.mrb[0].mxu0
  %v3503 = vadd.f32 %v3390, %v3502
  %v3504 = vpop.f32.mrb[0].mxu0
  %v3505 = vadd.f32 %v3392, %v3504
  %v3506 = vpop.f32.mrb[0].mxu0
  %v3507 = vadd.f32 %v3394, %v3506
  %3508 = vmatprep.mubr.bf16.mxu0 0
  %3509 = vmatmul.mubr.bf16.gmra.mrb[0].mxu0 %v785
  %v3510 = vpop.f32.mrb[0].mxu0
  %v3511 = vadd.f32 %v3398, %v3510
  %v3512 = vpop.f32.mrb[0].mxu0
  %v3513 = vadd.f32 %v3400, %v3512
  %v3514 = vpop.f32.mrb[0].mxu0
  %v3515 = vadd.f32 %v3402, %v3514
  %v3516 = vpop.f32.mrb[0].mxu0
  %v3517 = vadd.f32 %v3404, %v3516
  %3518 = vmatprep.mubr.bf16.mxu0 0
  %3519 = vmatmul.mubr.bf16.gmra.mrb[0].mxu0 %v792
  %v3520 = vpop.f32.mrb[0].mxu0
  %v3521 = vadd.f32 %v3408, %v3520
  %v3522 = vpop.f32.mrb[0].mxu0
  %v3523 = vadd.f32 %v3410, %v3522
  %v3524 = vpop.f32.mrb[0].mxu0
  %v3525 = vadd.f32 %v3412, %v3524
  %v3526 = vpop.f32.mrb[0].mxu0
  %v3527 = vadd.f32 %v3414, %v3526
  %3528 = vmatprep.mubr.bf16.mxu0 0
  %3529 = vmatmul.mubr.bf16.gmra.mrb[0].mxu0 %v799
  %v3530 = vpop.f32.mrb[0].mxu0
  %v3531 = vadd.f32 %v3418, %v3530
  %v3532 = vpop.f32.mrb[0].mxu0
  %v3533 = vadd.f32 %v3420, %v3532
  %v3534 = vpop.f32.mrb[0].mxu0
  %v3535 = vadd.f32 %v3422, %v3534
  %v3536 = vpop.f32.mrb[0].mxu0
  %v3537 = vadd.f32 %v3424, %v3536
  %3538 = vmatprep.mubr.bf16.mxu0 0
  %3539 = vmatmul.mubr.bf16.gmra.mrb[0].mxu0 %v806
  %v3540 = vpop.f32.mrb[0].mxu0
  %v3541 = vadd.f32 %v3428, %v3540
  %v3542 = vpop.f32.mrb[0].mxu0
  %v3543 = vadd.f32 %v3430, %v3542
  %v3544 = vpop.f32.mrb[0].mxu0
  %v3545 = vadd.f32 %v3432, %v3544
  %v3546 = vpop.f32.mrb[0].mxu0
  %v3547 = vadd.f32 %v3434, %v3546
  %3548 = vmatprep.mubr.bf16.mxu0 0
  %3549 = vmatmul.mubr.bf16.gmra.mrb[0].mxu0 %v813
  %v3550 = vpop.f32.mrb[0].mxu0
  %v3551 = vadd.f32 %v3438, %v3550
  %v3552 = vpop.f32.mrb[0].mxu0
  %v3553 = vadd.f32 %v3440, %v3552
  %v3554 = vpop.f32.mrb[0].mxu0
  %v3555 = vadd.f32 %v3442, %v3554
  %v3556 = vpop.f32.mrb[0].mxu0
  %v3557 = vadd.f32 %v3444, %v3556
  %3558 = vmatprep.mubr.bf16.mxu0 0
  %3559 = vmatmul.mubr.bf16.gmra.mrb[0].mxu0 %v820
  %v3560 = vpop.f32.mrb[0].mxu0
  %v3561 = vadd.f32 %v3448, %v3560
  %v3562 = vpop.f32.mrb[0].mxu0
  %v3563 = vadd.f32 %v3450, %v3562
  %v3564 = vpop.f32.mrb[0].mxu0
  %v3565 = vadd.f32 %v3452, %v3564
  %v3566 = vpop.f32.mrb[0].mxu0
  %v3567 = vadd.f32 %v3454, %v3566
  %3568 = vdwg.mxu0
  %3569 = vmatprep.subr.bf16.mxu0 %v2224
  %3570 = vmatpush1.bf16.msra.mxu0 %v2223
  %3571 = vmatprep.subr.bf16.mxu0 %v2232
  %3572 = vmatpush1.bf16.msra.mxu0 %v2231
  %3573 = vmatprep.subr.bf16.mxu0 %v2240
  %3574 = vmatpush1.bf16.msra.mxu0 %v2239
  %3575 = vmatprep.subr.bf16.mxu0 %v2248
  %3576 = vmatpush1.bf16.msra.mxu0 %v2247
  %3577 = vmatprep.subr.bf16.mxu0 %v2256
  %3578 = vmatpush1.bf16.msra.mxu0 %v2255
  %3579 = vmatprep.subr.bf16.mxu0 %v2264
  %3580 = vmatpush1.bf16.msra.mxu0 %v2263
  %3581 = vmatprep.subr.bf16.mxu0 %v2272
  %3582 = vmatpush1.bf16.msra.mxu0 %v2271
  %3583 = vmatprep.subr.bf16.mxu0 %v2280
  %3584 = vmatpush1.bf16.msra.mxu0 %v2279
  %3585 = vmatprep.subr.bf16.mxu0 %v2288
  %3586 = vmatpush1.bf16.msra.mxu0 %v2287
  %3587 = vmatprep.subr.bf16.mxu0 %v2296
  %3588 = vmatpush1.bf16.msra.mxu0 %v2295
  %3589 = vmatprep.subr.bf16.mxu0 %v2304
  %3590 = vmatpush1.bf16.msra.mxu0 %v2303
  %3591 = vmatprep.subr.bf16.mxu0 %v2312
  %3592 = vmatpush1.bf16.msra.mxu0 %v2311
  %3593 = vmatprep.subr.bf16.mxu0 %v2320
  %3594 = vmatpush1.bf16.msra.mxu0 %v2319
  %3595 = vmatprep.subr.bf16.mxu0 %v2328
  %3596 = vmatpush1.bf16.msra.mxu0 %v2327
  %3597 = vmatprep.subr.bf16.mxu0 %v2336
  %3598 = vmatpush1.bf16.msra.mxu0 %v2335
  %3599 = vmatprep.subr.bf16.mxu0 %v2344
  %3600 = vmatpush1.bf16.msra.mxu0 %v2343
  %3601 = vmatprep.mubr.bf16.mxu0 %v766
  %3602 = vmatmul.mubr.bf16.gmra.mrb[0].mxu0 %v765
  %v3603 = vpop.f32.mrb[0].mxu0
  %v3604 = vadd.f32 %v560, %v3603
  %v3605 = vpop.f32.mrb[0].mxu0
  %v3606 = vadd.f32 %v564, %v3605
  %v3607 = vpop.f32.mrb[0].mxu0
  %v3608 = vadd.f32 %v560, %v3607
  %v3609 = vpop.f32.mrb[0].mxu0
  %v3610 = vadd.f32 %v564, %v3609
  %3611 = vmatprep.mubr.bf16.mxu0 %v773
  %3612 = vmatmul.mubr.bf16.gmra.mrb[0].mxu0 %v772
  %v3613 = vpop.f32.mrb[0].mxu0
  %v3614 = vadd.f32 %v560, %v3613
  %v3615 = vpop.f32.mrb[0].mxu0
  %v3616 = vadd.f32 %v564, %v3615
  %v3617 = vpop.f32.mrb[0].mxu0
  %v3618 = vadd.f32 %v560, %v3617
  %v3619 = vpop.f32.mrb[0].mxu0
  %v3620 = vadd.f32 %v564, %v3619
  %3621 = vmatprep.mubr.bf16.mxu0 %v780
  %3622 = vmatmul.mubr.bf16.gmra.mrb[0].mxu0 %v779
  %v3623 = vpop.f32.mrb[0].mxu0
  %v3624 = vadd.f32 %v560, %v3623
  %v3625 = vpop.f32.mrb[0].mxu0
  %v3626 = vadd.f32 %v564, %v3625
  %v3627 = vpop.f32.mrb[0].mxu0
  %v3628 = vadd.f32 %v560, %v3627
  %v3629 = vpop.f32.mrb[0].mxu0
  %v3630 = vadd.f32 %v564, %v3629
  %3631 = vmatprep.mubr.bf16.mxu0 %v787
  %3632 = vmatmul.mubr.bf16.gmra.mrb[0].mxu0 %v786
  %v3633 = vpop.f32.mrb[0].mxu0
  %v3634 = vadd.f32 %v560, %v3633
  %v3635 = vpop.f32.mrb[0].mxu0
  %v3636 = vadd.f32 %v564, %v3635
  %v3637 = vpop.f32.mrb[0].mxu0
  %v3638 = vadd.f32 %v560, %v3637
  %v3639 = vpop.f32.mrb[0].mxu0
  %v3640 = vadd.f32 %v564, %v3639
  %3641 = vmatprep.mubr.bf16.mxu0 %v794
  %3642 = vmatmul.mubr.bf16.gmra.mrb[0].mxu0 %v793
  %v3643 = vpop.f32.mrb[0].mxu0
  %v3644 = vadd.f32 %v560, %v3643
  %v3645 = vpop.f32.mrb[0].mxu0
  %v3646 = vadd.f32 %v564, %v3645
  %v3647 = vpop.f32.mrb[0].mxu0
  %v3648 = vadd.f32 %v560, %v3647
  %v3649 = vpop.f32.mrb[0].mxu0
  %v3650 = vadd.f32 %v564, %v3649
  %3651 = vmatprep.mubr.bf16.mxu0 %v801
  %3652 = vmatmul.mubr.bf16.gmra.mrb[0].mxu0 %v800
  %v3653 = vpop.f32.mrb[0].mxu0
  %v3654 = vadd.f32 %v560, %v3653
  %v3655 = vpop.f32.mrb[0].mxu0
  %v3656 = vadd.f32 %v564, %v3655
  %v3657 = vpop.f32.mrb[0].mxu0
  %v3658 = vadd.f32 %v560, %v3657
  %v3659 = vpop.f32.mrb[0].mxu0
  %v3660 = vadd.f32 %v564, %v3659
  %3661 = vmatprep.mubr.bf16.mxu0 %v808
  %3662 = vmatmul.mubr.bf16.gmra.mrb[0].mxu0 %v807
  %v3663 = vpop.f32.mrb[0].mxu0
  %v3664 = vadd.f32 %v560, %v3663
  %v3665 = vpop.f32.mrb[0].mxu0
  %v3666 = vadd.f32 %v564, %v3665
  %v3667 = vpop.f32.mrb[0].mxu0
  %v3668 = vadd.f32 %v560, %v3667
  %v3669 = vpop.f32.mrb[0].mxu0
  %v3670 = vadd.f32 %v564, %v3669
  %3671 = vmatprep.mubr.bf16.mxu0 %v815
  %3672 = vmatmul.mubr.bf16.gmra.mrb[0].mxu0 %v814
  %v3673 = vpop.f32.mrb[0].mxu0
  %v3674 = vadd.f32 %v560, %v3673
  %v3675 = vpop.f32.mrb[0].mxu0
  %v3676 = vadd.f32 %v564, %v3675
  %v3677 = vpop.f32.mrb[0].mxu0
  %v3678 = vadd.f32 %v560, %v3677
  %v3679 = vpop.f32.mrb[0].mxu0
  %v3680 = vadd.f32 %v564, %v3679
  %3681 = vdwg.mxu0
  %3682 = vmatprep.subr.bf16.mxu0 %v2352
  %3683 = vmatpush1.bf16.msra.mxu0 %v2351
  %3684 = vmatprep.subr.bf16.mxu0 %v2360
  %3685 = vmatpush1.bf16.msra.mxu0 %v2359
  %3686 = vmatprep.subr.bf16.mxu0 %v2368
  %3687 = vmatpush1.bf16.msra.mxu0 %v2367
  %3688 = vmatprep.subr.bf16.mxu0 %v2376
  %3689 = vmatpush1.bf16.msra.mxu0 %v2375
  %3690 = vmatprep.subr.bf16.mxu0 %v2384
  %3691 = vmatpush1.bf16.msra.mxu0 %v2383
  %3692 = vmatprep.subr.bf16.mxu0 %v2392
  %3693 = vmatpush1.bf16.msra.mxu0 %v2391
  %3694 = vmatprep.subr.bf16.mxu0 %v2400
  %3695 = vmatpush1.bf16.msra.mxu0 %v2399
  %3696 = vmatprep.subr.bf16.mxu0 %v2408
  %3697 = vmatpush1.bf16.msra.mxu0 %v2407
  %3698 = vmatprep.subr.bf16.mxu0 %v2416
  %3699 = vmatpush1.bf16.msra.mxu0 %v2415
  %3700 = vmatprep.subr.bf16.mxu0 %v2424
  %3701 = vmatpush1.bf16.msra.mxu0 %v2423
  %3702 = vmatprep.subr.bf16.mxu0 %v2432
  %3703 = vmatpush1.bf16.msra.mxu0 %v2431
  %3704 = vmatprep.subr.bf16.mxu0 %v2440
  %3705 = vmatpush1.bf16.msra.mxu0 %v2439
  %3706 = vmatprep.subr.bf16.mxu0 %v2448
  %3707 = vmatpush1.bf16.msra.mxu0 %v2447
  %3708 = vmatprep.subr.bf16.mxu0 %v2456
  %3709 = vmatpush1.bf16.msra.mxu0 %v2455
  %3710 = vmatprep.subr.bf16.mxu0 %v2464
  %3711 = vmatpush1.bf16.msra.mxu0 %v2463
  %3712 = vmatprep.subr.bf16.mxu0 %v2472
  %3713 = vmatpush1.bf16.msra.mxu0 %v2471
  %3714 = vmatprep.mubr.bf16.mxu0 %v768
  %3715 = vmatmul.mubr.bf16.gmra.mrb[0].mxu0 %v767
  %v3716 = vpop.f32.mrb[0].mxu0
  %v3717 = vadd.f32 %v3604, %v3716
  %v3718 = vpop.f32.mrb[0].mxu0
  %v3719 = vadd.f32 %v3606, %v3718
  %v3720 = vpop.f32.mrb[0].mxu0
  %v3721 = vadd.f32 %v3608, %v3720
  %v3722 = vpop.f32.mrb[0].mxu0
  %v3723 = vadd.f32 %v3610, %v3722
  %3724 = vmatprep.mubr.bf16.mxu0 %v775
  %3725 = vmatmul.mubr.bf16.gmra.mrb[0].mxu0 %v774
  %v3726 = vpop.f32.mrb[0].mxu0
  %v3727 = vadd.f32 %v3614, %v3726
  %v3728 = vpop.f32.mrb[0].mxu0
  %v3729 = vadd.f32 %v3616, %v3728
  %v3730 = vpop.f32.mrb[0].mxu0
  %v3731 = vadd.f32 %v3618, %v3730
  %v3732 = vpop.f32.mrb[0].mxu0
  %v3733 = vadd.f32 %v3620, %v3732
  %3734 = vmatprep.mubr.bf16.mxu0 %v782
  %3735 = vmatmul.mubr.bf16.gmra.mrb[0].mxu0 %v781
  %v3736 = vpop.f32.mrb[0].mxu0
  %v3737 = vadd.f32 %v3624, %v3736
  %v3738 = vpop.f32.mrb[0].mxu0
  %v3739 = vadd.f32 %v3626, %v3738
  %v3740 = vpop.f32.mrb[0].mxu0
  %v3741 = vadd.f32 %v3628, %v3740
  %v3742 = vpop.f32.mrb[0].mxu0
  %v3743 = vadd.f32 %v3630, %v3742
  %3744 = vmatprep.mubr.bf16.mxu0 %v789
  %3745 = vmatmul.mubr.bf16.gmra.mrb[0].mxu0 %v788
  %v3746 = vpop.f32.mrb[0].mxu0
  %v3747 = vadd.f32 %v3634, %v3746
  %v3748 = vpop.f32.mrb[0].mxu0
  %v3749 = vadd.f32 %v3636, %v3748
  %v3750 = vpop.f32.mrb[0].mxu0
  %v3751 = vadd.f32 %v3638, %v3750
  %v3752 = vpop.f32.mrb[0].mxu0
  %v3753 = vadd.f32 %v3640, %v3752
  %3754 = vmatprep.mubr.bf16.mxu0 %v796
  %3755 = vmatmul.mubr.bf16.gmra.mrb[0].mxu0 %v795
  %v3756 = vpop.f32.mrb[0].mxu0
  %v3757 = vadd.f32 %v3644, %v3756
  %v3758 = vpop.f32.mrb[0].mxu0
  %v3759 = vadd.f32 %v3646, %v3758
  %v3760 = vpop.f32.mrb[0].mxu0
  %v3761 = vadd.f32 %v3648, %v3760
  %v3762 = vpop.f32.mrb[0].mxu0
  %v3763 = vadd.f32 %v3650, %v3762
  %3764 = vmatprep.mubr.bf16.mxu0 %v803
  %3765 = vmatmul.mubr.bf16.gmra.mrb[0].mxu0 %v802
  %v3766 = vpop.f32.mrb[0].mxu0
  %v3767 = vadd.f32 %v3654, %v3766
  %v3768 = vpop.f32.mrb[0].mxu0
  %v3769 = vadd.f32 %v3656, %v3768
  %v3770 = vpop.f32.mrb[0].mxu0
  %v3771 = vadd.f32 %v3658, %v3770
  %v3772 = vpop.f32.mrb[0].mxu0
  %v3773 = vadd.f32 %v3660, %v3772
  %3774 = vmatprep.mubr.bf16.mxu0 %v810
  %3775 = vmatmul.mubr.bf16.gmra.mrb[0].mxu0 %v809
  %v3776 = vpop.f32.mrb[0].mxu0
  %v3777 = vadd.f32 %v3664, %v3776
  %v3778 = vpop.f32.mrb[0].mxu0
  %v3779 = vadd.f32 %v3666, %v3778
  %v3780 = vpop.f32.mrb[0].mxu0
  %v3781 = vadd.f32 %v3668, %v3780
  %v3782 = vpop.f32.mrb[0].mxu0
  %v3783 = vadd.f32 %v3670, %v3782
  %3784 = vmatprep.mubr.bf16.mxu0 %v817
  %3785 = vmatmul.mubr.bf16.gmra.mrb[0].mxu0 %v816
  %v3786 = vpop.f32.mrb[0].mxu0
  %v3787 = vadd.f32 %v3674, %v3786
  %v3788 = vpop.f32.mrb[0].mxu0
  %v3789 = vadd.f32 %v3676, %v3788
  %v3790 = vpop.f32.mrb[0].mxu0
  %v3791 = vadd.f32 %v3678, %v3790
  %v3792 = vpop.f32.mrb[0].mxu0
  %v3793 = vadd.f32 %v3680, %v3792
  %3794 = vdwg.mxu0
  %3795 = vmatprep.subr.bf16.mxu0 %v2480
  %3796 = vmatpush1.bf16.msra.mxu0 %v2479
  %3797 = vmatprep.subr.bf16.mxu0 %v2488
  %3798 = vmatpush1.bf16.msra.mxu0 %v2487
  %3799 = vmatprep.subr.bf16.mxu0 %v2496
  %3800 = vmatpush1.bf16.msra.mxu0 %v2495
  %3801 = vmatprep.subr.bf16.mxu0 %v2504
  %3802 = vmatpush1.bf16.msra.mxu0 %v2503
  %3803 = vmatprep.subr.bf16.mxu0 %v2512
  %3804 = vmatpush1.bf16.msra.mxu0 %v2511
  %3805 = vmatprep.subr.bf16.mxu0 %v2520
  %3806 = vmatpush1.bf16.msra.mxu0 %v2519
  %3807 = vmatprep.subr.bf16.mxu0 %v2528
  %3808 = vmatpush1.bf16.msra.mxu0 %v2527
  %3809 = vmatprep.subr.bf16.mxu0 %v2536
  %3810 = vmatpush1.bf16.msra.mxu0 %v2535
  %3811 = vmatprep.subr.bf16.mxu0 %v2544
  %3812 = vmatpush1.bf16.msra.mxu0 %v2543
  %3813 = vmatprep.subr.bf16.mxu0 %v2552
  %3814 = vmatpush1.bf16.msra.mxu0 %v2551
  %3815 = vmatprep.subr.bf16.mxu0 %v2560
  %3816 = vmatpush1.bf16.msra.mxu0 %v2559
  %3817 = vmatprep.subr.bf16.mxu0 %v2568
  %3818 = vmatpush1.bf16.msra.mxu0 %v2567
  %3819 = vmatprep.subr.bf16.mxu0 %v2576
  %3820 = vmatpush1.bf16.msra.mxu0 %v2575
  %3821 = vmatprep.subr.bf16.mxu0 %v2584
  %3822 = vmatpush1.bf16.msra.mxu0 %v2583
  %3823 = vmatprep.subr.bf16.mxu0 %v2592
  %3824 = vmatpush1.bf16.msra.mxu0 %v2591
  %3825 = vmatprep.subr.bf16.mxu0 %v2600
  %3826 = vmatpush1.bf16.msra.mxu0 %v2599
  %3827 = vmatprep.mubr.bf16.mxu0 %v770
  %3828 = vmatmul.mubr.bf16.gmra.mrb[0].mxu0 %v769
  %v3829 = vpop.f32.mrb[0].mxu0
  %v3830 = vadd.f32 %v3717, %v3829
  %v3831 = vpop.f32.mrb[0].mxu0
  %v3832 = vadd.f32 %v3719, %v3831
  %v3833 = vpop.f32.mrb[0].mxu0
  %v3834 = vadd.f32 %v3721, %v3833
  %v3835 = vpop.f32.mrb[0].mxu0
  %v3836 = vadd.f32 %v3723, %v3835
  %3837 = vmatprep.mubr.bf16.mxu0 %v777
  %3838 = vmatmul.mubr.bf16.gmra.mrb[0].mxu0 %v776
  %v3839 = vpop.f32.mrb[0].mxu0
  %v3840 = vadd.f32 %v3727, %v3839
  %v3841 = vpop.f32.mrb[0].mxu0
  %v3842 = vadd.f32 %v3729, %v3841
  %v3843 = vpop.f32.mrb[0].mxu0
  %v3844 = vadd.f32 %v3731, %v3843
  %v3845 = vpop.f32.mrb[0].mxu0
  %v3846 = vadd.f32 %v3733, %v3845
  %3847 = vmatprep.mubr.bf16.mxu0 %v784
  %3848 = vmatmul.mubr.bf16.gmra.mrb[0].mxu0 %v783
  %v3849 = vpop.f32.mrb[0].mxu0
  %v3850 = vadd.f32 %v3737, %v3849
  %v3851 = vpop.f32.mrb[0].mxu0
  %v3852 = vadd.f32 %v3739, %v3851
  %v3853 = vpop.f32.mrb[0].mxu0
  %v3854 = vadd.f32 %v3741, %v3853
  %v3855 = vpop.f32.mrb[0].mxu0
  %v3856 = vadd.f32 %v3743, %v3855
  %3857 = vmatprep.mubr.bf16.mxu0 %v791
  %3858 = vmatmul.mubr.bf16.gmra.mrb[0].mxu0 %v790
  %v3859 = vpop.f32.mrb[0].mxu0
  %v3860 = vadd.f32 %v3747, %v3859
  %v3861 = vpop.f32.mrb[0].mxu0
  %v3862 = vadd.f32 %v3749, %v3861
  %v3863 = vpop.f32.mrb[0].mxu0
  %v3864 = vadd.f32 %v3751, %v3863
  %v3865 = vpop.f32.mrb[0].mxu0
  %v3866 = vadd.f32 %v3753, %v3865
  %3867 = vmatprep.mubr.bf16.mxu0 %v798
  %3868 = vmatmul.mubr.bf16.gmra.mrb[0].mxu0 %v797
  %v3869 = vpop.f32.mrb[0].mxu0
  %v3870 = vadd.f32 %v3757, %v3869
  %v3871 = vpop.f32.mrb[0].mxu0
  %v3872 = vadd.f32 %v3759, %v3871
  %v3873 = vpop.f32.mrb[0].mxu0
  %v3874 = vadd.f32 %v3761, %v3873
  %v3875 = vpop.f32.mrb[0].mxu0
  %v3876 = vadd.f32 %v3763, %v3875
  %3877 = vmatprep.mubr.bf16.mxu0 %v805
  %3878 = vmatmul.mubr.bf16.gmra.mrb[0].mxu0 %v804
  %v3879 = vpop.f32.mrb[0].mxu0
  %v3880 = vadd.f32 %v3767, %v3879
  %v3881 = vpop.f32.mrb[0].mxu0
  %v3882 = vadd.f32 %v3769, %v3881
  %v3883 = vpop.f32.mrb[0].mxu0
  %v3884 = vadd.f32 %v3771, %v3883
  %v3885 = vpop.f32.mrb[0].mxu0
  %v3886 = vadd.f32 %v3773, %v3885
  %3887 = vmatprep.mubr.bf16.mxu0 %v812
  %3888 = vmatmul.mubr.bf16.gmra.mrb[0].mxu0 %v811
  %v3889 = vpop.f32.mrb[0].mxu0
  %v3890 = vadd.f32 %v3777, %v3889
  %v3891 = vpop.f32.mrb[0].mxu0
  %v3892 = vadd.f32 %v3779, %v3891
  %v3893 = vpop.f32.mrb[0].mxu0
  %v3894 = vadd.f32 %v3781, %v3893
  %v3895 = vpop.f32.mrb[0].mxu0
  %v3896 = vadd.f32 %v3783, %v3895
  %3897 = vmatprep.mubr.bf16.mxu0 %v819
  %3898 = vmatmul.mubr.bf16.gmra.mrb[0].mxu0 %v818
  %v3899 = vpop.f32.mrb[0].mxu0
  %v3900 = vadd.f32 %v3787, %v3899
  %v3901 = vpop.f32.mrb[0].mxu0
  %v3902 = vadd.f32 %v3789, %v3901
  %v3903 = vpop.f32.mrb[0].mxu0
  %v3904 = vadd.f32 %v3791, %v3903
  %v3905 = vpop.f32.mrb[0].mxu0
  %v3906 = vadd.f32 %v3793, %v3905
  %3907 = vdwg.mxu0
  %3908 = vmatprep.subr.bf16.mxu0 %v2608
  %3909 = vmatpush1.bf16.msra.mxu0 %v2607
  %3910 = vmatprep.subr.bf16.mxu0 %v2616
  %3911 = vmatpush1.bf16.msra.mxu0 %v2615
  %3912 = vmatprep.subr.bf16.mxu0 %v2624
  %3913 = vmatpush1.bf16.msra.mxu0 %v2623
  %3914 = vmatprep.subr.bf16.mxu0 %v2632
  %3915 = vmatpush1.bf16.msra.mxu0 %v2631
  %3916 = vmatprep.subr.bf16.mxu0 %v2640
  %3917 = vmatpush1.bf16.msra.mxu0 %v2639
  %3918 = vmatprep.subr.bf16.mxu0 %v2648
  %3919 = vmatpush1.bf16.msra.mxu0 %v2647
  %3920 = vmatprep.subr.bf16.mxu0 %v2656
  %3921 = vmatpush1.bf16.msra.mxu0 %v2655
  %3922 = vmatprep.subr.bf16.mxu0 %v2664
  %3923 = vmatpush1.bf16.msra.mxu0 %v2663
  %3924 = vmatprep.subr.bf16.mxu0 0
  %3925 = vmatpush1.bf16.msra.mxu0 0
  %3926 = vmatprep.subr.bf16.mxu0 0
  %3927 = vmatpush1.bf16.msra.mxu0 0
  %3928 = vmatprep.subr.bf16.mxu0 0
  %3929 = vmatpush1.bf16.msra.mxu0 0
  %3930 = vmatprep.subr.bf16.mxu0 0
  %3931 = vmatpush1.bf16.msra.mxu0 0
  %3932 = vmatprep.subr.bf16.mxu0 0
  %3933 = vmatpush1.bf16.msra.mxu0 0
  %3934 = vmatprep.subr.bf16.mxu0 0
  %3935 = vmatpush1.bf16.msra.mxu0 0
  %3936 = vmatprep.subr.bf16.mxu0 0
  %3937 = vmatpush1.bf16.msra.mxu0 0
  %3938 = vmatprep.subr.bf16.mxu0 0
  %3939 = vmatpush1.bf16.msra.mxu0 0
  %3940 = vmatprep.mubr.bf16.mxu0 0
  %3941 = vmatmul.mubr.bf16.gmra.mrb[0].mxu0 %v771
  %v3942 = vpop.f32.mrb[0].mxu0
  %v3943 = vadd.f32 %v3830, %v3942
  %v3944 = vpop.f32.mrb[0].mxu0
  %v3945 = vadd.f32 %v3832, %v3944
  %v3946 = vpop.f32.mrb[0].mxu0
  %v3947 = vadd.f32 %v3834, %v3946
  %v3948 = vpop.f32.mrb[0].mxu0
  %v3949 = vadd.f32 %v3836, %v3948
  %3950 = vmatprep.mubr.bf16.mxu0 0
  %3951 = vmatmul.mubr.bf16.gmra.mrb[0].mxu0 %v778
  %v3952 = vpop.f32.mrb[0].mxu0
  %v3953 = vadd.f32 %v3840, %v3952
  %v3954 = vpop.f32.mrb[0].mxu0
  %v3955 = vadd.f32 %v3842, %v3954
  %v3956 = vpop.f32.mrb[0].mxu0
  %v3957 = vadd.f32 %v3844, %v3956
  %v3958 = vpop.f32.mrb[0].mxu0
  %v3959 = vadd.f32 %v3846, %v3958
  %3960 = vmatprep.mubr.bf16.mxu0 0
  %3961 = vmatmul.mubr.bf16.gmra.mrb[0].mxu0 %v785
  %v3962 = vpop.f32.mrb[0].mxu0
  %v3963 = vadd.f32 %v3850, %v3962
  %v3964 = vpop.f32.mrb[0].mxu0
  %v3965 = vadd.f32 %v3852, %v3964
  %v3966 = vpop.f32.mrb[0].mxu0
  %v3967 = vadd.f32 %v3854, %v3966
  %v3968 = vpop.f32.mrb[0].mxu0
  %v3969 = vadd.f32 %v3856, %v3968
  %3970 = vmatprep.mubr.bf16.mxu0 0
  %3971 = vmatmul.mubr.bf16.gmra.mrb[0].mxu0 %v792
  %v3972 = vpop.f32.mrb[0].mxu0
  %v3973 = vadd.f32 %v3860, %v3972
  %v3974 = vpop.f32.mrb[0].mxu0
  %v3975 = vadd.f32 %v3862, %v3974
  %v3976 = vpop.f32.mrb[0].mxu0
  %v3977 = vadd.f32 %v3864, %v3976
  %v3978 = vpop.f32.mrb[0].mxu0
  %v3979 = vadd.f32 %v3866, %v3978
  %3980 = vmatprep.mubr.bf16.mxu0 0
  %3981 = vmatmul.mubr.bf16.gmra.mrb[0].mxu0 %v799
  %v3982 = vpop.f32.mrb[0].mxu0
  %v3983 = vadd.f32 %v3870, %v3982
  %v3984 = vpop.f32.mrb[0].mxu0
  %v3985 = vadd.f32 %v3872, %v3984
  %v3986 = vpop.f32.mrb[0].mxu0
  %v3987 = vadd.f32 %v3874, %v3986
  %v3988 = vpop.f32.mrb[0].mxu0
  %v3989 = vadd.f32 %v3876, %v3988
  %3990 = vmatprep.mubr.bf16.mxu0 0
  %3991 = vmatmul.mubr.bf16.gmra.mrb[0].mxu0 %v806
  %v3992 = vpop.f32.mrb[0].mxu0
  %v3993 = vadd.f32 %v3880, %v3992
  %v3994 = vpop.f32.mrb[0].mxu0
  %v3995 = vadd.f32 %v3882, %v3994
  %v3996 = vpop.f32.mrb[0].mxu0
  %v3997 = vadd.f32 %v3884, %v3996
  %v3998 = vpop.f32.mrb[0].mxu0
  %v3999 = vadd.f32 %v3886, %v3998
  %4000 = vmatprep.mubr.bf16.mxu0 0
  %4001 = vmatmul.mubr.bf16.gmra.mrb[0].mxu0 %v813
  %v4002 = vpop.f32.mrb[0].mxu0
  %v4003 = vadd.f32 %v3890, %v4002
  %v4004 = vpop.f32.mrb[0].mxu0
  %v4005 = vadd.f32 %v3892, %v4004
  %v4006 = vpop.f32.mrb[0].mxu0
  %v4007 = vadd.f32 %v3894, %v4006
  %v4008 = vpop.f32.mrb[0].mxu0
  %v4009 = vadd.f32 %v3896, %v4008
  %4010 = vmatprep.mubr.bf16.mxu0 0
  %4011 = vmatmul.mubr.bf16.gmra.mrb[0].mxu0 %v820
  %v4012 = vpop.f32.mrb[0].mxu0
  %v4013 = vadd.f32 %v3900, %v4012
  %v4014 = vpop.f32.mrb[0].mxu0
  %v4015 = vadd.f32 %v3902, %v4014
  %v4016 = vpop.f32.mrb[0].mxu0
  %v4017 = vadd.f32 %v3904, %v4016
  %v4018 = vpop.f32.mrb[0].mxu0
  %v4019 = vadd.f32 %v3906, %v4018
  %4020 = vdwg.mxu0
  %4021 = vmatprep.subr.bf16.mxu0 %v2226
  %4022 = vmatpush1.bf16.msra.mxu0 %v2225
  %4023 = vmatprep.subr.bf16.mxu0 %v2234
  %4024 = vmatpush1.bf16.msra.mxu0 %v2233
  %4025 = vmatprep.subr.bf16.mxu0 %v2242
  %4026 = vmatpush1.bf16.msra.mxu0 %v2241
  %4027 = vmatprep.subr.bf16.mxu0 %v2250
  %4028 = vmatpush1.bf16.msra.mxu0 %v2249
  %4029 = vmatprep.subr.bf16.mxu0 %v2258
  %4030 = vmatpush1.bf16.msra.mxu0 %v2257
  %4031 = vmatprep.subr.bf16.mxu0 %v2266
  %4032 = vmatpush1.bf16.msra.mxu0 %v2265
  %4033 = vmatprep.subr.bf16.mxu0 %v2274
  %4034 = vmatpush1.bf16.msra.mxu0 %v2273
  %4035 = vmatprep.subr.bf16.mxu0 %v2282
  %4036 = vmatpush1.bf16.msra.mxu0 %v2281
  %4037 = vmatprep.subr.bf16.mxu0 %v2290
  %4038 = vmatpush1.bf16.msra.mxu0 %v2289
  %4039 = vmatprep.subr.bf16.mxu0 %v2298
  %4040 = vmatpush1.bf16.msra.mxu0 %v2297
  %4041 = vmatprep.subr.bf16.mxu0 %v2306
  %4042 = vmatpush1.bf16.msra.mxu0 %v2305
  %4043 = vmatprep.subr.bf16.mxu0 %v2314
  %4044 = vmatpush1.bf16.msra.mxu0 %v2313
  %4045 = vmatprep.subr.bf16.mxu0 %v2322
  %4046 = vmatpush1.bf16.msra.mxu0 %v2321
  %4047 = vmatprep.subr.bf16.mxu0 %v2330
  %4048 = vmatpush1.bf16.msra.mxu0 %v2329
  %4049 = vmatprep.subr.bf16.mxu0 %v2338
  %4050 = vmatpush1.bf16.msra.mxu0 %v2337
  %4051 = vmatprep.subr.bf16.mxu0 %v2346
  %4052 = vmatpush1.bf16.msra.mxu0 %v2345
  %4053 = vmatprep.mubr.bf16.mxu0 %v766
  %4054 = vmatmul.mubr.bf16.gmra.mrb[0].mxu0 %v765
  %v4055 = vpop.f32.mrb[0].mxu0
  %v4056 = vadd.f32 %v568, %v4055
  %v4057 = vpop.f32.mrb[0].mxu0
  %v4058 = vadd.f32 %v572, %v4057
  %v4059 = vpop.f32.mrb[0].mxu0
  %v4060 = vadd.f32 %v568, %v4059
  %v4061 = vpop.f32.mrb[0].mxu0
  %v4062 = vadd.f32 %v572, %v4061
  %4063 = vmatprep.mubr.bf16.mxu0 %v773
  %4064 = vmatmul.mubr.bf16.gmra.mrb[0].mxu0 %v772
  %v4065 = vpop.f32.mrb[0].mxu0
  %v4066 = vadd.f32 %v568, %v4065
  %v4067 = vpop.f32.mrb[0].mxu0
  %v4068 = vadd.f32 %v572, %v4067
  %v4069 = vpop.f32.mrb[0].mxu0
  %v4070 = vadd.f32 %v568, %v4069
  %v4071 = vpop.f32.mrb[0].mxu0
  %v4072 = vadd.f32 %v572, %v4071
  %4073 = vmatprep.mubr.bf16.mxu0 %v780
  %4074 = vmatmul.mubr.bf16.gmra.mrb[0].mxu0 %v779
  %v4075 = vpop.f32.mrb[0].mxu0
  %v4076 = vadd.f32 %v568, %v4075
  %v4077 = vpop.f32.mrb[0].mxu0
  %v4078 = vadd.f32 %v572, %v4077
  %v4079 = vpop.f32.mrb[0].mxu0
  %v4080 = vadd.f32 %v568, %v4079
  %v4081 = vpop.f32.mrb[0].mxu0
  %v4082 = vadd.f32 %v572, %v4081
  %4083 = vmatprep.mubr.bf16.mxu0 %v787
  %4084 = vmatmul.mubr.bf16.gmra.mrb[0].mxu0 %v786
  %v4085 = vpop.f32.mrb[0].mxu0
  %v4086 = vadd.f32 %v568, %v4085
  %v4087 = vpop.f32.mrb[0].mxu0
  %v4088 = vadd.f32 %v572, %v4087
  %v4089 = vpop.f32.mrb[0].mxu0
  %v4090 = vadd.f32 %v568, %v4089
  %v4091 = vpop.f32.mrb[0].mxu0
  %v4092 = vadd.f32 %v572, %v4091
  %4093 = vmatprep.mubr.bf16.mxu0 %v794
  %4094 = vmatmul.mubr.bf16.gmra.mrb[0].mxu0 %v793
  %v4095 = vpop.f32.mrb[0].mxu0
  %v4096 = vadd.f32 %v568, %v4095
  %v4097 = vpop.f32.mrb[0].mxu0
  %v4098 = vadd.f32 %v572, %v4097
  %v4099 = vpop.f32.mrb[0].mxu0
  %v4100 = vadd.f32 %v568, %v4099
  %v4101 = vpop.f32.mrb[0].mxu0
  %v4102 = vadd.f32 %v572, %v4101
  %4103 = vmatprep.mubr.bf16.mxu0 %v801
  %4104 = vmatmul.mubr.bf16.gmra.mrb[0].mxu0 %v800
  %v4105 = vpop.f32.mrb[0].mxu0
  %v4106 = vadd.f32 %v568, %v4105
  %v4107 = vpop.f32.mrb[0].mxu0
  %v4108 = vadd.f32 %v572, %v4107
  %v4109 = vpop.f32.mrb[0].mxu0
  %v4110 = vadd.f32 %v568, %v4109
  %v4111 = vpop.f32.mrb[0].mxu0
  %v4112 = vadd.f32 %v572, %v4111
  %4113 = vmatprep.mubr.bf16.mxu0 %v808
  %4114 = vmatmul.mubr.bf16.gmra.mrb[0].mxu0 %v807
  %v4115 = vpop.f32.mrb[0].mxu0
  %v4116 = vadd.f32 %v568, %v4115
  %v4117 = vpop.f32.mrb[0].mxu0
  %v4118 = vadd.f32 %v572, %v4117
  %v4119 = vpop.f32.mrb[0].mxu0
  %v4120 = vadd.f32 %v568, %v4119
  %v4121 = vpop.f32.mrb[0].mxu0
  %v4122 = vadd.f32 %v572, %v4121
  %4123 = vmatprep.mubr.bf16.mxu0 %v815
  %4124 = vmatmul.mubr.bf16.gmra.mrb[0].mxu0 %v814
  %v4125 = vpop.f32.mrb[0].mxu0
  %v4126 = vadd.f32 %v568, %v4125
  %v4127 = vpop.f32.mrb[0].mxu0
  %v4128 = vadd.f32 %v572, %v4127
  %v4129 = vpop.f32.mrb[0].mxu0
  %v4130 = vadd.f32 %v568, %v4129
  %v4131 = vpop.f32.mrb[0].mxu0
  %v4132 = vadd.f32 %v572, %v4131
  %4133 = vdwg.mxu0
  %4134 = vmatprep.subr.bf16.mxu0 %v2354
  %4135 = vmatpush1.bf16.msra.mxu0 %v2353
  %4136 = vmatprep.subr.bf16.mxu0 %v2362
  %4137 = vmatpush1.bf16.msra.mxu0 %v2361
  %4138 = vmatprep.subr.bf16.mxu0 %v2370
  %4139 = vmatpush1.bf16.msra.mxu0 %v2369
  %4140 = vmatprep.subr.bf16.mxu0 %v2378
  %4141 = vmatpush1.bf16.msra.mxu0 %v2377
  %4142 = vmatprep.subr.bf16.mxu0 %v2386
  %4143 = vmatpush1.bf16.msra.mxu0 %v2385
  %4144 = vmatprep.subr.bf16.mxu0 %v2394
  %4145 = vmatpush1.bf16.msra.mxu0 %v2393
  %4146 = vmatprep.subr.bf16.mxu0 %v2402
  %4147 = vmatpush1.bf16.msra.mxu0 %v2401
  %4148 = vmatprep.subr.bf16.mxu0 %v2410
  %4149 = vmatpush1.bf16.msra.mxu0 %v2409
  %4150 = vmatprep.subr.bf16.mxu0 %v2418
  %4151 = vmatpush1.bf16.msra.mxu0 %v2417
  %4152 = vmatprep.subr.bf16.mxu0 %v2426
  %4153 = vmatpush1.bf16.msra.mxu0 %v2425
  %4154 = vmatprep.subr.bf16.mxu0 %v2434
  %4155 = vmatpush1.bf16.msra.mxu0 %v2433
  %4156 = vmatprep.subr.bf16.mxu0 %v2442
  %4157 = vmatpush1.bf16.msra.mxu0 %v2441
  %4158 = vmatprep.subr.bf16.mxu0 %v2450
  %4159 = vmatpush1.bf16.msra.mxu0 %v2449
  %4160 = vmatprep.subr.bf16.mxu0 %v2458
  %4161 = vmatpush1.bf16.msra.mxu0 %v2457
  %4162 = vmatprep.subr.bf16.mxu0 %v2466
  %4163 = vmatpush1.bf16.msra.mxu0 %v2465
  %4164 = vmatprep.subr.bf16.mxu0 %v2474
  %4165 = vmatpush1.bf16.msra.mxu0 %v2473
  %4166 = vmatprep.mubr.bf16.mxu0 %v768
  %4167 = vmatmul.mubr.bf16.gmra.mrb[0].mxu0 %v767
  %v4168 = vpop.f32.mrb[0].mxu0
  %v4169 = vadd.f32 %v4056, %v4168
  %v4170 = vpop.f32.mrb[0].mxu0
  %v4171 = vadd.f32 %v4058, %v4170
  %v4172 = vpop.f32.mrb[0].mxu0
  %v4173 = vadd.f32 %v4060, %v4172
  %v4174 = vpop.f32.mrb[0].mxu0
  %v4175 = vadd.f32 %v4062, %v4174
  %4176 = vmatprep.mubr.bf16.mxu0 %v775
  %4177 = vmatmul.mubr.bf16.gmra.mrb[0].mxu0 %v774
  %v4178 = vpop.f32.mrb[0].mxu0
  %v4179 = vadd.f32 %v4066, %v4178
  %v4180 = vpop.f32.mrb[0].mxu0
  %v4181 = vadd.f32 %v4068, %v4180
  %v4182 = vpop.f32.mrb[0].mxu0
  %v4183 = vadd.f32 %v4070, %v4182
  %v4184 = vpop.f32.mrb[0].mxu0
  %v4185 = vadd.f32 %v4072, %v4184
  %4186 = vmatprep.mubr.bf16.mxu0 %v782
  %4187 = vmatmul.mubr.bf16.gmra.mrb[0].mxu0 %v781
  %v4188 = vpop.f32.mrb[0].mxu0
  %v4189 = vadd.f32 %v4076, %v4188
  %v4190 = vpop.f32.mrb[0].mxu0
  %v4191 = vadd.f32 %v4078, %v4190
  %v4192 = vpop.f32.mrb[0].mxu0
  %v4193 = vadd.f32 %v4080, %v4192
  %v4194 = vpop.f32.mrb[0].mxu0
  %v4195 = vadd.f32 %v4082, %v4194
  %4196 = vmatprep.mubr.bf16.mxu0 %v789
  %4197 = vmatmul.mubr.bf16.gmra.mrb[0].mxu0 %v788
  %v4198 = vpop.f32.mrb[0].mxu0
  %v4199 = vadd.f32 %v4086, %v4198
  %v4200 = vpop.f32.mrb[0].mxu0
  %v4201 = vadd.f32 %v4088, %v4200
  %v4202 = vpop.f32.mrb[0].mxu0
  %v4203 = vadd.f32 %v4090, %v4202
  %v4204 = vpop.f32.mrb[0].mxu0
  %v4205 = vadd.f32 %v4092, %v4204
  %4206 = vmatprep.mubr.bf16.mxu0 %v796
  %4207 = vmatmul.mubr.bf16.gmra.mrb[0].mxu0 %v795
  %v4208 = vpop.f32.mrb[0].mxu0
  %v4209 = vadd.f32 %v4096, %v4208
  %v4210 = vpop.f32.mrb[0].mxu0
  %v4211 = vadd.f32 %v4098, %v4210
  %v4212 = vpop.f32.mrb[0].mxu0
  %v4213 = vadd.f32 %v4100, %v4212
  %v4214 = vpop.f32.mrb[0].mxu0
  %v4215 = vadd.f32 %v4102, %v4214
  %4216 = vmatprep.mubr.bf16.mxu0 %v803
  %4217 = vmatmul.mubr.bf16.gmra.mrb[0].mxu0 %v802
  %v4218 = vpop.f32.mrb[0].mxu0
  %v4219 = vadd.f32 %v4106, %v4218
  %v4220 = vpop.f32.mrb[0].mxu0
  %v4221 = vadd.f32 %v4108, %v4220
  %v4222 = vpop.f32.mrb[0].mxu0
  %v4223 = vadd.f32 %v4110, %v4222
  %v4224 = vpop.f32.mrb[0].mxu0
  %v4225 = vadd.f32 %v4112, %v4224
  %4226 = vmatprep.mubr.bf16.mxu0 %v810
  %4227 = vmatmul.mubr.bf16.gmra.mrb[0].mxu0 %v809
  %v4228 = vpop.f32.mrb[0].mxu0
  %v4229 = vadd.f32 %v4116, %v4228
  %v4230 = vpop.f32.mrb[0].mxu0
  %v4231 = vadd.f32 %v4118, %v4230
  %v4232 = vpop.f32.mrb[0].mxu0
  %v4233 = vadd.f32 %v4120, %v4232
  %v4234 = vpop.f32.mrb[0].mxu0
  %v4235 = vadd.f32 %v4122, %v4234
  %4236 = vmatprep.mubr.bf16.mxu0 %v817
  %4237 = vmatmul.mubr.bf16.gmra.mrb[0].mxu0 %v816
  %v4238 = vpop.f32.mrb[0].mxu0
  %v4239 = vadd.f32 %v4126, %v4238
  %v4240 = vpop.f32.mrb[0].mxu0
  %v4241 = vadd.f32 %v4128, %v4240
  %v4242 = vpop.f32.mrb[0].mxu0
  %v4243 = vadd.f32 %v4130, %v4242
  %v4244 = vpop.f32.mrb[0].mxu0
  %v4245 = vadd.f32 %v4132, %v4244
  %4246 = vdwg.mxu0
  %4247 = vmatprep.subr.bf16.mxu0 %v2482
  %4248 = vmatpush1.bf16.msra.mxu0 %v2481
  %4249 = vmatprep.subr.bf16.mxu0 %v2490
  %4250 = vmatpush1.bf16.msra.mxu0 %v2489
  %4251 = vmatprep.subr.bf16.mxu0 %v2498
  %4252 = vmatpush1.bf16.msra.mxu0 %v2497
  %4253 = vmatprep.subr.bf16.mxu0 %v2506
  %4254 = vmatpush1.bf16.msra.mxu0 %v2505
  %4255 = vmatprep.subr.bf16.mxu0 %v2514
  %4256 = vmatpush1.bf16.msra.mxu0 %v2513
  %4257 = vmatprep.subr.bf16.mxu0 %v2522
  %4258 = vmatpush1.bf16.msra.mxu0 %v2521
  %4259 = vmatprep.subr.bf16.mxu0 %v2530
  %4260 = vmatpush1.bf16.msra.mxu0 %v2529
  %4261 = vmatprep.subr.bf16.mxu0 %v2538
  %4262 = vmatpush1.bf16.msra.mxu0 %v2537
  %4263 = vmatprep.subr.bf16.mxu0 %v2546
  %4264 = vmatpush1.bf16.msra.mxu0 %v2545
  %4265 = vmatprep.subr.bf16.mxu0 %v2554
  %4266 = vmatpush1.bf16.msra.mxu0 %v2553
  %4267 = vmatprep.subr.bf16.mxu0 %v2562
  %4268 = vmatpush1.bf16.msra.mxu0 %v2561
  %4269 = vmatprep.subr.bf16.mxu0 %v2570
  %4270 = vmatpush1.bf16.msra.mxu0 %v2569
  %4271 = vmatprep.subr.bf16.mxu0 %v2578
  %4272 = vmatpush1.bf16.msra.mxu0 %v2577
  %4273 = vmatprep.subr.bf16.mxu0 %v2586
  %4274 = vmatpush1.bf16.msra.mxu0 %v2585
  %4275 = vmatprep.subr.bf16.mxu0 %v2594
  %4276 = vmatpush1.bf16.msra.mxu0 %v2593
  %4277 = vmatprep.subr.bf16.mxu0 %v2602
  %4278 = vmatpush1.bf16.msra.mxu0 %v2601
  %4279 = vmatprep.mubr.bf16.mxu0 %v770
  %4280 = vmatmul.mubr.bf16.gmra.mrb[0].mxu0 %v769
  %v4281 = vpop.f32.mrb[0].mxu0
  %v4282 = vadd.f32 %v4169, %v4281
  %v4283 = vpop.f32.mrb[0].mxu0
  %v4284 = vadd.f32 %v4171, %v4283
  %v4285 = vpop.f32.mrb[0].mxu0
  %v4286 = vadd.f32 %v4173, %v4285
  %v4287 = vpop.f32.mrb[0].mxu0
  %v4288 = vadd.f32 %v4175, %v4287
  %4289 = vmatprep.mubr.bf16.mxu0 %v777
  %4290 = vmatmul.mubr.bf16.gmra.mrb[0].mxu0 %v776
  %v4291 = vpop.f32.mrb[0].mxu0
  %v4292 = vadd.f32 %v4179, %v4291
  %v4293 = vpop.f32.mrb[0].mxu0
  %v4294 = vadd.f32 %v4181, %v4293
  %v4295 = vpop.f32.mrb[0].mxu0
  %v4296 = vadd.f32 %v4183, %v4295
  %v4297 = vpop.f32.mrb[0].mxu0
  %v4298 = vadd.f32 %v4185, %v4297
  %4299 = vmatprep.mubr.bf16.mxu0 %v784
  %4300 = vmatmul.mubr.bf16.gmra.mrb[0].mxu0 %v783
  %v4301 = vpop.f32.mrb[0].mxu0
  %v4302 = vadd.f32 %v4189, %v4301
  %v4303 = vpop.f32.mrb[0].mxu0
  %v4304 = vadd.f32 %v4191, %v4303
  %v4305 = vpop.f32.mrb[0].mxu0
  %v4306 = vadd.f32 %v4193, %v4305
  %v4307 = vpop.f32.mrb[0].mxu0
  %v4308 = vadd.f32 %v4195, %v4307
  %4309 = vmatprep.mubr.bf16.mxu0 %v791
  %4310 = vmatmul.mubr.bf16.gmra.mrb[0].mxu0 %v790
  %v4311 = vpop.f32.mrb[0].mxu0
  %v4312 = vadd.f32 %v4199, %v4311
  %v4313 = vpop.f32.mrb[0].mxu0
  %v4314 = vadd.f32 %v4201, %v4313
  %v4315 = vpop.f32.mrb[0].mxu0
  %v4316 = vadd.f32 %v4203, %v4315
  %v4317 = vpop.f32.mrb[0].mxu0
  %v4318 = vadd.f32 %v4205, %v4317
  %4319 = vmatprep.mubr.bf16.mxu0 %v798
  %4320 = vmatmul.mubr.bf16.gmra.mrb[0].mxu0 %v797
  %v4321 = vpop.f32.mrb[0].mxu0
  %v4322 = vadd.f32 %v4209, %v4321
  %v4323 = vpop.f32.mrb[0].mxu0
  %v4324 = vadd.f32 %v4211, %v4323
  %v4325 = vpop.f32.mrb[0].mxu0
  %v4326 = vadd.f32 %v4213, %v4325
  %v4327 = vpop.f32.mrb[0].mxu0
  %v4328 = vadd.f32 %v4215, %v4327
  %4329 = vmatprep.mubr.bf16.mxu0 %v805
  %4330 = vmatmul.mubr.bf16.gmra.mrb[0].mxu0 %v804
  %v4331 = vpop.f32.mrb[0].mxu0
  %v4332 = vadd.f32 %v4219, %v4331
  %v4333 = vpop.f32.mrb[0].mxu0
  %v4334 = vadd.f32 %v4221, %v4333
  %v4335 = vpop.f32.mrb[0].mxu0
  %v4336 = vadd.f32 %v4223, %v4335
  %v4337 = vpop.f32.mrb[0].mxu0
  %v4338 = vadd.f32 %v4225, %v4337
  %4339 = vmatprep.mubr.bf16.mxu0 %v812
  %4340 = vmatmul.mubr.bf16.gmra.mrb[0].mxu0 %v811
  %v4341 = vpop.f32.mrb[0].mxu0
  %v4342 = vadd.f32 %v4229, %v4341
  %v4343 = vpop.f32.mrb[0].mxu0
  %v4344 = vadd.f32 %v4231, %v4343
  %v4345 = vpop.f32.mrb[0].mxu0
  %v4346 = vadd.f32 %v4233, %v4345
  %v4347 = vpop.f32.mrb[0].mxu0
  %v4348 = vadd.f32 %v4235, %v4347
  %4349 = vmatprep.mubr.bf16.mxu0 %v819
  %4350 = vmatmul.mubr.bf16.gmra.mrb[0].mxu0 %v818
  %v4351 = vpop.f32.mrb[0].mxu0
  %v4352 = vadd.f32 %v4239, %v4351
  %v4353 = vpop.f32.mrb[0].mxu0
  %v4354 = vadd.f32 %v4241, %v4353
  %v4355 = vpop.f32.mrb[0].mxu0
  %v4356 = vadd.f32 %v4243, %v4355
  %v4357 = vpop.f32.mrb[0].mxu0
  %v4358 = vadd.f32 %v4245, %v4357
  %4359 = vdwg.mxu0
  %4360 = vmatprep.subr.bf16.mxu0 %v2610
  %4361 = vmatpush1.bf16.msra.mxu0 %v2609
  %4362 = vmatprep.subr.bf16.mxu0 %v2618
  %4363 = vmatpush1.bf16.msra.mxu0 %v2617
  %4364 = vmatprep.subr.bf16.mxu0 %v2626
  %4365 = vmatpush1.bf16.msra.mxu0 %v2625
  %4366 = vmatprep.subr.bf16.mxu0 %v2634
  %4367 = vmatpush1.bf16.msra.mxu0 %v2633
  %4368 = vmatprep.subr.bf16.mxu0 %v2642
  %4369 = vmatpush1.bf16.msra.mxu0 %v2641
  %4370 = vmatprep.subr.bf16.mxu0 %v2650
  %4371 = vmatpush1.bf16.msra.mxu0 %v2649
  %4372 = vmatprep.subr.bf16.mxu0 %v2658
  %4373 = vmatpush1.bf16.msra.mxu0 %v2657
  %4374 = vmatprep.subr.bf16.mxu0 %v2666
  %4375 = vmatpush1.bf16.msra.mxu0 %v2665
  %4376 = vmatprep.subr.bf16.mxu0 0
  %4377 = vmatpush1.bf16.msra.mxu0 0
  %4378 = vmatprep.subr.bf16.mxu0 0
  %4379 = vmatpush1.bf16.msra.mxu0 0
  %4380 = vmatprep.subr.bf16.mxu0 0
  %4381 = vmatpush1.bf16.msra.mxu0 0
  %4382 = vmatprep.subr.bf16.mxu0 0
  %4383 = vmatpush1.bf16.msra.mxu0 0
  %4384 = vmatprep.subr.bf16.mxu0 0
  %4385 = vmatpush1.bf16.msra.mxu0 0
  %4386 = vmatprep.subr.bf16.mxu0 0
  %4387 = vmatpush1.bf16.msra.mxu0 0
  %4388 = vmatprep.subr.bf16.mxu0 0
  %4389 = vmatpush1.bf16.msra.mxu0 0
  %4390 = vmatprep.subr.bf16.mxu0 0
  %4391 = vmatpush1.bf16.msra.mxu0 0
  %4392 = vmatprep.mubr.bf16.mxu0 0
  %4393 = vmatmul.mubr.bf16.gmra.mrb[0].mxu0 %v771
  %v4394 = vpop.f32.mrb[0].mxu0
  %v4395 = vadd.f32 %v4282, %v4394
  %v4396 = vpop.f32.mrb[0].mxu0
  %v4397 = vadd.f32 %v4284, %v4396
  %v4398 = vpop.f32.mrb[0].mxu0
  %v4399 = vadd.f32 %v4286, %v4398
  %v4400 = vpop.f32.mrb[0].mxu0
  %v4401 = vadd.f32 %v4288, %v4400
  %4402 = vmatprep.mubr.bf16.mxu0 0
  %4403 = vmatmul.mubr.bf16.gmra.mrb[0].mxu0 %v778
  %v4404 = vpop.f32.mrb[0].mxu0
  %v4405 = vadd.f32 %v4292, %v4404
  %v4406 = vpop.f32.mrb[0].mxu0
  %v4407 = vadd.f32 %v4294, %v4406
  %v4408 = vpop.f32.mrb[0].mxu0
  %v4409 = vadd.f32 %v4296, %v4408
  %v4410 = vpop.f32.mrb[0].mxu0
  %v4411 = vadd.f32 %v4298, %v4410
  %4412 = vmatprep.mubr.bf16.mxu0 0
  %4413 = vmatmul.mubr.bf16.gmra.mrb[0].mxu0 %v785
  %v4414 = vpop.f32.mrb[0].mxu0
  %v4415 = vadd.f32 %v4302, %v4414
  %v4416 = vpop.f32.mrb[0].mxu0
  %v4417 = vadd.f32 %v4304, %v4416
  %v4418 = vpop.f32.mrb[0].mxu0
  %v4419 = vadd.f32 %v4306, %v4418
  %v4420 = vpop.f32.mrb[0].mxu0
  %v4421 = vadd.f32 %v4308, %v4420
  %4422 = vmatprep.mubr.bf16.mxu0 0
  %4423 = vmatmul.mubr.bf16.gmra.mrb[0].mxu0 %v792
  %v4424 = vpop.f32.mrb[0].mxu0
  %v4425 = vadd.f32 %v4312, %v4424
  %v4426 = vpop.f32.mrb[0].mxu0
  %v4427 = vadd.f32 %v4314, %v4426
  %v4428 = vpop.f32.mrb[0].mxu0
  %v4429 = vadd.f32 %v4316, %v4428
  %v4430 = vpop.f32.mrb[0].mxu0
  %v4431 = vadd.f32 %v4318, %v4430
  %4432 = vmatprep.mubr.bf16.mxu0 0
  %4433 = vmatmul.mubr.bf16.gmra.mrb[0].mxu0 %v799
  %v4434 = vpop.f32.mrb[0].mxu0
  %v4435 = vadd.f32 %v4322, %v4434
  %v4436 = vpop.f32.mrb[0].mxu0
  %v4437 = vadd.f32 %v4324, %v4436
  %v4438 = vpop.f32.mrb[0].mxu0
  %v4439 = vadd.f32 %v4326, %v4438
  %v4440 = vpop.f32.mrb[0].mxu0
  %v4441 = vadd.f32 %v4328, %v4440
  %4442 = vmatprep.mubr.bf16.mxu0 0
  %4443 = vmatmul.mubr.bf16.gmra.mrb[0].mxu0 %v806
  %v4444 = vpop.f32.mrb[0].mxu0
  %v4445 = vadd.f32 %v4332, %v4444
  %v4446 = vpop.f32.mrb[0].mxu0
  %v4447 = vadd.f32 %v4334, %v4446
  %v4448 = vpop.f32.mrb[0].mxu0
  %v4449 = vadd.f32 %v4336, %v4448
  %v4450 = vpop.f32.mrb[0].mxu0
  %v4451 = vadd.f32 %v4338, %v4450
  %4452 = vmatprep.mubr.bf16.mxu0 0
  %4453 = vmatmul.mubr.bf16.gmra.mrb[0].mxu0 %v813
  %v4454 = vpop.f32.mrb[0].mxu0
  %v4455 = vadd.f32 %v4342, %v4454
  %v4456 = vpop.f32.mrb[0].mxu0
  %v4457 = vadd.f32 %v4344, %v4456
  %v4458 = vpop.f32.mrb[0].mxu0
  %v4459 = vadd.f32 %v4346, %v4458
  %v4460 = vpop.f32.mrb[0].mxu0
  %v4461 = vadd.f32 %v4348, %v4460
  %4462 = vmatprep.mubr.bf16.mxu0 0
  %4463 = vmatmul.mubr.bf16.gmra.mrb[0].mxu0 %v820
  %v4464 = vpop.f32.mrb[0].mxu0
  %v4465 = vadd.f32 %v4352, %v4464
  %v4466 = vpop.f32.mrb[0].mxu0
  %v4467 = vadd.f32 %v4354, %v4466
  %v4468 = vpop.f32.mrb[0].mxu0
  %v4469 = vadd.f32 %v4356, %v4468
  %v4470 = vpop.f32.mrb[0].mxu0
  %v4471 = vadd.f32 %v4358, %v4470
  %4472 = vdwg.mxu0
  %4473 = vmatprep.subr.bf16.mxu0 %v2228
  %4474 = vmatpush1.bf16.msra.mxu0 %v2227
  %4475 = vmatprep.subr.bf16.mxu0 %v2236
  %4476 = vmatpush1.bf16.msra.mxu0 %v2235
  %4477 = vmatprep.subr.bf16.mxu0 %v2244
  %4478 = vmatpush1.bf16.msra.mxu0 %v2243
  %4479 = vmatprep.subr.bf16.mxu0 %v2252
  %4480 = vmatpush1.bf16.msra.mxu0 %v2251
  %4481 = vmatprep.subr.bf16.mxu0 %v2260
  %4482 = vmatpush1.bf16.msra.mxu0 %v2259
  %4483 = vmatprep.subr.bf16.mxu0 %v2268
  %4484 = vmatpush1.bf16.msra.mxu0 %v2267
  %4485 = vmatprep.subr.bf16.mxu0 %v2276
  %4486 = vmatpush1.bf16.msra.mxu0 %v2275
  %4487 = vmatprep.subr.bf16.mxu0 %v2284
  %4488 = vmatpush1.bf16.msra.mxu0 %v2283
  %4489 = vmatprep.subr.bf16.mxu0 %v2292
  %4490 = vmatpush1.bf16.msra.mxu0 %v2291
  %4491 = vmatprep.subr.bf16.mxu0 %v2300
  %4492 = vmatpush1.bf16.msra.mxu0 %v2299
  %4493 = vmatprep.subr.bf16.mxu0 %v2308
  %4494 = vmatpush1.bf16.msra.mxu0 %v2307
  %4495 = vmatprep.subr.bf16.mxu0 %v2316
  %4496 = vmatpush1.bf16.msra.mxu0 %v2315
  %4497 = vmatprep.subr.bf16.mxu0 %v2324
  %4498 = vmatpush1.bf16.msra.mxu0 %v2323
  %4499 = vmatprep.subr.bf16.mxu0 %v2332
  %4500 = vmatpush1.bf16.msra.mxu0 %v2331
  %4501 = vmatprep.subr.bf16.mxu0 %v2340
  %4502 = vmatpush1.bf16.msra.mxu0 %v2339
  %4503 = vmatprep.subr.bf16.mxu0 %v2348
  %4504 = vmatpush1.bf16.msra.mxu0 %v2347
  %4505 = vmatprep.mubr.bf16.mxu0 %v766
  %4506 = vmatmul.mubr.bf16.gmra.mrb[0].mxu0 %v765
  %v4507 = vpop.f32.mrb[0].mxu0
  %v4508 = vadd.f32 %v576, %v4507
  %v4509 = vpop.f32.mrb[0].mxu0
  %v4510 = vadd.f32 %v580, %v4509
  %v4511 = vpop.f32.mrb[0].mxu0
  %v4512 = vadd.f32 %v576, %v4511
  %v4513 = vpop.f32.mrb[0].mxu0
  %v4514 = vadd.f32 %v580, %v4513
  %4515 = vmatprep.mubr.bf16.mxu0 %v773
  %4516 = vmatmul.mubr.bf16.gmra.mrb[0].mxu0 %v772
  %v4517 = vpop.f32.mrb[0].mxu0
  %v4518 = vadd.f32 %v576, %v4517
  %v4519 = vpop.f32.mrb[0].mxu0
  %v4520 = vadd.f32 %v580, %v4519
  %v4521 = vpop.f32.mrb[0].mxu0
  %v4522 = vadd.f32 %v576, %v4521
  %v4523 = vpop.f32.mrb[0].mxu0
  %v4524 = vadd.f32 %v580, %v4523
  %4525 = vmatprep.mubr.bf16.mxu0 %v780
  %4526 = vmatmul.mubr.bf16.gmra.mrb[0].mxu0 %v779
  %v4527 = vpop.f32.mrb[0].mxu0
  %v4528 = vadd.f32 %v576, %v4527
  %v4529 = vpop.f32.mrb[0].mxu0
  %v4530 = vadd.f32 %v580, %v4529
  %v4531 = vpop.f32.mrb[0].mxu0
  %v4532 = vadd.f32 %v576, %v4531
  %v4533 = vpop.f32.mrb[0].mxu0
  %v4534 = vadd.f32 %v580, %v4533
  %4535 = vmatprep.mubr.bf16.mxu0 %v787
  %4536 = vmatmul.mubr.bf16.gmra.mrb[0].mxu0 %v786
  %v4537 = vpop.f32.mrb[0].mxu0
  %v4538 = vadd.f32 %v576, %v4537
  %v4539 = vpop.f32.mrb[0].mxu0
  %v4540 = vadd.f32 %v580, %v4539
  %v4541 = vpop.f32.mrb[0].mxu0
  %v4542 = vadd.f32 %v576, %v4541
  %v4543 = vpop.f32.mrb[0].mxu0
  %v4544 = vadd.f32 %v580, %v4543
  %4545 = vmatprep.mubr.bf16.mxu0 %v794
  %4546 = vmatmul.mubr.bf16.gmra.mrb[0].mxu0 %v793
  %v4547 = vpop.f32.mrb[0].mxu0
  %v4548 = vadd.f32 %v576, %v4547
  %v4549 = vpop.f32.mrb[0].mxu0
  %v4550 = vadd.f32 %v580, %v4549
  %v4551 = vpop.f32.mrb[0].mxu0
  %v4552 = vadd.f32 %v576, %v4551
  %v4553 = vpop.f32.mrb[0].mxu0
  %v4554 = vadd.f32 %v580, %v4553
  %4555 = vmatprep.mubr.bf16.mxu0 %v801
  %4556 = vmatmul.mubr.bf16.gmra.mrb[0].mxu0 %v800
  %v4557 = vpop.f32.mrb[0].mxu0
  %v4558 = vadd.f32 %v576, %v4557
  %v4559 = vpop.f32.mrb[0].mxu0
  %v4560 = vadd.f32 %v580, %v4559
  %v4561 = vpop.f32.mrb[0].mxu0
  %v4562 = vadd.f32 %v576, %v4561
  %v4563 = vpop.f32.mrb[0].mxu0
  %v4564 = vadd.f32 %v580, %v4563
  %4565 = vmatprep.mubr.bf16.mxu0 %v808
  %4566 = vmatmul.mubr.bf16.gmra.mrb[0].mxu0 %v807
  %v4567 = vpop.f32.mrb[0].mxu0
  %v4568 = vadd.f32 %v576, %v4567
  %v4569 = vpop.f32.mrb[0].mxu0
  %v4570 = vadd.f32 %v580, %v4569
  %v4571 = vpop.f32.mrb[0].mxu0
  %v4572 = vadd.f32 %v576, %v4571
  %v4573 = vpop.f32.mrb[0].mxu0
  %v4574 = vadd.f32 %v580, %v4573
  %4575 = vmatprep.mubr.bf16.mxu0 %v815
  %4576 = vmatmul.mubr.bf16.gmra.mrb[0].mxu0 %v814
  %v4577 = vpop.f32.mrb[0].mxu0
  %v4578 = vadd.f32 %v576, %v4577
  %v4579 = vpop.f32.mrb[0].mxu0
  %v4580 = vadd.f32 %v580, %v4579
  %v4581 = vpop.f32.mrb[0].mxu0
  %v4582 = vadd.f32 %v576, %v4581
  %v4583 = vpop.f32.mrb[0].mxu0
  %v4584 = vadd.f32 %v580, %v4583
  %4585 = vdwg.mxu0
  %4586 = vmatprep.subr.bf16.mxu0 %v2356
  %4587 = vmatpush1.bf16.msra.mxu0 %v2355
  %4588 = vmatprep.subr.bf16.mxu0 %v2364
  %4589 = vmatpush1.bf16.msra.mxu0 %v2363
  %4590 = vmatprep.subr.bf16.mxu0 %v2372
  %4591 = vmatpush1.bf16.msra.mxu0 %v2371
  %4592 = vmatprep.subr.bf16.mxu0 %v2380
  %4593 = vmatpush1.bf16.msra.mxu0 %v2379
  %4594 = vmatprep.subr.bf16.mxu0 %v2388
  %4595 = vmatpush1.bf16.msra.mxu0 %v2387
  %4596 = vmatprep.subr.bf16.mxu0 %v2396
  %4597 = vmatpush1.bf16.msra.mxu0 %v2395
  %4598 = vmatprep.subr.bf16.mxu0 %v2404
  %4599 = vmatpush1.bf16.msra.mxu0 %v2403
  %4600 = vmatprep.subr.bf16.mxu0 %v2412
  %4601 = vmatpush1.bf16.msra.mxu0 %v2411
  %4602 = vmatprep.subr.bf16.mxu0 %v2420
  %4603 = vmatpush1.bf16.msra.mxu0 %v2419
  %4604 = vmatprep.subr.bf16.mxu0 %v2428
  %4605 = vmatpush1.bf16.msra.mxu0 %v2427
  %4606 = vmatprep.subr.bf16.mxu0 %v2436
  %4607 = vmatpush1.bf16.msra.mxu0 %v2435
  %4608 = vmatprep.subr.bf16.mxu0 %v2444
  %4609 = vmatpush1.bf16.msra.mxu0 %v2443
  %4610 = vmatprep.subr.bf16.mxu0 %v2452
  %4611 = vmatpush1.bf16.msra.mxu0 %v2451
  %4612 = vmatprep.subr.bf16.mxu0 %v2460
  %4613 = vmatpush1.bf16.msra.mxu0 %v2459
  %4614 = vmatprep.subr.bf16.mxu0 %v2468
  %4615 = vmatpush1.bf16.msra.mxu0 %v2467
  %4616 = vmatprep.subr.bf16.mxu0 %v2476
  %4617 = vmatpush1.bf16.msra.mxu0 %v2475
  %4618 = vmatprep.mubr.bf16.mxu0 %v768
  %4619 = vmatmul.mubr.bf16.gmra.mrb[0].mxu0 %v767
  %v4620 = vpop.f32.mrb[0].mxu0
  %v4621 = vadd.f32 %v4508, %v4620
  %v4622 = vpop.f32.mrb[0].mxu0
  %v4623 = vadd.f32 %v4510, %v4622
  %v4624 = vpop.f32.mrb[0].mxu0
  %v4625 = vadd.f32 %v4512, %v4624
  %v4626 = vpop.f32.mrb[0].mxu0
  %v4627 = vadd.f32 %v4514, %v4626
  %4628 = vmatprep.mubr.bf16.mxu0 %v775
  %4629 = vmatmul.mubr.bf16.gmra.mrb[0].mxu0 %v774
  %v4630 = vpop.f32.mrb[0].mxu0
  %v4631 = vadd.f32 %v4518, %v4630
  %v4632 = vpop.f32.mrb[0].mxu0
  %v4633 = vadd.f32 %v4520, %v4632
  %v4634 = vpop.f32.mrb[0].mxu0
  %v4635 = vadd.f32 %v4522, %v4634
  %v4636 = vpop.f32.mrb[0].mxu0
  %v4637 = vadd.f32 %v4524, %v4636
  %4638 = vmatprep.mubr.bf16.mxu0 %v782
  %4639 = vmatmul.mubr.bf16.gmra.mrb[0].mxu0 %v781
  %v4640 = vpop.f32.mrb[0].mxu0
  %v4641 = vadd.f32 %v4528, %v4640
  %v4642 = vpop.f32.mrb[0].mxu0
  %v4643 = vadd.f32 %v4530, %v4642
  %v4644 = vpop.f32.mrb[0].mxu0
  %v4645 = vadd.f32 %v4532, %v4644
  %v4646 = vpop.f32.mrb[0].mxu0
  %v4647 = vadd.f32 %v4534, %v4646
  %4648 = vmatprep.mubr.bf16.mxu0 %v789
  %4649 = vmatmul.mubr.bf16.gmra.mrb[0].mxu0 %v788
  %v4650 = vpop.f32.mrb[0].mxu0
  %v4651 = vadd.f32 %v4538, %v4650
  %v4652 = vpop.f32.mrb[0].mxu0
  %v4653 = vadd.f32 %v4540, %v4652
  %v4654 = vpop.f32.mrb[0].mxu0
  %v4655 = vadd.f32 %v4542, %v4654
  %v4656 = vpop.f32.mrb[0].mxu0
  %v4657 = vadd.f32 %v4544, %v4656
  %4658 = vmatprep.mubr.bf16.mxu0 %v796
  %4659 = vmatmul.mubr.bf16.gmra.mrb[0].mxu0 %v795
  %v4660 = vpop.f32.mrb[0].mxu0
  %v4661 = vadd.f32 %v4548, %v4660
  %v4662 = vpop.f32.mrb[0].mxu0
  %v4663 = vadd.f32 %v4550, %v4662
  %v4664 = vpop.f32.mrb[0].mxu0
  %v4665 = vadd.f32 %v4552, %v4664
  %v4666 = vpop.f32.mrb[0].mxu0
  %v4667 = vadd.f32 %v4554, %v4666
  %4668 = vmatprep.mubr.bf16.mxu0 %v803
  %4669 = vmatmul.mubr.bf16.gmra.mrb[0].mxu0 %v802
  %v4670 = vpop.f32.mrb[0].mxu0
  %v4671 = vadd.f32 %v4558, %v4670
  %v4672 = vpop.f32.mrb[0].mxu0
  %v4673 = vadd.f32 %v4560, %v4672
  %v4674 = vpop.f32.mrb[0].mxu0
  %v4675 = vadd.f32 %v4562, %v4674
  %v4676 = vpop.f32.mrb[0].mxu0
  %v4677 = vadd.f32 %v4564, %v4676
  %4678 = vmatprep.mubr.bf16.mxu0 %v810
  %4679 = vmatmul.mubr.bf16.gmra.mrb[0].mxu0 %v809
  %v4680 = vpop.f32.mrb[0].mxu0
  %v4681 = vadd.f32 %v4568, %v4680
  %v4682 = vpop.f32.mrb[0].mxu0
  %v4683 = vadd.f32 %v4570, %v4682
  %v4684 = vpop.f32.mrb[0].mxu0
  %v4685 = vadd.f32 %v4572, %v4684
  %v4686 = vpop.f32.mrb[0].mxu0
  %v4687 = vadd.f32 %v4574, %v4686
  %4688 = vmatprep.mubr.bf16.mxu0 %v817
  %4689 = vmatmul.mubr.bf16.gmra.mrb[0].mxu0 %v816
  %v4690 = vpop.f32.mrb[0].mxu0
  %v4691 = vadd.f32 %v4578, %v4690
  %v4692 = vpop.f32.mrb[0].mxu0
  %v4693 = vadd.f32 %v4580, %v4692
  %v4694 = vpop.f32.mrb[0].mxu0
  %v4695 = vadd.f32 %v4582, %v4694
  %v4696 = vpop.f32.mrb[0].mxu0
  %v4697 = vadd.f32 %v4584, %v4696
  %4698 = vdwg.mxu0
  %4699 = vmatprep.subr.bf16.mxu0 %v2484
  %4700 = vmatpush1.bf16.msra.mxu0 %v2483
  %4701 = vmatprep.subr.bf16.mxu0 %v2492
  %4702 = vmatpush1.bf16.msra.mxu0 %v2491
  %4703 = vmatprep.subr.bf16.mxu0 %v2500
  %4704 = vmatpush1.bf16.msra.mxu0 %v2499
  %4705 = vmatprep.subr.bf16.mxu0 %v2508
  %4706 = vmatpush1.bf16.msra.mxu0 %v2507
  %4707 = vmatprep.subr.bf16.mxu0 %v2516
  %4708 = vmatpush1.bf16.msra.mxu0 %v2515
  %4709 = vmatprep.subr.bf16.mxu0 %v2524
  %4710 = vmatpush1.bf16.msra.mxu0 %v2523
  %4711 = vmatprep.subr.bf16.mxu0 %v2532
  %4712 = vmatpush1.bf16.msra.mxu0 %v2531
  %4713 = vmatprep.subr.bf16.mxu0 %v2540
  %4714 = vmatpush1.bf16.msra.mxu0 %v2539
  %4715 = vmatprep.subr.bf16.mxu0 %v2548
  %4716 = vmatpush1.bf16.msra.mxu0 %v2547
  %4717 = vmatprep.subr.bf16.mxu0 %v2556
  %4718 = vmatpush1.bf16.msra.mxu0 %v2555
  %4719 = vmatprep.subr.bf16.mxu0 %v2564
  %4720 = vmatpush1.bf16.msra.mxu0 %v2563
  %4721 = vmatprep.subr.bf16.mxu0 %v2572
  %4722 = vmatpush1.bf16.msra.mxu0 %v2571
  %4723 = vmatprep.subr.bf16.mxu0 %v2580
  %4724 = vmatpush1.bf16.msra.mxu0 %v2579
  %4725 = vmatprep.subr.bf16.mxu0 %v2588
  %4726 = vmatpush1.bf16.msra.mxu0 %v2587
  %4727 = vmatprep.subr.bf16.mxu0 %v2596
  %4728 = vmatpush1.bf16.msra.mxu0 %v2595
  %4729 = vmatprep.subr.bf16.mxu0 %v2604
  %4730 = vmatpush1.bf16.msra.mxu0 %v2603
  %4731 = vmatprep.mubr.bf16.mxu0 %v770
  %4732 = vmatmul.mubr.bf16.gmra.mrb[0].mxu0 %v769
  %v4733 = vpop.f32.mrb[0].mxu0
  %v4734 = vadd.f32 %v4621, %v4733
  %v4735 = vpop.f32.mrb[0].mxu0
  %v4736 = vadd.f32 %v4623, %v4735
  %v4737 = vpop.f32.mrb[0].mxu0
  %v4738 = vadd.f32 %v4625, %v4737
  %v4739 = vpop.f32.mrb[0].mxu0
  %v4740 = vadd.f32 %v4627, %v4739
  %4741 = vmatprep.mubr.bf16.mxu0 %v777
  %4742 = vmatmul.mubr.bf16.gmra.mrb[0].mxu0 %v776
  %v4743 = vpop.f32.mrb[0].mxu0
  %v4744 = vadd.f32 %v4631, %v4743
  %v4745 = vpop.f32.mrb[0].mxu0
  %v4746 = vadd.f32 %v4633, %v4745
  %v4747 = vpop.f32.mrb[0].mxu0
  %v4748 = vadd.f32 %v4635, %v4747
  %v4749 = vpop.f32.mrb[0].mxu0
  %v4750 = vadd.f32 %v4637, %v4749
  %4751 = vmatprep.mubr.bf16.mxu0 %v784
  %4752 = vmatmul.mubr.bf16.gmra.mrb[0].mxu0 %v783
  %v4753 = vpop.f32.mrb[0].mxu0
  %v4754 = vadd.f32 %v4641, %v4753
  %v4755 = vpop.f32.mrb[0].mxu0
  %v4756 = vadd.f32 %v4643, %v4755
  %v4757 = vpop.f32.mrb[0].mxu0
  %v4758 = vadd.f32 %v4645, %v4757
  %v4759 = vpop.f32.mrb[0].mxu0
  %v4760 = vadd.f32 %v4647, %v4759
  %4761 = vmatprep.mubr.bf16.mxu0 %v791
  %4762 = vmatmul.mubr.bf16.gmra.mrb[0].mxu0 %v790
  %v4763 = vpop.f32.mrb[0].mxu0
  %v4764 = vadd.f32 %v4651, %v4763
  %v4765 = vpop.f32.mrb[0].mxu0
  %v4766 = vadd.f32 %v4653, %v4765
  %v4767 = vpop.f32.mrb[0].mxu0
  %v4768 = vadd.f32 %v4655, %v4767
  %v4769 = vpop.f32.mrb[0].mxu0
  %v4770 = vadd.f32 %v4657, %v4769
  %4771 = vmatprep.mubr.bf16.mxu0 %v798
  %4772 = vmatmul.mubr.bf16.gmra.mrb[0].mxu0 %v797
  %v4773 = vpop.f32.mrb[0].mxu0
  %v4774 = vadd.f32 %v4661, %v4773
  %v4775 = vpop.f32.mrb[0].mxu0
  %v4776 = vadd.f32 %v4663, %v4775
  %v4777 = vpop.f32.mrb[0].mxu0
  %v4778 = vadd.f32 %v4665, %v4777
  %v4779 = vpop.f32.mrb[0].mxu0
  %v4780 = vadd.f32 %v4667, %v4779
  %4781 = vmatprep.mubr.bf16.mxu0 %v805
  %4782 = vmatmul.mubr.bf16.gmra.mrb[0].mxu0 %v804
  %v4783 = vpop.f32.mrb[0].mxu0
  %v4784 = vadd.f32 %v4671, %v4783
  %v4785 = vpop.f32.mrb[0].mxu0
  %v4786 = vadd.f32 %v4673, %v4785
  %v4787 = vpop.f32.mrb[0].mxu0
  %v4788 = vadd.f32 %v4675, %v4787
  %v4789 = vpop.f32.mrb[0].mxu0
  %v4790 = vadd.f32 %v4677, %v4789
  %4791 = vmatprep.mubr.bf16.mxu0 %v812
  %4792 = vmatmul.mubr.bf16.gmra.mrb[0].mxu0 %v811
  %v4793 = vpop.f32.mrb[0].mxu0
  %v4794 = vadd.f32 %v4681, %v4793
  %v4795 = vpop.f32.mrb[0].mxu0
  %v4796 = vadd.f32 %v4683, %v4795
  %v4797 = vpop.f32.mrb[0].mxu0
  %v4798 = vadd.f32 %v4685, %v4797
  %v4799 = vpop.f32.mrb[0].mxu0
  %v4800 = vadd.f32 %v4687, %v4799
  %4801 = vmatprep.mubr.bf16.mxu0 %v819
  %4802 = vmatmul.mubr.bf16.gmra.mrb[0].mxu0 %v818
  %v4803 = vpop.f32.mrb[0].mxu0
  %v4804 = vadd.f32 %v4691, %v4803
  %v4805 = vpop.f32.mrb[0].mxu0
  %v4806 = vadd.f32 %v4693, %v4805
  %v4807 = vpop.f32.mrb[0].mxu0
  %v4808 = vadd.f32 %v4695, %v4807
  %v4809 = vpop.f32.mrb[0].mxu0
  %v4810 = vadd.f32 %v4697, %v4809
  %4811 = vdwg.mxu0
  %4812 = vmatprep.subr.bf16.mxu0 %v2612
  %4813 = vmatpush1.bf16.msra.mxu0 %v2611
  %4814 = vmatprep.subr.bf16.mxu0 %v2620
  %4815 = vmatpush1.bf16.msra.mxu0 %v2619
  %4816 = vmatprep.subr.bf16.mxu0 %v2628
  %4817 = vmatpush1.bf16.msra.mxu0 %v2627
  %4818 = vmatprep.subr.bf16.mxu0 %v2636
  %4819 = vmatpush1.bf16.msra.mxu0 %v2635
  %4820 = vmatprep.subr.bf16.mxu0 %v2644
  %4821 = vmatpush1.bf16.msra.mxu0 %v2643
  %4822 = vmatprep.subr.bf16.mxu0 %v2652
  %4823 = vmatpush1.bf16.msra.mxu0 %v2651
  %4824 = vmatprep.subr.bf16.mxu0 %v2660
  %4825 = vmatpush1.bf16.msra.mxu0 %v2659
  %4826 = vmatprep.subr.bf16.mxu0 %v2668
  %4827 = vmatpush1.bf16.msra.mxu0 %v2667
  %4828 = vmatprep.subr.bf16.mxu0 0
  %4829 = vmatpush1.bf16.msra.mxu0 0
  %4830 = vmatprep.subr.bf16.mxu0 0
  %4831 = vmatpush1.bf16.msra.mxu0 0
  %4832 = vmatprep.subr.bf16.mxu0 0
  %4833 = vmatpush1.bf16.msra.mxu0 0
  %4834 = vmatprep.subr.bf16.mxu0 0
  %4835 = vmatpush1.bf16.msra.mxu0 0
  %4836 = vmatprep.subr.bf16.mxu0 0
  %4837 = vmatpush1.bf16.msra.mxu0 0
  %4838 = vmatprep.subr.bf16.mxu0 0
  %4839 = vmatpush1.bf16.msra.mxu0 0
  %4840 = vmatprep.subr.bf16.mxu0 0
  %4841 = vmatpush1.bf16.msra.mxu0 0
  %4842 = vmatprep.subr.bf16.mxu0 0
  %4843 = vmatpush1.bf16.msra.mxu0 0
  %4844 = vmatprep.mubr.bf16.mxu0 0
  %4845 = vmatmul.mubr.bf16.gmra.mrb[0].mxu0 %v771
  %v4846 = vpop.f32.mrb[0].mxu0
  %v4847 = vadd.f32 %v4734, %v4846
  %v4848 = vpop.f32.mrb[0].mxu0
  %v4849 = vadd.f32 %v4736, %v4848
  %v4850 = vpop.f32.mrb[0].mxu0
  %v4851 = vadd.f32 %v4738, %v4850
  %v4852 = vpop.f32.mrb[0].mxu0
  %v4853 = vadd.f32 %v4740, %v4852
  %4854 = vmatprep.mubr.bf16.mxu0 0
  %4855 = vmatmul.mubr.bf16.gmra.mrb[0].mxu0 %v778
  %v4856 = vpop.f32.mrb[0].mxu0
  %v4857 = vadd.f32 %v4744, %v4856
  %v4858 = vpop.f32.mrb[0].mxu0
  %v4859 = vadd.f32 %v4746, %v4858
  %v4860 = vpop.f32.mrb[0].mxu0
  %v4861 = vadd.f32 %v4748, %v4860
  %v4862 = vpop.f32.mrb[0].mxu0
  %v4863 = vadd.f32 %v4750, %v4862
  %4864 = vmatprep.mubr.bf16.mxu0 0
  %4865 = vmatmul.mubr.bf16.gmra.mrb[0].mxu0 %v785
  %v4866 = vpop.f32.mrb[0].mxu0
  %v4867 = vadd.f32 %v4754, %v4866
  %v4868 = vpop.f32.mrb[0].mxu0
  %v4869 = vadd.f32 %v4756, %v4868
  %v4870 = vpop.f32.mrb[0].mxu0
  %v4871 = vadd.f32 %v4758, %v4870
  %v4872 = vpop.f32.mrb[0].mxu0
  %v4873 = vadd.f32 %v4760, %v4872
  %4874 = vmatprep.mubr.bf16.mxu0 0
  %4875 = vmatmul.mubr.bf16.gmra.mrb[0].mxu0 %v792
  %v4876 = vpop.f32.mrb[0].mxu0
  %v4877 = vadd.f32 %v4764, %v4876
  %v4878 = vpop.f32.mrb[0].mxu0
  %v4879 = vadd.f32 %v4766, %v4878
  %v4880 = vpop.f32.mrb[0].mxu0
  %v4881 = vadd.f32 %v4768, %v4880
  %v4882 = vpop.f32.mrb[0].mxu0
  %v4883 = vadd.f32 %v4770, %v4882
  %4884 = vmatprep.mubr.bf16.mxu0 0
  %4885 = vmatmul.mubr.bf16.gmra.mrb[0].mxu0 %v799
  %v4886 = vpop.f32.mrb[0].mxu0
  %v4887 = vadd.f32 %v4774, %v4886
  %v4888 = vpop.f32.mrb[0].mxu0
  %v4889 = vadd.f32 %v4776, %v4888
  %v4890 = vpop.f32.mrb[0].mxu0
  %v4891 = vadd.f32 %v4778, %v4890
  %v4892 = vpop.f32.mrb[0].mxu0
  %v4893 = vadd.f32 %v4780, %v4892
  %4894 = vmatprep.mubr.bf16.mxu0 0
  %4895 = vmatmul.mubr.bf16.gmra.mrb[0].mxu0 %v806
  %v4896 = vpop.f32.mrb[0].mxu0
  %v4897 = vadd.f32 %v4784, %v4896
  %v4898 = vpop.f32.mrb[0].mxu0
  %v4899 = vadd.f32 %v4786, %v4898
  %v4900 = vpop.f32.mrb[0].mxu0
  %v4901 = vadd.f32 %v4788, %v4900
  %v4902 = vpop.f32.mrb[0].mxu0
  %v4903 = vadd.f32 %v4790, %v4902
  %4904 = vmatprep.mubr.bf16.mxu0 0
  %4905 = vmatmul.mubr.bf16.gmra.mrb[0].mxu0 %v813
  %v4906 = vpop.f32.mrb[0].mxu0
  %v4907 = vadd.f32 %v4794, %v4906
  %v4908 = vpop.f32.mrb[0].mxu0
  %v4909 = vadd.f32 %v4796, %v4908
  %v4910 = vpop.f32.mrb[0].mxu0
  %v4911 = vadd.f32 %v4798, %v4910
  %v4912 = vpop.f32.mrb[0].mxu0
  %v4913 = vadd.f32 %v4800, %v4912
  %4914 = vmatprep.mubr.bf16.mxu0 0
  %4915 = vmatmul.mubr.bf16.gmra.mrb[0].mxu0 %v820
  %v4916 = vpop.f32.mrb[0].mxu0
  %v4917 = vadd.f32 %v4804, %v4916
  %v4918 = vpop.f32.mrb[0].mxu0
  %v4919 = vadd.f32 %v4806, %v4918
  %v4920 = vpop.f32.mrb[0].mxu0
  %v4921 = vadd.f32 %v4808, %v4920
  %v4922 = vpop.f32.mrb[0].mxu0
  %v4923 = vadd.f32 %v4810, %v4922
  %4924 = vdwg.mxu0
  %vm4925 = vcmp.gt.f32.partialorder %v3491, 0.0
  %vm4926 = vcmp.gt.f32.partialorder %v3493, 0.0
  %vm4927 = vcmp.gt.f32.partialorder %v3943, 0.0
  %vm4928 = vcmp.gt.f32.partialorder %v3945, 0.0
  %vm4929 = vcmp.gt.f32.partialorder %v4395, 0.0
  %vm4930 = vcmp.gt.f32.partialorder %v4397, 0.0
  %vm4931 = vcmp.gt.f32.partialorder %v4847, 0.0
  %vm4932 = vcmp.gt.f32.partialorder %v4849, 0.0
  %vm4933 = vcmp.gt.f32.partialorder %v3495, 0.0
  %vm4934 = vcmp.gt.f32.partialorder %v3497, 0.0
  %vm4935 = vcmp.gt.f32.partialorder %v3947, 0.0
  %vm4936 = vcmp.gt.f32.partialorder %v3949, 0.0
  %vm4937 = vcmp.gt.f32.partialorder %v4399, 0.0
  %vm4938 = vcmp.gt.f32.partialorder %v4401, 0.0
  %vm4939 = vcmp.gt.f32.partialorder %v4851, 0.0
  %vm4940 = vcmp.gt.f32.partialorder %v4853, 0.0
  %vm4941 = vcmp.gt.f32.partialorder %v3501, 0.0
  %vm4942 = vcmp.gt.f32.partialorder %v3503, 0.0
  %vm4943 = vcmp.gt.f32.partialorder %v3953, 0.0
  %vm4944 = vcmp.gt.f32.partialorder %v3955, 0.0
  %vm4945 = vcmp.gt.f32.partialorder %v4405, 0.0
  %vm4946 = vcmp.gt.f32.partialorder %v4407, 0.0
  %vm4947 = vcmp.gt.f32.partialorder %v4857, 0.0
  %vm4948 = vcmp.gt.f32.partialorder %v4859, 0.0
  %vm4949 = vcmp.gt.f32.partialorder %v3505, 0.0
  %vm4950 = vcmp.gt.f32.partialorder %v3507, 0.0
  %vm4951 = vcmp.gt.f32.partialorder %v3957, 0.0
  %vm4952 = vcmp.gt.f32.partialorder %v3959, 0.0
  %vm4953 = vcmp.gt.f32.partialorder %v4409, 0.0
  %vm4954 = vcmp.gt.f32.partialorder %v4411, 0.0
  %vm4955 = vcmp.gt.f32.partialorder %v4861, 0.0
  %vm4956 = vcmp.gt.f32.partialorder %v4863, 0.0
  %vm4957 = vcmp.gt.f32.partialorder %v3511, 0.0
  %vm4958 = vcmp.gt.f32.partialorder %v3513, 0.0
  %vm4959 = vcmp.gt.f32.partialorder %v3963, 0.0
  %vm4960 = vcmp.gt.f32.partialorder %v3965, 0.0
  %vm4961 = vcmp.gt.f32.partialorder %v4415, 0.0
  %vm4962 = vcmp.gt.f32.partialorder %v4417, 0.0
  %vm4963 = vcmp.gt.f32.partialorder %v4867, 0.0
  %vm4964 = vcmp.gt.f32.partialorder %v4869, 0.0
  %vm4965 = vcmp.gt.f32.partialorder %v3515, 0.0
  %vm4966 = vcmp.gt.f32.partialorder %v3517, 0.0
  %vm4967 = vcmp.gt.f32.partialorder %v3967, 0.0
  %vm4968 = vcmp.gt.f32.partialorder %v3969, 0.0
  %vm4969 = vcmp.gt.f32.partialorder %v4419, 0.0
  %vm4970 = vcmp.gt.f32.partialorder %v4421, 0.0
  %vm4971 = vcmp.gt.f32.partialorder %v4871, 0.0
  %vm4972 = vcmp.gt.f32.partialorder %v4873, 0.0
  %vm4973 = vcmp.gt.f32.partialorder %v3521, 0.0
  %vm4974 = vcmp.gt.f32.partialorder %v3523, 0.0
  %vm4975 = vcmp.gt.f32.partialorder %v3973, 0.0
  %vm4976 = vcmp.gt.f32.partialorder %v3975, 0.0
  %vm4977 = vcmp.gt.f32.partialorder %v4425, 0.0
  %vm4978 = vcmp.gt.f32.partialorder %v4427, 0.0
  %vm4979 = vcmp.gt.f32.partialorder %v4877, 0.0
  %vm4980 = vcmp.gt.f32.partialorder %v4879, 0.0
  %vm4981 = vcmp.gt.f32.partialorder %v3525, 0.0
  %vm4982 = vcmp.gt.f32.partialorder %v3527, 0.0
  %vm4983 = vcmp.gt.f32.partialorder %v3977, 0.0
  %vm4984 = vcmp.gt.f32.partialorder %v3979, 0.0
  %vm4985 = vcmp.gt.f32.partialorder %v4429, 0.0
  %vm4986 = vcmp.gt.f32.partialorder %v4431, 0.0
  %vm4987 = vcmp.gt.f32.partialorder %v4881, 0.0
  %vm4988 = vcmp.gt.f32.partialorder %v4883, 0.0
  %vm4989 = vcmp.gt.f32.partialorder %v3531, 0.0
  %vm4990 = vcmp.gt.f32.partialorder %v3533, 0.0
  %vm4991 = vcmp.gt.f32.partialorder %v3983, 0.0
  %vm4992 = vcmp.gt.f32.partialorder %v3985, 0.0
  %vm4993 = vcmp.gt.f32.partialorder %v4435, 0.0
  %vm4994 = vcmp.gt.f32.partialorder %v4437, 0.0
  %vm4995 = vcmp.gt.f32.partialorder %v4887, 0.0
  %vm4996 = vcmp.gt.f32.partialorder %v4889, 0.0
  %vm4997 = vcmp.gt.f32.partialorder %v3535, 0.0
  %vm4998 = vcmp.gt.f32.partialorder %v3537, 0.0
  %vm4999 = vcmp.gt.f32.partialorder %v3987, 0.0
  %vm5000 = vcmp.gt.f32.partialorder %v3989, 0.0
  %vm5001 = vcmp.gt.f32.partialorder %v4439, 0.0
  %vm5002 = vcmp.gt.f32.partialorder %v4441, 0.0
  %vm5003 = vcmp.gt.f32.partialorder %v4891, 0.0
  %vm5004 = vcmp.gt.f32.partialorder %v4893, 0.0
  %vm5005 = vcmp.gt.f32.partialorder %v3541, 0.0
  %vm5006 = vcmp.gt.f32.partialorder %v3543, 0.0
  %vm5007 = vcmp.gt.f32.partialorder %v3993, 0.0
  %vm5008 = vcmp.gt.f32.partialorder %v3995, 0.0
  %vm5009 = vcmp.gt.f32.partialorder %v4445, 0.0
  %vm5010 = vcmp.gt.f32.partialorder %v4447, 0.0
  %vm5011 = vcmp.gt.f32.partialorder %v4897, 0.0
  %vm5012 = vcmp.gt.f32.partialorder %v4899, 0.0
  %vm5013 = vcmp.gt.f32.partialorder %v3545, 0.0
  %vm5014 = vcmp.gt.f32.partialorder %v3547, 0.0
  %vm5015 = vcmp.gt.f32.partialorder %v3997, 0.0
  %vm5016 = vcmp.gt.f32.partialorder %v3999, 0.0
  %vm5017 = vcmp.gt.f32.partialorder %v4449, 0.0
  %vm5018 = vcmp.gt.f32.partialorder %v4451, 0.0
  %vm5019 = vcmp.gt.f32.partialorder %v4901, 0.0
  %vm5020 = vcmp.gt.f32.partialorder %v4903, 0.0
  %vm5021 = vcmp.gt.f32.partialorder %v3551, 0.0
  %vm5022 = vcmp.gt.f32.partialorder %v3553, 0.0
  %vm5023 = vcmp.gt.f32.partialorder %v4003, 0.0
  %vm5024 = vcmp.gt.f32.partialorder %v4005, 0.0
  %vm5025 = vcmp.gt.f32.partialorder %v4455, 0.0
  %vm5026 = vcmp.gt.f32.partialorder %v4457, 0.0
  %vm5027 = vcmp.gt.f32.partialorder %v4907, 0.0
  %vm5028 = vcmp.gt.f32.partialorder %v4909, 0.0
  %vm5029 = vcmp.gt.f32.partialorder %v3555, 0.0
  %vm5030 = vcmp.gt.f32.partialorder %v3557, 0.0
  %vm5031 = vcmp.gt.f32.partialorder %v4007, 0.0
  %vm5032 = vcmp.gt.f32.partialorder %v4009, 0.0
  %vm5033 = vcmp.gt.f32.partialorder %v4459, 0.0
  %vm5034 = vcmp.gt.f32.partialorder %v4461, 0.0
  %vm5035 = vcmp.gt.f32.partialorder %v4911, 0.0
  %vm5036 = vcmp.gt.f32.partialorder %v4913, 0.0
  %vm5037 = vcmp.gt.f32.partialorder %v3561, 0.0
  %vm5038 = vcmp.gt.f32.partialorder %v3563, 0.0
  %vm5039 = vcmp.gt.f32.partialorder %v4013, 0.0
  %vm5040 = vcmp.gt.f32.partialorder %v4015, 0.0
  %vm5041 = vcmp.gt.f32.partialorder %v4465, 0.0
  %vm5042 = vcmp.gt.f32.partialorder %v4467, 0.0
  %vm5043 = vcmp.gt.f32.partialorder %v4917, 0.0
  %vm5044 = vcmp.gt.f32.partialorder %v4919, 0.0
  %vm5045 = vcmp.gt.f32.partialorder %v3565, 0.0
  %vm5046 = vcmp.gt.f32.partialorder %v3567, 0.0
  %vm5047 = vcmp.gt.f32.partialorder %v4017, 0.0
  %vm5048 = vcmp.gt.f32.partialorder %v4019, 0.0
  %vm5049 = vcmp.gt.f32.partialorder %v4469, 0.0
  %vm5050 = vcmp.gt.f32.partialorder %v4471, 0.0
  %vm5051 = vcmp.gt.f32.partialorder %v4921, 0.0
  %vm5052 = vcmp.gt.f32.partialorder %v4923, 0.0
  %v5053 = vmul.f32 %v3491, 0.2
  %v5054 = vmul.f32 %v3493, 0.2
  %v5055 = vmul.f32 %v3943, 0.2
  %v5056 = vmul.f32 %v3945, 0.2
  %v5057 = vmul.f32 %v4395, 0.2
  %v5058 = vmul.f32 %v4397, 0.2
  %v5059 = vmul.f32 %v4847, 0.2
  %v5060 = vmul.f32 %v4849, 0.2
  %v5061 = vmul.f32 %v3495, 0.2
  %v5062 = vmul.f32 %v3497, 0.2
  %v5063 = vmul.f32 %v3947, 0.2
  %v5064 = vmul.f32 %v3949, 0.2
  %v5065 = vmul.f32 %v4399, 0.2
  %v5066 = vmul.f32 %v4401, 0.2
  %v5067 = vmul.f32 %v4851, 0.2
  %v5068 = vmul.f32 %v4853, 0.2
  %v5069 = vmul.f32 %v3501, 0.2
  %v5070 = vmul.f32 %v3503, 0.2
  %v5071 = vmul.f32 %v3953, 0.2
  %v5072 = vmul.f32 %v3955, 0.2
  %v5073 = vmul.f32 %v4405, 0.2
  %v5074 = vmul.f32 %v4407, 0.2
  %v5075 = vmul.f32 %v4857, 0.2
  %v5076 = vmul.f32 %v4859, 0.2
  %v5077 = vmul.f32 %v3505, 0.2
  %v5078 = vmul.f32 %v3507, 0.2
  %v5079 = vmul.f32 %v3957, 0.2
  %v5080 = vmul.f32 %v3959, 0.2
  %v5081 = vmul.f32 %v4409, 0.2
  %v5082 = vmul.f32 %v4411, 0.2
  %v5083 = vmul.f32 %v4861, 0.2
  %v5084 = vmul.f32 %v4863, 0.2
  %v5085 = vmul.f32 %v3511, 0.2
  %v5086 = vmul.f32 %v3513, 0.2
  %v5087 = vmul.f32 %v3963, 0.2
  %v5088 = vmul.f32 %v3965, 0.2
  %v5089 = vmul.f32 %v4415, 0.2
  %v5090 = vmul.f32 %v4417, 0.2
  %v5091 = vmul.f32 %v4867, 0.2
  %v5092 = vmul.f32 %v4869, 0.2
  %v5093 = vmul.f32 %v3515, 0.2
  %v5094 = vmul.f32 %v3517, 0.2
  %v5095 = vmul.f32 %v3967, 0.2
  %v5096 = vmul.f32 %v3969, 0.2
  %v5097 = vmul.f32 %v4419, 0.2
  %v5098 = vmul.f32 %v4421, 0.2
  %v5099 = vmul.f32 %v4871, 0.2
  %v5100 = vmul.f32 %v4873, 0.2
  %v5101 = vmul.f32 %v3521, 0.2
  %v5102 = vmul.f32 %v3523, 0.2
  %v5103 = vmul.f32 %v3973, 0.2
  %v5104 = vmul.f32 %v3975, 0.2
  %v5105 = vmul.f32 %v4425, 0.2
  %v5106 = vmul.f32 %v4427, 0.2
  %v5107 = vmul.f32 %v4877, 0.2
  %v5108 = vmul.f32 %v4879, 0.2
  %v5109 = vmul.f32 %v3525, 0.2
  %v5110 = vmul.f32 %v3527, 0.2
  %v5111 = vmul.f32 %v3977, 0.2
  %v5112 = vmul.f32 %v3979, 0.2
  %v5113 = vmul.f32 %v4429, 0.2
  %v5114 = vmul.f32 %v4431, 0.2
  %v5115 = vmul.f32 %v4881, 0.2
  %v5116 = vmul.f32 %v4883, 0.2
  %v5117 = vmul.f32 %v3531, 0.2
  %v5118 = vmul.f32 %v3533, 0.2
  %v5119 = vmul.f32 %v3983, 0.2
  %v5120 = vmul.f32 %v3985, 0.2
  %v5121 = vmul.f32 %v4435, 0.2
  %v5122 = vmul.f32 %v4437, 0.2
  %v5123 = vmul.f32 %v4887, 0.2
  %v5124 = vmul.f32 %v4889, 0.2
  %v5125 = vmul.f32 %v3535, 0.2
  %v5126 = vmul.f32 %v3537, 0.2
  %v5127 = vmul.f32 %v3987, 0.2
  %v5128 = vmul.f32 %v3989, 0.2
  %v5129 = vmul.f32 %v4439, 0.2
  %v5130 = vmul.f32 %v4441, 0.2
  %v5131 = vmul.f32 %v4891, 0.2
  %v5132 = vmul.f32 %v4893, 0.2
  %v5133 = vmul.f32 %v3541, 0.2
  %v5134 = vmul.f32 %v3543, 0.2
  %v5135 = vmul.f32 %v3993, 0.2
  %v5136 = vmul.f32 %v3995, 0.2
  %v5137 = vmul.f32 %v4445, 0.2
  %v5138 = vmul.f32 %v4447, 0.2
  %v5139 = vmul.f32 %v4897, 0.2
  %v5140 = vmul.f32 %v4899, 0.2
  %v5141 = vmul.f32 %v3545, 0.2
  %v5142 = vmul.f32 %v3547, 0.2
  %v5143 = vmul.f32 %v3997, 0.2
  %v5144 = vmul.f32 %v3999, 0.2
  %v5145 = vmul.f32 %v4449, 0.2
  %v5146 = vmul.f32 %v4451, 0.2
  %v5147 = vmul.f32 %v4901, 0.2
  %v5148 = vmul.f32 %v4903, 0.2
  %v5149 = vmul.f32 %v3551, 0.2
  %v5150 = vmul.f32 %v3553, 0.2
  %v5151 = vmul.f32 %v4003, 0.2
  %v5152 = vmul.f32 %v4005, 0.2
  %v5153 = vmul.f32 %v4455, 0.2
  %v5154 = vmul.f32 %v4457, 0.2
  %v5155 = vmul.f32 %v4907, 0.2
  %v5156 = vmul.f32 %v4909, 0.2
  %v5157 = vmul.f32 %v3555, 0.2
  %v5158 = vmul.f32 %v3557, 0.2
  %v5159 = vmul.f32 %v4007, 0.2
  %v5160 = vmul.f32 %v4009, 0.2
  %v5161 = vmul.f32 %v4459, 0.2
  %v5162 = vmul.f32 %v4461, 0.2
  %v5163 = vmul.f32 %v4911, 0.2
  %v5164 = vmul.f32 %v4913, 0.2
  %v5165 = vmul.f32 %v3561, 0.2
  %v5166 = vmul.f32 %v3563, 0.2
  %v5167 = vmul.f32 %v4013, 0.2
  %v5168 = vmul.f32 %v4015, 0.2
  %v5169 = vmul.f32 %v4465, 0.2
  %v5170 = vmul.f32 %v4467, 0.2
  %v5171 = vmul.f32 %v4917, 0.2
  %v5172 = vmul.f32 %v4919, 0.2
  %v5173 = vmul.f32 %v3565, 0.2
  %v5174 = vmul.f32 %v3567, 0.2
  %v5175 = vmul.f32 %v4017, 0.2
  %v5176 = vmul.f32 %v4019, 0.2
  %v5177 = vmul.f32 %v4469, 0.2
  %v5178 = vmul.f32 %v4471, 0.2
  %v5179 = vmul.f32 %v4921, 0.2
  %v5180 = vmul.f32 %v4923, 0.2
  %v5181 = vsel %vm4925, %v3491, %v5053
  %v5182 = vsel %vm4926, %v3493, %v5054
  %v5183 = vsel %vm4927, %v3943, %v5055
  %v5184 = vsel %vm4928, %v3945, %v5056
  %v5185 = vsel %vm4929, %v4395, %v5057
  %v5186 = vsel %vm4930, %v4397, %v5058
  %v5187 = vsel %vm4931, %v4847, %v5059
  %v5188 = vsel %vm4932, %v4849, %v5060
  %v5189 = vsel %vm4933, %v3495, %v5061
  %v5190 = vsel %vm4934, %v3497, %v5062
  %v5191 = vsel %vm4935, %v3947, %v5063
  %v5192 = vsel %vm4936, %v3949, %v5064
  %v5193 = vsel %vm4937, %v4399, %v5065
  %v5194 = vsel %vm4938, %v4401, %v5066
  %v5195 = vsel %vm4939, %v4851, %v5067
  %v5196 = vsel %vm4940, %v4853, %v5068
  %v5197 = vsel %vm4941, %v3501, %v5069
  %v5198 = vsel %vm4942, %v3503, %v5070
  %v5199 = vsel %vm4943, %v3953, %v5071
  %v5200 = vsel %vm4944, %v3955, %v5072
  %v5201 = vsel %vm4945, %v4405, %v5073
  %v5202 = vsel %vm4946, %v4407, %v5074
  %v5203 = vsel %vm4947, %v4857, %v5075
  %v5204 = vsel %vm4948, %v4859, %v5076
  %v5205 = vsel %vm4949, %v3505, %v5077
  %v5206 = vsel %vm4950, %v3507, %v5078
  %v5207 = vsel %vm4951, %v3957, %v5079
  %v5208 = vsel %vm4952, %v3959, %v5080
  %v5209 = vsel %vm4953, %v4409, %v5081
  %v5210 = vsel %vm4954, %v4411, %v5082
  %v5211 = vsel %vm4955, %v4861, %v5083
  %v5212 = vsel %vm4956, %v4863, %v5084
  %v5213 = vsel %vm4957, %v3511, %v5085
  %v5214 = vsel %vm4958, %v3513, %v5086
  %v5215 = vsel %vm4959, %v3963, %v5087
  %v5216 = vsel %vm4960, %v3965, %v5088
  %v5217 = vsel %vm4961, %v4415, %v5089
  %v5218 = vsel %vm4962, %v4417, %v5090
  %v5219 = vsel %vm4963, %v4867, %v5091
  %v5220 = vsel %vm4964, %v4869, %v5092
  %v5221 = vsel %vm4965, %v3515, %v5093
  %v5222 = vsel %vm4966, %v3517, %v5094
  %v5223 = vsel %vm4967, %v3967, %v5095
  %v5224 = vsel %vm4968, %v3969, %v5096
  %v5225 = vsel %vm4969, %v4419, %v5097
  %v5226 = vsel %vm4970, %v4421, %v5098
  %v5227 = vsel %vm4971, %v4871, %v5099
  %v5228 = vsel %vm4972, %v4873, %v5100
  %v5229 = vsel %vm4973, %v3521, %v5101
  %v5230 = vsel %vm4974, %v3523, %v5102
  %v5231 = vsel %vm4975, %v3973, %v5103
  %v5232 = vsel %vm4976, %v3975, %v5104
  %v5233 = vsel %vm4977, %v4425, %v5105
  %v5234 = vsel %vm4978, %v4427, %v5106
  %v5235 = vsel %vm4979, %v4877, %v5107
  %v5236 = vsel %vm4980, %v4879, %v5108
  %v5237 = vsel %vm4981, %v3525, %v5109
  %v5238 = vsel %vm4982, %v3527, %v5110
  %v5239 = vsel %vm4983, %v3977, %v5111
  %v5240 = vsel %vm4984, %v3979, %v5112
  %v5241 = vsel %vm4985, %v4429, %v5113
  %v5242 = vsel %vm4986, %v4431, %v5114
  %v5243 = vsel %vm4987, %v4881, %v5115
  %v5244 = vsel %vm4988, %v4883, %v5116
  %v5245 = vsel %vm4989, %v3531, %v5117
  %v5246 = vsel %vm4990, %v3533, %v5118
  %v5247 = vsel %vm4991, %v3983, %v5119
  %v5248 = vsel %vm4992, %v3985, %v5120
  %v5249 = vsel %vm4993, %v4435, %v5121
  %v5250 = vsel %vm4994, %v4437, %v5122
  %v5251 = vsel %vm4995, %v4887, %v5123
  %v5252 = vsel %vm4996, %v4889, %v5124
  %v5253 = vsel %vm4997, %v3535, %v5125
  %v5254 = vsel %vm4998, %v3537, %v5126
  %v5255 = vsel %vm4999, %v3987, %v5127
  %v5256 = vsel %vm5000, %v3989, %v5128
  %v5257 = vsel %vm5001, %v4439, %v5129
  %v5258 = vsel %vm5002, %v4441, %v5130
  %v5259 = vsel %vm5003, %v4891, %v5131
  %v5260 = vsel %vm5004, %v4893, %v5132
  %v5261 = vsel %vm5005, %v3541, %v5133
  %v5262 = vsel %vm5006, %v3543, %v5134
  %v5263 = vsel %vm5007, %v3993, %v5135
  %v5264 = vsel %vm5008, %v3995, %v5136
  %v5265 = vsel %vm5009, %v4445, %v5137
  %v5266 = vsel %vm5010, %v4447, %v5138
  %v5267 = vsel %vm5011, %v4897, %v5139
  %v5268 = vsel %vm5012, %v4899, %v5140
  %v5269 = vsel %vm5013, %v3545, %v5141
  %v5270 = vsel %vm5014, %v3547, %v5142
  %v5271 = vsel %vm5015, %v3997, %v5143
  %v5272 = vsel %vm5016, %v3999, %v5144
  %v5273 = vsel %vm5017, %v4449, %v5145
  %v5274 = vsel %vm5018, %v4451, %v5146
  %v5275 = vsel %vm5019, %v4901, %v5147
  %v5276 = vsel %vm5020, %v4903, %v5148
  %v5277 = vsel %vm5021, %v3551, %v5149
  %v5278 = vsel %vm5022, %v3553, %v5150
  %v5279 = vsel %vm5023, %v4003, %v5151
  %v5280 = vsel %vm5024, %v4005, %v5152
  %v5281 = vsel %vm5025, %v4455, %v5153
  %v5282 = vsel %vm5026, %v4457, %v5154
  %v5283 = vsel %vm5027, %v4907, %v5155
  %v5284 = vsel %vm5028, %v4909, %v5156
  %v5285 = vsel %vm5029, %v3555, %v5157
  %v5286 = vsel %vm5030, %v3557, %v5158
  %v5287 = vsel %vm5031, %v4007, %v5159
  %v5288 = vsel %vm5032, %v4009, %v5160
  %v5289 = vsel %vm5033, %v4459, %v5161
  %v5290 = vsel %vm5034, %v4461, %v5162
  %v5291 = vsel %vm5035, %v4911, %v5163
  %v5292 = vsel %vm5036, %v4913, %v5164
  %v5293 = vsel %vm5037, %v3561, %v5165
  %v5294 = vsel %vm5038, %v3563, %v5166
  %v5295 = vsel %vm5039, %v4013, %v5167
  %v5296 = vsel %vm5040, %v4015, %v5168
  %v5297 = vsel %vm5041, %v4465, %v5169
  %v5298 = vsel %vm5042, %v4467, %v5170
  %v5299 = vsel %vm5043, %v4917, %v5171
  %v5300 = vsel %vm5044, %v4919, %v5172
  %v5301 = vsel %vm5045, %v3565, %v5173
  %v5302 = vsel %vm5046, %v3567, %v5174
  %v5303 = vsel %vm5047, %v4017, %v5175
  %v5304 = vsel %vm5048, %v4019, %v5176
  %v5305 = vsel %vm5049, %v4469, %v5177
  %v5306 = vsel %vm5050, %v4471, %v5178
  %v5307 = vsel %vm5051, %v4921, %v5179
  %v5308 = vsel %vm5052, %v4923, %v5180
  %v5309 = vpack.c.bf16 %v5189, %v5181
  %v5310 = vpack.c.bf16 %v5190, %v5182
  %v5311 = vpack.c.bf16 %v5191, %v5183
  %v5312 = vpack.c.bf16 %v5192, %v5184
  %v5313 = vpack.c.bf16 %v5193, %v5185
  %v5314 = vpack.c.bf16 %v5194, %v5186
  %v5315 = vpack.c.bf16 %v5195, %v5187
  %v5316 = vpack.c.bf16 %v5196, %v5188
  %v5317 = vpack.c.bf16 %v5205, %v5197
  %v5318 = vpack.c.bf16 %v5206, %v5198
  %v5319 = vpack.c.bf16 %v5207, %v5199
  %v5320 = vpack.c.bf16 %v5208, %v5200
  %v5321 = vpack.c.bf16 %v5209, %v5201
  %v5322 = vpack.c.bf16 %v5210, %v5202
  %v5323 = vpack.c.bf16 %v5211, %v5203
  %v5324 = vpack.c.bf16 %v5212, %v5204
  %v5325 = vpack.c.bf16 %v5221, %v5213
  %v5326 = vpack.c.bf16 %v5222, %v5214
  %v5327 = vpack.c.bf16 %v5223, %v5215
  %v5328 = vpack.c.bf16 %v5224, %v5216
  %v5329 = vpack.c.bf16 %v5225, %v5217
  %v5330 = vpack.c.bf16 %v5226, %v5218
  %v5331 = vpack.c.bf16 %v5227, %v5219
  %v5332 = vpack.c.bf16 %v5228, %v5220
  %v5333 = vpack.c.bf16 %v5237, %v5229
  %v5334 = vpack.c.bf16 %v5238, %v5230
  %v5335 = vpack.c.bf16 %v5239, %v5231
  %v5336 = vpack.c.bf16 %v5240, %v5232
  %v5337 = vpack.c.bf16 %v5241, %v5233
  %v5338 = vpack.c.bf16 %v5242, %v5234
  %v5339 = vpack.c.bf16 %v5243, %v5235
  %v5340 = vpack.c.bf16 %v5244, %v5236
  %v5341 = vpack.c.bf16 %v5253, %v5245
  %v5342 = vpack.c.bf16 %v5254, %v5246
  %v5343 = vpack.c.bf16 %v5255, %v5247
  %v5344 = vpack.c.bf16 %v5256, %v5248
  %v5345 = vpack.c.bf16 %v5257, %v5249
  %v5346 = vpack.c.bf16 %v5258, %v5250
  %v5347 = vpack.c.bf16 %v5259, %v5251
  %v5348 = vpack.c.bf16 %v5260, %v5252
  %v5349 = vpack.c.bf16 %v5269, %v5261
  %v5350 = vpack.c.bf16 %v5270, %v5262
  %v5351 = vpack.c.bf16 %v5271, %v5263
  %v5352 = vpack.c.bf16 %v5272, %v5264
  %v5353 = vpack.c.bf16 %v5273, %v5265
  %v5354 = vpack.c.bf16 %v5274, %v5266
  %v5355 = vpack.c.bf16 %v5275, %v5267
  %v5356 = vpack.c.bf16 %v5276, %v5268
  %v5357 = vpack.c.bf16 %v5285, %v5277
  %v5358 = vpack.c.bf16 %v5286, %v5278
  %v5359 = vpack.c.bf16 %v5287, %v5279
  %v5360 = vpack.c.bf16 %v5288, %v5280
  %v5361 = vpack.c.bf16 %v5289, %v5281
  %v5362 = vpack.c.bf16 %v5290, %v5282
  %v5363 = vpack.c.bf16 %v5291, %v5283
  %v5364 = vpack.c.bf16 %v5292, %v5284
  %v5365 = vpack.c.bf16 %v5301, %v5293
  %v5366 = vpack.c.bf16 %v5302, %v5294
  %v5367 = vpack.c.bf16 %v5303, %v5295
  %v5368 = vpack.c.bf16 %v5304, %v5296
  %v5369 = vpack.c.bf16 %v5305, %v5297
  %v5370 = vpack.c.bf16 %v5306, %v5298
  %v5371 = vpack.c.bf16 %v5307, %v5299
  %v5372 = vpack.c.bf16 %v5308, %v5300
  %v5373 = vld [vmem:[%s3] sm:$0xff]
  %v5374 = vld [vmem:[%s3 + $0x8] sm:$0xff]
  %v5375 = vld [vmem:[%s3 + $0x10] sm:$0xff]
  %v5376 = vld [vmem:[%s3 + $0x18] sm:$0xff]
  %v5377 = vld [vmem:[%s3 + $0x20] sm:$0xff]
  %v5378 = vld [vmem:[%s3 + $0x28] sm:$0xff]
  %v5379 = vld [vmem:[%s3 + $0x30] sm:$0xff]
  %v5380 = vld [vmem:[%s3 + $0x38] sm:$0xff]
  %v5381 = vld [vmem:[%s3 + $0x40] sm:$0xff]
  %v5382 = vld [vmem:[%s3 + $0x48] sm:$0xff]
  %v5383 = vld [vmem:[%s3 + $0x50] sm:$0xff]
  %v5384 = vld [vmem:[%s3 + $0x58] sm:$0xff]
  %v5385 = vld [vmem:[%s3 + $0x60] sm:$0xff]
  %v5386 = vld [vmem:[%s3 + $0x68] sm:$0xff]
  %v5387 = vld [vmem:[%s3 + $0x70] sm:$0xff]
  %v5388 = vld [vmem:[%s3 + $0x78] sm:$0xff]
  %v5389 = vld [vmem:[%s3 + $0x80] sm:$0xff]
  %v5390 = vld [vmem:[%s3 + $0x88] sm:$0xff]
  %v5391 = vld [vmem:[%s3 + $0x90] sm:$0xff]
  %v5392 = vld [vmem:[%s3 + $0x98] sm:$0xff]
  %v5393 = vld [vmem:[%s3 + $0xa0] sm:$0xff]
  %v5394 = vld [vmem:[%s3 + $0xa8] sm:$0xff]
  %v5395 = vld [vmem:[%s3 + $0xb0] sm:$0xff]
  %v5396 = vld [vmem:[%s3 + $0xb8] sm:$0xff]
  %v5397 = vld [vmem:[%s3 + $0xc0] sm:$0xff]
  %v5398 = vld [vmem:[%s3 + $0xc8] sm:$0xff]
  %v5399 = vld [vmem:[%s3 + $0xd0] sm:$0xff]
  %v5400 = vld [vmem:[%s3 + $0xd8] sm:$0xff]
  %v5401 = vld [vmem:[%s3 + $0xe0] sm:$0xff]
  %v5402 = vld [vmem:[%s3 + $0xe8] sm:$0xff]
  %v5403 = vld [vmem:[%s3 + $0xf0] sm:$0xff]
  %v5404 = vld [vmem:[%s3 + $0xf8] sm:$0xff]
  %v5405 = vld [vmem:[%s3 + $0x100] sm:$0xff]
  %v5406 = vld [vmem:[%s3 + $0x108] sm:$0xff]
  %v5407 = vld [vmem:[%s3 + $0x110] sm:$0xff]
  %v5408 = vld [vmem:[%s3 + $0x118] sm:$0xff]
  %v5409 = vld [vmem:[%s3 + $0x120] sm:$0xff]
  %v5410 = vld [vmem:[%s3 + $0x128] sm:$0xff]
  %v5411 = vld [vmem:[%s3 + $0x130] sm:$0xff]
  %v5412 = vld [vmem:[%s3 + $0x138] sm:$0xff]
  %v5413 = vld [vmem:[%s3 + $0x140] sm:$0xff]
  %v5414 = vld [vmem:[%s3 + $0x148] sm:$0xff]
  %v5415 = vld [vmem:[%s3 + $0x150] sm:$0xff]
  %v5416 = vld [vmem:[%s3 + $0x158] sm:$0xff]
  %v5417 = vld [vmem:[%s3 + $0x160] sm:$0xff]
  %v5418 = vld [vmem:[%s3 + $0x168] sm:$0xff]
  %v5419 = vld [vmem:[%s3 + $0x170] sm:$0xff]
  %v5420 = vld [vmem:[%s3 + $0x178] sm:$0xff]
  %v5421 = vld [vmem:[%s3 + $0x180] sm:$0xff]
  %v5422 = vld [vmem:[%s3 + $0x188] sm:$0xff]
  %v5423 = vld [vmem:[%s3 + $0x190] sm:$0xff]
  %v5424 = vld [vmem:[%s3 + $0x198] sm:$0xff]
  %v5425 = vld [vmem:[%s3 + $0x1a0] sm:$0xff]
  %v5426 = vld [vmem:[%s3 + $0x1a8] sm:$0xff]
  %v5427 = vld [vmem:[%s3 + $0x1b0] sm:$0xff]
  %v5428 = vld [vmem:[%s3 + $0x1b8] sm:$0xff]
  %v5429 = vld [vmem:[%s3 + $0x1c0] sm:$0xff]
  %v5430 = vld [vmem:[%s3 + $0x1c8] sm:$0xff]
  %v5431 = vld [vmem:[%s3 + $0x1d0] sm:$0xff]
  %v5432 = vld [vmem:[%s3 + $0x1d8] sm:$0xff]
  %v5433 = vld [vmem:[%s3 + $0x1e0] sm:$0xff]
  %v5434 = vld [vmem:[%s3 + $0x1e8] sm:$0xff]
  %v5435 = vld [vmem:[%s3 + $0x1f0] sm:$0xff]
  %v5436 = vld [vmem:[%s3 + $0x1f8] sm:$0xff]
  %v5437 = vld [vmem:[%s3 + $0x200] sm:$0xff]
  %v5438 = vld [vmem:[%s3 + $0x208] sm:$0xff]
  %v5439 = vld [vmem:[%s3 + $0x210] sm:$0xff]
  %v5440 = vld [vmem:[%s3 + $0x218] sm:$0xff]
  %v5441 = vld [vmem:[%s3 + $0x220] sm:$0xff]
  %v5442 = vld [vmem:[%s3 + $0x228] sm:$0xff]
  %v5443 = vld [vmem:[%s3 + $0x230] sm:$0xff]
  %v5444 = vld [vmem:[%s3 + $0x238] sm:$0xff]
  %v5445 = vld [vmem:[%s3 + $0x240] sm:$0xff]
  %v5446 = vld [vmem:[%s3 + $0x248] sm:$0xff]
  %v5447 = vld [vmem:[%s3 + $0x250] sm:$0xff]
  %v5448 = vld [vmem:[%s3 + $0x258] sm:$0xff]
  %v5449 = vld [vmem:[%s3 + $0x260] sm:$0xff]
  %v5450 = vld [vmem:[%s3 + $0x268] sm:$0xff]
  %v5451 = vld [vmem:[%s3 + $0x270] sm:$0xff]
  %v5452 = vld [vmem:[%s3 + $0x278] sm:$0xff]
  %v5453 = vld [vmem:[%s3 + $0x280] sm:$0xff]
  %v5454 = vld [vmem:[%s3 + $0x288] sm:$0xff]
  %v5455 = vld [vmem:[%s3 + $0x290] sm:$0xff]
  %v5456 = vld [vmem:[%s3 + $0x298] sm:$0xff]
  %v5457 = vld [vmem:[%s3 + $0x2a0] sm:$0xff]
  %v5458 = vld [vmem:[%s3 + $0x2a8] sm:$0xff]
  %v5459 = vld [vmem:[%s3 + $0x2b0] sm:$0xff]
  %v5460 = vld [vmem:[%s3 + $0x2b8] sm:$0xff]
  %v5461 = vld [vmem:[%s3 + $0x2c0] sm:$0xff]
  %v5462 = vld [vmem:[%s3 + $0x2c8] sm:$0xff]
  %v5463 = vld [vmem:[%s3 + $0x2d0] sm:$0xff]
  %v5464 = vld [vmem:[%s3 + $0x2d8] sm:$0xff]
  %v5465 = vld [vmem:[%s3 + $0x2e0] sm:$0xff]
  %v5466 = vld [vmem:[%s3 + $0x2e8] sm:$0xff]
  %v5467 = vld [vmem:[%s3 + $0x2f0] sm:$0xff]
  %v5468 = vld [vmem:[%s3 + $0x2f8] sm:$0xff]
  %v5469 = vld [vmem:[%s3 + $0x300] sm:$0xff]
  %v5470 = vld [vmem:[%s3 + $0x308] sm:$0xff]
  %v5471 = vld [vmem:[%s3 + $0x310] sm:$0xff]
  %v5472 = vld [vmem:[%s3 + $0x318] sm:$0xff]
  %v5473 = vld [vmem:[%s3 + $0x320] sm:$0xff]
  %v5474 = vld [vmem:[%s3 + $0x328] sm:$0xff]
  %v5475 = vld [vmem:[%s3 + $0x330] sm:$0xff]
  %v5476 = vld [vmem:[%s3 + $0x338] sm:$0xff]
  %v5477 = vld [vmem:[%s3 + $0x340] sm:$0xff]
  %v5478 = vld [vmem:[%s3 + $0x348] sm:$0xff]
  %v5479 = vld [vmem:[%s3 + $0x350] sm:$0xff]
  %v5480 = vld [vmem:[%s3 + $0x358] sm:$0xff]
  %v5481 = vld [vmem:[%s3 + $0x360] sm:$0xff]
  %v5482 = vld [vmem:[%s3 + $0x368] sm:$0xff]
  %v5483 = vld [vmem:[%s3 + $0x370] sm:$0xff]
  %v5484 = vld [vmem:[%s3 + $0x378] sm:$0xff]
  %v5485 = vld [vmem:[%s3 + $0x380] sm:$0xff]
  %v5486 = vld [vmem:[%s3 + $0x388] sm:$0xff]
  %v5487 = vld [vmem:[%s3 + $0x390] sm:$0xff]
  %v5488 = vld [vmem:[%s3 + $0x398] sm:$0xff]
  %v5489 = vld [vmem:[%s3 + $0x3a0] sm:$0xff]
  %v5490 = vld [vmem:[%s3 + $0x3a8] sm:$0xff]
  %v5491 = vld [vmem:[%s3 + $0x3b0] sm:$0xff]
  %v5492 = vld [vmem:[%s3 + $0x3b8] sm:$0xff]
  %v5493 = vld [vmem:[%s3 + $0x3c0] sm:$0xff]
  %v5494 = vld [vmem:[%s3 + $0x3c8] sm:$0xff]
  %v5495 = vld [vmem:[%s3 + $0x3d0] sm:$0xff]
  %v5496 = vld [vmem:[%s3 + $0x3d8] sm:$0xff]
  %v5497 = vld [vmem:[%s3 + $0x3e0] sm:$0xff]
  %v5498 = vld [vmem:[%s3 + $0x3e8] sm:$0xff]
  %v5499 = vld [vmem:[%s3 + $0x3f0] sm:$0xff]
  %v5500 = vld [vmem:[%s3 + $0x3f8] sm:$0xff]
  %v5501 = vld [vmem:[%s3 + $0x400] sm:$0xff]
  %v5502 = vld [vmem:[%s3 + $0x408] sm:$0xff]
  %v5503 = vld [vmem:[%s3 + $0x410] sm:$0xff]
  %v5504 = vld [vmem:[%s3 + $0x418] sm:$0xff]
  %v5505 = vld [vmem:[%s3 + $0x420] sm:$0xff]
  %v5506 = vld [vmem:[%s3 + $0x428] sm:$0xff]
  %v5507 = vld [vmem:[%s3 + $0x430] sm:$0xff]
  %v5508 = vld [vmem:[%s3 + $0x438] sm:$0xff]
  %v5509 = vld [vmem:[%s3 + $0x440] sm:$0xff]
  %v5510 = vld [vmem:[%s3 + $0x448] sm:$0xff]
  %v5511 = vld [vmem:[%s3 + $0x450] sm:$0xff]
  %v5512 = vld [vmem:[%s3 + $0x458] sm:$0xff]
  %v5513 = vld [vmem:[%s3 + $0x460] sm:$0xff]
  %v5514 = vld [vmem:[%s3 + $0x468] sm:$0xff]
  %v5515 = vld [vmem:[%s3 + $0x470] sm:$0xff]
  %v5516 = vld [vmem:[%s3 + $0x478] sm:$0xff]
  %v5517 = vld [vmem:[%s3 + $0x480] sm:$0xff]
  %v5518 = vld [vmem:[%s3 + $0x488] sm:$0xff]
  %v5519 = vld [vmem:[%s3 + $0x490] sm:$0xff]
  %v5520 = vld [vmem:[%s3 + $0x498] sm:$0xff]
  %v5521 = vld [vmem:[%s3 + $0x4a0] sm:$0xff]
  %v5522 = vld [vmem:[%s3 + $0x4a8] sm:$0xff]
  %v5523 = vld [vmem:[%s3 + $0x4b0] sm:$0xff]
  %v5524 = vld [vmem:[%s3 + $0x4b8] sm:$0xff]
  %v5525 = vld [vmem:[%s3 + $0x4c0] sm:$0xff]
  %v5526 = vld [vmem:[%s3 + $0x4c8] sm:$0xff]
  %v5527 = vld [vmem:[%s3 + $0x4d0] sm:$0xff]
  %v5528 = vld [vmem:[%s3 + $0x4d8] sm:$0xff]
  %v5529 = vld [vmem:[%s3 + $0x4e0] sm:$0xff]
  %v5530 = vld [vmem:[%s3 + $0x4e8] sm:$0xff]
  %v5531 = vld [vmem:[%s3 + $0x4f0] sm:$0xff]
  %v5532 = vld [vmem:[%s3 + $0x4f8] sm:$0xff]
  %v5533 = vld [vmem:[%s3 + $0x500] sm:$0xff]
  %v5534 = vld [vmem:[%s3 + $0x508] sm:$0xff]
  %v5535 = vld [vmem:[%s3 + $0x510] sm:$0xff]
  %v5536 = vld [vmem:[%s3 + $0x518] sm:$0xff]
  %v5537 = vld [vmem:[%s3 + $0x520] sm:$0xff]
  %v5538 = vld [vmem:[%s3 + $0x528] sm:$0xff]
  %v5539 = vld [vmem:[%s3 + $0x530] sm:$0xff]
  %v5540 = vld [vmem:[%s3 + $0x538] sm:$0xff]
  %v5541 = vld [vmem:[%s3 + $0x540] sm:$0xff]
  %v5542 = vld [vmem:[%s3 + $0x548] sm:$0xff]
  %v5543 = vld [vmem:[%s3 + $0x550] sm:$0xff]
  %v5544 = vld [vmem:[%s3 + $0x558] sm:$0xff]
  %v5545 = vld [vmem:[%s3 + $0x560] sm:$0xff]
  %v5546 = vld [vmem:[%s3 + $0x568] sm:$0xff]
  %v5547 = vld [vmem:[%s3 + $0x570] sm:$0xff]
  %v5548 = vld [vmem:[%s3 + $0x578] sm:$0xff]
  %v5549 = vld [vmem:[%s3 + $0x580] sm:$0xff]
  %v5550 = vld [vmem:[%s3 + $0x588] sm:$0xff]
  %v5551 = vld [vmem:[%s3 + $0x590] sm:$0xff]
  %v5552 = vld [vmem:[%s3 + $0x598] sm:$0xff]
  %v5553 = vld [vmem:[%s3 + $0x5a0] sm:$0xff]
  %v5554 = vld [vmem:[%s3 + $0x5a8] sm:$0xff]
  %v5555 = vld [vmem:[%s3 + $0x5b0] sm:$0xff]
  %v5556 = vld [vmem:[%s3 + $0x5b8] sm:$0xff]
  %v5557 = vld [vmem:[%s3 + $0x5c0] sm:$0xff]
  %v5558 = vld [vmem:[%s3 + $0x5c8] sm:$0xff]
  %v5559 = vld [vmem:[%s3 + $0x5d0] sm:$0xff]
  %v5560 = vld [vmem:[%s3 + $0x5d8] sm:$0xff]
  %v5561 = vld [vmem:[%s3 + $0x5e0] sm:$0xff]
  %v5562 = vld [vmem:[%s3 + $0x5e8] sm:$0xff]
  %v5563 = vld [vmem:[%s3 + $0x5f0] sm:$0xff]
  %v5564 = vld [vmem:[%s3 + $0x5f8] sm:$0xff]
  %v5565 = vld [vmem:[%s3 + $0x600] sm:$0xff]
  %v5566 = vld [vmem:[%s3 + $0x608] sm:$0xff]
  %v5567 = vld [vmem:[%s3 + $0x610] sm:$0xff]
  %v5568 = vld [vmem:[%s3 + $0x618] sm:$0xff]
  %v5569 = vld [vmem:[%s3 + $0x620] sm:$0xff]
  %v5570 = vld [vmem:[%s3 + $0x628] sm:$0xff]
  %v5571 = vld [vmem:[%s3 + $0x630] sm:$0xff]
  %v5572 = vld [vmem:[%s3 + $0x638] sm:$0xff]
  %v5573 = vld [vmem:[%s3 + $0x640] sm:$0xff]
  %v5574 = vld [vmem:[%s3 + $0x648] sm:$0xff]
  %v5575 = vld [vmem:[%s3 + $0x650] sm:$0xff]
  %v5576 = vld [vmem:[%s3 + $0x658] sm:$0xff]
  %v5577 = vld [vmem:[%s3 + $0x660] sm:$0xff]
  %v5578 = vld [vmem:[%s3 + $0x668] sm:$0xff]
  %v5579 = vld [vmem:[%s3 + $0x670] sm:$0xff]
  %v5580 = vld [vmem:[%s3 + $0x678] sm:$0xff]
  %v5581 = vld [vmem:[%s3 + $0x680] sm:$0xff]
  %v5582 = vld [vmem:[%s3 + $0x688] sm:$0xff]
  %v5583 = vld [vmem:[%s3 + $0x690] sm:$0xff]
  %v5584 = vld [vmem:[%s3 + $0x698] sm:$0xff]
  %v5585 = vld [vmem:[%s3 + $0x6a0] sm:$0xff]
  %v5586 = vld [vmem:[%s3 + $0x6a8] sm:$0xff]
  %v5587 = vld [vmem:[%s3 + $0x6b0] sm:$0xff]
  %v5588 = vld [vmem:[%s3 + $0x6b8] sm:$0xff]
  %v5589 = vld [vmem:[%s3 + $0x6c0] sm:$0xff]
  %v5590 = vld [vmem:[%s3 + $0x6c8] sm:$0xff]
  %v5591 = vld [vmem:[%s3 + $0x6d0] sm:$0xff]
  %v5592 = vld [vmem:[%s3 + $0x6d8] sm:$0xff]
  %v5593 = vld [vmem:[%s3 + $0x6e0] sm:$0xff]
  %v5594 = vld [vmem:[%s3 + $0x6e8] sm:$0xff]
  %v5595 = vld [vmem:[%s3 + $0x6f0] sm:$0xff]
  %v5596 = vld [vmem:[%s3 + $0x6f8] sm:$0xff]
  %v5597 = vld [vmem:[%s3 + $0x700] sm:$0xff]
  %v5598 = vld [vmem:[%s3 + $0x708] sm:$0xff]
  %v5599 = vld [vmem:[%s3 + $0x710] sm:$0xff]
  %v5600 = vld [vmem:[%s3 + $0x718] sm:$0xff]
  %v5601 = vld [vmem:[%s3 + $0x720] sm:$0xff]
  %v5602 = vld [vmem:[%s3 + $0x728] sm:$0xff]
  %v5603 = vld [vmem:[%s3 + $0x730] sm:$0xff]
  %v5604 = vld [vmem:[%s3 + $0x738] sm:$0xff]
  %v5605 = vld [vmem:[%s3 + $0x740] sm:$0xff]
  %v5606 = vld [vmem:[%s3 + $0x748] sm:$0xff]
  %v5607 = vld [vmem:[%s3 + $0x750] sm:$0xff]
  %v5608 = vld [vmem:[%s3 + $0x758] sm:$0xff]
  %v5609 = vld [vmem:[%s3 + $0x760] sm:$0xff]
  %v5610 = vld [vmem:[%s3 + $0x768] sm:$0xff]
  %v5611 = vld [vmem:[%s3 + $0x770] sm:$0xff]
  %v5612 = vld [vmem:[%s3 + $0x778] sm:$0xff]
  %v5613 = vld [vmem:[%s3 + $0x780] sm:$0xff]
  %v5614 = vld [vmem:[%s3 + $0x788] sm:$0xff]
  %v5615 = vld [vmem:[%s3 + $0x790] sm:$0xff]
  %v5616 = vld [vmem:[%s3 + $0x798] sm:$0xff]
  %v5617 = vld [vmem:[%s3 + $0x7a0] sm:$0xff]
  %v5618 = vld [vmem:[%s3 + $0x7a8] sm:$0xff]
  %v5619 = vld [vmem:[%s3 + $0x7b0] sm:$0xff]
  %v5620 = vld [vmem:[%s3 + $0x7b8] sm:$0xff]
  %v5621 = vld [vmem:[%s3 + $0x7c0] sm:$0xff]
  %v5622 = vld [vmem:[%s3 + $0x7c8] sm:$0xff]
  %v5623 = vld [vmem:[%s3 + $0x7d0] sm:$0xff]
  %v5624 = vld [vmem:[%s3 + $0x7d8] sm:$0xff]
  %v5625 = vld [vmem:[%s3 + $0x7e0] sm:$0xff]
  %v5626 = vld [vmem:[%s3 + $0x7e8] sm:$0xff]
  %v5627 = vld [vmem:[%s3 + $0x7f0] sm:$0xff]
  %v5628 = vld [vmem:[%s3 + $0x7f8] sm:$0xff]
  %v5629 = vld [vmem:[%s4] sm:$0xf]
  %v5631 = vlaneseq
  %v5632 = vshrl.u32 %v5631, 7
  %v5633 = vsub.s32 0, %v5632
  %v5634 = vrot.slane %v5629, %v5633
  %v5635 = vlaneseq
  %v5636 = vshrl.u32 %v5635, 7
  %v5637 = vsub.s32 1, %v5636
  %v5638 = vrot.slane %v5629, %v5637
  %v5639 = vlaneseq
  %v5640 = vshrl.u32 %v5639, 7
  %v5641 = vsub.s32 2, %v5640
  %v5642 = vrot.slane %v5629, %v5641
  %v5643 = vlaneseq
  %v5644 = vshrl.u32 %v5643, 7
  %v5645 = vsub.s32 3, %v5644
  %v5646 = vrot.slane %v5629, %v5645
  %v5907 = vunpack.c.l.b16 %v5373
  %v5908 = vunpack.c.h.b16 %v5373
  %v5909 = vunpack.c.l.b16 %v5374
  %v5910 = vunpack.c.h.b16 %v5374
  %v5911 = vunpack.c.l.b16 %v5375
  %v5912 = vunpack.c.h.b16 %v5375
  %v5913 = vunpack.c.l.b16 %v5376
  %v5914 = vunpack.c.h.b16 %v5376
  %v5915 = vunpack.c.l.b16 %v5377
  %v5916 = vunpack.c.h.b16 %v5377
  %v5917 = vunpack.c.l.b16 %v5378
  %v5918 = vunpack.c.h.b16 %v5378
  %v5919 = vunpack.c.l.b16 %v5379
  %v5920 = vunpack.c.h.b16 %v5379
  %v5921 = vunpack.c.l.b16 %v5380
  %v5922 = vunpack.c.h.b16 %v5380
  %v5923 = vunpack.c.l.b16 %v5381
  %v5924 = vunpack.c.h.b16 %v5381
  %v5925 = vunpack.c.l.b16 %v5382
  %v5926 = vunpack.c.h.b16 %v5382
  %v5927 = vunpack.c.l.b16 %v5383
  %v5928 = vunpack.c.h.b16 %v5383
  %v5929 = vunpack.c.l.b16 %v5384
  %v5930 = vunpack.c.h.b16 %v5384
  %v5931 = vunpack.c.l.b16 %v5385
  %v5932 = vunpack.c.h.b16 %v5385
  %v5933 = vunpack.c.l.b16 %v5386
  %v5934 = vunpack.c.h.b16 %v5386
  %v5935 = vunpack.c.l.b16 %v5387
  %v5936 = vunpack.c.h.b16 %v5387
  %v5937 = vunpack.c.l.b16 %v5388
  %v5938 = vunpack.c.h.b16 %v5388
  %v5939 = vunpack.c.l.b16 %v5389
  %v5940 = vunpack.c.h.b16 %v5389
  %v5941 = vunpack.c.l.b16 %v5390
  %v5942 = vunpack.c.h.b16 %v5390
  %v5943 = vunpack.c.l.b16 %v5391
  %v5944 = vunpack.c.h.b16 %v5391
  %v5945 = vunpack.c.l.b16 %v5392
  %v5946 = vunpack.c.h.b16 %v5392
  %v5947 = vunpack.c.l.b16 %v5393
  %v5948 = vunpack.c.h.b16 %v5393
  %v5949 = vunpack.c.l.b16 %v5394
  %v5950 = vunpack.c.h.b16 %v5394
  %v5951 = vunpack.c.l.b16 %v5395
  %v5952 = vunpack.c.h.b16 %v5395
  %v5953 = vunpack.c.l.b16 %v5396
  %v5954 = vunpack.c.h.b16 %v5396
  %v5955 = vunpack.c.l.b16 %v5397
  %v5956 = vunpack.c.h.b16 %v5397
  %v5957 = vunpack.c.l.b16 %v5398
  %v5958 = vunpack.c.h.b16 %v5398
  %v5959 = vunpack.c.l.b16 %v5399
  %v5960 = vunpack.c.h.b16 %v5399
  %v5961 = vunpack.c.l.b16 %v5400
  %v5962 = vunpack.c.h.b16 %v5400
  %v5963 = vunpack.c.l.b16 %v5401
  %v5964 = vunpack.c.h.b16 %v5401
  %v5965 = vunpack.c.l.b16 %v5402
  %v5966 = vunpack.c.h.b16 %v5402
  %v5967 = vunpack.c.l.b16 %v5403
  %v5968 = vunpack.c.h.b16 %v5403
  %v5969 = vunpack.c.l.b16 %v5404
  %v5970 = vunpack.c.h.b16 %v5404
  %v5971 = vunpack.c.l.b16 %v5405
  %v5972 = vunpack.c.h.b16 %v5405
  %v5973 = vunpack.c.l.b16 %v5406
  %v5974 = vunpack.c.h.b16 %v5406
  %v5975 = vunpack.c.l.b16 %v5407
  %v5976 = vunpack.c.h.b16 %v5407
  %v5977 = vunpack.c.l.b16 %v5408
  %v5978 = vunpack.c.h.b16 %v5408
  %v5979 = vunpack.c.l.b16 %v5409
  %v5980 = vunpack.c.h.b16 %v5409
  %v5981 = vunpack.c.l.b16 %v5410
  %v5982 = vunpack.c.h.b16 %v5410
  %v5983 = vunpack.c.l.b16 %v5411
  %v5984 = vunpack.c.h.b16 %v5411
  %v5985 = vunpack.c.l.b16 %v5412
  %v5986 = vunpack.c.h.b16 %v5412
  %v5987 = vunpack.c.l.b16 %v5413
  %v5988 = vunpack.c.h.b16 %v5413
  %v5989 = vunpack.c.l.b16 %v5414
  %v5990 = vunpack.c.h.b16 %v5414
  %v5991 = vunpack.c.l.b16 %v5415
  %v5992 = vunpack.c.h.b16 %v5415
  %v5993 = vunpack.c.l.b16 %v5416
  %v5994 = vunpack.c.h.b16 %v5416
  %v5995 = vunpack.c.l.b16 %v5417
  %v5996 = vunpack.c.h.b16 %v5417
  %v5997 = vunpack.c.l.b16 %v5418
  %v5998 = vunpack.c.h.b16 %v5418
  %v5999 = vunpack.c.l.b16 %v5419
  %v6000 = vunpack.c.h.b16 %v5419
  %v6001 = vunpack.c.l.b16 %v5420
  %v6002 = vunpack.c.h.b16 %v5420
  %v6003 = vunpack.c.l.b16 %v5421
  %v6004 = vunpack.c.h.b16 %v5421
  %v6005 = vunpack.c.l.b16 %v5422
  %v6006 = vunpack.c.h.b16 %v5422
  %v6007 = vunpack.c.l.b16 %v5423
  %v6008 = vunpack.c.h.b16 %v5423
  %v6009 = vunpack.c.l.b16 %v5424
  %v6010 = vunpack.c.h.b16 %v5424
  %v6011 = vunpack.c.l.b16 %v5425
  %v6012 = vunpack.c.h.b16 %v5425
  %v6013 = vunpack.c.l.b16 %v5426
  %v6014 = vunpack.c.h.b16 %v5426
  %v6015 = vunpack.c.l.b16 %v5427
  %v6016 = vunpack.c.h.b16 %v5427
  %v6017 = vunpack.c.l.b16 %v5428
  %v6018 = vunpack.c.h.b16 %v5428
  %v6019 = vunpack.c.l.b16 %v5429
  %v6020 = vunpack.c.h.b16 %v5429
  %v6021 = vunpack.c.l.b16 %v5430
  %v6022 = vunpack.c.h.b16 %v5430
  %v6023 = vunpack.c.l.b16 %v5431
  %v6024 = vunpack.c.h.b16 %v5431
  %v6025 = vunpack.c.l.b16 %v5432
  %v6026 = vunpack.c.h.b16 %v5432
  %v6027 = vunpack.c.l.b16 %v5433
  %v6028 = vunpack.c.h.b16 %v5433
  %v6029 = vunpack.c.l.b16 %v5434
  %v6030 = vunpack.c.h.b16 %v5434
  %v6031 = vunpack.c.l.b16 %v5435
  %v6032 = vunpack.c.h.b16 %v5435
  %v6033 = vunpack.c.l.b16 %v5436
  %v6034 = vunpack.c.h.b16 %v5436
  %v6035 = vunpack.c.l.b16 %v5437
  %v6036 = vunpack.c.h.b16 %v5437
  %v6037 = vunpack.c.l.b16 %v5438
  %v6038 = vunpack.c.h.b16 %v5438
  %v6039 = vunpack.c.l.b16 %v5439
  %v6040 = vunpack.c.h.b16 %v5439
  %v6041 = vunpack.c.l.b16 %v5440
  %v6042 = vunpack.c.h.b16 %v5440
  %v6043 = vunpack.c.l.b16 %v5441
  %v6044 = vunpack.c.h.b16 %v5441
  %v6045 = vunpack.c.l.b16 %v5442
  %v6046 = vunpack.c.h.b16 %v5442
  %v6047 = vunpack.c.l.b16 %v5443
  %v6048 = vunpack.c.h.b16 %v5443
  %v6049 = vunpack.c.l.b16 %v5444
  %v6050 = vunpack.c.h.b16 %v5444
  %v6051 = vunpack.c.l.b16 %v5445
  %v6052 = vunpack.c.h.b16 %v5445
  %v6053 = vunpack.c.l.b16 %v5446
  %v6054 = vunpack.c.h.b16 %v5446
  %v6055 = vunpack.c.l.b16 %v5447
  %v6056 = vunpack.c.h.b16 %v5447
  %v6057 = vunpack.c.l.b16 %v5448
  %v6058 = vunpack.c.h.b16 %v5448
  %v6059 = vunpack.c.l.b16 %v5449
  %v6060 = vunpack.c.h.b16 %v5449
  %v6061 = vunpack.c.l.b16 %v5450
  %v6062 = vunpack.c.h.b16 %v5450
  %v6063 = vunpack.c.l.b16 %v5451
  %v6064 = vunpack.c.h.b16 %v5451
  %v6065 = vunpack.c.l.b16 %v5452
  %v6066 = vunpack.c.h.b16 %v5452
  %v6067 = vunpack.c.l.b16 %v5453
  %v6068 = vunpack.c.h.b16 %v5453
  %v6069 = vunpack.c.l.b16 %v5454
  %v6070 = vunpack.c.h.b16 %v5454
  %v6071 = vunpack.c.l.b16 %v5455
  %v6072 = vunpack.c.h.b16 %v5455
  %v6073 = vunpack.c.l.b16 %v5456
  %v6074 = vunpack.c.h.b16 %v5456
  %v6075 = vunpack.c.l.b16 %v5457
  %v6076 = vunpack.c.h.b16 %v5457
  %v6077 = vunpack.c.l.b16 %v5458
  %v6078 = vunpack.c.h.b16 %v5458
  %v6079 = vunpack.c.l.b16 %v5459
  %v6080 = vunpack.c.h.b16 %v5459
  %v6081 = vunpack.c.l.b16 %v5460
  %v6082 = vunpack.c.h.b16 %v5460
  %v6083 = vunpack.c.l.b16 %v5461
  %v6084 = vunpack.c.h.b16 %v5461
  %v6085 = vunpack.c.l.b16 %v5462
  %v6086 = vunpack.c.h.b16 %v5462
  %v6087 = vunpack.c.l.b16 %v5463
  %v6088 = vunpack.c.h.b16 %v5463
  %v6089 = vunpack.c.l.b16 %v5464
  %v6090 = vunpack.c.h.b16 %v5464
  %v6091 = vunpack.c.l.b16 %v5465
  %v6092 = vunpack.c.h.b16 %v5465
  %v6093 = vunpack.c.l.b16 %v5466
  %v6094 = vunpack.c.h.b16 %v5466
  %v6095 = vunpack.c.l.b16 %v5467
  %v6096 = vunpack.c.h.b16 %v5467
  %v6097 = vunpack.c.l.b16 %v5468
  %v6098 = vunpack.c.h.b16 %v5468
  %v6099 = vunpack.c.l.b16 %v5469
  %v6100 = vunpack.c.h.b16 %v5469
  %v6101 = vunpack.c.l.b16 %v5470
  %v6102 = vunpack.c.h.b16 %v5470
  %v6103 = vunpack.c.l.b16 %v5471
  %v6104 = vunpack.c.h.b16 %v5471
  %v6105 = vunpack.c.l.b16 %v5472
  %v6106 = vunpack.c.h.b16 %v5472
  %v6107 = vunpack.c.l.b16 %v5473
  %v6108 = vunpack.c.h.b16 %v5473
  %v6109 = vunpack.c.l.b16 %v5474
  %v6110 = vunpack.c.h.b16 %v5474
  %v6111 = vunpack.c.l.b16 %v5475
  %v6112 = vunpack.c.h.b16 %v5475
  %v6113 = vunpack.c.l.b16 %v5476
  %v6114 = vunpack.c.h.b16 %v5476
  %v6115 = vunpack.c.l.b16 %v5477
  %v6116 = vunpack.c.h.b16 %v5477
  %v6117 = vunpack.c.l.b16 %v5478
  %v6118 = vunpack.c.h.b16 %v5478
  %v6119 = vunpack.c.l.b16 %v5479
  %v6120 = vunpack.c.h.b16 %v5479
  %v6121 = vunpack.c.l.b16 %v5480
  %v6122 = vunpack.c.h.b16 %v5480
  %v6123 = vunpack.c.l.b16 %v5481
  %v6124 = vunpack.c.h.b16 %v5481
  %v6125 = vunpack.c.l.b16 %v5482
  %v6126 = vunpack.c.h.b16 %v5482
  %v6127 = vunpack.c.l.b16 %v5483
  %v6128 = vunpack.c.h.b16 %v5483
  %v6129 = vunpack.c.l.b16 %v5484
  %v6130 = vunpack.c.h.b16 %v5484
  %v6131 = vunpack.c.l.b16 %v5485
  %v6132 = vunpack.c.h.b16 %v5485
  %v6133 = vunpack.c.l.b16 %v5486
  %v6134 = vunpack.c.h.b16 %v5486
  %v6135 = vunpack.c.l.b16 %v5487
  %v6136 = vunpack.c.h.b16 %v5487
  %v6137 = vunpack.c.l.b16 %v5488
  %v6138 = vunpack.c.h.b16 %v5488
  %v6139 = vunpack.c.l.b16 %v5489
  %v6140 = vunpack.c.h.b16 %v5489
  %v6141 = vunpack.c.l.b16 %v5490
  %v6142 = vunpack.c.h.b16 %v5490
  %v6143 = vunpack.c.l.b16 %v5491
  %v6144 = vunpack.c.h.b16 %v5491
  %v6145 = vunpack.c.l.b16 %v5492
  %v6146 = vunpack.c.h.b16 %v5492
  %v6147 = vunpack.c.l.b16 %v5493
  %v6148 = vunpack.c.h.b16 %v5493
  %v6149 = vunpack.c.l.b16 %v5494
  %v6150 = vunpack.c.h.b16 %v5494
  %v6151 = vunpack.c.l.b16 %v5495
  %v6152 = vunpack.c.h.b16 %v5495
  %v6153 = vunpack.c.l.b16 %v5496
  %v6154 = vunpack.c.h.b16 %v5496
  %v6155 = vunpack.c.l.b16 %v5497
  %v6156 = vunpack.c.h.b16 %v5497
  %v6157 = vunpack.c.l.b16 %v5498
  %v6158 = vunpack.c.h.b16 %v5498
  %v6159 = vunpack.c.l.b16 %v5499
  %v6160 = vunpack.c.h.b16 %v5499
  %v6161 = vunpack.c.l.b16 %v5500
  %v6162 = vunpack.c.h.b16 %v5500
  %v6163 = vunpack.c.l.b16 %v5501
  %v6164 = vunpack.c.h.b16 %v5501
  %v6165 = vunpack.c.l.b16 %v5502
  %v6166 = vunpack.c.h.b16 %v5502
  %v6167 = vunpack.c.l.b16 %v5503
  %v6168 = vunpack.c.h.b16 %v5503
  %v6169 = vunpack.c.l.b16 %v5504
  %v6170 = vunpack.c.h.b16 %v5504
  %v6171 = vunpack.c.l.b16 %v5505
  %v6172 = vunpack.c.h.b16 %v5505
  %v6173 = vunpack.c.l.b16 %v5506
  %v6174 = vunpack.c.h.b16 %v5506
  %v6175 = vunpack.c.l.b16 %v5507
  %v6176 = vunpack.c.h.b16 %v5507
  %v6177 = vunpack.c.l.b16 %v5508
  %v6178 = vunpack.c.h.b16 %v5508
  %v6179 = vunpack.c.l.b16 %v5509
  %v6180 = vunpack.c.h.b16 %v5509
  %v6181 = vunpack.c.l.b16 %v5510
  %v6182 = vunpack.c.h.b16 %v5510
  %v6183 = vunpack.c.l.b16 %v5511
  %v6184 = vunpack.c.h.b16 %v5511
  %v6185 = vunpack.c.l.b16 %v5512
  %v6186 = vunpack.c.h.b16 %v5512
  %v6187 = vunpack.c.l.b16 %v5513
  %v6188 = vunpack.c.h.b16 %v5513
  %v6189 = vunpack.c.l.b16 %v5514
  %v6190 = vunpack.c.h.b16 %v5514
  %v6191 = vunpack.c.l.b16 %v5515
  %v6192 = vunpack.c.h.b16 %v5515
  %v6193 = vunpack.c.l.b16 %v5516
  %v6194 = vunpack.c.h.b16 %v5516
  %v6195 = vunpack.c.l.b16 %v5517
  %v6196 = vunpack.c.h.b16 %v5517
  %v6197 = vunpack.c.l.b16 %v5518
  %v6198 = vunpack.c.h.b16 %v5518
  %v6199 = vunpack.c.l.b16 %v5519
  %v6200 = vunpack.c.h.b16 %v5519
  %v6201 = vunpack.c.l.b16 %v5520
  %v6202 = vunpack.c.h.b16 %v5520
  %v6203 = vunpack.c.l.b16 %v5521
  %v6204 = vunpack.c.h.b16 %v5521
  %v6205 = vunpack.c.l.b16 %v5522
  %v6206 = vunpack.c.h.b16 %v5522
  %v6207 = vunpack.c.l.b16 %v5523
  %v6208 = vunpack.c.h.b16 %v5523
  %v6209 = vunpack.c.l.b16 %v5524
  %v6210 = vunpack.c.h.b16 %v5524
  %v6211 = vunpack.c.l.b16 %v5525
  %v6212 = vunpack.c.h.b16 %v5525
  %v6213 = vunpack.c.l.b16 %v5526
  %v6214 = vunpack.c.h.b16 %v5526
  %v6215 = vunpack.c.l.b16 %v5527
  %v6216 = vunpack.c.h.b16 %v5527
  %v6217 = vunpack.c.l.b16 %v5528
  %v6218 = vunpack.c.h.b16 %v5528
  %v6219 = vunpack.c.l.b16 %v5529
  %v6220 = vunpack.c.h.b16 %v5529
  %v6221 = vunpack.c.l.b16 %v5530
  %v6222 = vunpack.c.h.b16 %v5530
  %v6223 = vunpack.c.l.b16 %v5531
  %v6224 = vunpack.c.h.b16 %v5531
  %v6225 = vunpack.c.l.b16 %v5532
  %v6226 = vunpack.c.h.b16 %v5532
  %v6227 = vunpack.c.l.b16 %v5533
  %v6228 = vunpack.c.h.b16 %v5533
  %v6229 = vunpack.c.l.b16 %v5534
  %v6230 = vunpack.c.h.b16 %v5534
  %v6231 = vunpack.c.l.b16 %v5535
  %v6232 = vunpack.c.h.b16 %v5535
  %v6233 = vunpack.c.l.b16 %v5536
  %v6234 = vunpack.c.h.b16 %v5536
  %v6235 = vunpack.c.l.b16 %v5537
  %v6236 = vunpack.c.h.b16 %v5537
  %v6237 = vunpack.c.l.b16 %v5538
  %v6238 = vunpack.c.h.b16 %v5538
  %v6239 = vunpack.c.l.b16 %v5539
  %v6240 = vunpack.c.h.b16 %v5539
  %v6241 = vunpack.c.l.b16 %v5540
  %v6242 = vunpack.c.h.b16 %v5540
  %v6243 = vunpack.c.l.b16 %v5541
  %v6244 = vunpack.c.h.b16 %v5541
  %v6245 = vunpack.c.l.b16 %v5542
  %v6246 = vunpack.c.h.b16 %v5542
  %v6247 = vunpack.c.l.b16 %v5543
  %v6248 = vunpack.c.h.b16 %v5543
  %v6249 = vunpack.c.l.b16 %v5544
  %v6250 = vunpack.c.h.b16 %v5544
  %v6251 = vunpack.c.l.b16 %v5545
  %v6252 = vunpack.c.h.b16 %v5545
  %v6253 = vunpack.c.l.b16 %v5546
  %v6254 = vunpack.c.h.b16 %v5546
  %v6255 = vunpack.c.l.b16 %v5547
  %v6256 = vunpack.c.h.b16 %v5547
  %v6257 = vunpack.c.l.b16 %v5548
  %v6258 = vunpack.c.h.b16 %v5548
  %v6259 = vunpack.c.l.b16 %v5549
  %v6260 = vunpack.c.h.b16 %v5549
  %v6261 = vunpack.c.l.b16 %v5550
  %v6262 = vunpack.c.h.b16 %v5550
  %v6263 = vunpack.c.l.b16 %v5551
  %v6264 = vunpack.c.h.b16 %v5551
  %v6265 = vunpack.c.l.b16 %v5552
  %v6266 = vunpack.c.h.b16 %v5552
  %v6267 = vunpack.c.l.b16 %v5553
  %v6268 = vunpack.c.h.b16 %v5553
  %v6269 = vunpack.c.l.b16 %v5554
  %v6270 = vunpack.c.h.b16 %v5554
  %v6271 = vunpack.c.l.b16 %v5555
  %v6272 = vunpack.c.h.b16 %v5555
  %v6273 = vunpack.c.l.b16 %v5556
  %v6274 = vunpack.c.h.b16 %v5556
  %v6275 = vunpack.c.l.b16 %v5557
  %v6276 = vunpack.c.h.b16 %v5557
  %v6277 = vunpack.c.l.b16 %v5558
  %v6278 = vunpack.c.h.b16 %v5558
  %v6279 = vunpack.c.l.b16 %v5559
  %v6280 = vunpack.c.h.b16 %v5559
  %v6281 = vunpack.c.l.b16 %v5560
  %v6282 = vunpack.c.h.b16 %v5560
  %v6283 = vunpack.c.l.b16 %v5561
  %v6284 = vunpack.c.h.b16 %v5561
  %v6285 = vunpack.c.l.b16 %v5562
  %v6286 = vunpack.c.h.b16 %v5562
  %v6287 = vunpack.c.l.b16 %v5563
  %v6288 = vunpack.c.h.b16 %v5563
  %v6289 = vunpack.c.l.b16 %v5564
  %v6290 = vunpack.c.h.b16 %v5564
  %v6291 = vunpack.c.l.b16 %v5565
  %v6292 = vunpack.c.h.b16 %v5565
  %v6293 = vunpack.c.l.b16 %v5566
  %v6294 = vunpack.c.h.b16 %v5566
  %v6295 = vunpack.c.l.b16 %v5567
  %v6296 = vunpack.c.h.b16 %v5567
  %v6297 = vunpack.c.l.b16 %v5568
  %v6298 = vunpack.c.h.b16 %v5568
  %v6299 = vunpack.c.l.b16 %v5569
  %v6300 = vunpack.c.h.b16 %v5569
  %v6301 = vunpack.c.l.b16 %v5570
  %v6302 = vunpack.c.h.b16 %v5570
  %v6303 = vunpack.c.l.b16 %v5571
  %v6304 = vunpack.c.h.b16 %v5571
  %v6305 = vunpack.c.l.b16 %v5572
  %v6306 = vunpack.c.h.b16 %v5572
  %v6307 = vunpack.c.l.b16 %v5573
  %v6308 = vunpack.c.h.b16 %v5573
  %v6309 = vunpack.c.l.b16 %v5574
  %v6310 = vunpack.c.h.b16 %v5574
  %v6311 = vunpack.c.l.b16 %v5575
  %v6312 = vunpack.c.h.b16 %v5575
  %v6313 = vunpack.c.l.b16 %v5576
  %v6314 = vunpack.c.h.b16 %v5576
  %v6315 = vunpack.c.l.b16 %v5577
  %v6316 = vunpack.c.h.b16 %v5577
  %v6317 = vunpack.c.l.b16 %v5578
  %v6318 = vunpack.c.h.b16 %v5578
  %v6319 = vunpack.c.l.b16 %v5579
  %v6320 = vunpack.c.h.b16 %v5579
  %v6321 = vunpack.c.l.b16 %v5580
  %v6322 = vunpack.c.h.b16 %v5580
  %v6323 = vunpack.c.l.b16 %v5581
  %v6324 = vunpack.c.h.b16 %v5581
  %v6325 = vunpack.c.l.b16 %v5582
  %v6326 = vunpack.c.h.b16 %v5582
  %v6327 = vunpack.c.l.b16 %v5583
  %v6328 = vunpack.c.h.b16 %v5583
  %v6329 = vunpack.c.l.b16 %v5584
  %v6330 = vunpack.c.h.b16 %v5584
  %v6331 = vunpack.c.l.b16 %v5585
  %v6332 = vunpack.c.h.b16 %v5585
  %v6333 = vunpack.c.l.b16 %v5586
  %v6334 = vunpack.c.h.b16 %v5586
  %v6335 = vunpack.c.l.b16 %v5587
  %v6336 = vunpack.c.h.b16 %v5587
  %v6337 = vunpack.c.l.b16 %v5588
  %v6338 = vunpack.c.h.b16 %v5588
  %v6339 = vunpack.c.l.b16 %v5589
  %v6340 = vunpack.c.h.b16 %v5589
  %v6341 = vunpack.c.l.b16 %v5590
  %v6342 = vunpack.c.h.b16 %v5590
  %v6343 = vunpack.c.l.b16 %v5591
  %v6344 = vunpack.c.h.b16 %v5591
  %v6345 = vunpack.c.l.b16 %v5592
  %v6346 = vunpack.c.h.b16 %v5592
  %v6347 = vunpack.c.l.b16 %v5593
  %v6348 = vunpack.c.h.b16 %v5593
  %v6349 = vunpack.c.l.b16 %v5594
  %v6350 = vunpack.c.h.b16 %v5594
  %v6351 = vunpack.c.l.b16 %v5595
  %v6352 = vunpack.c.h.b16 %v5595
  %v6353 = vunpack.c.l.b16 %v5596
  %v6354 = vunpack.c.h.b16 %v5596
  %v6355 = vunpack.c.l.b16 %v5597
  %v6356 = vunpack.c.h.b16 %v5597
  %v6357 = vunpack.c.l.b16 %v5598
  %v6358 = vunpack.c.h.b16 %v5598
  %v6359 = vunpack.c.l.b16 %v5599
  %v6360 = vunpack.c.h.b16 %v5599
  %v6361 = vunpack.c.l.b16 %v5600
  %v6362 = vunpack.c.h.b16 %v5600
  %v6363 = vunpack.c.l.b16 %v5601
  %v6364 = vunpack.c.h.b16 %v5601
  %v6365 = vunpack.c.l.b16 %v5602
  %v6366 = vunpack.c.h.b16 %v5602
  %v6367 = vunpack.c.l.b16 %v5603
  %v6368 = vunpack.c.h.b16 %v5603
  %v6369 = vunpack.c.l.b16 %v5604
  %v6370 = vunpack.c.h.b16 %v5604
  %v6371 = vunpack.c.l.b16 %v5605
  %v6372 = vunpack.c.h.b16 %v5605
  %v6373 = vunpack.c.l.b16 %v5606
  %v6374 = vunpack.c.h.b16 %v5606
  %v6375 = vunpack.c.l.b16 %v5607
  %v6376 = vunpack.c.h.b16 %v5607
  %v6377 = vunpack.c.l.b16 %v5608
  %v6378 = vunpack.c.h.b16 %v5608
  %v6379 = vunpack.c.l.b16 %v5609
  %v6380 = vunpack.c.h.b16 %v5609
  %v6381 = vunpack.c.l.b16 %v5610
  %v6382 = vunpack.c.h.b16 %v5610
  %v6383 = vunpack.c.l.b16 %v5611
  %v6384 = vunpack.c.h.b16 %v5611
  %v6385 = vunpack.c.l.b16 %v5612
  %v6386 = vunpack.c.h.b16 %v5612
  %v6387 = vunpack.c.l.b16 %v5613
  %v6388 = vunpack.c.h.b16 %v5613
  %v6389 = vunpack.c.l.b16 %v5614
  %v6390 = vunpack.c.h.b16 %v5614
  %v6391 = vunpack.c.l.b16 %v5615
  %v6392 = vunpack.c.h.b16 %v5615
  %v6393 = vunpack.c.l.b16 %v5616
  %v6394 = vunpack.c.h.b16 %v5616
  %v6395 = vunpack.c.l.b16 %v5617
  %v6396 = vunpack.c.h.b16 %v5617
  %v6397 = vunpack.c.l.b16 %v5618
  %v6398 = vunpack.c.h.b16 %v5618
  %v6399 = vunpack.c.l.b16 %v5619
  %v6400 = vunpack.c.h.b16 %v5619
  %v6401 = vunpack.c.l.b16 %v5620
  %v6402 = vunpack.c.h.b16 %v5620
  %v6403 = vunpack.c.l.b16 %v5621
  %v6404 = vunpack.c.h.b16 %v5621
  %v6405 = vunpack.c.l.b16 %v5622
  %v6406 = vunpack.c.h.b16 %v5622
  %v6407 = vunpack.c.l.b16 %v5623
  %v6408 = vunpack.c.h.b16 %v5623
  %v6409 = vunpack.c.l.b16 %v5624
  %v6410 = vunpack.c.h.b16 %v5624
  %v6411 = vunpack.c.l.b16 %v5625
  %v6412 = vunpack.c.h.b16 %v5625
  %v6413 = vunpack.c.l.b16 %v5626
  %v6414 = vunpack.c.h.b16 %v5626
  %v6415 = vunpack.c.l.b16 %v5627
  %v6416 = vunpack.c.h.b16 %v5627
  %v6417 = vunpack.c.l.b16 %v5628
  %v6418 = vunpack.c.h.b16 %v5628
  %v6419 = vpack.c.b16 %v5911, %v5907
  %v6420 = vpack.c.b16 %v5912, %v5908
  %v6421 = vpack.c.b16 %v5913, %v5909
  %v6422 = vpack.c.b16 %v5914, %v5910
  %v6423 = vpack.c.b16 %v5919, %v5915
  %v6424 = vpack.c.b16 %v5920, %v5916
  %v6425 = vpack.c.b16 %v5921, %v5917
  %v6426 = vpack.c.b16 %v5922, %v5918
  %v6427 = vpack.c.b16 %v5927, %v5923
  %v6428 = vpack.c.b16 %v5928, %v5924
  %v6429 = vpack.c.b16 %v5929, %v5925
  %v6430 = vpack.c.b16 %v5930, %v5926
  %v6431 = vpack.c.b16 %v5935, %v5931
  %v6432 = vpack.c.b16 %v5936, %v5932
  %v6433 = vpack.c.b16 %v5937, %v5933
  %v6434 = vpack.c.b16 %v5938, %v5934
  %v6435 = vpack.c.b16 %v5943, %v5939
  %v6436 = vpack.c.b16 %v5944, %v5940
  %v6437 = vpack.c.b16 %v5945, %v5941
  %v6438 = vpack.c.b16 %v5946, %v5942
  %v6439 = vpack.c.b16 %v5951, %v5947
  %v6440 = vpack.c.b16 %v5952, %v5948
  %v6441 = vpack.c.b16 %v5953, %v5949
  %v6442 = vpack.c.b16 %v5954, %v5950
  %v6443 = vpack.c.b16 %v5959, %v5955
  %v6444 = vpack.c.b16 %v5960, %v5956
  %v6445 = vpack.c.b16 %v5961, %v5957
  %v6446 = vpack.c.b16 %v5962, %v5958
  %v6447 = vpack.c.b16 %v5967, %v5963
  %v6448 = vpack.c.b16 %v5968, %v5964
  %v6449 = vpack.c.b16 %v5969, %v5965
  %v6450 = vpack.c.b16 %v5970, %v5966
  %v6451 = vpack.c.b16 %v5975, %v5971
  %v6452 = vpack.c.b16 %v5976, %v5972
  %v6453 = vpack.c.b16 %v5977, %v5973
  %v6454 = vpack.c.b16 %v5978, %v5974
  %v6455 = vpack.c.b16 %v5983, %v5979
  %v6456 = vpack.c.b16 %v5984, %v5980
  %v6457 = vpack.c.b16 %v5985, %v5981
  %v6458 = vpack.c.b16 %v5986, %v5982
  %v6459 = vpack.c.b16 %v5991, %v5987
  %v6460 = vpack.c.b16 %v5992, %v5988
  %v6461 = vpack.c.b16 %v5993, %v5989
  %v6462 = vpack.c.b16 %v5994, %v5990
  %v6463 = vpack.c.b16 %v5999, %v5995
  %v6464 = vpack.c.b16 %v6000, %v5996
  %v6465 = vpack.c.b16 %v6001, %v5997
  %v6466 = vpack.c.b16 %v6002, %v5998
  %v6467 = vpack.c.b16 %v6007, %v6003
  %v6468 = vpack.c.b16 %v6008, %v6004
  %v6469 = vpack.c.b16 %v6009, %v6005
  %v6470 = vpack.c.b16 %v6010, %v6006
  %v6471 = vpack.c.b16 %v6015, %v6011
  %v6472 = vpack.c.b16 %v6016, %v6012
  %v6473 = vpack.c.b16 %v6017, %v6013
  %v6474 = vpack.c.b16 %v6018, %v6014
  %v6475 = vpack.c.b16 %v6023, %v6019
  %v6476 = vpack.c.b16 %v6024, %v6020
  %v6477 = vpack.c.b16 %v6025, %v6021
  %v6478 = vpack.c.b16 %v6026, %v6022
  %v6479 = vpack.c.b16 %v6031, %v6027
  %v6480 = vpack.c.b16 %v6032, %v6028
  %v6481 = vpack.c.b16 %v6033, %v6029
  %v6482 = vpack.c.b16 %v6034, %v6030
  %v6483 = vpack.c.b16 %v6039, %v6035
  %v6484 = vpack.c.b16 %v6040, %v6036
  %v6485 = vpack.c.b16 %v6041, %v6037
  %v6486 = vpack.c.b16 %v6042, %v6038
  %v6487 = vpack.c.b16 %v6047, %v6043
  %v6488 = vpack.c.b16 %v6048, %v6044
  %v6489 = vpack.c.b16 %v6049, %v6045
  %v6490 = vpack.c.b16 %v6050, %v6046
  %v6491 = vpack.c.b16 %v6055, %v6051
  %v6492 = vpack.c.b16 %v6056, %v6052
  %v6493 = vpack.c.b16 %v6057, %v6053
  %v6494 = vpack.c.b16 %v6058, %v6054
  %v6495 = vpack.c.b16 %v6063, %v6059
  %v6496 = vpack.c.b16 %v6064, %v6060
  %v6497 = vpack.c.b16 %v6065, %v6061
  %v6498 = vpack.c.b16 %v6066, %v6062
  %v6499 = vpack.c.b16 %v6071, %v6067
  %v6500 = vpack.c.b16 %v6072, %v6068
  %v6501 = vpack.c.b16 %v6073, %v6069
  %v6502 = vpack.c.b16 %v6074, %v6070
  %v6503 = vpack.c.b16 %v6079, %v6075
  %v6504 = vpack.c.b16 %v6080, %v6076
  %v6505 = vpack.c.b16 %v6081, %v6077
  %v6506 = vpack.c.b16 %v6082, %v6078
  %v6507 = vpack.c.b16 %v6087, %v6083
  %v6508 = vpack.c.b16 %v6088, %v6084
  %v6509 = vpack.c.b16 %v6089, %v6085
  %v6510 = vpack.c.b16 %v6090, %v6086
  %v6511 = vpack.c.b16 %v6095, %v6091
  %v6512 = vpack.c.b16 %v6096, %v6092
  %v6513 = vpack.c.b16 %v6097, %v6093
  %v6514 = vpack.c.b16 %v6098, %v6094
  %v6515 = vpack.c.b16 %v6103, %v6099
  %v6516 = vpack.c.b16 %v6104, %v6100
  %v6517 = vpack.c.b16 %v6105, %v6101
  %v6518 = vpack.c.b16 %v6106, %v6102
  %v6519 = vpack.c.b16 %v6111, %v6107
  %v6520 = vpack.c.b16 %v6112, %v6108
  %v6521 = vpack.c.b16 %v6113, %v6109
  %v6522 = vpack.c.b16 %v6114, %v6110
  %v6523 = vpack.c.b16 %v6119, %v6115
  %v6524 = vpack.c.b16 %v6120, %v6116
  %v6525 = vpack.c.b16 %v6121, %v6117
  %v6526 = vpack.c.b16 %v6122, %v6118
  %v6527 = vpack.c.b16 %v6127, %v6123
  %v6528 = vpack.c.b16 %v6128, %v6124
  %v6529 = vpack.c.b16 %v6129, %v6125
  %v6530 = vpack.c.b16 %v6130, %v6126
  %v6531 = vpack.c.b16 %v6135, %v6131
  %v6532 = vpack.c.b16 %v6136, %v6132
  %v6533 = vpack.c.b16 %v6137, %v6133
  %v6534 = vpack.c.b16 %v6138, %v6134
  %v6535 = vpack.c.b16 %v6143, %v6139
  %v6536 = vpack.c.b16 %v6144, %v6140
  %v6537 = vpack.c.b16 %v6145, %v6141
  %v6538 = vpack.c.b16 %v6146, %v6142
  %v6539 = vpack.c.b16 %v6151, %v6147
  %v6540 = vpack.c.b16 %v6152, %v6148
  %v6541 = vpack.c.b16 %v6153, %v6149
  %v6542 = vpack.c.b16 %v6154, %v6150
  %v6543 = vpack.c.b16 %v6159, %v6155
  %v6544 = vpack.c.b16 %v6160, %v6156
  %v6545 = vpack.c.b16 %v6161, %v6157
  %v6546 = vpack.c.b16 %v6162, %v6158
  %v6547 = vpack.c.b16 %v6167, %v6163
  %v6548 = vpack.c.b16 %v6168, %v6164
  %v6549 = vpack.c.b16 %v6169, %v6165
  %v6550 = vpack.c.b16 %v6170, %v6166
  %v6551 = vpack.c.b16 %v6175, %v6171
  %v6552 = vpack.c.b16 %v6176, %v6172
  %v6553 = vpack.c.b16 %v6177, %v6173
  %v6554 = vpack.c.b16 %v6178, %v6174
  %v6555 = vpack.c.b16 %v6183, %v6179
  %v6556 = vpack.c.b16 %v6184, %v6180
  %v6557 = vpack.c.b16 %v6185, %v6181
  %v6558 = vpack.c.b16 %v6186, %v6182
  %v6559 = vpack.c.b16 %v6191, %v6187
  %v6560 = vpack.c.b16 %v6192, %v6188
  %v6561 = vpack.c.b16 %v6193, %v6189
  %v6562 = vpack.c.b16 %v6194, %v6190
  %v6563 = vpack.c.b16 %v6199, %v6195
  %v6564 = vpack.c.b16 %v6200, %v6196
  %v6565 = vpack.c.b16 %v6201, %v6197
  %v6566 = vpack.c.b16 %v6202, %v6198
  %v6567 = vpack.c.b16 %v6207, %v6203
  %v6568 = vpack.c.b16 %v6208, %v6204
  %v6569 = vpack.c.b16 %v6209, %v6205
  %v6570 = vpack.c.b16 %v6210, %v6206
  %v6571 = vpack.c.b16 %v6215, %v6211
  %v6572 = vpack.c.b16 %v6216, %v6212
  %v6573 = vpack.c.b16 %v6217, %v6213
  %v6574 = vpack.c.b16 %v6218, %v6214
  %v6575 = vpack.c.b16 %v6223, %v6219
  %v6576 = vpack.c.b16 %v6224, %v6220
  %v6577 = vpack.c.b16 %v6225, %v6221
  %v6578 = vpack.c.b16 %v6226, %v6222
  %v6579 = vpack.c.b16 %v6231, %v6227
  %v6580 = vpack.c.b16 %v6232, %v6228
  %v6581 = vpack.c.b16 %v6233, %v6229
  %v6582 = vpack.c.b16 %v6234, %v6230
  %v6583 = vpack.c.b16 %v6239, %v6235
  %v6584 = vpack.c.b16 %v6240, %v6236
  %v6585 = vpack.c.b16 %v6241, %v6237
  %v6586 = vpack.c.b16 %v6242, %v6238
  %v6587 = vpack.c.b16 %v6247, %v6243
  %v6588 = vpack.c.b16 %v6248, %v6244
  %v6589 = vpack.c.b16 %v6249, %v6245
  %v6590 = vpack.c.b16 %v6250, %v6246
  %v6591 = vpack.c.b16 %v6255, %v6251
  %v6592 = vpack.c.b16 %v6256, %v6252
  %v6593 = vpack.c.b16 %v6257, %v6253
  %v6594 = vpack.c.b16 %v6258, %v6254
  %v6595 = vpack.c.b16 %v6263, %v6259
  %v6596 = vpack.c.b16 %v6264, %v6260
  %v6597 = vpack.c.b16 %v6265, %v6261
  %v6598 = vpack.c.b16 %v6266, %v6262
  %v6599 = vpack.c.b16 %v6271, %v6267
  %v6600 = vpack.c.b16 %v6272, %v6268
  %v6601 = vpack.c.b16 %v6273, %v6269
  %v6602 = vpack.c.b16 %v6274, %v6270
  %v6603 = vpack.c.b16 %v6279, %v6275
  %v6604 = vpack.c.b16 %v6280, %v6276
  %v6605 = vpack.c.b16 %v6281, %v6277
  %v6606 = vpack.c.b16 %v6282, %v6278
  %v6607 = vpack.c.b16 %v6287, %v6283
  %v6608 = vpack.c.b16 %v6288, %v6284
  %v6609 = vpack.c.b16 %v6289, %v6285
  %v6610 = vpack.c.b16 %v6290, %v6286
  %v6611 = vpack.c.b16 %v6295, %v6291
  %v6612 = vpack.c.b16 %v6296, %v6292
  %v6613 = vpack.c.b16 %v6297, %v6293
  %v6614 = vpack.c.b16 %v6298, %v6294
  %v6615 = vpack.c.b16 %v6303, %v6299
  %v6616 = vpack.c.b16 %v6304, %v6300
  %v6617 = vpack.c.b16 %v6305, %v6301
  %v6618 = vpack.c.b16 %v6306, %v6302
  %v6619 = vpack.c.b16 %v6311, %v6307
  %v6620 = vpack.c.b16 %v6312, %v6308
  %v6621 = vpack.c.b16 %v6313, %v6309
  %v6622 = vpack.c.b16 %v6314, %v6310
  %v6623 = vpack.c.b16 %v6319, %v6315
  %v6624 = vpack.c.b16 %v6320, %v6316
  %v6625 = vpack.c.b16 %v6321, %v6317
  %v6626 = vpack.c.b16 %v6322, %v6318
  %v6627 = vpack.c.b16 %v6327, %v6323
  %v6628 = vpack.c.b16 %v6328, %v6324
  %v6629 = vpack.c.b16 %v6329, %v6325
  %v6630 = vpack.c.b16 %v6330, %v6326
  %v6631 = vpack.c.b16 %v6335, %v6331
  %v6632 = vpack.c.b16 %v6336, %v6332
  %v6633 = vpack.c.b16 %v6337, %v6333
  %v6634 = vpack.c.b16 %v6338, %v6334
  %v6635 = vpack.c.b16 %v6343, %v6339
  %v6636 = vpack.c.b16 %v6344, %v6340
  %v6637 = vpack.c.b16 %v6345, %v6341
  %v6638 = vpack.c.b16 %v6346, %v6342
  %v6639 = vpack.c.b16 %v6351, %v6347
  %v6640 = vpack.c.b16 %v6352, %v6348
  %v6641 = vpack.c.b16 %v6353, %v6349
  %v6642 = vpack.c.b16 %v6354, %v6350
  %v6643 = vpack.c.b16 %v6359, %v6355
  %v6644 = vpack.c.b16 %v6360, %v6356
  %v6645 = vpack.c.b16 %v6361, %v6357
  %v6646 = vpack.c.b16 %v6362, %v6358
  %v6647 = vpack.c.b16 %v6367, %v6363
  %v6648 = vpack.c.b16 %v6368, %v6364
  %v6649 = vpack.c.b16 %v6369, %v6365
  %v6650 = vpack.c.b16 %v6370, %v6366
  %v6651 = vpack.c.b16 %v6375, %v6371
  %v6652 = vpack.c.b16 %v6376, %v6372
  %v6653 = vpack.c.b16 %v6377, %v6373
  %v6654 = vpack.c.b16 %v6378, %v6374
  %v6655 = vpack.c.b16 %v6383, %v6379
  %v6656 = vpack.c.b16 %v6384, %v6380
  %v6657 = vpack.c.b16 %v6385, %v6381
  %v6658 = vpack.c.b16 %v6386, %v6382
  %v6659 = vpack.c.b16 %v6391, %v6387
  %v6660 = vpack.c.b16 %v6392, %v6388
  %v6661 = vpack.c.b16 %v6393, %v6389
  %v6662 = vpack.c.b16 %v6394, %v6390
  %v6663 = vpack.c.b16 %v6399, %v6395
  %v6664 = vpack.c.b16 %v6400, %v6396
  %v6665 = vpack.c.b16 %v6401, %v6397
  %v6666 = vpack.c.b16 %v6402, %v6398
  %v6667 = vpack.c.b16 %v6407, %v6403
  %v6668 = vpack.c.b16 %v6408, %v6404
  %v6669 = vpack.c.b16 %v6409, %v6405
  %v6670 = vpack.c.b16 %v6410, %v6406
  %v6671 = vpack.c.b16 %v6415, %v6411
  %v6672 = vpack.c.b16 %v6416, %v6412
  %v6673 = vpack.c.b16 %v6417, %v6413
  %v6674 = vpack.c.b16 %v6418, %v6414
  %6931 = vmatprep.subr.bf16.mxu0 %v6420
  %6932 = vmatpush1.bf16.msra.mxu0 %v6419
  %6933 = vmatprep.subr.bf16.mxu0 %v6424
  %6934 = vmatpush1.bf16.msra.mxu0 %v6423
  %6935 = vmatprep.subr.bf16.mxu0 %v6428
  %6936 = vmatpush1.bf16.msra.mxu0 %v6427
  %6937 = vmatprep.subr.bf16.mxu0 %v6432
  %6938 = vmatpush1.bf16.msra.mxu0 %v6431
  %6939 = vmatprep.subr.bf16.mxu0 %v6436
  %6940 = vmatpush1.bf16.msra.mxu0 %v6435
  %6941 = vmatprep.subr.bf16.mxu0 %v6440
  %6942 = vmatpush1.bf16.msra.mxu0 %v6439
  %6943 = vmatprep.subr.bf16.mxu0 %v6444
  %6944 = vmatpush1.bf16.msra.mxu0 %v6443
  %6945 = vmatprep.subr.bf16.mxu0 %v6448
  %6946 = vmatpush1.bf16.msra.mxu0 %v6447
  %6947 = vmatprep.subr.bf16.mxu0 %v6452
  %6948 = vmatpush1.bf16.msra.mxu0 %v6451
  %6949 = vmatprep.subr.bf16.mxu0 %v6456
  %6950 = vmatpush1.bf16.msra.mxu0 %v6455
  %6951 = vmatprep.subr.bf16.mxu0 %v6460
  %6952 = vmatpush1.bf16.msra.mxu0 %v6459
  %6953 = vmatprep.subr.bf16.mxu0 %v6464
  %6954 = vmatpush1.bf16.msra.mxu0 %v6463
  %6955 = vmatprep.subr.bf16.mxu0 %v6468
  %6956 = vmatpush1.bf16.msra.mxu0 %v6467
  %6957 = vmatprep.subr.bf16.mxu0 %v6472
  %6958 = vmatpush1.bf16.msra.mxu0 %v6471
  %6959 = vmatprep.subr.bf16.mxu0 %v6476
  %6960 = vmatpush1.bf16.msra.mxu0 %v6475
  %6961 = vmatprep.subr.bf16.mxu0 %v6480
  %6962 = vmatpush1.bf16.msra.mxu0 %v6479
  %6963 = vmatprep.mubr.bf16.mxu0 %v5310
  %6964 = vmatmul.mubr.bf16.gmra.mrb[0].mxu0 %v5309
  %v6965 = vpop.f32.mrb[0].mxu0
  %v6966 = vadd.f32 %v5634, %v6965
  %v6967 = vpop.f32.mrb[0].mxu0
  %v6968 = vadd.f32 %v5638, %v6967
  %v6969 = vpop.f32.mrb[0].mxu0
  %v6970 = vadd.f32 %v5634, %v6969
  %v6971 = vpop.f32.mrb[0].mxu0
  %v6972 = vadd.f32 %v5638, %v6971
  %6973 = vmatprep.mubr.bf16.mxu0 %v5318
  %6974 = vmatmul.mubr.bf16.gmra.mrb[0].mxu0 %v5317
  %v6975 = vpop.f32.mrb[0].mxu0
  %v6976 = vadd.f32 %v5634, %v6975
  %v6977 = vpop.f32.mrb[0].mxu0
  %v6978 = vadd.f32 %v5638, %v6977
  %v6979 = vpop.f32.mrb[0].mxu0
  %v6980 = vadd.f32 %v5634, %v6979
  %v6981 = vpop.f32.mrb[0].mxu0
  %v6982 = vadd.f32 %v5638, %v6981
  %6983 = vmatprep.mubr.bf16.mxu0 %v5326
  %6984 = vmatmul.mubr.bf16.gmra.mrb[0].mxu0 %v5325
  %v6985 = vpop.f32.mrb[0].mxu0
  %v6986 = vadd.f32 %v5634, %v6985
  %v6987 = vpop.f32.mrb[0].mxu0
  %v6988 = vadd.f32 %v5638, %v6987
  %v6989 = vpop.f32.mrb[0].mxu0
  %v6990 = vadd.f32 %v5634, %v6989
  %v6991 = vpop.f32.mrb[0].mxu0
  %v6992 = vadd.f32 %v5638, %v6991
  %6993 = vmatprep.mubr.bf16.mxu0 %v5334
  %6994 = vmatmul.mubr.bf16.gmra.mrb[0].mxu0 %v5333
  %v6995 = vpop.f32.mrb[0].mxu0
  %v6996 = vadd.f32 %v5634, %v6995
  %v6997 = vpop.f32.mrb[0].mxu0
  %v6998 = vadd.f32 %v5638, %v6997
  %v6999 = vpop.f32.mrb[0].mxu0
  %v7000 = vadd.f32 %v5634, %v6999
  %v7001 = vpop.f32.mrb[0].mxu0
  %v7002 = vadd.f32 %v5638, %v7001
  %7003 = vmatprep.mubr.bf16.mxu0 %v5342
  %7004 = vmatmul.mubr.bf16.gmra.mrb[0].mxu0 %v5341
  %v7005 = vpop.f32.mrb[0].mxu0
  %v7006 = vadd.f32 %v5634, %v7005
  %v7007 = vpop.f32.mrb[0].mxu0
  %v7008 = vadd.f32 %v5638, %v7007
  %v7009 = vpop.f32.mrb[0].mxu0
  %v7010 = vadd.f32 %v5634, %v7009
  %v7011 = vpop.f32.mrb[0].mxu0
  %v7012 = vadd.f32 %v5638, %v7011
  %7013 = vmatprep.mubr.bf16.mxu0 %v5350
  %7014 = vmatmul.mubr.bf16.gmra.mrb[0].mxu0 %v5349
  %v7015 = vpop.f32.mrb[0].mxu0
  %v7016 = vadd.f32 %v5634, %v7015
  %v7017 = vpop.f32.mrb[0].mxu0
  %v7018 = vadd.f32 %v5638, %v7017
  %v7019 = vpop.f32.mrb[0].mxu0
  %v7020 = vadd.f32 %v5634, %v7019
  %v7021 = vpop.f32.mrb[0].mxu0
  %v7022 = vadd.f32 %v5638, %v7021
  %7023 = vmatprep.mubr.bf16.mxu0 %v5358
  %7024 = vmatmul.mubr.bf16.gmra.mrb[0].mxu0 %v5357
  %v7025 = vpop.f32.mrb[0].mxu0
  %v7026 = vadd.f32 %v5634, %v7025
  %v7027 = vpop.f32.mrb[0].mxu0
  %v7028 = vadd.f32 %v5638, %v7027
  %v7029 = vpop.f32.mrb[0].mxu0
  %v7030 = vadd.f32 %v5634, %v7029
  %v7031 = vpop.f32.mrb[0].mxu0
  %v7032 = vadd.f32 %v5638, %v7031
  %7033 = vmatprep.mubr.bf16.mxu0 %v5366
  %7034 = vmatmul.mubr.bf16.gmra.mrb[0].mxu0 %v5365
  %v7035 = vpop.f32.mrb[0].mxu0
  %v7036 = vadd.f32 %v5634, %v7035
  %v7037 = vpop.f32.mrb[0].mxu0
  %v7038 = vadd.f32 %v5638, %v7037
  %v7039 = vpop.f32.mrb[0].mxu0
  %v7040 = vadd.f32 %v5634, %v7039
  %v7041 = vpop.f32.mrb[0].mxu0
  %v7042 = vadd.f32 %v5638, %v7041
  %7043 = vdwg.mxu0
  %7044 = vmatprep.subr.bf16.mxu0 %v6484
  %7045 = vmatpush1.bf16.msra.mxu0 %v6483
  %7046 = vmatprep.subr.bf16.mxu0 %v6488
  %7047 = vmatpush1.bf16.msra.mxu0 %v6487
  %7048 = vmatprep.subr.bf16.mxu0 %v6492
  %7049 = vmatpush1.bf16.msra.mxu0 %v6491
  %7050 = vmatprep.subr.bf16.mxu0 %v6496
  %7051 = vmatpush1.bf16.msra.mxu0 %v6495
  %7052 = vmatprep.subr.bf16.mxu0 %v6500
  %7053 = vmatpush1.bf16.msra.mxu0 %v6499
  %7054 = vmatprep.subr.bf16.mxu0 %v6504
  %7055 = vmatpush1.bf16.msra.mxu0 %v6503
  %7056 = vmatprep.subr.bf16.mxu0 %v6508
  %7057 = vmatpush1.bf16.msra.mxu0 %v6507
  %7058 = vmatprep.subr.bf16.mxu0 %v6512
  %7059 = vmatpush1.bf16.msra.mxu0 %v6511
  %7060 = vmatprep.subr.bf16.mxu0 %v6516
  %7061 = vmatpush1.bf16.msra.mxu0 %v6515
  %7062 = vmatprep.subr.bf16.mxu0 %v6520
  %7063 = vmatpush1.bf16.msra.mxu0 %v6519
  %7064 = vmatprep.subr.bf16.mxu0 %v6524
  %7065 = vmatpush1.bf16.msra.mxu0 %v6523
  %7066 = vmatprep.subr.bf16.mxu0 %v6528
  %7067 = vmatpush1.bf16.msra.mxu0 %v6527
  %7068 = vmatprep.subr.bf16.mxu0 %v6532
  %7069 = vmatpush1.bf16.msra.mxu0 %v6531
  %7070 = vmatprep.subr.bf16.mxu0 %v6536
  %7071 = vmatpush1.bf16.msra.mxu0 %v6535
  %7072 = vmatprep.subr.bf16.mxu0 %v6540
  %7073 = vmatpush1.bf16.msra.mxu0 %v6539
  %7074 = vmatprep.subr.bf16.mxu0 %v6544
  %7075 = vmatpush1.bf16.msra.mxu0 %v6543
  %7076 = vmatprep.mubr.bf16.mxu0 %v5312
  %7077 = vmatmul.mubr.bf16.gmra.mrb[0].mxu0 %v5311
  %v7078 = vpop.f32.mrb[0].mxu0
  %v7079 = vadd.f32 %v6966, %v7078
  %v7080 = vpop.f32.mrb[0].mxu0
  %v7081 = vadd.f32 %v6968, %v7080
  %v7082 = vpop.f32.mrb[0].mxu0
  %v7083 = vadd.f32 %v6970, %v7082
  %v7084 = vpop.f32.mrb[0].mxu0
  %v7085 = vadd.f32 %v6972, %v7084
  %7086 = vmatprep.mubr.bf16.mxu0 %v5320
  %7087 = vmatmul.mubr.bf16.gmra.mrb[0].mxu0 %v5319
  %v7088 = vpop.f32.mrb[0].mxu0
  %v7089 = vadd.f32 %v6976, %v7088
  %v7090 = vpop.f32.mrb[0].mxu0
  %v7091 = vadd.f32 %v6978, %v7090
  %v7092 = vpop.f32.mrb[0].mxu0
  %v7093 = vadd.f32 %v6980, %v7092
  %v7094 = vpop.f32.mrb[0].mxu0
  %v7095 = vadd.f32 %v6982, %v7094
  %7096 = vmatprep.mubr.bf16.mxu0 %v5328
  %7097 = vmatmul.mubr.bf16.gmra.mrb[0].mxu0 %v5327
  %v7098 = vpop.f32.mrb[0].mxu0
  %v7099 = vadd.f32 %v6986, %v7098
  %v7100 = vpop.f32.mrb[0].mxu0
  %v7101 = vadd.f32 %v6988, %v7100
  %v7102 = vpop.f32.mrb[0].mxu0
  %v7103 = vadd.f32 %v6990, %v7102
  %v7104 = vpop.f32.mrb[0].mxu0
  %v7105 = vadd.f32 %v6992, %v7104
  %7106 = vmatprep.mubr.bf16.mxu0 %v5336
  %7107 = vmatmul.mubr.bf16.gmra.mrb[0].mxu0 %v5335
  %v7108 = vpop.f32.mrb[0].mxu0
  %v7109 = vadd.f32 %v6996, %v7108
  %v7110 = vpop.f32.mrb[0].mxu0
  %v7111 = vadd.f32 %v6998, %v7110
  %v7112 = vpop.f32.mrb[0].mxu0
  %v7113 = vadd.f32 %v7000, %v7112
  %v7114 = vpop.f32.mrb[0].mxu0
  %v7115 = vadd.f32 %v7002, %v7114
  %7116 = vmatprep.mubr.bf16.mxu0 %v5344
  %7117 = vmatmul.mubr.bf16.gmra.mrb[0].mxu0 %v5343
  %v7118 = vpop.f32.mrb[0].mxu0
  %v7119 = vadd.f32 %v7006, %v7118
  %v7120 = vpop.f32.mrb[0].mxu0
  %v7121 = vadd.f32 %v7008, %v7120
  %v7122 = vpop.f32.mrb[0].mxu0
  %v7123 = vadd.f32 %v7010, %v7122
  %v7124 = vpop.f32.mrb[0].mxu0
  %v7125 = vadd.f32 %v7012, %v7124
  %7126 = vmatprep.mubr.bf16.mxu0 %v5352
  %7127 = vmatmul.mubr.bf16.gmra.mrb[0].mxu0 %v5351
  %v7128 = vpop.f32.mrb[0].mxu0
  %v7129 = vadd.f32 %v7016, %v7128
  %v7130 = vpop.f32.mrb[0].mxu0
  %v7131 = vadd.f32 %v7018, %v7130
  %v7132 = vpop.f32.mrb[0].mxu0
  %v7133 = vadd.f32 %v7020, %v7132
  %v7134 = vpop.f32.mrb[0].mxu0
  %v7135 = vadd.f32 %v7022, %v7134
  %7136 = vmatprep.mubr.bf16.mxu0 %v5360
  %7137 = vmatmul.mubr.bf16.gmra.mrb[0].mxu0 %v5359
  %v7138 = vpop.f32.mrb[0].mxu0
  %v7139 = vadd.f32 %v7026, %v7138
  %v7140 = vpop.f32.mrb[0].mxu0
  %v7141 = vadd.f32 %v7028, %v7140
  %v7142 = vpop.f32.mrb[0].mxu0
  %v7143 = vadd.f32 %v7030, %v7142
  %v7144 = vpop.f32.mrb[0].mxu0
  %v7145 = vadd.f32 %v7032, %v7144
  %7146 = vmatprep.mubr.bf16.mxu0 %v5368
  %7147 = vmatmul.mubr.bf16.gmra.mrb[0].mxu0 %v5367
  %v7148 = vpop.f32.mrb[0].mxu0
  %v7149 = vadd.f32 %v7036, %v7148
  %v7150 = vpop.f32.mrb[0].mxu0
  %v7151 = vadd.f32 %v7038, %v7150
  %v7152 = vpop.f32.mrb[0].mxu0
  %v7153 = vadd.f32 %v7040, %v7152
  %v7154 = vpop.f32.mrb[0].mxu0
  %v7155 = vadd.f32 %v7042, %v7154
  %7156 = vdwg.mxu0
  %7157 = vmatprep.subr.bf16.mxu0 %v6548
  %7158 = vmatpush1.bf16.msra.mxu0 %v6547
  %7159 = vmatprep.subr.bf16.mxu0 %v6552
  %7160 = vmatpush1.bf16.msra.mxu0 %v6551
  %7161 = vmatprep.subr.bf16.mxu0 %v6556
  %7162 = vmatpush1.bf16.msra.mxu0 %v6555
  %7163 = vmatprep.subr.bf16.mxu0 %v6560
  %7164 = vmatpush1.bf16.msra.mxu0 %v6559
  %7165 = vmatprep.subr.bf16.mxu0 %v6564
  %7166 = vmatpush1.bf16.msra.mxu0 %v6563
  %7167 = vmatprep.subr.bf16.mxu0 %v6568
  %7168 = vmatpush1.bf16.msra.mxu0 %v6567
  %7169 = vmatprep.subr.bf16.mxu0 %v6572
  %7170 = vmatpush1.bf16.msra.mxu0 %v6571
  %7171 = vmatprep.subr.bf16.mxu0 %v6576
  %7172 = vmatpush1.bf16.msra.mxu0 %v6575
  %7173 = vmatprep.subr.bf16.mxu0 %v6580
  %7174 = vmatpush1.bf16.msra.mxu0 %v6579
  %7175 = vmatprep.subr.bf16.mxu0 %v6584
  %7176 = vmatpush1.bf16.msra.mxu0 %v6583
  %7177 = vmatprep.subr.bf16.mxu0 %v6588
  %7178 = vmatpush1.bf16.msra.mxu0 %v6587
  %7179 = vmatprep.subr.bf16.mxu0 %v6592
  %7180 = vmatpush1.bf16.msra.mxu0 %v6591
  %7181 = vmatprep.subr.bf16.mxu0 %v6596
  %7182 = vmatpush1.bf16.msra.mxu0 %v6595
  %7183 = vmatprep.subr.bf16.mxu0 %v6600
  %7184 = vmatpush1.bf16.msra.mxu0 %v6599
  %7185 = vmatprep.subr.bf16.mxu0 %v6604
  %7186 = vmatpush1.bf16.msra.mxu0 %v6603
  %7187 = vmatprep.subr.bf16.mxu0 %v6608
  %7188 = vmatpush1.bf16.msra.mxu0 %v6607
  %7189 = vmatprep.mubr.bf16.mxu0 %v5314
  %7190 = vmatmul.mubr.bf16.gmra.mrb[0].mxu0 %v5313
  %v7191 = vpop.f32.mrb[0].mxu0
  %v7192 = vadd.f32 %v7079, %v7191
  %v7193 = vpop.f32.mrb[0].mxu0
  %v7194 = vadd.f32 %v7081, %v7193
  %v7195 = vpop.f32.mrb[0].mxu0
  %v7196 = vadd.f32 %v7083, %v7195
  %v7197 = vpop.f32.mrb[0].mxu0
  %v7198 = vadd.f32 %v7085, %v7197
  %7199 = vmatprep.mubr.bf16.mxu0 %v5322
  %7200 = vmatmul.mubr.bf16.gmra.mrb[0].mxu0 %v5321
  %v7201 = vpop.f32.mrb[0].mxu0
  %v7202 = vadd.f32 %v7089, %v7201
  %v7203 = vpop.f32.mrb[0].mxu0
  %v7204 = vadd.f32 %v7091, %v7203
  %v7205 = vpop.f32.mrb[0].mxu0
  %v7206 = vadd.f32 %v7093, %v7205
  %v7207 = vpop.f32.mrb[0].mxu0
  %v7208 = vadd.f32 %v7095, %v7207
  %7209 = vmatprep.mubr.bf16.mxu0 %v5330
  %7210 = vmatmul.mubr.bf16.gmra.mrb[0].mxu0 %v5329
  %v7211 = vpop.f32.mrb[0].mxu0
  %v7212 = vadd.f32 %v7099, %v7211
  %v7213 = vpop.f32.mrb[0].mxu0
  %v7214 = vadd.f32 %v7101, %v7213
  %v7215 = vpop.f32.mrb[0].mxu0
  %v7216 = vadd.f32 %v7103, %v7215
  %v7217 = vpop.f32.mrb[0].mxu0
  %v7218 = vadd.f32 %v7105, %v7217
  %7219 = vmatprep.mubr.bf16.mxu0 %v5338
  %7220 = vmatmul.mubr.bf16.gmra.mrb[0].mxu0 %v5337
  %v7221 = vpop.f32.mrb[0].mxu0
  %v7222 = vadd.f32 %v7109, %v7221
  %v7223 = vpop.f32.mrb[0].mxu0
  %v7224 = vadd.f32 %v7111, %v7223
  %v7225 = vpop.f32.mrb[0].mxu0
  %v7226 = vadd.f32 %v7113, %v7225
  %v7227 = vpop.f32.mrb[0].mxu0
  %v7228 = vadd.f32 %v7115, %v7227
  %7229 = vmatprep.mubr.bf16.mxu0 %v5346
  %7230 = vmatmul.mubr.bf16.gmra.mrb[0].mxu0 %v5345
  %v7231 = vpop.f32.mrb[0].mxu0
  %v7232 = vadd.f32 %v7119, %v7231
  %v7233 = vpop.f32.mrb[0].mxu0
  %v7234 = vadd.f32 %v7121, %v7233
  %v7235 = vpop.f32.mrb[0].mxu0
  %v7236 = vadd.f32 %v7123, %v7235
  %v7237 = vpop.f32.mrb[0].mxu0
  %v7238 = vadd.f32 %v7125, %v7237
  %7239 = vmatprep.mubr.bf16.mxu0 %v5354
  %7240 = vmatmul.mubr.bf16.gmra.mrb[0].mxu0 %v5353
  %v7241 = vpop.f32.mrb[0].mxu0
  %v7242 = vadd.f32 %v7129, %v7241
  %v7243 = vpop.f32.mrb[0].mxu0
  %v7244 = vadd.f32 %v7131, %v7243
  %v7245 = vpop.f32.mrb[0].mxu0
  %v7246 = vadd.f32 %v7133, %v7245
  %v7247 = vpop.f32.mrb[0].mxu0
  %v7248 = vadd.f32 %v7135, %v7247
  %7249 = vmatprep.mubr.bf16.mxu0 %v5362
  %7250 = vmatmul.mubr.bf16.gmra.mrb[0].mxu0 %v5361
  %v7251 = vpop.f32.mrb[0].mxu0
  %v7252 = vadd.f32 %v7139, %v7251
  %v7253 = vpop.f32.mrb[0].mxu0
  %v7254 = vadd.f32 %v7141, %v7253
  %v7255 = vpop.f32.mrb[0].mxu0
  %v7256 = vadd.f32 %v7143, %v7255
  %v7257 = vpop.f32.mrb[0].mxu0
  %v7258 = vadd.f32 %v7145, %v7257
  %7259 = vmatprep.mubr.bf16.mxu0 %v5370
  %7260 = vmatmul.mubr.bf16.gmra.mrb[0].mxu0 %v5369
  %v7261 = vpop.f32.mrb[0].mxu0
  %v7262 = vadd.f32 %v7149, %v7261
  %v7263 = vpop.f32.mrb[0].mxu0
  %v7264 = vadd.f32 %v7151, %v7263
  %v7265 = vpop.f32.mrb[0].mxu0
  %v7266 = vadd.f32 %v7153, %v7265
  %v7267 = vpop.f32.mrb[0].mxu0
  %v7268 = vadd.f32 %v7155, %v7267
  %7269 = vdwg.mxu0
  %7270 = vmatprep.subr.bf16.mxu0 %v6612
  %7271 = vmatpush1.bf16.msra.mxu0 %v6611
  %7272 = vmatprep.subr.bf16.mxu0 %v6616
  %7273 = vmatpush1.bf16.msra.mxu0 %v6615
  %7274 = vmatprep.subr.bf16.mxu0 %v6620
  %7275 = vmatpush1.bf16.msra.mxu0 %v6619
  %7276 = vmatprep.subr.bf16.mxu0 %v6624
  %7277 = vmatpush1.bf16.msra.mxu0 %v6623
  %7278 = vmatprep.subr.bf16.mxu0 %v6628
  %7279 = vmatpush1.bf16.msra.mxu0 %v6627
  %7280 = vmatprep.subr.bf16.mxu0 %v6632
  %7281 = vmatpush1.bf16.msra.mxu0 %v6631
  %7282 = vmatprep.subr.bf16.mxu0 %v6636
  %7283 = vmatpush1.bf16.msra.mxu0 %v6635
  %7284 = vmatprep.subr.bf16.mxu0 %v6640
  %7285 = vmatpush1.bf16.msra.mxu0 %v6639
  %7286 = vmatprep.subr.bf16.mxu0 %v6644
  %7287 = vmatpush1.bf16.msra.mxu0 %v6643
  %7288 = vmatprep.subr.bf16.mxu0 %v6648
  %7289 = vmatpush1.bf16.msra.mxu0 %v6647
  %7290 = vmatprep.subr.bf16.mxu0 %v6652
  %7291 = vmatpush1.bf16.msra.mxu0 %v6651
  %7292 = vmatprep.subr.bf16.mxu0 %v6656
  %7293 = vmatpush1.bf16.msra.mxu0 %v6655
  %7294 = vmatprep.subr.bf16.mxu0 %v6660
  %7295 = vmatpush1.bf16.msra.mxu0 %v6659
  %7296 = vmatprep.subr.bf16.mxu0 %v6664
  %7297 = vmatpush1.bf16.msra.mxu0 %v6663
  %7298 = vmatprep.subr.bf16.mxu0 %v6668
  %7299 = vmatpush1.bf16.msra.mxu0 %v6667
  %7300 = vmatprep.subr.bf16.mxu0 %v6672
  %7301 = vmatpush1.bf16.msra.mxu0 %v6671
  %7302 = vmatprep.mubr.bf16.mxu0 %v5316
  %7303 = vmatmul.mubr.bf16.gmra.mrb[0].mxu0 %v5315
  %v7304 = vpop.f32.mrb[0].mxu0
  %v7305 = vadd.f32 %v7192, %v7304
  %v7306 = vpop.f32.mrb[0].mxu0
  %v7307 = vadd.f32 %v7194, %v7306
  %v7308 = vpop.f32.mrb[0].mxu0
  %v7309 = vadd.f32 %v7196, %v7308
  %v7310 = vpop.f32.mrb[0].mxu0
  %v7311 = vadd.f32 %v7198, %v7310
  %7312 = vmatprep.mubr.bf16.mxu0 %v5324
  %7313 = vmatmul.mubr.bf16.gmra.mrb[0].mxu0 %v5323
  %v7314 = vpop.f32.mrb[0].mxu0
  %v7315 = vadd.f32 %v7202, %v7314
  %v7316 = vpop.f32.mrb[0].mxu0
  %v7317 = vadd.f32 %v7204, %v7316
  %v7318 = vpop.f32.mrb[0].mxu0
  %v7319 = vadd.f32 %v7206, %v7318
  %v7320 = vpop.f32.mrb[0].mxu0
  %v7321 = vadd.f32 %v7208, %v7320
  %7322 = vmatprep.mubr.bf16.mxu0 %v5332
  %7323 = vmatmul.mubr.bf16.gmra.mrb[0].mxu0 %v5331
  %v7324 = vpop.f32.mrb[0].mxu0
  %v7325 = vadd.f32 %v7212, %v7324
  %v7326 = vpop.f32.mrb[0].mxu0
  %v7327 = vadd.f32 %v7214, %v7326
  %v7328 = vpop.f32.mrb[0].mxu0
  %v7329 = vadd.f32 %v7216, %v7328
  %v7330 = vpop.f32.mrb[0].mxu0
  %v7331 = vadd.f32 %v7218, %v7330
  %7332 = vmatprep.mubr.bf16.mxu0 %v5340
  %7333 = vmatmul.mubr.bf16.gmra.mrb[0].mxu0 %v5339
  %v7334 = vpop.f32.mrb[0].mxu0
  %v7335 = vadd.f32 %v7222, %v7334
  %v7336 = vpop.f32.mrb[0].mxu0
  %v7337 = vadd.f32 %v7224, %v7336
  %v7338 = vpop.f32.mrb[0].mxu0
  %v7339 = vadd.f32 %v7226, %v7338
  %v7340 = vpop.f32.mrb[0].mxu0
  %v7341 = vadd.f32 %v7228, %v7340
  %7342 = vmatprep.mubr.bf16.mxu0 %v5348
  %7343 = vmatmul.mubr.bf16.gmra.mrb[0].mxu0 %v5347
  %v7344 = vpop.f32.mrb[0].mxu0
  %v7345 = vadd.f32 %v7232, %v7344
  %v7346 = vpop.f32.mrb[0].mxu0
  %v7347 = vadd.f32 %v7234, %v7346
  %v7348 = vpop.f32.mrb[0].mxu0
  %v7349 = vadd.f32 %v7236, %v7348
  %v7350 = vpop.f32.mrb[0].mxu0
  %v7351 = vadd.f32 %v7238, %v7350
  %7352 = vmatprep.mubr.bf16.mxu0 %v5356
  %7353 = vmatmul.mubr.bf16.gmra.mrb[0].mxu0 %v5355
  %v7354 = vpop.f32.mrb[0].mxu0
  %v7355 = vadd.f32 %v7242, %v7354
  %v7356 = vpop.f32.mrb[0].mxu0
  %v7357 = vadd.f32 %v7244, %v7356
  %v7358 = vpop.f32.mrb[0].mxu0
  %v7359 = vadd.f32 %v7246, %v7358
  %v7360 = vpop.f32.mrb[0].mxu0
  %v7361 = vadd.f32 %v7248, %v7360
  %7362 = vmatprep.mubr.bf16.mxu0 %v5364
  %7363 = vmatmul.mubr.bf16.gmra.mrb[0].mxu0 %v5363
  %v7364 = vpop.f32.mrb[0].mxu0
  %v7365 = vadd.f32 %v7252, %v7364
  %v7366 = vpop.f32.mrb[0].mxu0
  %v7367 = vadd.f32 %v7254, %v7366
  %v7368 = vpop.f32.mrb[0].mxu0
  %v7369 = vadd.f32 %v7256, %v7368
  %v7370 = vpop.f32.mrb[0].mxu0
  %v7371 = vadd.f32 %v7258, %v7370
  %7372 = vmatprep.mubr.bf16.mxu0 %v5372
  %7373 = vmatmul.mubr.bf16.gmra.mrb[0].mxu0 %v5371
  %v7374 = vpop.f32.mrb[0].mxu0
  %v7375 = vadd.f32 %v7262, %v7374
  %v7376 = vpop.f32.mrb[0].mxu0
  %v7377 = vadd.f32 %v7264, %v7376
  %v7378 = vpop.f32.mrb[0].mxu0
  %v7379 = vadd.f32 %v7266, %v7378
  %v7380 = vpop.f32.mrb[0].mxu0
  %v7381 = vadd.f32 %v7268, %v7380
  %7382 = vdwg.mxu0
  %7383 = vmatprep.subr.bf16.mxu0 %v6422
  %7384 = vmatpush1.bf16.msra.mxu0 %v6421
  %7385 = vmatprep.subr.bf16.mxu0 %v6426
  %7386 = vmatpush1.bf16.msra.mxu0 %v6425
  %7387 = vmatprep.subr.bf16.mxu0 %v6430
  %7388 = vmatpush1.bf16.msra.mxu0 %v6429
  %7389 = vmatprep.subr.bf16.mxu0 %v6434
  %7390 = vmatpush1.bf16.msra.mxu0 %v6433
  %7391 = vmatprep.subr.bf16.mxu0 %v6438
  %7392 = vmatpush1.bf16.msra.mxu0 %v6437
  %7393 = vmatprep.subr.bf16.mxu0 %v6442
  %7394 = vmatpush1.bf16.msra.mxu0 %v6441
  %7395 = vmatprep.subr.bf16.mxu0 %v6446
  %7396 = vmatpush1.bf16.msra.mxu0 %v6445
  %7397 = vmatprep.subr.bf16.mxu0 %v6450
  %7398 = vmatpush1.bf16.msra.mxu0 %v6449
  %7399 = vmatprep.subr.bf16.mxu0 %v6454
  %7400 = vmatpush1.bf16.msra.mxu0 %v6453
  %7401 = vmatprep.subr.bf16.mxu0 %v6458
  %7402 = vmatpush1.bf16.msra.mxu0 %v6457
  %7403 = vmatprep.subr.bf16.mxu0 %v6462
  %7404 = vmatpush1.bf16.msra.mxu0 %v6461
  %7405 = vmatprep.subr.bf16.mxu0 %v6466
  %7406 = vmatpush1.bf16.msra.mxu0 %v6465
  %7407 = vmatprep.subr.bf16.mxu0 %v6470
  %7408 = vmatpush1.bf16.msra.mxu0 %v6469
  %7409 = vmatprep.subr.bf16.mxu0 %v6474
  %7410 = vmatpush1.bf16.msra.mxu0 %v6473
  %7411 = vmatprep.subr.bf16.mxu0 %v6478
  %7412 = vmatpush1.bf16.msra.mxu0 %v6477
  %7413 = vmatprep.subr.bf16.mxu0 %v6482
  %7414 = vmatpush1.bf16.msra.mxu0 %v6481
  %7415 = vmatprep.mubr.bf16.mxu0 %v5310
  %7416 = vmatmul.mubr.bf16.gmra.mrb[0].mxu0 %v5309
  %v7417 = vpop.f32.mrb[0].mxu0
  %v7418 = vadd.f32 %v5642, %v7417
  %v7419 = vpop.f32.mrb[0].mxu0
  %v7420 = vadd.f32 %v5646, %v7419
  %v7421 = vpop.f32.mrb[0].mxu0
  %v7422 = vadd.f32 %v5642, %v7421
  %v7423 = vpop.f32.mrb[0].mxu0
  %v7424 = vadd.f32 %v5646, %v7423
  %7425 = vmatprep.mubr.bf16.mxu0 %v5318
  %7426 = vmatmul.mubr.bf16.gmra.mrb[0].mxu0 %v5317
  %v7427 = vpop.f32.mrb[0].mxu0
  %v7428 = vadd.f32 %v5642, %v7427
  %v7429 = vpop.f32.mrb[0].mxu0
  %v7430 = vadd.f32 %v5646, %v7429
  %v7431 = vpop.f32.mrb[0].mxu0
  %v7432 = vadd.f32 %v5642, %v7431
  %v7433 = vpop.f32.mrb[0].mxu0
  %v7434 = vadd.f32 %v5646, %v7433
  %7435 = vmatprep.mubr.bf16.mxu0 %v5326
  %7436 = vmatmul.mubr.bf16.gmra.mrb[0].mxu0 %v5325
  %v7437 = vpop.f32.mrb[0].mxu0
  %v7438 = vadd.f32 %v5642, %v7437
  %v7439 = vpop.f32.mrb[0].mxu0
  %v7440 = vadd.f32 %v5646, %v7439
  %v7441 = vpop.f32.mrb[0].mxu0
  %v7442 = vadd.f32 %v5642, %v7441
  %v7443 = vpop.f32.mrb[0].mxu0
  %v7444 = vadd.f32 %v5646, %v7443
  %7445 = vmatprep.mubr.bf16.mxu0 %v5334
  %7446 = vmatmul.mubr.bf16.gmra.mrb[0].mxu0 %v5333
  %v7447 = vpop.f32.mrb[0].mxu0
  %v7448 = vadd.f32 %v5642, %v7447
  %v7449 = vpop.f32.mrb[0].mxu0
  %v7450 = vadd.f32 %v5646, %v7449
  %v7451 = vpop.f32.mrb[0].mxu0
  %v7452 = vadd.f32 %v5642, %v7451
  %v7453 = vpop.f32.mrb[0].mxu0
  %v7454 = vadd.f32 %v5646, %v7453
  %7455 = vmatprep.mubr.bf16.mxu0 %v5342
  %7456 = vmatmul.mubr.bf16.gmra.mrb[0].mxu0 %v5341
  %v7457 = vpop.f32.mrb[0].mxu0
  %v7458 = vadd.f32 %v5642, %v7457
  %v7459 = vpop.f32.mrb[0].mxu0
  %v7460 = vadd.f32 %v5646, %v7459
  %v7461 = vpop.f32.mrb[0].mxu0
  %v7462 = vadd.f32 %v5642, %v7461
  %v7463 = vpop.f32.mrb[0].mxu0
  %v7464 = vadd.f32 %v5646, %v7463
  %7465 = vmatprep.mubr.bf16.mxu0 %v5350
  %7466 = vmatmul.mubr.bf16.gmra.mrb[0].mxu0 %v5349
  %v7467 = vpop.f32.mrb[0].mxu0
  %v7468 = vadd.f32 %v5642, %v7467
  %v7469 = vpop.f32.mrb[0].mxu0
  %v7470 = vadd.f32 %v5646, %v7469
  %v7471 = vpop.f32.mrb[0].mxu0
  %v7472 = vadd.f32 %v5642, %v7471
  %v7473 = vpop.f32.mrb[0].mxu0
  %v7474 = vadd.f32 %v5646, %v7473
  %7475 = vmatprep.mubr.bf16.mxu0 %v5358
  %7476 = vmatmul.mubr.bf16.gmra.mrb[0].mxu0 %v5357
  %v7477 = vpop.f32.mrb[0].mxu0
  %v7478 = vadd.f32 %v5642, %v7477
  %v7479 = vpop.f32.mrb[0].mxu0
  %v7480 = vadd.f32 %v5646, %v7479
  %v7481 = vpop.f32.mrb[0].mxu0
  %v7482 = vadd.f32 %v5642, %v7481
  %v7483 = vpop.f32.mrb[0].mxu0
  %v7484 = vadd.f32 %v5646, %v7483
  %7485 = vmatprep.mubr.bf16.mxu0 %v5366
  %7486 = vmatmul.mubr.bf16.gmra.mrb[0].mxu0 %v5365
  %v7487 = vpop.f32.mrb[0].mxu0
  %v7488 = vadd.f32 %v5642, %v7487
  %v7489 = vpop.f32.mrb[0].mxu0
  %v7490 = vadd.f32 %v5646, %v7489
  %v7491 = vpop.f32.mrb[0].mxu0
  %v7492 = vadd.f32 %v5642, %v7491
  %v7493 = vpop.f32.mrb[0].mxu0
  %v7494 = vadd.f32 %v5646, %v7493
  %7495 = vdwg.mxu0
  %7496 = vmatprep.subr.bf16.mxu0 %v6486
  %7497 = vmatpush1.bf16.msra.mxu0 %v6485
  %7498 = vmatprep.subr.bf16.mxu0 %v6490
  %7499 = vmatpush1.bf16.msra.mxu0 %v6489
  %7500 = vmatprep.subr.bf16.mxu0 %v6494
  %7501 = vmatpush1.bf16.msra.mxu0 %v6493
  %7502 = vmatprep.subr.bf16.mxu0 %v6498
  %7503 = vmatpush1.bf16.msra.mxu0 %v6497
  %7504 = vmatprep.subr.bf16.mxu0 %v6502
  %7505 = vmatpush1.bf16.msra.mxu0 %v6501
  %7506 = vmatprep.subr.bf16.mxu0 %v6506
  %7507 = vmatpush1.bf16.msra.mxu0 %v6505
  %7508 = vmatprep.subr.bf16.mxu0 %v6510
  %7509 = vmatpush1.bf16.msra.mxu0 %v6509
  %7510 = vmatprep.subr.bf16.mxu0 %v6514
  %7511 = vmatpush1.bf16.msra.mxu0 %v6513
  %7512 = vmatprep.subr.bf16.mxu0 %v6518
  %7513 = vmatpush1.bf16.msra.mxu0 %v6517
  %7514 = vmatprep.subr.bf16.mxu0 %v6522
  %7515 = vmatpush1.bf16.msra.mxu0 %v6521
  %7516 = vmatprep.subr.bf16.mxu0 %v6526
  %7517 = vmatpush1.bf16.msra.mxu0 %v6525
  %7518 = vmatprep.subr.bf16.mxu0 %v6530
  %7519 = vmatpush1.bf16.msra.mxu0 %v6529
  %7520 = vmatprep.subr.bf16.mxu0 %v6534
  %7521 = vmatpush1.bf16.msra.mxu0 %v6533
  %7522 = vmatprep.subr.bf16.mxu0 %v6538
  %7523 = vmatpush1.bf16.msra.mxu0 %v6537
  %7524 = vmatprep.subr.bf16.mxu0 %v6542
  %7525 = vmatpush1.bf16.msra.mxu0 %v6541
  %7526 = vmatprep.subr.bf16.mxu0 %v6546
  %7527 = vmatpush1.bf16.msra.mxu0 %v6545
  %7528 = vmatprep.mubr.bf16.mxu0 %v5312
  %7529 = vmatmul.mubr.bf16.gmra.mrb[0].mxu0 %v5311
  %v7530 = vpop.f32.mrb[0].mxu0
  %v7531 = vadd.f32 %v7418, %v7530
  %v7532 = vpop.f32.mrb[0].mxu0
  %v7533 = vadd.f32 %v7420, %v7532
  %v7534 = vpop.f32.mrb[0].mxu0
  %v7535 = vadd.f32 %v7422, %v7534
  %v7536 = vpop.f32.mrb[0].mxu0
  %v7537 = vadd.f32 %v7424, %v7536
  %7538 = vmatprep.mubr.bf16.mxu0 %v5320
  %7539 = vmatmul.mubr.bf16.gmra.mrb[0].mxu0 %v5319
  %v7540 = vpop.f32.mrb[0].mxu0
  %v7541 = vadd.f32 %v7428, %v7540
  %v7542 = vpop.f32.mrb[0].mxu0
  %v7543 = vadd.f32 %v7430, %v7542
  %v7544 = vpop.f32.mrb[0].mxu0
  %v7545 = vadd.f32 %v7432, %v7544
  %v7546 = vpop.f32.mrb[0].mxu0
  %v7547 = vadd.f32 %v7434, %v7546
  %7548 = vmatprep.mubr.bf16.mxu0 %v5328
  %7549 = vmatmul.mubr.bf16.gmra.mrb[0].mxu0 %v5327
  %v7550 = vpop.f32.mrb[0].mxu0
  %v7551 = vadd.f32 %v7438, %v7550
  %v7552 = vpop.f32.mrb[0].mxu0
  %v7553 = vadd.f32 %v7440, %v7552
  %v7554 = vpop.f32.mrb[0].mxu0
  %v7555 = vadd.f32 %v7442, %v7554
  %v7556 = vpop.f32.mrb[0].mxu0
  %v7557 = vadd.f32 %v7444, %v7556
  %7558 = vmatprep.mubr.bf16.mxu0 %v5336
  %7559 = vmatmul.mubr.bf16.gmra.mrb[0].mxu0 %v5335
  %v7560 = vpop.f32.mrb[0].mxu0
  %v7561 = vadd.f32 %v7448, %v7560
  %v7562 = vpop.f32.mrb[0].mxu0
  %v7563 = vadd.f32 %v7450, %v7562
  %v7564 = vpop.f32.mrb[0].mxu0
  %v7565 = vadd.f32 %v7452, %v7564
  %v7566 = vpop.f32.mrb[0].mxu0
  %v7567 = vadd.f32 %v7454, %v7566
  %7568 = vmatprep.mubr.bf16.mxu0 %v5344
  %7569 = vmatmul.mubr.bf16.gmra.mrb[0].mxu0 %v5343
  %v7570 = vpop.f32.mrb[0].mxu0
  %v7571 = vadd.f32 %v7458, %v7570
  %v7572 = vpop.f32.mrb[0].mxu0
  %v7573 = vadd.f32 %v7460, %v7572
  %v7574 = vpop.f32.mrb[0].mxu0
  %v7575 = vadd.f32 %v7462, %v7574
  %v7576 = vpop.f32.mrb[0].mxu0
  %v7577 = vadd.f32 %v7464, %v7576
  %7578 = vmatprep.mubr.bf16.mxu0 %v5352
  %7579 = vmatmul.mubr.bf16.gmra.mrb[0].mxu0 %v5351
  %v7580 = vpop.f32.mrb[0].mxu0
  %v7581 = vadd.f32 %v7468, %v7580
  %v7582 = vpop.f32.mrb[0].mxu0
  %v7583 = vadd.f32 %v7470, %v7582
  %v7584 = vpop.f32.mrb[0].mxu0
  %v7585 = vadd.f32 %v7472, %v7584
  %v7586 = vpop.f32.mrb[0].mxu0
  %v7587 = vadd.f32 %v7474, %v7586
  %7588 = vmatprep.mubr.bf16.mxu0 %v5360
  %7589 = vmatmul.mubr.bf16.gmra.mrb[0].mxu0 %v5359
  %v7590 = vpop.f32.mrb[0].mxu0
  %v7591 = vadd.f32 %v7478, %v7590
  %v7592 = vpop.f32.mrb[0].mxu0
  %v7593 = vadd.f32 %v7480, %v7592
  %v7594 = vpop.f32.mrb[0].mxu0
  %v7595 = vadd.f32 %v7482, %v7594
  %v7596 = vpop.f32.mrb[0].mxu0
  %v7597 = vadd.f32 %v7484, %v7596
  %7598 = vmatprep.mubr.bf16.mxu0 %v5368
  %7599 = vmatmul.mubr.bf16.gmra.mrb[0].mxu0 %v5367
  %v7600 = vpop.f32.mrb[0].mxu0
  %v7601 = vadd.f32 %v7488, %v7600
  %v7602 = vpop.f32.mrb[0].mxu0
  %v7603 = vadd.f32 %v7490, %v7602
  %v7604 = vpop.f32.mrb[0].mxu0
  %v7605 = vadd.f32 %v7492, %v7604
  %v7606 = vpop.f32.mrb[0].mxu0
  %v7607 = vadd.f32 %v7494, %v7606
  %7608 = vdwg.mxu0
  %7609 = vmatprep.subr.bf16.mxu0 %v6550
  %7610 = vmatpush1.bf16.msra.mxu0 %v6549
  %7611 = vmatprep.subr.bf16.mxu0 %v6554
  %7612 = vmatpush1.bf16.msra.mxu0 %v6553
  %7613 = vmatprep.subr.bf16.mxu0 %v6558
  %7614 = vmatpush1.bf16.msra.mxu0 %v6557
  %7615 = vmatprep.subr.bf16.mxu0 %v6562
  %7616 = vmatpush1.bf16.msra.mxu0 %v6561
  %7617 = vmatprep.subr.bf16.mxu0 %v6566
  %7618 = vmatpush1.bf16.msra.mxu0 %v6565
  %7619 = vmatprep.subr.bf16.mxu0 %v6570
  %7620 = vmatpush1.bf16.msra.mxu0 %v6569
  %7621 = vmatprep.subr.bf16.mxu0 %v6574
  %7622 = vmatpush1.bf16.msra.mxu0 %v6573
  %7623 = vmatprep.subr.bf16.mxu0 %v6578
  %7624 = vmatpush1.bf16.msra.mxu0 %v6577
  %7625 = vmatprep.subr.bf16.mxu0 %v6582
  %7626 = vmatpush1.bf16.msra.mxu0 %v6581
  %7627 = vmatprep.subr.bf16.mxu0 %v6586
  %7628 = vmatpush1.bf16.msra.mxu0 %v6585
  %7629 = vmatprep.subr.bf16.mxu0 %v6590
  %7630 = vmatpush1.bf16.msra.mxu0 %v6589
  %7631 = vmatprep.subr.bf16.mxu0 %v6594
  %7632 = vmatpush1.bf16.msra.mxu0 %v6593
  %7633 = vmatprep.subr.bf16.mxu0 %v6598
  %7634 = vmatpush1.bf16.msra.mxu0 %v6597
  %7635 = vmatprep.subr.bf16.mxu0 %v6602
  %7636 = vmatpush1.bf16.msra.mxu0 %v6601
  %7637 = vmatprep.subr.bf16.mxu0 %v6606
  %7638 = vmatpush1.bf16.msra.mxu0 %v6605
  %7639 = vmatprep.subr.bf16.mxu0 %v6610
  %7640 = vmatpush1.bf16.msra.mxu0 %v6609
  %7641 = vmatprep.mubr.bf16.mxu0 %v5314
  %7642 = vmatmul.mubr.bf16.gmra.mrb[0].mxu0 %v5313
  %v7643 = vpop.f32.mrb[0].mxu0
  %v7644 = vadd.f32 %v7531, %v7643
  %v7645 = vpop.f32.mrb[0].mxu0
  %v7646 = vadd.f32 %v7533, %v7645
  %v7647 = vpop.f32.mrb[0].mxu0
  %v7648 = vadd.f32 %v7535, %v7647
  %v7649 = vpop.f32.mrb[0].mxu0
  %v7650 = vadd.f32 %v7537, %v7649
  %7651 = vmatprep.mubr.bf16.mxu0 %v5322
  %7652 = vmatmul.mubr.bf16.gmra.mrb[0].mxu0 %v5321
  %v7653 = vpop.f32.mrb[0].mxu0
  %v7654 = vadd.f32 %v7541, %v7653
  %v7655 = vpop.f32.mrb[0].mxu0
  %v7656 = vadd.f32 %v7543, %v7655
  %v7657 = vpop.f32.mrb[0].mxu0
  %v7658 = vadd.f32 %v7545, %v7657
  %v7659 = vpop.f32.mrb[0].mxu0
  %v7660 = vadd.f32 %v7547, %v7659
  %7661 = vmatprep.mubr.bf16.mxu0 %v5330
  %7662 = vmatmul.mubr.bf16.gmra.mrb[0].mxu0 %v5329
  %v7663 = vpop.f32.mrb[0].mxu0
  %v7664 = vadd.f32 %v7551, %v7663
  %v7665 = vpop.f32.mrb[0].mxu0
  %v7666 = vadd.f32 %v7553, %v7665
  %v7667 = vpop.f32.mrb[0].mxu0
  %v7668 = vadd.f32 %v7555, %v7667
  %v7669 = vpop.f32.mrb[0].mxu0
  %v7670 = vadd.f32 %v7557, %v7669
  %7671 = vmatprep.mubr.bf16.mxu0 %v5338
  %7672 = vmatmul.mubr.bf16.gmra.mrb[0].mxu0 %v5337
  %v7673 = vpop.f32.mrb[0].mxu0
  %v7674 = vadd.f32 %v7561, %v7673
  %v7675 = vpop.f32.mrb[0].mxu0
  %v7676 = vadd.f32 %v7563, %v7675
  %v7677 = vpop.f32.mrb[0].mxu0
  %v7678 = vadd.f32 %v7565, %v7677
  %v7679 = vpop.f32.mrb[0].mxu0
  %v7680 = vadd.f32 %v7567, %v7679
  %7681 = vmatprep.mubr.bf16.mxu0 %v5346
  %7682 = vmatmul.mubr.bf16.gmra.mrb[0].mxu0 %v5345
  %v7683 = vpop.f32.mrb[0].mxu0
  %v7684 = vadd.f32 %v7571, %v7683
  %v7685 = vpop.f32.mrb[0].mxu0
  %v7686 = vadd.f32 %v7573, %v7685
  %v7687 = vpop.f32.mrb[0].mxu0
  %v7688 = vadd.f32 %v7575, %v7687
  %v7689 = vpop.f32.mrb[0].mxu0
  %v7690 = vadd.f32 %v7577, %v7689
  %7691 = vmatprep.mubr.bf16.mxu0 %v5354
  %7692 = vmatmul.mubr.bf16.gmra.mrb[0].mxu0 %v5353
  %v7693 = vpop.f32.mrb[0].mxu0
  %v7694 = vadd.f32 %v7581, %v7693
  %v7695 = vpop.f32.mrb[0].mxu0
  %v7696 = vadd.f32 %v7583, %v7695
  %v7697 = vpop.f32.mrb[0].mxu0
  %v7698 = vadd.f32 %v7585, %v7697
  %v7699 = vpop.f32.mrb[0].mxu0
  %v7700 = vadd.f32 %v7587, %v7699
  %7701 = vmatprep.mubr.bf16.mxu0 %v5362
  %7702 = vmatmul.mubr.bf16.gmra.mrb[0].mxu0 %v5361
  %v7703 = vpop.f32.mrb[0].mxu0
  %v7704 = vadd.f32 %v7591, %v7703
  %v7705 = vpop.f32.mrb[0].mxu0
  %v7706 = vadd.f32 %v7593, %v7705
  %v7707 = vpop.f32.mrb[0].mxu0
  %v7708 = vadd.f32 %v7595, %v7707
  %v7709 = vpop.f32.mrb[0].mxu0
  %v7710 = vadd.f32 %v7597, %v7709
  %7711 = vmatprep.mubr.bf16.mxu0 %v5370
  %7712 = vmatmul.mubr.bf16.gmra.mrb[0].mxu0 %v5369
  %v7713 = vpop.f32.mrb[0].mxu0
  %v7714 = vadd.f32 %v7601, %v7713
  %v7715 = vpop.f32.mrb[0].mxu0
  %v7716 = vadd.f32 %v7603, %v7715
  %v7717 = vpop.f32.mrb[0].mxu0
  %v7718 = vadd.f32 %v7605, %v7717
  %v7719 = vpop.f32.mrb[0].mxu0
  %v7720 = vadd.f32 %v7607, %v7719
  %7721 = vdwg.mxu0
  %7722 = vmatprep.subr.bf16.mxu0 %v6614
  %7723 = vmatpush1.bf16.msra.mxu0 %v6613
  %7724 = vmatprep.subr.bf16.mxu0 %v6618
  %7725 = vmatpush1.bf16.msra.mxu0 %v6617
  %7726 = vmatprep.subr.bf16.mxu0 %v6622
  %7727 = vmatpush1.bf16.msra.mxu0 %v6621
  %7728 = vmatprep.subr.bf16.mxu0 %v6626
  %7729 = vmatpush1.bf16.msra.mxu0 %v6625
  %7730 = vmatprep.subr.bf16.mxu0 %v6630
  %7731 = vmatpush1.bf16.msra.mxu0 %v6629
  %7732 = vmatprep.subr.bf16.mxu0 %v6634
  %7733 = vmatpush1.bf16.msra.mxu0 %v6633
  %7734 = vmatprep.subr.bf16.mxu0 %v6638
  %7735 = vmatpush1.bf16.msra.mxu0 %v6637
  %7736 = vmatprep.subr.bf16.mxu0 %v6642
  %7737 = vmatpush1.bf16.msra.mxu0 %v6641
  %7738 = vmatprep.subr.bf16.mxu0 %v6646
  %7739 = vmatpush1.bf16.msra.mxu0 %v6645
  %7740 = vmatprep.subr.bf16.mxu0 %v6650
  %7741 = vmatpush1.bf16.msra.mxu0 %v6649
  %7742 = vmatprep.subr.bf16.mxu0 %v6654
  %7743 = vmatpush1.bf16.msra.mxu0 %v6653
  %7744 = vmatprep.subr.bf16.mxu0 %v6658
  %7745 = vmatpush1.bf16.msra.mxu0 %v6657
  %7746 = vmatprep.subr.bf16.mxu0 %v6662
  %7747 = vmatpush1.bf16.msra.mxu0 %v6661
  %7748 = vmatprep.subr.bf16.mxu0 %v6666
  %7749 = vmatpush1.bf16.msra.mxu0 %v6665
  %7750 = vmatprep.subr.bf16.mxu0 %v6670
  %7751 = vmatpush1.bf16.msra.mxu0 %v6669
  %7752 = vmatprep.subr.bf16.mxu0 %v6674
  %7753 = vmatpush1.bf16.msra.mxu0 %v6673
  %7754 = vmatprep.mubr.bf16.mxu0 %v5316
  %7755 = vmatmul.mubr.bf16.gmra.mrb[0].mxu0 %v5315
  %v7756 = vpop.f32.mrb[0].mxu0
  %v7757 = vadd.f32 %v7644, %v7756
  %v7758 = vpop.f32.mrb[0].mxu0
  %v7759 = vadd.f32 %v7646, %v7758
  %v7760 = vpop.f32.mrb[0].mxu0
  %v7761 = vadd.f32 %v7648, %v7760
  %v7762 = vpop.f32.mrb[0].mxu0
  %v7763 = vadd.f32 %v7650, %v7762
  %7764 = vmatprep.mubr.bf16.mxu0 %v5324
  %7765 = vmatmul.mubr.bf16.gmra.mrb[0].mxu0 %v5323
  %v7766 = vpop.f32.mrb[0].mxu0
  %v7767 = vadd.f32 %v7654, %v7766
  %v7768 = vpop.f32.mrb[0].mxu0
  %v7769 = vadd.f32 %v7656, %v7768
  %v7770 = vpop.f32.mrb[0].mxu0
  %v7771 = vadd.f32 %v7658, %v7770
  %v7772 = vpop.f32.mrb[0].mxu0
  %v7773 = vadd.f32 %v7660, %v7772
  %7774 = vmatprep.mubr.bf16.mxu0 %v5332
  %7775 = vmatmul.mubr.bf16.gmra.mrb[0].mxu0 %v5331
  %v7776 = vpop.f32.mrb[0].mxu0
  %v7777 = vadd.f32 %v7664, %v7776
  %v7778 = vpop.f32.mrb[0].mxu0
  %v7779 = vadd.f32 %v7666, %v7778
  %v7780 = vpop.f32.mrb[0].mxu0
  %v7781 = vadd.f32 %v7668, %v7780
  %v7782 = vpop.f32.mrb[0].mxu0
  %v7783 = vadd.f32 %v7670, %v7782
  %7784 = vmatprep.mubr.bf16.mxu0 %v5340
  %7785 = vmatmul.mubr.bf16.gmra.mrb[0].mxu0 %v5339
  %v7786 = vpop.f32.mrb[0].mxu0
  %v7787 = vadd.f32 %v7674, %v7786
  %v7788 = vpop.f32.mrb[0].mxu0
  %v7789 = vadd.f32 %v7676, %v7788
  %v7790 = vpop.f32.mrb[0].mxu0
  %v7791 = vadd.f32 %v7678, %v7790
  %v7792 = vpop.f32.mrb[0].mxu0
  %v7793 = vadd.f32 %v7680, %v7792
  %7794 = vmatprep.mubr.bf16.mxu0 %v5348
  %7795 = vmatmul.mubr.bf16.gmra.mrb[0].mxu0 %v5347
  %v7796 = vpop.f32.mrb[0].mxu0
  %v7797 = vadd.f32 %v7684, %v7796
  %v7798 = vpop.f32.mrb[0].mxu0
  %v7799 = vadd.f32 %v7686, %v7798
  %v7800 = vpop.f32.mrb[0].mxu0
  %v7801 = vadd.f32 %v7688, %v7800
  %v7802 = vpop.f32.mrb[0].mxu0
  %v7803 = vadd.f32 %v7690, %v7802
  %7804 = vmatprep.mubr.bf16.mxu0 %v5356
  %7805 = vmatmul.mubr.bf16.gmra.mrb[0].mxu0 %v5355
  %v7806 = vpop.f32.mrb[0].mxu0
  %v7807 = vadd.f32 %v7694, %v7806
  %v7808 = vpop.f32.mrb[0].mxu0
  %v7809 = vadd.f32 %v7696, %v7808
  %v7810 = vpop.f32.mrb[0].mxu0
  %v7811 = vadd.f32 %v7698, %v7810
  %v7812 = vpop.f32.mrb[0].mxu0
  %v7813 = vadd.f32 %v7700, %v7812
  %7814 = vmatprep.mubr.bf16.mxu0 %v5364
  %7815 = vmatmul.mubr.bf16.gmra.mrb[0].mxu0 %v5363
  %v7816 = vpop.f32.mrb[0].mxu0
  %v7817 = vadd.f32 %v7704, %v7816
  %v7818 = vpop.f32.mrb[0].mxu0
  %v7819 = vadd.f32 %v7706, %v7818
  %v7820 = vpop.f32.mrb[0].mxu0
  %v7821 = vadd.f32 %v7708, %v7820
  %v7822 = vpop.f32.mrb[0].mxu0
  %v7823 = vadd.f32 %v7710, %v7822
  %7824 = vmatprep.mubr.bf16.mxu0 %v5372
  %7825 = vmatmul.mubr.bf16.gmra.mrb[0].mxu0 %v5371
  %v7826 = vpop.f32.mrb[0].mxu0
  %v7827 = vadd.f32 %v7714, %v7826
  %v7828 = vpop.f32.mrb[0].mxu0
  %v7829 = vadd.f32 %v7716, %v7828
  %v7830 = vpop.f32.mrb[0].mxu0
  %v7831 = vadd.f32 %v7718, %v7830
  %v7832 = vpop.f32.mrb[0].mxu0
  %v7833 = vadd.f32 %v7720, %v7832
  %7834 = vdwg.mxu0
  %vm7835 = vcmp.gt.f32.partialorder %v7305, 0.0
  %vm7836 = vcmp.gt.f32.partialorder %v7307, 0.0
  %vm7837 = vcmp.gt.f32.partialorder %v7757, 0.0
  %vm7838 = vcmp.gt.f32.partialorder %v7759, 0.0
  %vm7839 = vcmp.gt.f32.partialorder %v7309, 0.0
  %vm7840 = vcmp.gt.f32.partialorder %v7311, 0.0
  %vm7841 = vcmp.gt.f32.partialorder %v7761, 0.0
  %vm7842 = vcmp.gt.f32.partialorder %v7763, 0.0
  %vm7843 = vcmp.gt.f32.partialorder %v7315, 0.0
  %vm7844 = vcmp.gt.f32.partialorder %v7317, 0.0
  %vm7845 = vcmp.gt.f32.partialorder %v7767, 0.0
  %vm7846 = vcmp.gt.f32.partialorder %v7769, 0.0
  %vm7847 = vcmp.gt.f32.partialorder %v7319, 0.0
  %vm7848 = vcmp.gt.f32.partialorder %v7321, 0.0
  %vm7849 = vcmp.gt.f32.partialorder %v7771, 0.0
  %vm7850 = vcmp.gt.f32.partialorder %v7773, 0.0
  %vm7851 = vcmp.gt.f32.partialorder %v7325, 0.0
  %vm7852 = vcmp.gt.f32.partialorder %v7327, 0.0
  %vm7853 = vcmp.gt.f32.partialorder %v7777, 0.0
  %vm7854 = vcmp.gt.f32.partialorder %v7779, 0.0
  %vm7855 = vcmp.gt.f32.partialorder %v7329, 0.0
  %vm7856 = vcmp.gt.f32.partialorder %v7331, 0.0
  %vm7857 = vcmp.gt.f32.partialorder %v7781, 0.0
  %vm7858 = vcmp.gt.f32.partialorder %v7783, 0.0
  %vm7859 = vcmp.gt.f32.partialorder %v7335, 0.0
  %vm7860 = vcmp.gt.f32.partialorder %v7337, 0.0
  %vm7861 = vcmp.gt.f32.partialorder %v7787, 0.0
  %vm7862 = vcmp.gt.f32.partialorder %v7789, 0.0
  %vm7863 = vcmp.gt.f32.partialorder %v7339, 0.0
  %vm7864 = vcmp.gt.f32.partialorder %v7341, 0.0
  %vm7865 = vcmp.gt.f32.partialorder %v7791, 0.0
  %vm7866 = vcmp.gt.f32.partialorder %v7793, 0.0
  %vm7867 = vcmp.gt.f32.partialorder %v7345, 0.0
  %vm7868 = vcmp.gt.f32.partialorder %v7347, 0.0
  %vm7869 = vcmp.gt.f32.partialorder %v7797, 0.0
  %vm7870 = vcmp.gt.f32.partialorder %v7799, 0.0
  %vm7871 = vcmp.gt.f32.partialorder %v7349, 0.0
  %vm7872 = vcmp.gt.f32.partialorder %v7351, 0.0
  %vm7873 = vcmp.gt.f32.partialorder %v7801, 0.0
  %vm7874 = vcmp.gt.f32.partialorder %v7803, 0.0
  %vm7875 = vcmp.gt.f32.partialorder %v7355, 0.0
  %vm7876 = vcmp.gt.f32.partialorder %v7357, 0.0
  %vm7877 = vcmp.gt.f32.partialorder %v7807, 0.0
  %vm7878 = vcmp.gt.f32.partialorder %v7809, 0.0
  %vm7879 = vcmp.gt.f32.partialorder %v7359, 0.0
  %vm7880 = vcmp.gt.f32.partialorder %v7361, 0.0
  %vm7881 = vcmp.gt.f32.partialorder %v7811, 0.0
  %vm7882 = vcmp.gt.f32.partialorder %v7813, 0.0
  %vm7883 = vcmp.gt.f32.partialorder %v7365, 0.0
  %vm7884 = vcmp.gt.f32.partialorder %v7367, 0.0
  %vm7885 = vcmp.gt.f32.partialorder %v7817, 0.0
  %vm7886 = vcmp.gt.f32.partialorder %v7819, 0.0
  %vm7887 = vcmp.gt.f32.partialorder %v7369, 0.0
  %vm7888 = vcmp.gt.f32.partialorder %v7371, 0.0
  %vm7889 = vcmp.gt.f32.partialorder %v7821, 0.0
  %vm7890 = vcmp.gt.f32.partialorder %v7823, 0.0
  %vm7891 = vcmp.gt.f32.partialorder %v7375, 0.0
  %vm7892 = vcmp.gt.f32.partialorder %v7377, 0.0
  %vm7893 = vcmp.gt.f32.partialorder %v7827, 0.0
  %vm7894 = vcmp.gt.f32.partialorder %v7829, 0.0
  %vm7895 = vcmp.gt.f32.partialorder %v7379, 0.0
  %vm7896 = vcmp.gt.f32.partialorder %v7381, 0.0
  %vm7897 = vcmp.gt.f32.partialorder %v7831, 0.0
  %vm7898 = vcmp.gt.f32.partialorder %v7833, 0.0
  %v7899 = vmul.f32 %v7305, 0.2
  %v7900 = vmul.f32 %v7307, 0.2
  %v7901 = vmul.f32 %v7757, 0.2
  %v7902 = vmul.f32 %v7759, 0.2
  %v7903 = vmul.f32 %v7309, 0.2
  %v7904 = vmul.f32 %v7311, 0.2
  %v7905 = vmul.f32 %v7761, 0.2
  %v7906 = vmul.f32 %v7763, 0.2
  %v7907 = vmul.f32 %v7315, 0.2
  %v7908 = vmul.f32 %v7317, 0.2
  %v7909 = vmul.f32 %v7767, 0.2
  %v7910 = vmul.f32 %v7769, 0.2
  %v7911 = vmul.f32 %v7319, 0.2
  %v7912 = vmul.f32 %v7321, 0.2
  %v7913 = vmul.f32 %v7771, 0.2
  %v7914 = vmul.f32 %v7773, 0.2
  %v7915 = vmul.f32 %v7325, 0.2
  %v7916 = vmul.f32 %v7327, 0.2
  %v7917 = vmul.f32 %v7777, 0.2
  %v7918 = vmul.f32 %v7779, 0.2
  %v7919 = vmul.f32 %v7329, 0.2
  %v7920 = vmul.f32 %v7331, 0.2
  %v7921 = vmul.f32 %v7781, 0.2
  %v7922 = vmul.f32 %v7783, 0.2
  %v7923 = vmul.f32 %v7335, 0.2
  %v7924 = vmul.f32 %v7337, 0.2
  %v7925 = vmul.f32 %v7787, 0.2
  %v7926 = vmul.f32 %v7789, 0.2
  %v7927 = vmul.f32 %v7339, 0.2
  %v7928 = vmul.f32 %v7341, 0.2
  %v7929 = vmul.f32 %v7791, 0.2
  %v7930 = vmul.f32 %v7793, 0.2
  %v7931 = vmul.f32 %v7345, 0.2
  %v7932 = vmul.f32 %v7347, 0.2
  %v7933 = vmul.f32 %v7797, 0.2
  %v7934 = vmul.f32 %v7799, 0.2
  %v7935 = vmul.f32 %v7349, 0.2
  %v7936 = vmul.f32 %v7351, 0.2
  %v7937 = vmul.f32 %v7801, 0.2
  %v7938 = vmul.f32 %v7803, 0.2
  %v7939 = vmul.f32 %v7355, 0.2
  %v7940 = vmul.f32 %v7357, 0.2
  %v7941 = vmul.f32 %v7807, 0.2
  %v7942 = vmul.f32 %v7809, 0.2
  %v7943 = vmul.f32 %v7359, 0.2
  %v7944 = vmul.f32 %v7361, 0.2
  %v7945 = vmul.f32 %v7811, 0.2
  %v7946 = vmul.f32 %v7813, 0.2
  %v7947 = vmul.f32 %v7365, 0.2
  %v7948 = vmul.f32 %v7367, 0.2
  %v7949 = vmul.f32 %v7817, 0.2
  %v7950 = vmul.f32 %v7819, 0.2
  %v7951 = vmul.f32 %v7369, 0.2
  %v7952 = vmul.f32 %v7371, 0.2
  %v7953 = vmul.f32 %v7821, 0.2
  %v7954 = vmul.f32 %v7823, 0.2
  %v7955 = vmul.f32 %v7375, 0.2
  %v7956 = vmul.f32 %v7377, 0.2
  %v7957 = vmul.f32 %v7827, 0.2
  %v7958 = vmul.f32 %v7829, 0.2
  %v7959 = vmul.f32 %v7379, 0.2
  %v7960 = vmul.f32 %v7381, 0.2
  %v7961 = vmul.f32 %v7831, 0.2
  %v7962 = vmul.f32 %v7833, 0.2
  %v7963 = vsel %vm7835, %v7305, %v7899
  %v7964 = vsel %vm7836, %v7307, %v7900
  %v7965 = vsel %vm7837, %v7757, %v7901
  %v7966 = vsel %vm7838, %v7759, %v7902
  %v7967 = vsel %vm7839, %v7309, %v7903
  %v7968 = vsel %vm7840, %v7311, %v7904
  %v7969 = vsel %vm7841, %v7761, %v7905
  %v7970 = vsel %vm7842, %v7763, %v7906
  %v7971 = vsel %vm7843, %v7315, %v7907
  %v7972 = vsel %vm7844, %v7317, %v7908
  %v7973 = vsel %vm7845, %v7767, %v7909
  %v7974 = vsel %vm7846, %v7769, %v7910
  %v7975 = vsel %vm7847, %v7319, %v7911
  %v7976 = vsel %vm7848, %v7321, %v7912
  %v7977 = vsel %vm7849, %v7771, %v7913
  %v7978 = vsel %vm7850, %v7773, %v7914
  %v7979 = vsel %vm7851, %v7325, %v7915
  %v7980 = vsel %vm7852, %v7327, %v7916
  %v7981 = vsel %vm7853, %v7777, %v7917
  %v7982 = vsel %vm7854, %v7779, %v7918
  %v7983 = vsel %vm7855, %v7329, %v7919
  %v7984 = vsel %vm7856, %v7331, %v7920
  %v7985 = vsel %vm7857, %v7781, %v7921
  %v7986 = vsel %vm7858, %v7783, %v7922
  %v7987 = vsel %vm7859, %v7335, %v7923
  %v7988 = vsel %vm7860, %v7337, %v7924
  %v7989 = vsel %vm7861, %v7787, %v7925
  %v7990 = vsel %vm7862, %v7789, %v7926
  %v7991 = vsel %vm7863, %v7339, %v7927
  %v7992 = vsel %vm7864, %v7341, %v7928
  %v7993 = vsel %vm7865, %v7791, %v7929
  %v7994 = vsel %vm7866, %v7793, %v7930
  %v7995 = vsel %vm7867, %v7345, %v7931
  %v7996 = vsel %vm7868, %v7347, %v7932
  %v7997 = vsel %vm7869, %v7797, %v7933
  %v7998 = vsel %vm7870, %v7799, %v7934
  %v7999 = vsel %vm7871, %v7349, %v7935
  %v8000 = vsel %vm7872, %v7351, %v7936
  %v8001 = vsel %vm7873, %v7801, %v7937
  %v8002 = vsel %vm7874, %v7803, %v7938
  %v8003 = vsel %vm7875, %v7355, %v7939
  %v8004 = vsel %vm7876, %v7357, %v7940
  %v8005 = vsel %vm7877, %v7807, %v7941
  %v8006 = vsel %vm7878, %v7809, %v7942
  %v8007 = vsel %vm7879, %v7359, %v7943
  %v8008 = vsel %vm7880, %v7361, %v7944
  %v8009 = vsel %vm7881, %v7811, %v7945
  %v8010 = vsel %vm7882, %v7813, %v7946
  %v8011 = vsel %vm7883, %v7365, %v7947
  %v8012 = vsel %vm7884, %v7367, %v7948
  %v8013 = vsel %vm7885, %v7817, %v7949
  %v8014 = vsel %vm7886, %v7819, %v7950
  %v8015 = vsel %vm7887, %v7369, %v7951
  %v8016 = vsel %vm7888, %v7371, %v7952
  %v8017 = vsel %vm7889, %v7821, %v7953
  %v8018 = vsel %vm7890, %v7823, %v7954
  %v8019 = vsel %vm7891, %v7375, %v7955
  %v8020 = vsel %vm7892, %v7377, %v7956
  %v8021 = vsel %vm7893, %v7827, %v7957
  %v8022 = vsel %vm7894, %v7829, %v7958
  %v8023 = vsel %vm7895, %v7379, %v7959
  %v8024 = vsel %vm7896, %v7381, %v7960
  %v8025 = vsel %vm7897, %v7831, %v7961
  %v8026 = vsel %vm7898, %v7833, %v7962
  %v8027 = vpack.c.bf16 %v7967, %v7963
  %v8028 = vpack.c.bf16 %v7968, %v7964
  %v8029 = vpack.c.bf16 %v7969, %v7965
  %v8030 = vpack.c.bf16 %v7970, %v7966
  %v8031 = vpack.c.bf16 %v7975, %v7971
  %v8032 = vpack.c.bf16 %v7976, %v7972
  %v8033 = vpack.c.bf16 %v7977, %v7973
  %v8034 = vpack.c.bf16 %v7978, %v7974
  %v8035 = vpack.c.bf16 %v7983, %v7979
  %v8036 = vpack.c.bf16 %v7984, %v7980
  %v8037 = vpack.c.bf16 %v7985, %v7981
  %v8038 = vpack.c.bf16 %v7986, %v7982
  %v8039 = vpack.c.bf16 %v7991, %v7987
  %v8040 = vpack.c.bf16 %v7992, %v7988
  %v8041 = vpack.c.bf16 %v7993, %v7989
  %v8042 = vpack.c.bf16 %v7994, %v7990
  %v8043 = vpack.c.bf16 %v7999, %v7995
  %v8044 = vpack.c.bf16 %v8000, %v7996
  %v8045 = vpack.c.bf16 %v8001, %v7997
  %v8046 = vpack.c.bf16 %v8002, %v7998
  %v8047 = vpack.c.bf16 %v8007, %v8003
  %v8048 = vpack.c.bf16 %v8008, %v8004
  %v8049 = vpack.c.bf16 %v8009, %v8005
  %v8050 = vpack.c.bf16 %v8010, %v8006
  %v8051 = vpack.c.bf16 %v8015, %v8011
  %v8052 = vpack.c.bf16 %v8016, %v8012
  %v8053 = vpack.c.bf16 %v8017, %v8013
  %v8054 = vpack.c.bf16 %v8018, %v8014
  %v8055 = vpack.c.bf16 %v8023, %v8019
  %v8056 = vpack.c.bf16 %v8024, %v8020
  %v8057 = vpack.c.bf16 %v8025, %v8021
  %v8058 = vpack.c.bf16 %v8026, %v8022
  %v8059 = vld [vmem:[%s5] sm:$0xff]
  %v8060 = vld [vmem:[%s5 + $0x8] sm:$0xff]
  %v8061 = vld [vmem:[%s5 + $0x10] sm:$0xff]
  %v8062 = vld [vmem:[%s5 + $0x18] sm:$0xff]
  %v8063 = vld [vmem:[%s5 + $0x20] sm:$0xff]
  %v8064 = vld [vmem:[%s5 + $0x28] sm:$0xff]
  %v8065 = vld [vmem:[%s5 + $0x30] sm:$0xff]
  %v8066 = vld [vmem:[%s5 + $0x38] sm:$0xff]
  %v8067 = vld [vmem:[%s5 + $0x40] sm:$0xff]
  %v8068 = vld [vmem:[%s5 + $0x48] sm:$0xff]
  %v8069 = vld [vmem:[%s5 + $0x50] sm:$0xff]
  %v8070 = vld [vmem:[%s5 + $0x58] sm:$0xff]
  %v8071 = vld [vmem:[%s5 + $0x60] sm:$0xff]
  %v8072 = vld [vmem:[%s5 + $0x68] sm:$0xff]
  %v8073 = vld [vmem:[%s5 + $0x70] sm:$0xff]
  %v8074 = vld [vmem:[%s5 + $0x78] sm:$0xff]
  %v8075 = vld [vmem:[%s5 + $0x80] sm:$0xff]
  %v8076 = vld [vmem:[%s5 + $0x88] sm:$0xff]
  %v8077 = vld [vmem:[%s5 + $0x90] sm:$0xff]
  %v8078 = vld [vmem:[%s5 + $0x98] sm:$0xff]
  %v8079 = vld [vmem:[%s5 + $0xa0] sm:$0xff]
  %v8080 = vld [vmem:[%s5 + $0xa8] sm:$0xff]
  %v8081 = vld [vmem:[%s5 + $0xb0] sm:$0xff]
  %v8082 = vld [vmem:[%s5 + $0xb8] sm:$0xff]
  %v8083 = vld [vmem:[%s5 + $0xc0] sm:$0xff]
  %v8084 = vld [vmem:[%s5 + $0xc8] sm:$0xff]
  %v8085 = vld [vmem:[%s5 + $0xd0] sm:$0xff]
  %v8086 = vld [vmem:[%s5 + $0xd8] sm:$0xff]
  %v8087 = vld [vmem:[%s5 + $0xe0] sm:$0xff]
  %v8088 = vld [vmem:[%s5 + $0xe8] sm:$0xff]
  %v8089 = vld [vmem:[%s5 + $0xf0] sm:$0xff]
  %v8090 = vld [vmem:[%s5 + $0xf8] sm:$0xff]
  %v8091 = vld [vmem:[%s5 + $0x100] sm:$0xff]
  %v8092 = vld [vmem:[%s5 + $0x108] sm:$0xff]
  %v8093 = vld [vmem:[%s5 + $0x110] sm:$0xff]
  %v8094 = vld [vmem:[%s5 + $0x118] sm:$0xff]
  %v8095 = vld [vmem:[%s5 + $0x120] sm:$0xff]
  %v8096 = vld [vmem:[%s5 + $0x128] sm:$0xff]
  %v8097 = vld [vmem:[%s5 + $0x130] sm:$0xff]
  %v8098 = vld [vmem:[%s5 + $0x138] sm:$0xff]
  %v8099 = vld [vmem:[%s5 + $0x140] sm:$0xff]
  %v8100 = vld [vmem:[%s5 + $0x148] sm:$0xff]
  %v8101 = vld [vmem:[%s5 + $0x150] sm:$0xff]
  %v8102 = vld [vmem:[%s5 + $0x158] sm:$0xff]
  %v8103 = vld [vmem:[%s5 + $0x160] sm:$0xff]
  %v8104 = vld [vmem:[%s5 + $0x168] sm:$0xff]
  %v8105 = vld [vmem:[%s5 + $0x170] sm:$0xff]
  %v8106 = vld [vmem:[%s5 + $0x178] sm:$0xff]
  %v8107 = vld [vmem:[%s5 + $0x180] sm:$0xff]
  %v8108 = vld [vmem:[%s5 + $0x188] sm:$0xff]
  %v8109 = vld [vmem:[%s5 + $0x190] sm:$0xff]
  %v8110 = vld [vmem:[%s5 + $0x198] sm:$0xff]
  %v8111 = vld [vmem:[%s5 + $0x1a0] sm:$0xff]
  %v8112 = vld [vmem:[%s5 + $0x1a8] sm:$0xff]
  %v8113 = vld [vmem:[%s5 + $0x1b0] sm:$0xff]
  %v8114 = vld [vmem:[%s5 + $0x1b8] sm:$0xff]
  %v8115 = vld [vmem:[%s5 + $0x1c0] sm:$0xff]
  %v8116 = vld [vmem:[%s5 + $0x1c8] sm:$0xff]
  %v8117 = vld [vmem:[%s5 + $0x1d0] sm:$0xff]
  %v8118 = vld [vmem:[%s5 + $0x1d8] sm:$0xff]
  %v8119 = vld [vmem:[%s5 + $0x1e0] sm:$0xff]
  %v8120 = vld [vmem:[%s5 + $0x1e8] sm:$0xff]
  %v8121 = vld [vmem:[%s5 + $0x1f0] sm:$0xff]
  %v8122 = vld [vmem:[%s5 + $0x1f8] sm:$0xff]
  %v8123 = vld [vmem:[%s6] sm:$0x3]
  %v8125 = vlaneseq
  %v8126 = vshrl.u32 %v8125, 7
  %v8127 = vsub.s32 0, %v8126
  %v8128 = vrot.slane %v8123, %v8127
  %v8129 = vlaneseq
  %v8130 = vshrl.u32 %v8129, 7
  %v8131 = vsub.s32 1, %v8130
  %v8132 = vrot.slane %v8123, %v8131
  %v8199 = vunpack.c.l.b16 %v8059
  %v8200 = vunpack.c.h.b16 %v8059
  %v8201 = vunpack.c.l.b16 %v8060
  %v8202 = vunpack.c.h.b16 %v8060
  %v8203 = vunpack.c.l.b16 %v8061
  %v8204 = vunpack.c.h.b16 %v8061
  %v8205 = vunpack.c.l.b16 %v8062
  %v8206 = vunpack.c.h.b16 %v8062
  %v8207 = vunpack.c.l.b16 %v8063
  %v8208 = vunpack.c.h.b16 %v8063
  %v8209 = vunpack.c.l.b16 %v8064
  %v8210 = vunpack.c.h.b16 %v8064
  %v8211 = vunpack.c.l.b16 %v8065
  %v8212 = vunpack.c.h.b16 %v8065
  %v8213 = vunpack.c.l.b16 %v8066
  %v8214 = vunpack.c.h.b16 %v8066
  %v8215 = vunpack.c.l.b16 %v8067
  %v8216 = vunpack.c.h.b16 %v8067
  %v8217 = vunpack.c.l.b16 %v8068
  %v8218 = vunpack.c.h.b16 %v8068
  %v8219 = vunpack.c.l.b16 %v8069
  %v8220 = vunpack.c.h.b16 %v8069
  %v8221 = vunpack.c.l.b16 %v8070
  %v8222 = vunpack.c.h.b16 %v8070
  %v8223 = vunpack.c.l.b16 %v8071
  %v8224 = vunpack.c.h.b16 %v8071
  %v8225 = vunpack.c.l.b16 %v8072
  %v8226 = vunpack.c.h.b16 %v8072
  %v8227 = vunpack.c.l.b16 %v8073
  %v8228 = vunpack.c.h.b16 %v8073
  %v8229 = vunpack.c.l.b16 %v8074
  %v8230 = vunpack.c.h.b16 %v8074
  %v8231 = vunpack.c.l.b16 %v8075
  %v8232 = vunpack.c.h.b16 %v8075
  %v8233 = vunpack.c.l.b16 %v8076
  %v8234 = vunpack.c.h.b16 %v8076
  %v8235 = vunpack.c.l.b16 %v8077
  %v8236 = vunpack.c.h.b16 %v8077
  %v8237 = vunpack.c.l.b16 %v8078
  %v8238 = vunpack.c.h.b16 %v8078
  %v8239 = vunpack.c.l.b16 %v8079
  %v8240 = vunpack.c.h.b16 %v8079
  %v8241 = vunpack.c.l.b16 %v8080
  %v8242 = vunpack.c.h.b16 %v8080
  %v8243 = vunpack.c.l.b16 %v8081
  %v8244 = vunpack.c.h.b16 %v8081
  %v8245 = vunpack.c.l.b16 %v8082
  %v8246 = vunpack.c.h.b16 %v8082
  %v8247 = vunpack.c.l.b16 %v8083
  %v8248 = vunpack.c.h.b16 %v8083
  %v8249 = vunpack.c.l.b16 %v8084
  %v8250 = vunpack.c.h.b16 %v8084
  %v8251 = vunpack.c.l.b16 %v8085
  %v8252 = vunpack.c.h.b16 %v8085
  %v8253 = vunpack.c.l.b16 %v8086
  %v8254 = vunpack.c.h.b16 %v8086
  %v8255 = vunpack.c.l.b16 %v8087
  %v8256 = vunpack.c.h.b16 %v8087
  %v8257 = vunpack.c.l.b16 %v8088
  %v8258 = vunpack.c.h.b16 %v8088
  %v8259 = vunpack.c.l.b16 %v8089
  %v8260 = vunpack.c.h.b16 %v8089
  %v8261 = vunpack.c.l.b16 %v8090
  %v8262 = vunpack.c.h.b16 %v8090
  %v8263 = vunpack.c.l.b16 %v8091
  %v8264 = vunpack.c.h.b16 %v8091
  %v8265 = vunpack.c.l.b16 %v8092
  %v8266 = vunpack.c.h.b16 %v8092
  %v8267 = vunpack.c.l.b16 %v8093
  %v8268 = vunpack.c.h.b16 %v8093
  %v8269 = vunpack.c.l.b16 %v8094
  %v8270 = vunpack.c.h.b16 %v8094
  %v8271 = vunpack.c.l.b16 %v8095
  %v8272 = vunpack.c.h.b16 %v8095
  %v8273 = vunpack.c.l.b16 %v8096
  %v8274 = vunpack.c.h.b16 %v8096
  %v8275 = vunpack.c.l.b16 %v8097
  %v8276 = vunpack.c.h.b16 %v8097
  %v8277 = vunpack.c.l.b16 %v8098
  %v8278 = vunpack.c.h.b16 %v8098
  %v8279 = vunpack.c.l.b16 %v8099
  %v8280 = vunpack.c.h.b16 %v8099
  %v8281 = vunpack.c.l.b16 %v8100
  %v8282 = vunpack.c.h.b16 %v8100
  %v8283 = vunpack.c.l.b16 %v8101
  %v8284 = vunpack.c.h.b16 %v8101
  %v8285 = vunpack.c.l.b16 %v8102
  %v8286 = vunpack.c.h.b16 %v8102
  %v8287 = vunpack.c.l.b16 %v8103
  %v8288 = vunpack.c.h.b16 %v8103
  %v8289 = vunpack.c.l.b16 %v8104
  %v8290 = vunpack.c.h.b16 %v8104
  %v8291 = vunpack.c.l.b16 %v8105
  %v8292 = vunpack.c.h.b16 %v8105
  %v8293 = vunpack.c.l.b16 %v8106
  %v8294 = vunpack.c.h.b16 %v8106
  %v8295 = vunpack.c.l.b16 %v8107
  %v8296 = vunpack.c.h.b16 %v8107
  %v8297 = vunpack.c.l.b16 %v8108
  %v8298 = vunpack.c.h.b16 %v8108
  %v8299 = vunpack.c.l.b16 %v8109
  %v8300 = vunpack.c.h.b16 %v8109
  %v8301 = vunpack.c.l.b16 %v8110
  %v8302 = vunpack.c.h.b16 %v8110
  %v8303 = vunpack.c.l.b16 %v8111
  %v8304 = vunpack.c.h.b16 %v8111
  %v8305 = vunpack.c.l.b16 %v8112
  %v8306 = vunpack.c.h.b16 %v8112
  %v8307 = vunpack.c.l.b16 %v8113
  %v8308 = vunpack.c.h.b16 %v8113
  %v8309 = vunpack.c.l.b16 %v8114
  %v8310 = vunpack.c.h.b16 %v8114
  %v8311 = vunpack.c.l.b16 %v8115
  %v8312 = vunpack.c.h.b16 %v8115
  %v8313 = vunpack.c.l.b16 %v8116
  %v8314 = vunpack.c.h.b16 %v8116
  %v8315 = vunpack.c.l.b16 %v8117
  %v8316 = vunpack.c.h.b16 %v8117
  %v8317 = vunpack.c.l.b16 %v8118
  %v8318 = vunpack.c.h.b16 %v8118
  %v8319 = vunpack.c.l.b16 %v8119
  %v8320 = vunpack.c.h.b16 %v8119
  %v8321 = vunpack.c.l.b16 %v8120
  %v8322 = vunpack.c.h.b16 %v8120
  %v8323 = vunpack.c.l.b16 %v8121
  %v8324 = vunpack.c.h.b16 %v8121
  %v8325 = vunpack.c.l.b16 %v8122
  %v8326 = vunpack.c.h.b16 %v8122
  %v8327 = vpack.c.b16 %v8201, %v8199
  %v8328 = vpack.c.b16 %v8202, %v8200
  %v8329 = vpack.c.b16 %v8205, %v8203
  %v8330 = vpack.c.b16 %v8206, %v8204
  %v8331 = vpack.c.b16 %v8209, %v8207
  %v8332 = vpack.c.b16 %v8210, %v8208
  %v8333 = vpack.c.b16 %v8213, %v8211
  %v8334 = vpack.c.b16 %v8214, %v8212
  %v8335 = vpack.c.b16 %v8217, %v8215
  %v8336 = vpack.c.b16 %v8218, %v8216
  %v8337 = vpack.c.b16 %v8221, %v8219
  %v8338 = vpack.c.b16 %v8222, %v8220
  %v8339 = vpack.c.b16 %v8225, %v8223
  %v8340 = vpack.c.b16 %v8226, %v8224
  %v8341 = vpack.c.b16 %v8229, %v8227
  %v8342 = vpack.c.b16 %v8230, %v8228
  %v8343 = vpack.c.b16 %v8233, %v8231
  %v8344 = vpack.c.b16 %v8234, %v8232
  %v8345 = vpack.c.b16 %v8237, %v8235
  %v8346 = vpack.c.b16 %v8238, %v8236
  %v8347 = vpack.c.b16 %v8241, %v8239
  %v8348 = vpack.c.b16 %v8242, %v8240
  %v8349 = vpack.c.b16 %v8245, %v8243
  %v8350 = vpack.c.b16 %v8246, %v8244
  %v8351 = vpack.c.b16 %v8249, %v8247
  %v8352 = vpack.c.b16 %v8250, %v8248
  %v8353 = vpack.c.b16 %v8253, %v8251
  %v8354 = vpack.c.b16 %v8254, %v8252
  %v8355 = vpack.c.b16 %v8257, %v8255
  %v8356 = vpack.c.b16 %v8258, %v8256
  %v8357 = vpack.c.b16 %v8261, %v8259
  %v8358 = vpack.c.b16 %v8262, %v8260
  %v8359 = vpack.c.b16 %v8265, %v8263
  %v8360 = vpack.c.b16 %v8266, %v8264
  %v8361 = vpack.c.b16 %v8269, %v8267
  %v8362 = vpack.c.b16 %v8270, %v8268
  %v8363 = vpack.c.b16 %v8273, %v8271
  %v8364 = vpack.c.b16 %v8274, %v8272
  %v8365 = vpack.c.b16 %v8277, %v8275
  %v8366 = vpack.c.b16 %v8278, %v8276
  %v8367 = vpack.c.b16 %v8281, %v8279
  %v8368 = vpack.c.b16 %v8282, %v8280
  %v8369 = vpack.c.b16 %v8285, %v8283
  %v8370 = vpack.c.b16 %v8286, %v8284
  %v8371 = vpack.c.b16 %v8289, %v8287
  %v8372 = vpack.c.b16 %v8290, %v8288
  %v8373 = vpack.c.b16 %v8293, %v8291
  %v8374 = vpack.c.b16 %v8294, %v8292
  %v8375 = vpack.c.b16 %v8297, %v8295
  %v8376 = vpack.c.b16 %v8298, %v8296
  %v8377 = vpack.c.b16 %v8301, %v8299
  %v8378 = vpack.c.b16 %v8302, %v8300
  %v8379 = vpack.c.b16 %v8305, %v8303
  %v8380 = vpack.c.b16 %v8306, %v8304
  %v8381 = vpack.c.b16 %v8309, %v8307
  %v8382 = vpack.c.b16 %v8310, %v8308
  %v8383 = vpack.c.b16 %v8313, %v8311
  %v8384 = vpack.c.b16 %v8314, %v8312
  %v8385 = vpack.c.b16 %v8317, %v8315
  %v8386 = vpack.c.b16 %v8318, %v8316
  %v8387 = vpack.c.b16 %v8321, %v8319
  %v8388 = vpack.c.b16 %v8322, %v8320
  %v8389 = vpack.c.b16 %v8325, %v8323
  %v8390 = vpack.c.b16 %v8326, %v8324
  %8455 = vmatprep.subr.bf16.mxu0 %v8328
  %8456 = vmatpush1.bf16.msra.mxu0 %v8327
  %8457 = vmatprep.subr.bf16.mxu0 %v8330
  %8458 = vmatpush1.bf16.msra.mxu0 %v8329
  %8459 = vmatprep.subr.bf16.mxu0 %v8332
  %8460 = vmatpush1.bf16.msra.mxu0 %v8331
  %8461 = vmatprep.subr.bf16.mxu0 %v8334
  %8462 = vmatpush1.bf16.msra.mxu0 %v8333
  %8463 = vmatprep.subr.bf16.mxu0 %v8336
  %8464 = vmatpush1.bf16.msra.mxu0 %v8335
  %8465 = vmatprep.subr.bf16.mxu0 %v8338
  %8466 = vmatpush1.bf16.msra.mxu0 %v8337
  %8467 = vmatprep.subr.bf16.mxu0 %v8340
  %8468 = vmatpush1.bf16.msra.mxu0 %v8339
  %8469 = vmatprep.subr.bf16.mxu0 %v8342
  %8470 = vmatpush1.bf16.msra.mxu0 %v8341
  %8471 = vmatprep.subr.bf16.mxu0 %v8344
  %8472 = vmatpush1.bf16.msra.mxu0 %v8343
  %8473 = vmatprep.subr.bf16.mxu0 %v8346
  %8474 = vmatpush1.bf16.msra.mxu0 %v8345
  %8475 = vmatprep.subr.bf16.mxu0 %v8348
  %8476 = vmatpush1.bf16.msra.mxu0 %v8347
  %8477 = vmatprep.subr.bf16.mxu0 %v8350
  %8478 = vmatpush1.bf16.msra.mxu0 %v8349
  %8479 = vmatprep.subr.bf16.mxu0 %v8352
  %8480 = vmatpush1.bf16.msra.mxu0 %v8351
  %8481 = vmatprep.subr.bf16.mxu0 %v8354
  %8482 = vmatpush1.bf16.msra.mxu0 %v8353
  %8483 = vmatprep.subr.bf16.mxu0 %v8356
  %8484 = vmatpush1.bf16.msra.mxu0 %v8355
  %8485 = vmatprep.subr.bf16.mxu0 %v8358
  %8486 = vmatpush1.bf16.msra.mxu0 %v8357
  %8487 = vmatprep.mubr.bf16.mxu0 %v8028
  %8488 = vmatmul.mubr.bf16.gmra.mrb[0].mxu0 %v8027
  %v8489 = vpop.f32.mrb[0].mxu0
  %v8490 = vadd.f32 %v8128, %v8489
  %v8491 = vpop.f32.mrb[0].mxu0
  %v8492 = vadd.f32 %v8132, %v8491
  %v8493 = vpop.f32.mrb[0].mxu0
  %v8494 = vadd.f32 %v8128, %v8493
  %v8495 = vpop.f32.mrb[0].mxu0
  %v8496 = vadd.f32 %v8132, %v8495
  %8497 = vmatprep.mubr.bf16.mxu0 %v8032
  %8498 = vmatmul.mubr.bf16.gmra.mrb[0].mxu0 %v8031
  %v8499 = vpop.f32.mrb[0].mxu0
  %v8500 = vadd.f32 %v8128, %v8499
  %v8501 = vpop.f32.mrb[0].mxu0
  %v8502 = vadd.f32 %v8132, %v8501
  %v8503 = vpop.f32.mrb[0].mxu0
  %v8504 = vadd.f32 %v8128, %v8503
  %v8505 = vpop.f32.mrb[0].mxu0
  %v8506 = vadd.f32 %v8132, %v8505
  %8507 = vmatprep.mubr.bf16.mxu0 %v8036
  %8508 = vmatmul.mubr.bf16.gmra.mrb[0].mxu0 %v8035
  %v8509 = vpop.f32.mrb[0].mxu0
  %v8510 = vadd.f32 %v8128, %v8509
  %v8511 = vpop.f32.mrb[0].mxu0
  %v8512 = vadd.f32 %v8132, %v8511
  %v8513 = vpop.f32.mrb[0].mxu0
  %v8514 = vadd.f32 %v8128, %v8513
  %v8515 = vpop.f32.mrb[0].mxu0
  %v8516 = vadd.f32 %v8132, %v8515
  %8517 = vmatprep.mubr.bf16.mxu0 %v8040
  %8518 = vmatmul.mubr.bf16.gmra.mrb[0].mxu0 %v8039
  %v8519 = vpop.f32.mrb[0].mxu0
  %v8520 = vadd.f32 %v8128, %v8519
  %v8521 = vpop.f32.mrb[0].mxu0
  %v8522 = vadd.f32 %v8132, %v8521
  %v8523 = vpop.f32.mrb[0].mxu0
  %v8524 = vadd.f32 %v8128, %v8523
  %v8525 = vpop.f32.mrb[0].mxu0
  %v8526 = vadd.f32 %v8132, %v8525
  %8527 = vmatprep.mubr.bf16.mxu0 %v8044
  %8528 = vmatmul.mubr.bf16.gmra.mrb[0].mxu0 %v8043
  %v8529 = vpop.f32.mrb[0].mxu0
  %v8530 = vadd.f32 %v8128, %v8529
  %v8531 = vpop.f32.mrb[0].mxu0
  %v8532 = vadd.f32 %v8132, %v8531
  %v8533 = vpop.f32.mrb[0].mxu0
  %v8534 = vadd.f32 %v8128, %v8533
  %v8535 = vpop.f32.mrb[0].mxu0
  %v8536 = vadd.f32 %v8132, %v8535
  %8537 = vmatprep.mubr.bf16.mxu0 %v8048
  %8538 = vmatmul.mubr.bf16.gmra.mrb[0].mxu0 %v8047
  %v8539 = vpop.f32.mrb[0].mxu0
  %v8540 = vadd.f32 %v8128, %v8539
  %v8541 = vpop.f32.mrb[0].mxu0
  %v8542 = vadd.f32 %v8132, %v8541
  %v8543 = vpop.f32.mrb[0].mxu0
  %v8544 = vadd.f32 %v8128, %v8543
  %v8545 = vpop.f32.mrb[0].mxu0
  %v8546 = vadd.f32 %v8132, %v8545
  %8547 = vmatprep.mubr.bf16.mxu0 %v8052
  %8548 = vmatmul.mubr.bf16.gmra.mrb[0].mxu0 %v8051
  %v8549 = vpop.f32.mrb[0].mxu0
  %v8550 = vadd.f32 %v8128, %v8549
  %v8551 = vpop.f32.mrb[0].mxu0
  %v8552 = vadd.f32 %v8132, %v8551
  %v8553 = vpop.f32.mrb[0].mxu0
  %v8554 = vadd.f32 %v8128, %v8553
  %v8555 = vpop.f32.mrb[0].mxu0
  %v8556 = vadd.f32 %v8132, %v8555
  %8557 = vmatprep.mubr.bf16.mxu0 %v8056
  %8558 = vmatmul.mubr.bf16.gmra.mrb[0].mxu0 %v8055
  %v8559 = vpop.f32.mrb[0].mxu0
  %v8560 = vadd.f32 %v8128, %v8559
  %v8561 = vpop.f32.mrb[0].mxu0
  %v8562 = vadd.f32 %v8132, %v8561
  %v8563 = vpop.f32.mrb[0].mxu0
  %v8564 = vadd.f32 %v8128, %v8563
  %v8565 = vpop.f32.mrb[0].mxu0
  %v8566 = vadd.f32 %v8132, %v8565
  %8567 = vdwg.mxu0
  %8568 = vmatprep.subr.bf16.mxu0 %v8360
  %8569 = vmatpush1.bf16.msra.mxu0 %v8359
  %8570 = vmatprep.subr.bf16.mxu0 %v8362
  %8571 = vmatpush1.bf16.msra.mxu0 %v8361
  %8572 = vmatprep.subr.bf16.mxu0 %v8364
  %8573 = vmatpush1.bf16.msra.mxu0 %v8363
  %8574 = vmatprep.subr.bf16.mxu0 %v8366
  %8575 = vmatpush1.bf16.msra.mxu0 %v8365
  %8576 = vmatprep.subr.bf16.mxu0 %v8368
  %8577 = vmatpush1.bf16.msra.mxu0 %v8367
  %8578 = vmatprep.subr.bf16.mxu0 %v8370
  %8579 = vmatpush1.bf16.msra.mxu0 %v8369
  %8580 = vmatprep.subr.bf16.mxu0 %v8372
  %8581 = vmatpush1.bf16.msra.mxu0 %v8371
  %8582 = vmatprep.subr.bf16.mxu0 %v8374
  %8583 = vmatpush1.bf16.msra.mxu0 %v8373
  %8584 = vmatprep.subr.bf16.mxu0 %v8376
  %8585 = vmatpush1.bf16.msra.mxu0 %v8375
  %8586 = vmatprep.subr.bf16.mxu0 %v8378
  %8587 = vmatpush1.bf16.msra.mxu0 %v8377
  %8588 = vmatprep.subr.bf16.mxu0 %v8380
  %8589 = vmatpush1.bf16.msra.mxu0 %v8379
  %8590 = vmatprep.subr.bf16.mxu0 %v8382
  %8591 = vmatpush1.bf16.msra.mxu0 %v8381
  %8592 = vmatprep.subr.bf16.mxu0 %v8384
  %8593 = vmatpush1.bf16.msra.mxu0 %v8383
  %8594 = vmatprep.subr.bf16.mxu0 %v8386
  %8595 = vmatpush1.bf16.msra.mxu0 %v8385
  %8596 = vmatprep.subr.bf16.mxu0 %v8388
  %8597 = vmatpush1.bf16.msra.mxu0 %v8387
  %8598 = vmatprep.subr.bf16.mxu0 %v8390
  %8599 = vmatpush1.bf16.msra.mxu0 %v8389
  %8600 = vmatprep.mubr.bf16.mxu0 %v8030
  %8601 = vmatmul.mubr.bf16.gmra.mrb[0].mxu0 %v8029
  %v8602 = vpop.f32.mrb[0].mxu0
  %v8603 = vadd.f32 %v8490, %v8602
  %v8604 = vpop.f32.mrb[0].mxu0
  %v8605 = vadd.f32 %v8492, %v8604
  %v8606 = vpop.f32.mrb[0].mxu0
  %v8607 = vadd.f32 %v8494, %v8606
  %v8608 = vpop.f32.mrb[0].mxu0
  %v8609 = vadd.f32 %v8496, %v8608
  %8610 = vmatprep.mubr.bf16.mxu0 %v8034
  %8611 = vmatmul.mubr.bf16.gmra.mrb[0].mxu0 %v8033
  %v8612 = vpop.f32.mrb[0].mxu0
  %v8613 = vadd.f32 %v8500, %v8612
  %v8614 = vpop.f32.mrb[0].mxu0
  %v8615 = vadd.f32 %v8502, %v8614
  %v8616 = vpop.f32.mrb[0].mxu0
  %v8617 = vadd.f32 %v8504, %v8616
  %v8618 = vpop.f32.mrb[0].mxu0
  %v8619 = vadd.f32 %v8506, %v8618
  %8620 = vmatprep.mubr.bf16.mxu0 %v8038
  %8621 = vmatmul.mubr.bf16.gmra.mrb[0].mxu0 %v8037
  %v8622 = vpop.f32.mrb[0].mxu0
  %v8623 = vadd.f32 %v8510, %v8622
  %v8624 = vpop.f32.mrb[0].mxu0
  %v8625 = vadd.f32 %v8512, %v8624
  %v8626 = vpop.f32.mrb[0].mxu0
  %v8627 = vadd.f32 %v8514, %v8626
  %v8628 = vpop.f32.mrb[0].mxu0
  %v8629 = vadd.f32 %v8516, %v8628
  %8630 = vmatprep.mubr.bf16.mxu0 %v8042
  %8631 = vmatmul.mubr.bf16.gmra.mrb[0].mxu0 %v8041
  %v8632 = vpop.f32.mrb[0].mxu0
  %v8633 = vadd.f32 %v8520, %v8632
  %v8634 = vpop.f32.mrb[0].mxu0
  %v8635 = vadd.f32 %v8522, %v8634
  %v8636 = vpop.f32.mrb[0].mxu0
  %v8637 = vadd.f32 %v8524, %v8636
  %v8638 = vpop.f32.mrb[0].mxu0
  %v8639 = vadd.f32 %v8526, %v8638
  %8640 = vmatprep.mubr.bf16.mxu0 %v8046
  %8641 = vmatmul.mubr.bf16.gmra.mrb[0].mxu0 %v8045
  %v8642 = vpop.f32.mrb[0].mxu0
  %v8643 = vadd.f32 %v8530, %v8642
  %v8644 = vpop.f32.mrb[0].mxu0
  %v8645 = vadd.f32 %v8532, %v8644
  %v8646 = vpop.f32.mrb[0].mxu0
  %v8647 = vadd.f32 %v8534, %v8646
  %v8648 = vpop.f32.mrb[0].mxu0
  %v8649 = vadd.f32 %v8536, %v8648
  %8650 = vmatprep.mubr.bf16.mxu0 %v8050
  %8651 = vmatmul.mubr.bf16.gmra.mrb[0].mxu0 %v8049
  %v8652 = vpop.f32.mrb[0].mxu0
  %v8653 = vadd.f32 %v8540, %v8652
  %v8654 = vpop.f32.mrb[0].mxu0
  %v8655 = vadd.f32 %v8542, %v8654
  %v8656 = vpop.f32.mrb[0].mxu0
  %v8657 = vadd.f32 %v8544, %v8656
  %v8658 = vpop.f32.mrb[0].mxu0
  %v8659 = vadd.f32 %v8546, %v8658
  %8660 = vmatprep.mubr.bf16.mxu0 %v8054
  %8661 = vmatmul.mubr.bf16.gmra.mrb[0].mxu0 %v8053
  %v8662 = vpop.f32.mrb[0].mxu0
  %v8663 = vadd.f32 %v8550, %v8662
  %v8664 = vpop.f32.mrb[0].mxu0
  %v8665 = vadd.f32 %v8552, %v8664
  %v8666 = vpop.f32.mrb[0].mxu0
  %v8667 = vadd.f32 %v8554, %v8666
  %v8668 = vpop.f32.mrb[0].mxu0
  %v8669 = vadd.f32 %v8556, %v8668
  %8670 = vmatprep.mubr.bf16.mxu0 %v8058
  %8671 = vmatmul.mubr.bf16.gmra.mrb[0].mxu0 %v8057
  %v8672 = vpop.f32.mrb[0].mxu0
  %v8673 = vadd.f32 %v8560, %v8672
  %v8674 = vpop.f32.mrb[0].mxu0
  %v8675 = vadd.f32 %v8562, %v8674
  %v8676 = vpop.f32.mrb[0].mxu0
  %v8677 = vadd.f32 %v8564, %v8676
  %v8678 = vpop.f32.mrb[0].mxu0
  %v8679 = vadd.f32 %v8566, %v8678
  %8680 = vdwg.mxu0
  %vm8681 = vcmp.gt.f32.partialorder %v8603, 0.0
  %vm8682 = vcmp.gt.f32.partialorder %v8605, 0.0
  %vm8683 = vcmp.gt.f32.partialorder %v8607, 0.0
  %vm8684 = vcmp.gt.f32.partialorder %v8609, 0.0
  %vm8685 = vcmp.gt.f32.partialorder %v8613, 0.0
  %vm8686 = vcmp.gt.f32.partialorder %v8615, 0.0
  %vm8687 = vcmp.gt.f32.partialorder %v8617, 0.0
  %vm8688 = vcmp.gt.f32.partialorder %v8619, 0.0
  %vm8689 = vcmp.gt.f32.partialorder %v8623, 0.0
  %vm8690 = vcmp.gt.f32.partialorder %v8625, 0.0
  %vm8691 = vcmp.gt.f32.partialorder %v8627, 0.0
  %vm8692 = vcmp.gt.f32.partialorder %v8629, 0.0
  %vm8693 = vcmp.gt.f32.partialorder %v8633, 0.0
  %vm8694 = vcmp.gt.f32.partialorder %v8635, 0.0
  %vm8695 = vcmp.gt.f32.partialorder %v8637, 0.0
  %vm8696 = vcmp.gt.f32.partialorder %v8639, 0.0
  %vm8697 = vcmp.gt.f32.partialorder %v8643, 0.0
  %vm8698 = vcmp.gt.f32.partialorder %v8645, 0.0
  %vm8699 = vcmp.gt.f32.partialorder %v8647, 0.0
  %vm8700 = vcmp.gt.f32.partialorder %v8649, 0.0
  %vm8701 = vcmp.gt.f32.partialorder %v8653, 0.0
  %vm8702 = vcmp.gt.f32.partialorder %v8655, 0.0
  %vm8703 = vcmp.gt.f32.partialorder %v8657, 0.0
  %vm8704 = vcmp.gt.f32.partialorder %v8659, 0.0
  %vm8705 = vcmp.gt.f32.partialorder %v8663, 0.0
  %vm8706 = vcmp.gt.f32.partialorder %v8665, 0.0
  %vm8707 = vcmp.gt.f32.partialorder %v8667, 0.0
  %vm8708 = vcmp.gt.f32.partialorder %v8669, 0.0
  %vm8709 = vcmp.gt.f32.partialorder %v8673, 0.0
  %vm8710 = vcmp.gt.f32.partialorder %v8675, 0.0
  %vm8711 = vcmp.gt.f32.partialorder %v8677, 0.0
  %vm8712 = vcmp.gt.f32.partialorder %v8679, 0.0
  %v8713 = vmul.f32 %v8603, 0.2
  %v8714 = vmul.f32 %v8605, 0.2
  %v8715 = vmul.f32 %v8607, 0.2
  %v8716 = vmul.f32 %v8609, 0.2
  %v8717 = vmul.f32 %v8613, 0.2
  %v8718 = vmul.f32 %v8615, 0.2
  %v8719 = vmul.f32 %v8617, 0.2
  %v8720 = vmul.f32 %v8619, 0.2
  %v8721 = vmul.f32 %v8623, 0.2
  %v8722 = vmul.f32 %v8625, 0.2
  %v8723 = vmul.f32 %v8627, 0.2
  %v8724 = vmul.f32 %v8629, 0.2
  %v8725 = vmul.f32 %v8633, 0.2
  %v8726 = vmul.f32 %v8635, 0.2
  %v8727 = vmul.f32 %v8637, 0.2
  %v8728 = vmul.f32 %v8639, 0.2
  %v8729 = vmul.f32 %v8643, 0.2
  %v8730 = vmul.f32 %v8645, 0.2
  %v8731 = vmul.f32 %v8647, 0.2
  %v8732 = vmul.f32 %v8649, 0.2
  %v8733 = vmul.f32 %v8653, 0.2
  %v8734 = vmul.f32 %v8655, 0.2
  %v8735 = vmul.f32 %v8657, 0.2
  %v8736 = vmul.f32 %v8659, 0.2
  %v8737 = vmul.f32 %v8663, 0.2
  %v8738 = vmul.f32 %v8665, 0.2
  %v8739 = vmul.f32 %v8667, 0.2
  %v8740 = vmul.f32 %v8669, 0.2
  %v8741 = vmul.f32 %v8673, 0.2
  %v8742 = vmul.f32 %v8675, 0.2
  %v8743 = vmul.f32 %v8677, 0.2
  %v8744 = vmul.f32 %v8679, 0.2
  %v8745 = vsel %vm8681, %v8603, %v8713
  %v8746 = vsel %vm8682, %v8605, %v8714
  %v8747 = vsel %vm8683, %v8607, %v8715
  %v8748 = vsel %vm8684, %v8609, %v8716
  %v8749 = vsel %vm8685, %v8613, %v8717
  %v8750 = vsel %vm8686, %v8615, %v8718
  %v8751 = vsel %vm8687, %v8617, %v8719
  %v8752 = vsel %vm8688, %v8619, %v8720
  %v8753 = vsel %vm8689, %v8623, %v8721
  %v8754 = vsel %vm8690, %v8625, %v8722
  %v8755 = vsel %vm8691, %v8627, %v8723
  %v8756 = vsel %vm8692, %v8629, %v8724
  %v8757 = vsel %vm8693, %v8633, %v8725
  %v8758 = vsel %vm8694, %v8635, %v8726
  %v8759 = vsel %vm8695, %v8637, %v8727
  %v8760 = vsel %vm8696, %v8639, %v8728
  %v8761 = vsel %vm8697, %v8643, %v8729
  %v8762 = vsel %vm8698, %v8645, %v8730
  %v8763 = vsel %vm8699, %v8647, %v8731
  %v8764 = vsel %vm8700, %v8649, %v8732
  %v8765 = vsel %vm8701, %v8653, %v8733
  %v8766 = vsel %vm8702, %v8655, %v8734
  %v8767 = vsel %vm8703, %v8657, %v8735
  %v8768 = vsel %vm8704, %v8659, %v8736
  %v8769 = vsel %vm8705, %v8663, %v8737
  %v8770 = vsel %vm8706, %v8665, %v8738
  %v8771 = vsel %vm8707, %v8667, %v8739
  %v8772 = vsel %vm8708, %v8669, %v8740
  %v8773 = vsel %vm8709, %v8673, %v8741
  %v8774 = vsel %vm8710, %v8675, %v8742
  %v8775 = vsel %vm8711, %v8677, %v8743
  %v8776 = vsel %vm8712, %v8679, %v8744
  %v8777 = vld [vmem:[%s7] sm:$0x3]
  %v8779 = vlaneseq
  %v8780 = vshrl.u32 %v8779, 7
  %v8781 = vsub.s32 0, %v8780
  %v8782 = vrot.slane %v8777, %v8781
  %v8783 = vlaneseq
  %v8784 = vshrl.u32 %v8783, 7
  %v8785 = vsub.s32 1, %v8784
  %v8786 = vrot.slane %v8777, %v8785
  %v8789 = vmul.f32 %v8745, %v8782
  %v8790 = vmul.f32 %v8746, %v8786
  %v8791 = vmul.f32 %v8747, %v8782
  %v8792 = vmul.f32 %v8748, %v8786
  %v8793 = vmul.f32 %v8749, %v8782
  %v8794 = vmul.f32 %v8750, %v8786
  %v8795 = vmul.f32 %v8751, %v8782
  %v8796 = vmul.f32 %v8752, %v8786
  %v8797 = vmul.f32 %v8753, %v8782
  %v8798 = vmul.f32 %v8754, %v8786
  %v8799 = vmul.f32 %v8755, %v8782
  %v8800 = vmul.f32 %v8756, %v8786
  %v8801 = vmul.f32 %v8757, %v8782
  %v8802 = vmul.f32 %v8758, %v8786
  %v8803 = vmul.f32 %v8759, %v8782
  %v8804 = vmul.f32 %v8760, %v8786
  %v8805 = vmul.f32 %v8761, %v8782
  %v8806 = vmul.f32 %v8762, %v8786
  %v8807 = vmul.f32 %v8763, %v8782
  %v8808 = vmul.f32 %v8764, %v8786
  %v8809 = vmul.f32 %v8765, %v8782
  %v8810 = vmul.f32 %v8766, %v8786
  %v8811 = vmul.f32 %v8767, %v8782
  %v8812 = vmul.f32 %v8768, %v8786
  %v8813 = vmul.f32 %v8769, %v8782
  %v8814 = vmul.f32 %v8770, %v8786
  %v8815 = vmul.f32 %v8771, %v8782
  %v8816 = vmul.f32 %v8772, %v8786
  %v8817 = vmul.f32 %v8773, %v8782
  %v8818 = vmul.f32 %v8774, %v8786
  %v8819 = vmul.f32 %v8775, %v8782
  %v8820 = vmul.f32 %v8776, %v8786
  %v8821 = vadd.f32 %v8789, %v8790
  %8822 = vadd.xlane.f32.xlu0 %v8821
  %v8823 = vpop.xlane.xlu0 %8822
  %v8824 = vadd.f32 %v8791, %v8792
  %8825 = vadd.xlane.f32.xlu0 %v8824
  %v8826 = vpop.xlane.xlu0 %8825
  %v8827 = vadd.f32 %v8793, %v8794
  %8828 = vadd.xlane.f32.xlu0 %v8827
  %v8829 = vpop.xlane.xlu0 %8828
  %v8830 = vadd.f32 %v8795, %v8796
  %8831 = vadd.xlane.f32.xlu0 %v8830
  %v8832 = vpop.xlane.xlu0 %8831
  %v8833 = vadd.f32 %v8797, %v8798
  %8834 = vadd.xlane.f32.xlu0 %v8833
  %v8835 = vpop.xlane.xlu0 %8834
  %v8836 = vadd.f32 %v8799, %v8800
  %8837 = vadd.xlane.f32.xlu0 %v8836
  %v8838 = vpop.xlane.xlu0 %8837
  %v8839 = vadd.f32 %v8801, %v8802
  %8840 = vadd.xlane.f32.xlu0 %v8839
  %v8841 = vpop.xlane.xlu0 %8840
  %v8842 = vadd.f32 %v8803, %v8804
  %8843 = vadd.xlane.f32.xlu0 %v8842
  %v8844 = vpop.xlane.xlu0 %8843
  %v8845 = vadd.f32 %v8805, %v8806
  %8846 = vadd.xlane.f32.xlu0 %v8845
  %v8847 = vpop.xlane.xlu0 %8846
  %v8848 = vadd.f32 %v8807, %v8808
  %8849 = vadd.xlane.f32.xlu0 %v8848
  %v8850 = vpop.xlane.xlu0 %8849
  %v8851 = vadd.f32 %v8809, %v8810
  %8852 = vadd.xlane.f32.xlu0 %v8851
  %v8853 = vpop.xlane.xlu0 %8852
  %v8854 = vadd.f32 %v8811, %v8812
  %8855 = vadd.xlane.f32.xlu0 %v8854
  %v8856 = vpop.xlane.xlu0 %8855
  %v8857 = vadd.f32 %v8813, %v8814
  %8858 = vadd.xlane.f32.xlu0 %v8857
  %v8859 = vpop.xlane.xlu0 %8858
  %v8860 = vadd.f32 %v8815, %v8816
  %8861 = vadd.xlane.f32.xlu0 %v8860
  %v8862 = vpop.xlane.xlu0 %8861
  %v8863 = vadd.f32 %v8817, %v8818
  %8864 = vadd.xlane.f32.xlu0 %v8863
  %v8865 = vpop.xlane.xlu0 %8864
  %v8866 = vadd.f32 %v8819, %v8820
  %8867 = vadd.xlane.f32.xlu0 %v8866
  %v8868 = vpop.xlane.xlu0 %8867
  %v8869 = vld [vmem:[#allocation2] sm:$0x1]
  %v8871 = vlaneseq
  %v8872 = vshrl.u32 %v8871, 7
  %v8873 = vsub.s32 0, %v8872
  %v8874 = vrot.slane %v8869, %v8873
  %v8876 = vadd.f32 %v8823, %v8874
  %v8877 = vadd.f32 %v8826, %v8874
  %v8878 = vadd.f32 %v8829, %v8874
  %v8879 = vadd.f32 %v8832, %v8874
  %v8880 = vadd.f32 %v8835, %v8874
  %v8881 = vadd.f32 %v8838, %v8874
  %v8882 = vadd.f32 %v8841, %v8874
  %v8883 = vadd.f32 %v8844, %v8874
  %v8884 = vadd.f32 %v8847, %v8874
  %v8885 = vadd.f32 %v8850, %v8874
  %v8886 = vadd.f32 %v8853, %v8874
  %v8887 = vadd.f32 %v8856, %v8874
  %v8888 = vadd.f32 %v8859, %v8874
  %v8889 = vadd.f32 %v8862, %v8874
  %v8890 = vadd.f32 %v8865, %v8874
  %v8891 = vadd.f32 %v8868, %v8874
  %v8892 = vsub.f32 0.0, %v8876
  %v8893 = vsub.f32 0.0, %v8877
  %v8894 = vsub.f32 0.0, %v8878
  %v8895 = vsub.f32 0.0, %v8879
  %v8896 = vsub.f32 0.0, %v8880
  %v8897 = vsub.f32 0.0, %v8881
  %v8898 = vsub.f32 0.0, %v8882
  %v8899 = vsub.f32 0.0, %v8883
  %v8900 = vsub.f32 0.0, %v8884
  %v8901 = vsub.f32 0.0, %v8885
  %v8902 = vsub.f32 0.0, %v8886
  %v8903 = vsub.f32 0.0, %v8887
  %v8904 = vsub.f32 0.0, %v8888
  %v8905 = vsub.f32 0.0, %v8889
  %v8906 = vsub.f32 0.0, %v8890
  %v8907 = vsub.f32 0.0, %v8891
  %v8908 = vmul.f32 %v8892, 1.442695
  %v8909 = vpow.pop %v8908
  %v8910 = vmul.f32 %v8893, 1.442695
  %v8911 = vpow.pop %v8910
  %v8912 = vmul.f32 %v8894, 1.442695
  %v8913 = vpow.pop %v8912
  %v8914 = vmul.f32 %v8895, 1.442695
  %v8915 = vpow.pop %v8914
  %v8916 = vmul.f32 %v8896, 1.442695
  %v8917 = vpow.pop %v8916
  %v8918 = vmul.f32 %v8897, 1.442695
  %v8919 = vpow.pop %v8918
  %v8920 = vmul.f32 %v8898, 1.442695
  %v8921 = vpow.pop %v8920
  %v8922 = vmul.f32 %v8899, 1.442695
  %v8923 = vpow.pop %v8922
  %v8924 = vmul.f32 %v8900, 1.442695
  %v8925 = vpow.pop %v8924
  %v8926 = vmul.f32 %v8901, 1.442695
  %v8927 = vpow.pop %v8926
  %v8928 = vmul.f32 %v8902, 1.442695
  %v8929 = vpow.pop %v8928
  %v8930 = vmul.f32 %v8903, 1.442695
  %v8931 = vpow.pop %v8930
  %v8932 = vmul.f32 %v8904, 1.442695
  %v8933 = vpow.pop %v8932
  %v8934 = vmul.f32 %v8905, 1.442695
  %v8935 = vpow.pop %v8934
  %v8936 = vmul.f32 %v8906, 1.442695
  %v8937 = vpow.pop %v8936
  %v8938 = vmul.f32 %v8907, 1.442695
  %v8939 = vpow.pop %v8938
  %v8940 = vadd.f32 %v8909, 1.0
  %v8941 = vadd.f32 %v8911, 1.0
  %v8942 = vadd.f32 %v8913, 1.0
  %v8943 = vadd.f32 %v8915, 1.0
  %v8944 = vadd.f32 %v8917, 1.0
  %v8945 = vadd.f32 %v8919, 1.0
  %v8946 = vadd.f32 %v8921, 1.0
  %v8947 = vadd.f32 %v8923, 1.0
  %v8948 = vadd.f32 %v8925, 1.0
  %v8949 = vadd.f32 %v8927, 1.0
  %v8950 = vadd.f32 %v8929, 1.0
  %v8951 = vadd.f32 %v8931, 1.0
  %v8952 = vadd.f32 %v8933, 1.0
  %v8953 = vadd.f32 %v8935, 1.0
  %v8954 = vadd.f32 %v8937, 1.0
  %v8955 = vadd.f32 %v8939, 1.0
  %v8956 = vrcp.pop %v8940
  %v8957 = vrcp.pop %v8941
  %v8958 = vrcp.pop %v8942
  %v8959 = vrcp.pop %v8943
  %v8960 = vrcp.pop %v8944
  %v8961 = vrcp.pop %v8945
  %v8962 = vrcp.pop %v8946
  %v8963 = vrcp.pop %v8947
  %v8964 = vrcp.pop %v8948
  %v8965 = vrcp.pop %v8949
  %v8966 = vrcp.pop %v8950
  %v8967 = vrcp.pop %v8951
  %v8968 = vrcp.pop %v8952
  %v8969 = vrcp.pop %v8953
  %v8970 = vrcp.pop %v8954
  %v8971 = vrcp.pop %v8955
  %v8972 = vpack.c.bf16 %v8957, %v8956
  %v8973 = vpack.c.bf16 %v8959, %v8958
  %v8974 = vpack.c.bf16 %v8961, %v8960
  %v8975 = vpack.c.bf16 %v8963, %v8962
  %v8976 = vpack.c.bf16 %v8965, %v8964
  %v8977 = vpack.c.bf16 %v8967, %v8966
  %v8978 = vpack.c.bf16 %v8969, %v8968
  %v8979 = vpack.c.bf16 %v8971, %v8970
  %8981 = vset.pattern.permute.xlu0 0
  %8982 = vperm.xlu0 %8981, %v8972
  %v8983 = vpop.permute.xlu0 %8982
  %8985 = vset.pattern.permute.xlu0 0
  %8986 = vperm.xlu0 %8985, %v8973
  %v8987 = vpop.permute.xlu0 %8986
  %8989 = vset.pattern.permute.xlu0 0
  %8990 = vperm.xlu0 %8989, %v8974
  %v8991 = vpop.permute.xlu0 %8990
  %8993 = vset.pattern.permute.xlu0 0
  %8994 = vperm.xlu0 %8993, %v8975
  %v8995 = vpop.permute.xlu0 %8994
  %8997 = vset.pattern.permute.xlu0 0
  %8998 = vperm.xlu0 %8997, %v8976
  %v8999 = vpop.permute.xlu0 %8998
  %9001 = vset.pattern.permute.xlu0 0
  %9002 = vperm.xlu0 %9001, %v8977
  %v9003 = vpop.permute.xlu0 %9002
  %9005 = vset.pattern.permute.xlu0 0
  %9006 = vperm.xlu0 %9005, %v8978
  %v9007 = vpop.permute.xlu0 %9006
  %9009 = vset.pattern.permute.xlu0 0
  %9010 = vperm.xlu0 %9009, %v8979
  %v9011 = vpop.permute.xlu0 %9010
  %v9021 = vunpack.c.l.s4 839922192
  %v9022 = vunpack.c.0.s8 %v9021
  %v9023 = vlaneseq
  %v9024 = vshrl.u32 %v9023, 7
  %v9025 = vsub.s32 %v9022, %v9024
  %v9026 = vrot.slane %v8983, %v9025
  %v9028 = vunpack.c.l.s4 1985246804
  %v9029 = vunpack.c.0.s8 %v9028
  %v9030 = vlaneseq
  %v9031 = vshrl.u32 %v9030, 7
  %v9032 = vsub.s32 %v9029, %v9031
  %v9033 = vrot.slane %v8983, %v9032
  %v9035 = vunpack.c.l.s4 839922192
  %v9036 = vunpack.c.0.s8 %v9035
  %v9037 = vlaneseq
  %v9038 = vshrl.u32 %v9037, 7
  %v9039 = vsub.s32 %v9036, %v9038
  %v9040 = vrot.slane %v8987, %v9039
  %v9042 = vunpack.c.l.s4 1985246804
  %v9043 = vunpack.c.0.s8 %v9042
  %v9044 = vlaneseq
  %v9045 = vshrl.u32 %v9044, 7
  %v9046 = vsub.s32 %v9043, %v9045
  %v9047 = vrot.slane %v8987, %v9046
  %v9049 = vunpack.c.l.s4 839922192
  %v9050 = vunpack.c.0.s8 %v9049
  %v9051 = vlaneseq
  %v9052 = vshrl.u32 %v9051, 7
  %v9053 = vsub.s32 %v9050, %v9052
  %v9054 = vrot.slane %v8991, %v9053
  %v9056 = vunpack.c.l.s4 1985246804
  %v9057 = vunpack.c.0.s8 %v9056
  %v9058 = vlaneseq
  %v9059 = vshrl.u32 %v9058, 7
  %v9060 = vsub.s32 %v9057, %v9059
  %v9061 = vrot.slane %v8991, %v9060
  %v9063 = vunpack.c.l.s4 839922192
  %v9064 = vunpack.c.0.s8 %v9063
  %v9065 = vlaneseq
  %v9066 = vshrl.u32 %v9065, 7
  %v9067 = vsub.s32 %v9064, %v9066
  %v9068 = vrot.slane %v8995, %v9067
  %v9070 = vunpack.c.l.s4 1985246804
  %v9071 = vunpack.c.0.s8 %v9070
  %v9072 = vlaneseq
  %v9073 = vshrl.u32 %v9072, 7
  %v9074 = vsub.s32 %v9071, %v9073
  %v9075 = vrot.slane %v8995, %v9074
  %v9077 = vunpack.c.l.s4 839922192
  %v9078 = vunpack.c.0.s8 %v9077
  %v9079 = vlaneseq
  %v9080 = vshrl.u32 %v9079, 7
  %v9081 = vsub.s32 %v9078, %v9080
  %v9082 = vrot.slane %v8999, %v9081
  %v9084 = vunpack.c.l.s4 1985246804
  %v9085 = vunpack.c.0.s8 %v9084
  %v9086 = vlaneseq
  %v9087 = vshrl.u32 %v9086, 7
  %v9088 = vsub.s32 %v9085, %v9087
  %v9089 = vrot.slane %v8999, %v9088
  %v9091 = vunpack.c.l.s4 839922192
  %v9092 = vunpack.c.0.s8 %v9091
  %v9093 = vlaneseq
  %v9094 = vshrl.u32 %v9093, 7
  %v9095 = vsub.s32 %v9092, %v9094
  %v9096 = vrot.slane %v9003, %v9095
  %v9098 = vunpack.c.l.s4 1985246804
  %v9099 = vunpack.c.0.s8 %v9098
  %v9100 = vlaneseq
  %v9101 = vshrl.u32 %v9100, 7
  %v9102 = vsub.s32 %v9099, %v9101
  %v9103 = vrot.slane %v9003, %v9102
  %v9105 = vunpack.c.l.s4 839922192
  %v9106 = vunpack.c.0.s8 %v9105
  %v9107 = vlaneseq
  %v9108 = vshrl.u32 %v9107, 7
  %v9109 = vsub.s32 %v9106, %v9108
  %v9110 = vrot.slane %v9007, %v9109
  %v9112 = vunpack.c.l.s4 1985246804
  %v9113 = vunpack.c.0.s8 %v9112
  %v9114 = vlaneseq
  %v9115 = vshrl.u32 %v9114, 7
  %v9116 = vsub.s32 %v9113, %v9115
  %v9117 = vrot.slane %v9007, %v9116
  %v9119 = vunpack.c.l.s4 839922192
  %v9120 = vunpack.c.0.s8 %v9119
  %v9121 = vlaneseq
  %v9122 = vshrl.u32 %v9121, 7
  %v9123 = vsub.s32 %v9120, %v9122
  %v9124 = vrot.slane %v9011, %v9123
  %v9126 = vunpack.c.l.s4 1985246804
  %v9127 = vunpack.c.0.s8 %v9126
  %v9128 = vlaneseq
  %v9129 = vshrl.u32 %v9128, 7
  %v9130 = vsub.s32 %v9127, %v9129
  %v9131 = vrot.slane %v9011, %v9130
  %9148 = vst [vmem:[%s9] sm:$0xf] %v9026
  %9149 = vst [vmem:[%s9 + $0x4] sm:$0xf] %v9033
  %9150 = vst [vmem:[%s9 + $0x8] sm:$0xf] %v9040
  %9151 = vst [vmem:[%s9 + $0xc] sm:$0xf] %v9047
  %9152 = vst [vmem:[%s9 + $0x10] sm:$0xf] %v9054
  %9153 = vst [vmem:[%s9 + $0x14] sm:$0xf] %v9061
  %9154 = vst [vmem:[%s9 + $0x18] sm:$0xf] %v9068
  %9155 = vst [vmem:[%s9 + $0x1c] sm:$0xf] %v9075
  %9156 = vst [vmem:[%s9 + $0x20] sm:$0xf] %v9082
  %9157 = vst [vmem:[%s9 + $0x24] sm:$0xf] %v9089
  %9158 = vst [vmem:[%s9 + $0x28] sm:$0xf] %v9096
  %9159 = vst [vmem:[%s9 + $0x2c] sm:$0xf] %v9103
  %9160 = vst [vmem:[%s9 + $0x30] sm:$0xf] %v9110
  %9161 = vst [vmem:[%s9 + $0x34] sm:$0xf] %v9117
  %9162 = vst [vmem:[%s9 + $0x38] sm:$0xf] %v9124
  %9163 = vst [vmem:[%s9 + $0x3c] sm:$0xf] %v9131
  // Predicated region
  $region38: #{discriminator_forward.1} parent=0 // pred_check
    _
  $region39: #{discriminator_forward.1} parent=0 // pred_check_branch
    %9165 = sbr.rel (0) target = $region41
  $region40: #{discriminator_forward.1} parent=0 // pred_region
    _
  $region41: #{discriminator_forward.1} parent=0 // pred_fallthru
    _
  // Predicated region
  $region42: #{discriminator_forward.1} parent=0 // pred_check
    _
  $region43: #{discriminator_forward.1} parent=0 // pred_check_branch
    %9167 = sbr.rel (0) target = $region45
  $region44: #{discriminator_forward.1} parent=0 // pred_region
    _
  $region45: #{discriminator_forward.1} parent=0 // pred_fallthru
    _

</llo_original>
